<compile_context>
chip_gen: v5e
topology: v5e:2x2
jax: 0.10.0
libtpu: 0.0.40
codegen_flags: <defaults>
</compile_context>

<pallas_src>
import math
import jax
import jax.numpy as jnp
from jax.experimental import pallas as pl
from jax.experimental.pallas import tpu as pltpu

H, W = 16, 16                       # small spatial size consistent with the module
CIN, C1, C2 = 2, 32, 64
KH = 3                              # 3x3 kernels
WCIN, WC1, WC2 = W * CIN, W * C1, W * C2


def _round_up(v, m):
    return ((v + m - 1) // m) * m


def _shift_rows(a, zero_row):
    """(row[y-1], row[y], row[y+1]) views of a (BB, H, D) value, zero-filled at
    the image border (== the 3x3 conv's dy taps with spatial zero padding)."""
    up = jnp.concatenate([zero_row, a[:, :H - 1, :]], axis=1)     # holds row y-1
    down = jnp.concatenate([a[:, 1:, :], zero_row], axis=1)       # holds row y+1
    return up, a, down


def cnn2_kernel(x_ref, w1_ref, b1_ref, w2_ref, b2_ref, fcw_ref, fcb_ref, out_ref):
    bb = x_ref.shape[0]

    # ---- conv1 (3x3, pad 1) + folded BN1 + ReLU: one (BB*H, 96)@(96, 512) matmul ----
    x = x_ref[...]                                                 # (BB, H, W*CIN) bf16
    z1 = jnp.zeros((bb, 1, WCIN), jnp.bfloat16)
    rows1 = jnp.concatenate(_shift_rows(x, z1), axis=-1)          # (BB, H, 3*W*CIN)
    rows1 = rows1.reshape(bb * H, KH * WCIN)
    h1 = jnp.dot(rows1, w1_ref[...],
                 preferred_element_type=jnp.float32) + b1_ref[...]
    h1 = jnp.maximum(h1, 0.0)                                      # (BB*H, W*C1) f32

    # ---- conv2 (3x3, pad 1) + folded BN2 + ReLU: one (BB*H, 1536)@(1536, 1024) matmul ----
    h1b = h1.astype(jnp.bfloat16).reshape(bb, H, WC1)
    z2 = jnp.zeros((bb, 1, WC1), jnp.bfloat16)
    rows2 = jnp.concatenate(_shift_rows(h1b, z2), axis=-1)        # (BB, H, 3*W*C1)
    rows2 = rows2.reshape(bb * H, KH * WC1)
    h2 = jnp.dot(rows2, w2_ref[...],
                 preferred_element_type=jnp.float32) + b2_ref[...]
    h2 = jnp.maximum(h2, 0.0)                                      # (BB*H, W*C2) f32

    # ---- mean over (H, W) + Linear(64 -> 1), fused on the VPU ----------------
    # fcw_ref already holds fc_w[c] / (H*W) tiled over x, so
    #   logits[b] = sum_{y,x,c} h2[b,y,x*C2+c] * fcw[x*C2+c] + fc_b.
    contrib = h2 * fcw_ref[...]                                    # (BB*H, W*C2) f32
    per_row = jnp.sum(contrib.reshape(bb, H, WC2), axis=-1)        # (BB, H)
    per_img = jnp.sum(per_row, axis=-1)                            # (BB,)
    logits = per_img[None, :] + fcb_ref[...]                       # (1, BB)
    out_ref[...] = logits[None]                                    # (1, 1, BB) lane-dense


def cnn2_cmnist_forward(x_nchw, params, *, block_images=32):
    """x_nchw: (N, 2, H, W) float32 like the PyTorch module. Returns {'logits': (N,)}.

    block_images: images per grid step. 32 fits every generation; v5e/v6e
    (128 MiB VMEM) can use 64; on v7x keep it <= 48 and ensure N > BB so the
    "parallel" grid axis spans both TensorCores.
    """
    n = x_nchw.shape[0]
    w1t, b1r, w2t, b2r, fcw_t, fcb = params

    bb = min(_round_up(block_images, 8), _round_up(n, 8))
    n_pad = _round_up(n, bb)
    g = n_pad // bb

    # NCHW -> (N, H, W*CIN) with CIN minor (NHWC rows), bf16 input DMA.
    x_rows = jnp.transpose(x_nchw, (0, 2, 3, 1)).reshape(n, H, WCIN).astype(jnp.bfloat16)
    if n_pad != n:
        x_rows = jnp.pad(x_rows, ((0, n_pad - n), (0, 0), (0, 0)))

    out = pl.pallas_call(
        cnn2_kernel,
        out_shape=jax.ShapeDtypeStruct((g, 1, bb), jnp.float32),
        grid_spec=pltpu.PrefetchScalarGridSpec(
            num_scalar_prefetch=0,
            grid=(g,),
            in_specs=[
                pl.BlockSpec((bb, H, WCIN), lambda i: (i, 0, 0)),
                pl.BlockSpec((KH * WCIN, WC1), lambda i: (0, 0)),
                pl.BlockSpec((1, WC1), lambda i: (0, 0)),
                pl.BlockSpec((KH * WC1, WC2), lambda i: (0, 0)),
                pl.BlockSpec((1, WC2), lambda i: (0, 0)),
                pl.BlockSpec((1, WC2), lambda i: (0, 0)),
                pl.BlockSpec((1, 1), lambda i: (0, 0)),
            ],
            out_specs=pl.BlockSpec((1, 1, bb), lambda i: (i, 0, 0)),
        ),
        compiler_params=pltpu.CompilerParams(
            dimension_semantics=("parallel",),     # independent image blocks
            vmem_limit_bytes=48 * 1024 * 1024,     # safe on v7x (64 MiB physical)
        ),
    )(x_rows, w1t, b1r, w2t, b2r, fcw_t, fcb)

    logits = out.reshape(-1)[:n]
    # TODO(synk): torch.squeeze returns a 0-d tensor when N == 1; we always return (N,).
    return {'logits': logits}


def _toeplitz_rowconv_weights(w):
    """(Cout, Cin, 3, 3) conv weight -> (3*W*Cin, W*Cout) banded row-conv matrix.

    Row index  = dy*W*Cin + x_in*Cin + ci   (matches concat([row y-1, y, y+1]))
    Col index  = x_out*Cout + co
    Entry      = w[co, ci, dy, dx] with x_in = x_out + dx - 1 (zero outside the band).
    """
    cout, cin, kh, kw = w.shape
    wt = jnp.transpose(w, (2, 3, 1, 0))                    # (dy, dx, ci, co)
    out = jnp.zeros((kh, W, cin, W, cout), jnp.float32)
    for dx in range(kw):
        band = jnp.eye(W, W, k=1 - dx, dtype=jnp.float32)  # band[x_in, x_out]
        out = out + band[None, :, None, :, None] * wt[:, dx][:, None, :, None, :]
    return out.reshape(kh * W * cin, W * cout)


def make_params(key):
    ks = jax.random.split(key, 10)
    eps = 1e-5

    def xavier(k, shape):  # (Cout, Cin, kh, kw), like nn.init.xavier_uniform_
        fan_in = shape[1] * shape[2] * shape[3]
        fan_out = shape[0] * shape[2] * shape[3]
        a = math.sqrt(6.0 / (fan_in + fan_out))
        return jax.random.uniform(k, shape, jnp.float32, -a, a)

    # conv1: 2 -> 32
    w1 = xavier(ks[0], (C1, CIN, 3, 3))
    bnd1 = 1.0 / math.sqrt(CIN * 9)
    b1 = jax.random.uniform(ks[1], (C1,), jnp.float32, -bnd1, bnd1)
    g1 = 1.0 + 0.1 * jax.random.normal(ks[2], (C1,), jnp.float32)
    bt1 = 0.1 * jax.random.normal(ks[3], (C1,), jnp.float32)
    rm1, rv1 = jnp.zeros((C1,), jnp.float32), jnp.ones((C1,), jnp.float32)

    # conv2: 32 -> 64
    w2 = xavier(ks[4], (C2, C1, 3, 3))
    bnd2 = 1.0 / math.sqrt(C1 * 9)
    b2 = jax.random.uniform(ks[5], (C2,), jnp.float32, -bnd2, bnd2)
    g2 = 1.0 + 0.1 * jax.random.normal(ks[6], (C2,), jnp.float32)
    bt2 = 0.1 * jax.random.normal(ks[7], (C2,), jnp.float32)
    rm2, rv2 = jnp.zeros((C2,), jnp.float32), jnp.ones((C2,), jnp.float32)

    # fc: Linear_customize(64, 1) assumed nn.Linear-like
    bndf = 1.0 / math.sqrt(C2)
    fc_w = jax.random.uniform(ks[8], (1, C2), jnp.float32, -bndf, bndf)
    fc_b = jax.random.uniform(ks[9], (1,), jnp.float32, -bndf, bndf)

    # fold eval-mode BN into the convolutions
    s1 = g1 / jnp.sqrt(rv1 + eps)
    w1f = w1 * s1[:, None, None, None]
    b1f = (b1 - rm1) * s1 + bt1
    s2 = g2 / jnp.sqrt(rv2 + eps)
    w2f = w2 * s2[:, None, None, None]
    b2f = (b2 - rm2) * s2 + bt2

    # row-level (Toeplitz) matmul weights, bf16 for the MXU
    w1t = _toeplitz_rowconv_weights(w1f).astype(jnp.bfloat16)   # (96, 512)
    w2t = _toeplitz_rowconv_weights(w2f).astype(jnp.bfloat16)   # (1536, 1024)
    b1r = jnp.tile(b1f, (W,)).reshape(1, WC1)                   # bias tiled over x
    b2r = jnp.tile(b2f, (W,)).reshape(1, WC2)
    # fc weight tiled over x with the 1/(H*W) mean factor folded in
    fcw_t = (jnp.tile(fc_w[0], (W,)) / float(H * W)).reshape(1, WC2)
    fcb = fc_b.reshape(1, 1)

    return (w1t, b1r, w2t, b2r, fcw_t, fcb)


if __name__ == "__main__":
    key = jax.random.PRNGKey(0)
    kx, kp = jax.random.split(key)
    x = jax.random.normal(kx, (2, CIN, H, W), jnp.float32)   # NCHW, like PyTorch
    params = make_params(kp)
    out = cnn2_cmnist_forward(x, params)
    jax.block_until_ready(out['logits'])
    assert out['logits'].shape == (2,)
    print("KERNEL_OK")
</pallas_src>

<mosaic_0001>
module attributes {stable_mosaic.version = 11 : i64} {
  func.func @cnn2_kernel(%arg0: i32, %arg1: memref<8x16x32xbf16, #tpu.memory_space<vmem>>, %arg2: memref<96x512xbf16, #tpu.memory_space<vmem>>, %arg3: memref<1x512xf32, #tpu.memory_space<vmem>>, %arg4: memref<1536x1024xbf16, #tpu.memory_space<vmem>>, %arg5: memref<1x1024xf32, #tpu.memory_space<vmem>>, %arg6: memref<1x1024xf32, #tpu.memory_space<vmem>>, %arg7: memref<1x1xf32, #tpu.memory_space<vmem>>, %arg8: memref<1x1x8xf32, #tpu.memory_space<vmem>>) attributes {dimension_semantics = [#tpu.dimension_semantics<parallel>], iteration_bounds = array<i64: 1>, scalar_prefetch = 0 : i64, scratch_operands = 0 : i64, tpu.core_type = #tpu.core_type<tc>, window_params = [{transform_indices = @transform_0, window_bounds = array<i64: 8, 16, 32>}, {pipeline_mode = #tpu.pipeline_mode<synchronous>, transform_indices = @transform_1, window_bounds = array<i64: 96, 512>}, {pipeline_mode = #tpu.pipeline_mode<synchronous>, transform_indices = @transform_2, window_bounds = array<i64: 1, 512>}, {pipeline_mode = #tpu.pipeline_mode<synchronous>, transform_indices = @transform_3, window_bounds = array<i64: 1536, 1024>}, {pipeline_mode = #tpu.pipeline_mode<synchronous>, transform_indices = @transform_4, window_bounds = array<i64: 1, 1024>}, {pipeline_mode = #tpu.pipeline_mode<synchronous>, transform_indices = @transform_5, window_bounds = array<i64: 1, 1024>}, {pipeline_mode = #tpu.pipeline_mode<synchronous>, transform_indices = @transform_6, window_bounds = array<i64: 1, 1>}, {transform_indices = @transform_7, window_bounds = array<i64: 1, 1, 8>}]} {
    %c0 = arith.constant 0 : index
    %c0_0 = arith.constant 0 : index
    %c0_1 = arith.constant 0 : index
    %0 = vector.load %arg1[%c0, %c0_0, %c0_1] : memref<8x16x32xbf16, #tpu.memory_space<vmem>>, vector<8x16x32xbf16>
    %cst = arith.constant 0.000000e+00 : bf16
    %1 = vector.broadcast %cst : bf16 to vector<8x1x32xbf16>
    %2 = vector.extract_strided_slice %0 {offsets = [0, 0, 0], sizes = [8, 15, 32], strides = [1, 1, 1]} : vector<8x16x32xbf16> to vector<8x15x32xbf16>
    %3 = tpu.concatenate %1, %2 in 1 : vector<8x1x32xbf16>, vector<8x15x32xbf16> -> vector<8x16x32xbf16>
    %4 = vector.extract_strided_slice %0 {offsets = [0, 1, 0], sizes = [8, 15, 32], strides = [1, 1, 1]} : vector<8x16x32xbf16> to vector<8x15x32xbf16>
    %5 = tpu.concatenate %4, %1 in 1 : vector<8x15x32xbf16>, vector<8x1x32xbf16> -> vector<8x16x32xbf16>
    %6 = tpu.concatenate %3, %0, %5 in 2 : vector<8x16x32xbf16>, vector<8x16x32xbf16>, vector<8x16x32xbf16> -> vector<8x16x96xbf16>
    %7 = vector.shape_cast %6 : vector<8x16x96xbf16> to vector<128x96xbf16>
    %c0_2 = arith.constant 0 : index
    %c0_3 = arith.constant 0 : index
    %8 = vector.load %arg2[%c0_2, %c0_3] : memref<96x512xbf16, #tpu.memory_space<vmem>>, vector<96x512xbf16>
    %cst_4 = arith.constant dense<0.000000e+00> : vector<128x512xf32>
    %9 = tpu.matmul %7, %8, %cst_4 {dimension_numbers = #tpu.dot_dimension_numbers<[1], [0], [0], [1], [0, 0, 1, 1], [], []>} : vector<128x96xbf16>, vector<96x512xbf16>, vector<128x512xf32> -> vector<128x512xf32>
    %c0_5 = arith.constant 0 : index
    %c0_6 = arith.constant 0 : index
    %10 = vector.load %arg3[%c0_5, %c0_6] : memref<1x512xf32, #tpu.memory_space<vmem>>, vector<1x512xf32>
    %11 = vector.broadcast %10 : vector<1x512xf32> to vector<128x512xf32>
    %12 = arith.addf %9, %11 : vector<128x512xf32>
    %cst_7 = arith.constant 0.000000e+00 : f32
    %13 = vector.broadcast %cst_7 : f32 to vector<128x512xf32>
    %14 = arith.maximumf %12, %13 : vector<128x512xf32>
    %15 = arith.truncf %14 : vector<128x512xf32> to vector<128x512xbf16>
    %16 = vector.shape_cast %15 : vector<128x512xbf16> to vector<8x16x512xbf16>
    %cst_8 = arith.constant 0.000000e+00 : bf16
    %17 = vector.broadcast %cst_8 : bf16 to vector<8x1x512xbf16>
    %18 = vector.extract_strided_slice %16 {offsets = [0, 0, 0], sizes = [8, 15, 512], strides = [1, 1, 1]} : vector<8x16x512xbf16> to vector<8x15x512xbf16>
    %19 = tpu.concatenate %17, %18 in 1 : vector<8x1x512xbf16>, vector<8x15x512xbf16> -> vector<8x16x512xbf16>
    %20 = vector.extract_strided_slice %16 {offsets = [0, 1, 0], sizes = [8, 15, 512], strides = [1, 1, 1]} : vector<8x16x512xbf16> to vector<8x15x512xbf16>
    %21 = tpu.concatenate %20, %17 in 1 : vector<8x15x512xbf16>, vector<8x1x512xbf16> -> vector<8x16x512xbf16>
    %22 = tpu.concatenate %19, %16, %21 in 2 : vector<8x16x512xbf16>, vector<8x16x512xbf16>, vector<8x16x512xbf16> -> vector<8x16x1536xbf16>
    %23 = vector.shape_cast %22 : vector<8x16x1536xbf16> to vector<128x1536xbf16>
    %c0_9 = arith.constant 0 : index
    %c0_10 = arith.constant 0 : index
    %24 = vector.load %arg4[%c0_9, %c0_10] : memref<1536x1024xbf16, #tpu.memory_space<vmem>>, vector<1536x1024xbf16>
    %cst_11 = arith.constant dense<0.000000e+00> : vector<128x1024xf32>
    %25 = tpu.matmul %23, %24, %cst_11 {dimension_numbers = #tpu.dot_dimension_numbers<[1], [0], [0], [1], [0, 0, 1, 1], [], []>} : vector<128x1536xbf16>, vector<1536x1024xbf16>, vector<128x1024xf32> -> vector<128x1024xf32>
    %c0_12 = arith.constant 0 : index
    %c0_13 = arith.constant 0 : index
    %26 = vector.load %arg5[%c0_12, %c0_13] : memref<1x1024xf32, #tpu.memory_space<vmem>>, vector<1x1024xf32>
    %27 = vector.broadcast %26 : vector<1x1024xf32> to vector<128x1024xf32>
    %28 = arith.addf %25, %27 : vector<128x1024xf32>
    %cst_14 = arith.constant 0.000000e+00 : f32
    %29 = vector.broadcast %cst_14 : f32 to vector<128x1024xf32>
    %30 = arith.maximumf %28, %29 : vector<128x1024xf32>
    %c0_15 = arith.constant 0 : index
    %c0_16 = arith.constant 0 : index
    %31 = vector.load %arg6[%c0_15, %c0_16] : memref<1x1024xf32, #tpu.memory_space<vmem>>, vector<1x1024xf32>
    %32 = vector.broadcast %31 : vector<1x1024xf32> to vector<128x1024xf32>
    %33 = arith.mulf %30, %32 : vector<128x1024xf32>
    %34 = vector.shape_cast %33 : vector<128x1024xf32> to vector<8x16x1024xf32>
    %cst_17 = arith.constant dense<0.000000e+00> : vector<8x16xf32>
    %35 = vector.multi_reduction <add>, %34, %cst_17 [2] : vector<8x16x1024xf32> to vector<8x16xf32>
    %cst_18 = arith.constant dense<0.000000e+00> : vector<8xf32>
    %36 = vector.multi_reduction <add>, %35, %cst_18 [1] : vector<8x16xf32> to vector<8xf32>
    %37 = vector.shape_cast %36 : vector<8xf32> to vector<1x8xf32>
    %c0_19 = arith.constant 0 : index
    %c0_20 = arith.constant 0 : index
    %38 = vector.load %arg7[%c0_19, %c0_20] : memref<1x1xf32, #tpu.memory_space<vmem>>, vector<1x1xf32>
    %39 = vector.broadcast %38 : vector<1x1xf32> to vector<1x8xf32>
    %40 = arith.addf %37, %39 : vector<1x8xf32>
    %41 = vector.shape_cast %40 : vector<1x8xf32> to vector<1x1x8xf32>
    %c0_21 = arith.constant 0 : index
    %c0_22 = arith.constant 0 : index
    %c0_23 = arith.constant 0 : index
    %42 = vector.load %arg8[%c0_21, %c0_22, %c0_23] : memref<1x1x8xf32, #tpu.memory_space<vmem>>, vector<1x1x8xf32>
    tpu.vector_store %arg8[%c0_21, %c0_22, %c0_23], %41 {strides = array<i32>} : memref<1x1x8xf32, #tpu.memory_space<vmem>>, vector<1x1x8xf32>,
    return
  }
  func.func @transform_0(%arg0: i32) -> (i32, i32, i32) {
    %c0_i32 = arith.constant 0 : i32
    %c0_i32_0 = arith.constant 0 : i32
    %c0_i32_1 = arith.constant 0 : i32
    return %arg0, %c0_i32, %c0_i32_0 : i32, i32, i32
  }
  func.func @transform_1(%arg0: i32) -> (i32, i32) {
    %c0_i32 = arith.constant 0 : i32
    %c0_i32_0 = arith.constant 0 : i32
    %c0_i32_1 = arith.constant 0 : i32
    return %c0_i32, %c0_i32_0 : i32, i32
  }
  func.func @transform_2(%arg0: i32) -> (i32, i32) {
    %c0_i32 = arith.constant 0 : i32
    %c0_i32_0 = arith.constant 0 : i32
    %c0_i32_1 = arith.constant 0 : i32
    return %c0_i32, %c0_i32_0 : i32, i32
  }
  func.func @transform_3(%arg0: i32) -> (i32, i32) {
    %c0_i32 = arith.constant 0 : i32
    %c0_i32_0 = arith.constant 0 : i32
    %c0_i32_1 = arith.constant 0 : i32
    return %c0_i32, %c0_i32_0 : i32, i32
  }
  func.func @transform_4(%arg0: i32) -> (i32, i32) {
    %c0_i32 = arith.constant 0 : i32
    %c0_i32_0 = arith.constant 0 : i32
    %c0_i32_1 = arith.constant 0 : i32
    return %c0_i32, %c0_i32_0 : i32, i32
  }
  func.func @transform_5(%arg0: i32) -> (i32, i32) {
    %c0_i32 = arith.constant 0 : i32
    %c0_i32_0 = arith.constant 0 : i32
    %c0_i32_1 = arith.constant 0 : i32
    return %c0_i32, %c0_i32_0 : i32, i32
  }
  func.func @transform_6(%arg0: i32) -> (i32, i32) {
    %c0_i32 = arith.constant 0 : i32
    %c0_i32_0 = arith.constant 0 : i32
    %c0_i32_1 = arith.constant 0 : i32
    return %c0_i32, %c0_i32_0 : i32, i32
  }
  func.func @transform_7(%arg0: i32) -> (i32, i32, i32) {
    %c0_i32 = arith.constant 0 : i32
    %c0_i32_0 = arith.constant 0 : i32
    %c0_i32_1 = arith.constant 0 : i32
    return %arg0, %c0_i32, %c0_i32_0 : i32, i32, i32
  }
}

</mosaic_0001>

<llo_original>
// kernel: tpu_custom_call.1
$region0: #{tpu_custom_call.1}
  #allocation0 [shape = 'u32[]', space=smem, size = 0x4, offset = 0x4, fixed_abs, tag = 'smem constant byte address 0x4 - core index']
  #allocation1 [shape = 'u32[72,128]{1,0:T(1,128)}', space=vmem, size = 0x9000, scoped, tag = 'internal scratch']
  #allocation2 [shape = 'f32[1,1]{1,0:T(1,128)S(1)}', space=vmem, size = 0x200, scoped, tag = 'scoped memory for tpu_custom_call.1']
  %s0 = inlined_call_operand.hbm [shape: bf16[8,16,32], index: 0, kind: input, shape index: {}]
  %s1 = inlined_call_operand.hbm [shape: bf16[96,512], index: 1, kind: input, shape index: {}]
  %s2 = inlined_call_operand.hbm [shape: f32[1,512], index: 2, kind: input, shape index: {}]
  %s3 = inlined_call_operand.hbm [shape: bf16[1536,1024], index: 3, kind: input, shape index: {}]
  %s4 = inlined_call_operand.hbm [shape: f32[1,1024], index: 4, kind: input, shape index: {}]
  %s5 = inlined_call_operand.hbm [shape: f32[1,1024], index: 5, kind: input, shape index: {}]
  %s6 = inlined_call_operand.<no memory space> [shape: f32[1,1], index: 6, kind: input, shape index: {}]
  %s7 = inlined_call_operand.hbm [shape: f32[1,1,8], index: 7, kind: output, shape index: {}]
  %s8 = sld [smem:[#allocation0]]
  $region62: #{tpu_custom_call.1} parent=0
    _
  %s10 = ssub.s32 1, %s8
  %s11 = scalar_select 0, %s10, %s8
  %v12 = vstv %s6
  %13 = vst [vmem:[#allocation2] sm:$0x1] %v12
  $region1: #{tpu_custom_call.1} parent=0
    #allocation3 [shape = 'u8[32768]{0}', space=vmem, size = 0x8000, scoped, tag = 'input window, operand 0, single buffered']
    #allocation4 [shape = 's32[1]{0}', space=sflag, size = 0x4, scoped, tag = 'scoped memory for tpu_custom_call.1']
    #allocation5 [shape = 's32[1]{0}', space=sflag, size = 0x4, scoped, tag = 'scoped memory for tpu_custom_call.1']
    #allocation6 [shape = 'u8[98304]{0}', space=vmem, size = 0x18000, scoped, tag = 'input window, operand 1, single buffered']
    #allocation7 [shape = 's32[1]{0}', space=sflag, size = 0x4, scoped, tag = 'scoped memory for tpu_custom_call.1']
    #allocation8 [shape = 'u8[2048]{0}', space=vmem, size = 0x800, scoped, tag = 'input window, operand 2, single buffered']
    #allocation9 [shape = 'u8[3145728]{0}', space=vmem, size = 0x300000, scoped, tag = 'input window, operand 3, single buffered']
    #allocation10 [shape = 's32[1]{0}', space=sflag, size = 0x4, scoped, tag = 'scoped memory for tpu_custom_call.1']
    #allocation11 [shape = 'u8[4096]{0}', space=vmem, size = 0x1000, scoped, tag = 'input window, operand 4, single buffered']
    #allocation12 [shape = 'u8[4096]{0}', space=vmem, size = 0x1000, scoped, tag = 'input window, operand 5, single buffered']
    #allocation13 [shape = 's32[1]{0}', space=sflag, size = 0x4, scoped, tag = 'scoped memory for tpu_custom_call.1']
    #allocation14 [shape = 'u8[512]{0}', space=vmem, size = 0x400, scoped, tag = 'output window, operand 0, single buffered']
    %14 = vsyncpa [#allocation4], 0
    %15 = vsyncpa [#allocation7], 0
    %16 = vsyncpa [#allocation10], 0
    %17 = vsyncpa [#allocation13], 0
    %18 = vsyncpa [#allocation5], 0
    // Predicated region
    $region2: #{tpu_custom_call.1} parent=1 // pred_check
      _
    $region3: #{tpu_custom_call.1} parent=1 // pred_check_branch
      %20 = sbr.rel (0) target = $region5
    $region4: #{tpu_custom_call.1} parent=1 // pred_region
      %22 = vsyncadd [#allocation4], 0
      %s23 = sshll.u32 %s0, 4
      %s24 = int_to_ptr.hbm [resolvable:$true] %s23
      %s25 = sshll.u32 [#allocation3], 4
      %s26 = int_to_ptr.vmem [resolvable:$true] %s25
      %31 = dma.hbm_to_vmem [thread:$0]  %s24, 1024, %s26, [#allocation4], 64, 64, 4
    $region5: #{tpu_custom_call.1} parent=1 // pred_fallthru
      _
    // Predicated region
    $region6: #{tpu_custom_call.1} parent=1 // pred_check
      _
    $region7: #{tpu_custom_call.1} parent=1 // pred_check_branch
      %33 = sbr.rel (0) target = $region9
    $region8: #{tpu_custom_call.1} parent=1 // pred_region
      %35 = vsyncadd [#allocation7], 0
      %s36 = sshll.u32 %s1, 4
      %s37 = int_to_ptr.hbm [resolvable:$true] %s36
      %s38 = sshll.u32 [#allocation6], 4
      %s39 = int_to_ptr.vmem [resolvable:$true] %s38
      %44 = dma.hbm_to_vmem [thread:$0]  %s37, 3072, %s39, [#allocation7], 256, 256, 16
    $region9: #{tpu_custom_call.1} parent=1 // pred_fallthru
      _
    // Predicated region
    $region10: #{tpu_custom_call.1} parent=1 // pred_check
      _
    $region11: #{tpu_custom_call.1} parent=1 // pred_check_branch
      %46 = sbr.rel (0) target = $region13
    $region12: #{tpu_custom_call.1} parent=1 // pred_region
      %48 = vsyncadd [#allocation7], 0
      %s50 = sshll.u32 %s2, 4
      %s51 = int_to_ptr.hbm [resolvable:$true] %s50
      %s52 = sshll.u32 [#allocation8], 4
      %s53 = int_to_ptr.vmem [resolvable:$true] %s52
      %55 = dma.hbm_to_vmem [thread:$0]  %s51, 64, %s53, [#allocation7]
    $region13: #{tpu_custom_call.1} parent=1 // pred_fallthru
      _
    // Predicated region
    $region14: #{tpu_custom_call.1} parent=1 // pred_check
      _
    $region15: #{tpu_custom_call.1} parent=1 // pred_check_branch
      %57 = sbr.rel (0) target = $region17
    $region16: #{tpu_custom_call.1} parent=1 // pred_region
      %59 = vsyncadd [#allocation10], 0
      %s60 = sshll.u32 %s3, 4
      %s61 = int_to_ptr.hbm [resolvable:$true] %s60
      %s62 = sshll.u32 [#allocation9], 4
      %s63 = int_to_ptr.vmem [resolvable:$true] %s62
      %68 = dma.hbm_to_vmem [thread:$0]  %s61, 98304, %s63, [#allocation10], 512, 512, 32
    $region17: #{tpu_custom_call.1} parent=1 // pred_fallthru
      _
    // Predicated region
    $region18: #{tpu_custom_call.1} parent=1 // pred_check
      _
    $region19: #{tpu_custom_call.1} parent=1 // pred_check_branch
      %70 = sbr.rel (0) target = $region21
    $region20: #{tpu_custom_call.1} parent=1 // pred_region
      %72 = vsyncadd [#allocation10], 0
      %s74 = sshll.u32 %s4, 4
      %s75 = int_to_ptr.hbm [resolvable:$true] %s74
      %s76 = sshll.u32 [#allocation11], 4
      %s77 = int_to_ptr.vmem [resolvable:$true] %s76
      %79 = dma.hbm_to_vmem [thread:$0]  %s75, 128, %s77, [#allocation10]
    $region21: #{tpu_custom_call.1} parent=1 // pred_fallthru
      _
    // Predicated region
    $region22: #{tpu_custom_call.1} parent=1 // pred_check
      _
    $region23: #{tpu_custom_call.1} parent=1 // pred_check_branch
      %81 = sbr.rel (0) target = $region25
    $region24: #{tpu_custom_call.1} parent=1 // pred_region
      %83 = vsyncadd [#allocation13], 0
      %s85 = sshll.u32 %s5, 4
      %s86 = int_to_ptr.hbm [resolvable:$true] %s85
      %s87 = sshll.u32 [#allocation12], 4
      %s88 = int_to_ptr.vmem [resolvable:$true] %s87
      %90 = dma.hbm_to_vmem [thread:$0]  %s86, 128, %s88, [#allocation13]
    $region25: #{tpu_custom_call.1} parent=1 // pred_fallthru
      _
    // Predicated region
    $region26: #{tpu_custom_call.1} parent=1 // pred_check
      _
    $region27: #{tpu_custom_call.1} parent=1 // pred_check_branch
      %92 = sbr.rel (0) target = $region29
    $region28: #{tpu_custom_call.1} parent=1 // pred_region
      _
    $region29: #{tpu_custom_call.1} parent=1 // pred_fallthru
      _
    // Predicated region
    $region30: #{tpu_custom_call.1} parent=1 // pred_check
      _
    $region31: #{tpu_custom_call.1} parent=1 // pred_check_branch
      %94 = sbr.rel (0) target = $region33
    $region32: #{tpu_custom_call.1} parent=1 // pred_region
      %96 = dma.done [#allocation4], 1024
    $region33: #{tpu_custom_call.1} parent=1 // pred_fallthru
      _
    // Predicated region
    $region34: #{tpu_custom_call.1} parent=1 // pred_check
      _
    $region35: #{tpu_custom_call.1} parent=1 // pred_check_branch
      %98 = sbr.rel (0) target = $region37
    $region36: #{tpu_custom_call.1} parent=1 // pred_region
      %100 = dma.done [#allocation7], 3072
    $region37: #{tpu_custom_call.1} parent=1 // pred_fallthru
      _
    // Predicated region
    $region38: #{tpu_custom_call.1} parent=1 // pred_check
      _
    $region39: #{tpu_custom_call.1} parent=1 // pred_check_branch
      %102 = sbr.rel (0) target = $region41
    $region40: #{tpu_custom_call.1} parent=1 // pred_region
      %104 = dma.done [#allocation7], 64
    $region41: #{tpu_custom_call.1} parent=1 // pred_fallthru
      _
    // Predicated region
    $region42: #{tpu_custom_call.1} parent=1 // pred_check
      _
    $region43: #{tpu_custom_call.1} parent=1 // pred_check_branch
      %106 = sbr.rel (0) target = $region45
    $region44: #{tpu_custom_call.1} parent=1 // pred_region
      %108 = dma.done [#allocation10], 98304
    $region45: #{tpu_custom_call.1} parent=1 // pred_fallthru
      _
    // Predicated region
    $region46: #{tpu_custom_call.1} parent=1 // pred_check
      _
    $region47: #{tpu_custom_call.1} parent=1 // pred_check_branch
      %110 = sbr.rel (0) target = $region49
    $region48: #{tpu_custom_call.1} parent=1 // pred_region
      %112 = dma.done [#allocation10], 128
    $region49: #{tpu_custom_call.1} parent=1 // pred_fallthru
      _
    // Predicated region
    $region50: #{tpu_custom_call.1} parent=1 // pred_check
      _
    $region51: #{tpu_custom_call.1} parent=1 // pred_check_branch
      %114 = sbr.rel (0) target = $region53
    $region52: #{tpu_custom_call.1} parent=1 // pred_region
      %116 = dma.done [#allocation13], 128
    $region53: #{tpu_custom_call.1} parent=1 // pred_fallthru
      _
    %v118 = vld [vmem:[#allocation3] sm:$0xf]
    %v119 = vld [vmem:[#allocation3 + $0x4] sm:$0xf]
    %v120 = vld [vmem:[#allocation3 + $0x8] sm:$0xf]
    %v121 = vld [vmem:[#allocation3 + $0xc] sm:$0xf]
    %v122 = vld [vmem:[#allocation3 + $0x10] sm:$0xf]
    %v123 = vld [vmem:[#allocation3 + $0x14] sm:$0xf]
    %v124 = vld [vmem:[#allocation3 + $0x18] sm:$0xf]
    %v125 = vld [vmem:[#allocation3 + $0x1c] sm:$0xf]
    %v126 = vld [vmem:[#allocation3 + $0x20] sm:$0xf]
    %v127 = vld [vmem:[#allocation3 + $0x24] sm:$0xf]
    %v128 = vld [vmem:[#allocation3 + $0x28] sm:$0xf]
    %v129 = vld [vmem:[#allocation3 + $0x2c] sm:$0xf]
    %v130 = vld [vmem:[#allocation3 + $0x30] sm:$0xf]
    %v131 = vld [vmem:[#allocation3 + $0x34] sm:$0xf]
    %v132 = vld [vmem:[#allocation3 + $0x38] sm:$0xf]
    %v133 = vld [vmem:[#allocation3 + $0x3c] sm:$0xf]
    %v150 = vunpack.c.l.b16 %v118
    %v151 = vunpack.c.l.b16 %v119
    %v152 = vunpack.c.l.b16 %v120
    %v153 = vunpack.c.l.b16 %v121
    %v154 = vunpack.c.l.b16 %v122
    %v155 = vunpack.c.l.b16 %v123
    %v156 = vunpack.c.l.b16 %v124
    %v157 = vunpack.c.l.b16 %v125
    %v158 = vunpack.c.l.b16 %v126
    %v159 = vunpack.c.l.b16 %v127
    %v160 = vunpack.c.l.b16 %v128
    %v161 = vunpack.c.l.b16 %v129
    %v162 = vunpack.c.l.b16 %v130
    %v163 = vunpack.c.l.b16 %v131
    %v164 = vunpack.c.l.b16 %v132
    %v165 = vunpack.c.l.b16 %v133
    %v166 = vpack.c.b16 %v151, %v150
    %v167 = vpack.c.b16 %v153, %v152
    %v168 = vpack.c.b16 %v155, %v154
    %v169 = vpack.c.b16 %v157, %v156
    %v170 = vpack.c.b16 %v159, %v158
    %v171 = vpack.c.b16 %v161, %v160
    %v172 = vpack.c.b16 %v163, %v162
    %v173 = vpack.c.b16 %v165, %v164
    %v175 = vshrl.u32 %v166, 16
    %v177 = vrot.slane %v175, 7
    %v178 = vshll.u32 %v166, 16
    %v180 = vor.u32 %v177, %v178
    %v182 = vshrl.u32 %v167, 16
    %v184 = vrot.slane %v182, 7
    %v185 = vshll.u32 %v167, 16
    %v187 = vor.u32 %v184, %v185
    %v189 = vshrl.u32 %v168, 16
    %v191 = vrot.slane %v189, 7
    %v192 = vshll.u32 %v168, 16
    %v194 = vor.u32 %v191, %v192
    %v196 = vshrl.u32 %v169, 16
    %v198 = vrot.slane %v196, 7
    %v199 = vshll.u32 %v169, 16
    %v201 = vor.u32 %v198, %v199
    %v203 = vshrl.u32 %v170, 16
    %v205 = vrot.slane %v203, 7
    %v206 = vshll.u32 %v170, 16
    %v208 = vor.u32 %v205, %v206
    %v210 = vshrl.u32 %v171, 16
    %v212 = vrot.slane %v210, 7
    %v213 = vshll.u32 %v171, 16
    %v215 = vor.u32 %v212, %v213
    %v217 = vshrl.u32 %v172, 16
    %v219 = vrot.slane %v217, 7
    %v220 = vshll.u32 %v172, 16
    %v222 = vor.u32 %v219, %v220
    %v224 = vshrl.u32 %v173, 16
    %v226 = vrot.slane %v224, 7
    %v227 = vshll.u32 %v173, 16
    %v229 = vor.u32 %v226, %v227
    %vm238 = vcmask 1040384
    %vm239 = vsmask.f32 256
    %vm240 = vmand %vm238, %vm239
    %v241 = vsel %vm240, 0, %v180
    %v242 = vsel %vm240, 0, %v187
    %v243 = vsel %vm240, 0, %v194
    %v244 = vsel %vm240, 0, %v201
    %v245 = vsel %vm240, 0, %v208
    %v246 = vsel %vm240, 0, %v215
    %v247 = vsel %vm240, 0, %v222
    %v248 = vsel %vm240, 0, %v229
    %v249 = vrot.slane %v178, 1
    %v250 = vor.u32 %v175, %v249
    %v251 = vrot.slane %v185, 1
    %v252 = vor.u32 %v182, %v251
    %v253 = vrot.slane %v192, 1
    %v254 = vor.u32 %v189, %v253
    %v255 = vrot.slane %v199, 1
    %v256 = vor.u32 %v196, %v255
    %v257 = vrot.slane %v206, 1
    %v258 = vor.u32 %v203, %v257
    %v259 = vrot.slane %v213, 1
    %v260 = vor.u32 %v210, %v259
    %v261 = vrot.slane %v220, 1
    %v262 = vor.u32 %v217, %v261
    %v263 = vrot.slane %v227, 1
    %v264 = vor.u32 %v224, %v263
    %vm273 = vcmask 1047552
    %vm274 = vsmask.f32 7424
    %vm275 = vmand %vm273, %vm274
    %v276 = vsel %vm275, %v250, 0
    %v277 = vsel %vm275, %v252, 0
    %v278 = vsel %vm275, %v254, 0
    %v279 = vsel %vm275, %v256, 0
    %v280 = vsel %vm275, %v258, 0
    %v281 = vsel %vm275, %v260, 0
    %v282 = vsel %vm275, %v262, 0
    %v283 = vsel %vm275, %v264, 0
    %284 = vrot.lane.b32.xlu0 %v166, 32
    %v285 = vpop.permute.xlu0 %284
    %286 = vrot.lane.b32.xlu0 %v167, 32
    %v287 = vpop.permute.xlu0 %286
    %288 = vrot.lane.b32.xlu0 %v168, 32
    %v289 = vpop.permute.xlu0 %288
    %290 = vrot.lane.b32.xlu0 %v169, 32
    %v291 = vpop.permute.xlu0 %290
    %292 = vrot.lane.b32.xlu0 %v170, 32
    %v293 = vpop.permute.xlu0 %292
    %294 = vrot.lane.b32.xlu0 %v171, 32
    %v295 = vpop.permute.xlu0 %294
    %296 = vrot.lane.b32.xlu0 %v172, 32
    %v297 = vpop.permute.xlu0 %296
    %298 = vrot.lane.b32.xlu0 %v173, 32
    %v299 = vpop.permute.xlu0 %298
    %308 = vrot.lane.b32.xlu0 %v276, 64
    %v309 = vpop.permute.xlu0 %308
    %310 = vrot.lane.b32.xlu0 %v277, 64
    %v311 = vpop.permute.xlu0 %310
    %312 = vrot.lane.b32.xlu0 %v278, 64
    %v313 = vpop.permute.xlu0 %312
    %314 = vrot.lane.b32.xlu0 %v279, 64
    %v315 = vpop.permute.xlu0 %314
    %316 = vrot.lane.b32.xlu0 %v280, 64
    %v317 = vpop.permute.xlu0 %316
    %318 = vrot.lane.b32.xlu0 %v281, 64
    %v319 = vpop.permute.xlu0 %318
    %320 = vrot.lane.b32.xlu0 %v282, 64
    %v321 = vpop.permute.xlu0 %320
    %322 = vrot.lane.b32.xlu0 %v283, 64
    %v323 = vpop.permute.xlu0 %322
    %vm324 = vcmask 261120
    %v327 = vsel %vm324, %v241, %v285
    %v330 = vsel %vm324, %v242, %v287
    %v333 = vsel %vm324, %v243, %v289
    %v336 = vsel %vm324, %v244, %v291
    %v339 = vsel %vm324, %v245, %v293
    %v342 = vsel %vm324, %v246, %v295
    %v345 = vsel %vm324, %v247, %v297
    %v348 = vsel %vm324, %v248, %v299
    %vm349 = vcmask 523264
    %v351 = vsel %vm349, %v327, %v309
    %v353 = vsel %vm349, %v330, %v311
    %v355 = vsel %vm349, %v333, %v313
    %v357 = vsel %vm349, %v336, %v315
    %v359 = vsel %vm349, %v339, %v317
    %v361 = vsel %vm349, %v342, %v319
    %v363 = vsel %vm349, %v345, %v321
    %v365 = vsel %vm349, %v348, %v323
    %v366 = vld [vmem:[#allocation6] sm:$0xff]
    %v367 = vld [vmem:[#allocation6 + $0x8] sm:$0xff]
    %v368 = vld [vmem:[#allocation6 + $0x10] sm:$0xff]
    %v369 = vld [vmem:[#allocation6 + $0x18] sm:$0xff]
    %v370 = vld [vmem:[#allocation6 + $0x20] sm:$0xff]
    %v371 = vld [vmem:[#allocation6 + $0x28] sm:$0xff]
    %v372 = vld [vmem:[#allocation6 + $0x30] sm:$0xff]
    %v373 = vld [vmem:[#allocation6 + $0x38] sm:$0xff]
    %v374 = vld [vmem:[#allocation6 + $0x40] sm:$0xff]
    %v375 = vld [vmem:[#allocation6 + $0x48] sm:$0xff]
    %v376 = vld [vmem:[#allocation6 + $0x50] sm:$0xff]
    %v377 = vld [vmem:[#allocation6 + $0x58] sm:$0xff]
    %v378 = vld [vmem:[#allocation6 + $0x60] sm:$0xff]
    %v379 = vld [vmem:[#allocation6 + $0x68] sm:$0xff]
    %v380 = vld [vmem:[#allocation6 + $0x70] sm:$0xff]
    %v381 = vld [vmem:[#allocation6 + $0x78] sm:$0xff]
    %v382 = vld [vmem:[#allocation6 + $0x80] sm:$0xff]
    %v383 = vld [vmem:[#allocation6 + $0x88] sm:$0xff]
    %v384 = vld [vmem:[#allocation6 + $0x90] sm:$0xff]
    %v385 = vld [vmem:[#allocation6 + $0x98] sm:$0xff]
    %v386 = vld [vmem:[#allocation6 + $0xa0] sm:$0xff]
    %v387 = vld [vmem:[#allocation6 + $0xa8] sm:$0xff]
    %v388 = vld [vmem:[#allocation6 + $0xb0] sm:$0xff]
    %v389 = vld [vmem:[#allocation6 + $0xb8] sm:$0xff]
    %v390 = vld [vmem:[#allocation8] sm:$0xf]
    %v392 = vperm.slane %v390, 0
    %v393 = vperm.slane %v390, 1
    %v394 = vperm.slane %v390, 2
    %v395 = vperm.slane %v390, 3
    %v424 = vunpack.c.l.b16 %v366
    %v425 = vunpack.c.h.b16 %v366
    %v426 = vunpack.c.l.b16 %v367
    %v427 = vunpack.c.h.b16 %v367
    %v428 = vunpack.c.l.b16 %v368
    %v429 = vunpack.c.h.b16 %v368
    %v430 = vunpack.c.l.b16 %v369
    %v431 = vunpack.c.h.b16 %v369
    %v432 = vunpack.c.l.b16 %v370
    %v433 = vunpack.c.h.b16 %v370
    %v434 = vunpack.c.l.b16 %v371
    %v435 = vunpack.c.h.b16 %v371
    %v436 = vunpack.c.l.b16 %v372
    %v437 = vunpack.c.h.b16 %v372
    %v438 = vunpack.c.l.b16 %v373
    %v439 = vunpack.c.h.b16 %v373
    %v440 = vunpack.c.l.b16 %v374
    %v441 = vunpack.c.h.b16 %v374
    %v442 = vunpack.c.l.b16 %v375
    %v443 = vunpack.c.h.b16 %v375
    %v444 = vunpack.c.l.b16 %v376
    %v445 = vunpack.c.h.b16 %v376
    %v446 = vunpack.c.l.b16 %v377
    %v447 = vunpack.c.h.b16 %v377
    %v448 = vunpack.c.l.b16 %v378
    %v449 = vunpack.c.h.b16 %v378
    %v450 = vunpack.c.l.b16 %v379
    %v451 = vunpack.c.h.b16 %v379
    %v452 = vunpack.c.l.b16 %v380
    %v453 = vunpack.c.h.b16 %v380
    %v454 = vunpack.c.l.b16 %v381
    %v455 = vunpack.c.h.b16 %v381
    %v456 = vunpack.c.l.b16 %v382
    %v457 = vunpack.c.h.b16 %v382
    %v458 = vunpack.c.l.b16 %v383
    %v459 = vunpack.c.h.b16 %v383
    %v460 = vunpack.c.l.b16 %v384
    %v461 = vunpack.c.h.b16 %v384
    %v462 = vunpack.c.l.b16 %v385
    %v463 = vunpack.c.h.b16 %v385
    %v464 = vunpack.c.l.b16 %v386
    %v465 = vunpack.c.h.b16 %v386
    %v466 = vunpack.c.l.b16 %v387
    %v467 = vunpack.c.h.b16 %v387
    %v468 = vunpack.c.l.b16 %v388
    %v469 = vunpack.c.h.b16 %v388
    %v470 = vunpack.c.l.b16 %v389
    %v471 = vunpack.c.h.b16 %v389
    %v472 = vpack.c.b16 %v428, %v424
    %v473 = vpack.c.b16 %v429, %v425
    %v474 = vpack.c.b16 %v430, %v426
    %v475 = vpack.c.b16 %v431, %v427
    %v476 = vpack.c.b16 %v436, %v432
    %v477 = vpack.c.b16 %v437, %v433
    %v478 = vpack.c.b16 %v438, %v434
    %v479 = vpack.c.b16 %v439, %v435
    %v480 = vpack.c.b16 %v444, %v440
    %v481 = vpack.c.b16 %v445, %v441
    %v482 = vpack.c.b16 %v446, %v442
    %v483 = vpack.c.b16 %v447, %v443
    %v484 = vpack.c.b16 %v452, %v448
    %v485 = vpack.c.b16 %v453, %v449
    %v486 = vpack.c.b16 %v454, %v450
    %v487 = vpack.c.b16 %v455, %v451
    %v488 = vpack.c.b16 %v460, %v456
    %v489 = vpack.c.b16 %v461, %v457
    %v490 = vpack.c.b16 %v462, %v458
    %v491 = vpack.c.b16 %v463, %v459
    %v492 = vpack.c.b16 %v468, %v464
    %v493 = vpack.c.b16 %v469, %v465
    %v494 = vpack.c.b16 %v470, %v466
    %v495 = vpack.c.b16 %v471, %v467
    %vm520 = vcmask 785408
    %v521 = vsel %vm520, %v351, 0
    %v523 = vsel %vm520, %v353, 0
    %v525 = vsel %vm520, %v355, 0
    %v527 = vsel %vm520, %v357, 0
    %v529 = vsel %vm520, %v359, 0
    %v531 = vsel %vm520, %v361, 0
    %v533 = vsel %vm520, %v363, 0
    %v535 = vsel %vm520, %v365, 0
    %537 = vmatpush.bf16.msra.mxu0 0
    %538 = vmatpush.bf16.msra.mxu0 0
    %539 = vmatpush.bf16.msra.mxu0 %v492
    %540 = vmatpush.bf16.msra.mxu0 %v488
    %541 = vmatpush.bf16.msra.mxu0 %v484
    %542 = vmatpush.bf16.msra.mxu0 %v480
    %543 = vmatpush.bf16.msra.mxu0 %v476
    %544 = vmatpush.bf16.msra.mxu0 %v472
    %545 = vmatmul.bf16.gmra.mxu0 %v521
    %v546 = vpop.f32.mrf.mxu0
    %v547 = vadd.f32 %v392, %v546
    %v548 = vpop.f32.mrf.mxu0
    %v549 = vadd.f32 %v392, %v548
    %550 = vmatmul.bf16.gmra.mxu0 %v523
    %v551 = vpop.f32.mrf.mxu0
    %v552 = vadd.f32 %v392, %v551
    %v553 = vpop.f32.mrf.mxu0
    %v554 = vadd.f32 %v392, %v553
    %555 = vmatmul.bf16.gmra.mxu0 %v525
    %v556 = vpop.f32.mrf.mxu0
    %v557 = vadd.f32 %v392, %v556
    %v558 = vpop.f32.mrf.mxu0
    %v559 = vadd.f32 %v392, %v558
    %560 = vmatmul.bf16.gmra.mxu0 %v527
    %v561 = vpop.f32.mrf.mxu0
    %v562 = vadd.f32 %v392, %v561
    %v563 = vpop.f32.mrf.mxu0
    %v564 = vadd.f32 %v392, %v563
    %565 = vmatmul.bf16.gmra.mxu0 %v529
    %v566 = vpop.f32.mrf.mxu0
    %v567 = vadd.f32 %v392, %v566
    %v568 = vpop.f32.mrf.mxu0
    %v569 = vadd.f32 %v392, %v568
    %570 = vmatmul.bf16.gmra.mxu0 %v531
    %v571 = vpop.f32.mrf.mxu0
    %v572 = vadd.f32 %v392, %v571
    %v573 = vpop.f32.mrf.mxu0
    %v574 = vadd.f32 %v392, %v573
    %575 = vmatmul.bf16.gmra.mxu0 %v533
    %v576 = vpop.f32.mrf.mxu0
    %v577 = vadd.f32 %v392, %v576
    %v578 = vpop.f32.mrf.mxu0
    %v579 = vadd.f32 %v392, %v578
    %580 = vmatmul.bf16.gmra.mxu0 %v535
    %v581 = vpop.f32.mrf.mxu0
    %v582 = vadd.f32 %v392, %v581
    %v583 = vpop.f32.mrf.mxu0
    %v584 = vadd.f32 %v392, %v583
    %585 = vdwg.mxu0
    %586 = vmatpush.bf16.msra.mxu0 0
    %587 = vmatpush.bf16.msra.mxu0 0
    %588 = vmatpush.bf16.msra.mxu0 %v493
    %589 = vmatpush.bf16.msra.mxu0 %v489
    %590 = vmatpush.bf16.msra.mxu0 %v485
    %591 = vmatpush.bf16.msra.mxu0 %v481
    %592 = vmatpush.bf16.msra.mxu0 %v477
    %593 = vmatpush.bf16.msra.mxu0 %v473
    %594 = vmatmul.bf16.gmra.mxu0 %v521
    %v595 = vpop.f32.mrf.mxu0
    %v596 = vadd.f32 %v393, %v595
    %v597 = vpop.f32.mrf.mxu0
    %v598 = vadd.f32 %v393, %v597
    %599 = vmatmul.bf16.gmra.mxu0 %v523
    %v600 = vpop.f32.mrf.mxu0
    %v601 = vadd.f32 %v393, %v600
    %v602 = vpop.f32.mrf.mxu0
    %v603 = vadd.f32 %v393, %v602
    %604 = vmatmul.bf16.gmra.mxu0 %v525
    %v605 = vpop.f32.mrf.mxu0
    %v606 = vadd.f32 %v393, %v605
    %v607 = vpop.f32.mrf.mxu0
    %v608 = vadd.f32 %v393, %v607
    %609 = vmatmul.bf16.gmra.mxu0 %v527
    %v610 = vpop.f32.mrf.mxu0
    %v611 = vadd.f32 %v393, %v610
    %v612 = vpop.f32.mrf.mxu0
    %v613 = vadd.f32 %v393, %v612
    %614 = vmatmul.bf16.gmra.mxu0 %v529
    %v615 = vpop.f32.mrf.mxu0
    %v616 = vadd.f32 %v393, %v615
    %v617 = vpop.f32.mrf.mxu0
    %v618 = vadd.f32 %v393, %v617
    %619 = vmatmul.bf16.gmra.mxu0 %v531
    %v620 = vpop.f32.mrf.mxu0
    %v621 = vadd.f32 %v393, %v620
    %v622 = vpop.f32.mrf.mxu0
    %v623 = vadd.f32 %v393, %v622
    %624 = vmatmul.bf16.gmra.mxu0 %v533
    %v625 = vpop.f32.mrf.mxu0
    %v626 = vadd.f32 %v393, %v625
    %v627 = vpop.f32.mrf.mxu0
    %v628 = vadd.f32 %v393, %v627
    %629 = vmatmul.bf16.gmra.mxu0 %v535
    %v630 = vpop.f32.mrf.mxu0
    %v631 = vadd.f32 %v393, %v630
    %v632 = vpop.f32.mrf.mxu0
    %v633 = vadd.f32 %v393, %v632
    %634 = vdwg.mxu0
    %635 = vmatpush.bf16.msra.mxu0 0
    %636 = vmatpush.bf16.msra.mxu0 0
    %637 = vmatpush.bf16.msra.mxu0 %v494
    %638 = vmatpush.bf16.msra.mxu0 %v490
    %639 = vmatpush.bf16.msra.mxu0 %v486
    %640 = vmatpush.bf16.msra.mxu0 %v482
    %641 = vmatpush.bf16.msra.mxu0 %v478
    %642 = vmatpush.bf16.msra.mxu0 %v474
    %643 = vmatmul.bf16.gmra.mxu0 %v521
    %v644 = vpop.f32.mrf.mxu0
    %v645 = vadd.f32 %v394, %v644
    %v646 = vpop.f32.mrf.mxu0
    %v647 = vadd.f32 %v394, %v646
    %648 = vmatmul.bf16.gmra.mxu0 %v523
    %v649 = vpop.f32.mrf.mxu0
    %v650 = vadd.f32 %v394, %v649
    %v651 = vpop.f32.mrf.mxu0
    %v652 = vadd.f32 %v394, %v651
    %653 = vmatmul.bf16.gmra.mxu0 %v525
    %v654 = vpop.f32.mrf.mxu0
    %v655 = vadd.f32 %v394, %v654
    %v656 = vpop.f32.mrf.mxu0
    %v657 = vadd.f32 %v394, %v656
    %658 = vmatmul.bf16.gmra.mxu0 %v527
    %v659 = vpop.f32.mrf.mxu0
    %v660 = vadd.f32 %v394, %v659
    %v661 = vpop.f32.mrf.mxu0
    %v662 = vadd.f32 %v394, %v661
    %663 = vmatmul.bf16.gmra.mxu0 %v529
    %v664 = vpop.f32.mrf.mxu0
    %v665 = vadd.f32 %v394, %v664
    %v666 = vpop.f32.mrf.mxu0
    %v667 = vadd.f32 %v394, %v666
    %668 = vmatmul.bf16.gmra.mxu0 %v531
    %v669 = vpop.f32.mrf.mxu0
    %v670 = vadd.f32 %v394, %v669
    %v671 = vpop.f32.mrf.mxu0
    %v672 = vadd.f32 %v394, %v671
    %673 = vmatmul.bf16.gmra.mxu0 %v533
    %v674 = vpop.f32.mrf.mxu0
    %v675 = vadd.f32 %v394, %v674
    %v676 = vpop.f32.mrf.mxu0
    %v677 = vadd.f32 %v394, %v676
    %678 = vmatmul.bf16.gmra.mxu0 %v535
    %v679 = vpop.f32.mrf.mxu0
    %v680 = vadd.f32 %v394, %v679
    %v681 = vpop.f32.mrf.mxu0
    %v682 = vadd.f32 %v394, %v681
    %683 = vdwg.mxu0
    %684 = vmatpush.bf16.msra.mxu0 0
    %685 = vmatpush.bf16.msra.mxu0 0
    %686 = vmatpush.bf16.msra.mxu0 %v495
    %687 = vmatpush.bf16.msra.mxu0 %v491
    %688 = vmatpush.bf16.msra.mxu0 %v487
    %689 = vmatpush.bf16.msra.mxu0 %v483
    %690 = vmatpush.bf16.msra.mxu0 %v479
    %691 = vmatpush.bf16.msra.mxu0 %v475
    %692 = vmatmul.bf16.gmra.mxu0 %v521
    %v693 = vpop.f32.mrf.mxu0
    %v694 = vadd.f32 %v395, %v693
    %v695 = vpop.f32.mrf.mxu0
    %v696 = vadd.f32 %v395, %v695
    %697 = vmatmul.bf16.gmra.mxu0 %v523
    %v698 = vpop.f32.mrf.mxu0
    %v699 = vadd.f32 %v395, %v698
    %v700 = vpop.f32.mrf.mxu0
    %v701 = vadd.f32 %v395, %v700
    %702 = vmatmul.bf16.gmra.mxu0 %v525
    %v703 = vpop.f32.mrf.mxu0
    %v704 = vadd.f32 %v395, %v703
    %v705 = vpop.f32.mrf.mxu0
    %v706 = vadd.f32 %v395, %v705
    %707 = vmatmul.bf16.gmra.mxu0 %v527
    %v708 = vpop.f32.mrf.mxu0
    %v709 = vadd.f32 %v395, %v708
    %v710 = vpop.f32.mrf.mxu0
    %v711 = vadd.f32 %v395, %v710
    %712 = vmatmul.bf16.gmra.mxu0 %v529
    %v713 = vpop.f32.mrf.mxu0
    %v714 = vadd.f32 %v395, %v713
    %v715 = vpop.f32.mrf.mxu0
    %v716 = vadd.f32 %v395, %v715
    %717 = vmatmul.bf16.gmra.mxu0 %v531
    %v718 = vpop.f32.mrf.mxu0
    %v719 = vadd.f32 %v395, %v718
    %v720 = vpop.f32.mrf.mxu0
    %v721 = vadd.f32 %v395, %v720
    %722 = vmatmul.bf16.gmra.mxu0 %v533
    %v723 = vpop.f32.mrf.mxu0
    %v724 = vadd.f32 %v395, %v723
    %v725 = vpop.f32.mrf.mxu0
    %v726 = vadd.f32 %v395, %v725
    %727 = vmatmul.bf16.gmra.mxu0 %v535
    %v728 = vpop.f32.mrf.mxu0
    %v729 = vadd.f32 %v395, %v728
    %v730 = vpop.f32.mrf.mxu0
    %v731 = vadd.f32 %v395, %v730
    %732 = vdwg.mxu0
    %v733 = vmax.f32 %v547, 0.0
    %v734 = vmax.f32 %v596, 0.0
    %v735 = vmax.f32 %v645, 0.0
    %v736 = vmax.f32 %v694, 0.0
    %v737 = vmax.f32 %v549, 0.0
    %v738 = vmax.f32 %v598, 0.0
    %v739 = vmax.f32 %v647, 0.0
    %v740 = vmax.f32 %v696, 0.0
    %v741 = vmax.f32 %v552, 0.0
    %v742 = vmax.f32 %v601, 0.0
    %v743 = vmax.f32 %v650, 0.0
    %v744 = vmax.f32 %v699, 0.0
    %v745 = vmax.f32 %v554, 0.0
    %v746 = vmax.f32 %v603, 0.0
    %v747 = vmax.f32 %v652, 0.0
    %v748 = vmax.f32 %v701, 0.0
    %v749 = vmax.f32 %v557, 0.0
    %v750 = vmax.f32 %v606, 0.0
    %v751 = vmax.f32 %v655, 0.0
    %v752 = vmax.f32 %v704, 0.0
    %v753 = vmax.f32 %v559, 0.0
    %v754 = vmax.f32 %v608, 0.0
    %v755 = vmax.f32 %v657, 0.0
    %v756 = vmax.f32 %v706, 0.0
    %v757 = vmax.f32 %v562, 0.0
    %v758 = vmax.f32 %v611, 0.0
    %v759 = vmax.f32 %v660, 0.0
    %v760 = vmax.f32 %v709, 0.0
    %v761 = vmax.f32 %v564, 0.0
    %v762 = vmax.f32 %v613, 0.0
    %v763 = vmax.f32 %v662, 0.0
    %v764 = vmax.f32 %v711, 0.0
    %v765 = vmax.f32 %v567, 0.0
    %v766 = vmax.f32 %v616, 0.0
    %v767 = vmax.f32 %v665, 0.0
    %v768 = vmax.f32 %v714, 0.0
    %v769 = vmax.f32 %v569, 0.0
    %v770 = vmax.f32 %v618, 0.0
    %v771 = vmax.f32 %v667, 0.0
    %v772 = vmax.f32 %v716, 0.0
    %v773 = vmax.f32 %v572, 0.0
    %v774 = vmax.f32 %v621, 0.0
    %v775 = vmax.f32 %v670, 0.0
    %v776 = vmax.f32 %v719, 0.0
    %v777 = vmax.f32 %v574, 0.0
    %v778 = vmax.f32 %v623, 0.0
    %v779 = vmax.f32 %v672, 0.0
    %v780 = vmax.f32 %v721, 0.0
    %v781 = vmax.f32 %v577, 0.0
    %v782 = vmax.f32 %v626, 0.0
    %v783 = vmax.f32 %v675, 0.0
    %v784 = vmax.f32 %v724, 0.0
    %v785 = vmax.f32 %v579, 0.0
    %v786 = vmax.f32 %v628, 0.0
    %v787 = vmax.f32 %v677, 0.0
    %v788 = vmax.f32 %v726, 0.0
    %v789 = vmax.f32 %v582, 0.0
    %v790 = vmax.f32 %v631, 0.0
    %v791 = vmax.f32 %v680, 0.0
    %v792 = vmax.f32 %v729, 0.0
    %v793 = vmax.f32 %v584, 0.0
    %v794 = vmax.f32 %v633, 0.0
    %v795 = vmax.f32 %v682, 0.0
    %v796 = vmax.f32 %v731, 0.0
    %v797 = vpack.c.bf16 %v734, %v733
    %v798 = vpack.c.bf16 %v736, %v735
    %v799 = vpack.c.bf16 %v738, %v737
    %v800 = vpack.c.bf16 %v740, %v739
    %v801 = vpack.c.bf16 %v742, %v741
    %v802 = vpack.c.bf16 %v744, %v743
    %v803 = vpack.c.bf16 %v746, %v745
    %v804 = vpack.c.bf16 %v748, %v747
    %v805 = vpack.c.bf16 %v750, %v749
    %v806 = vpack.c.bf16 %v752, %v751
    %v807 = vpack.c.bf16 %v754, %v753
    %v808 = vpack.c.bf16 %v756, %v755
    %v809 = vpack.c.bf16 %v758, %v757
    %v810 = vpack.c.bf16 %v760, %v759
    %v811 = vpack.c.bf16 %v762, %v761
    %v812 = vpack.c.bf16 %v764, %v763
    %v813 = vpack.c.bf16 %v766, %v765
    %v814 = vpack.c.bf16 %v768, %v767
    %v815 = vpack.c.bf16 %v770, %v769
    %v816 = vpack.c.bf16 %v772, %v771
    %v817 = vpack.c.bf16 %v774, %v773
    %v818 = vpack.c.bf16 %v776, %v775
    %v819 = vpack.c.bf16 %v778, %v777
    %v820 = vpack.c.bf16 %v780, %v779
    %v821 = vpack.c.bf16 %v782, %v781
    %v822 = vpack.c.bf16 %v784, %v783
    %v823 = vpack.c.bf16 %v786, %v785
    %v824 = vpack.c.bf16 %v788, %v787
    %v825 = vpack.c.bf16 %v790, %v789
    %v826 = vpack.c.bf16 %v792, %v791
    %v827 = vpack.c.bf16 %v794, %v793
    %v828 = vpack.c.bf16 %v796, %v795
    %v861 = vunpack.c.l.b16 %v797
    %v862 = vunpack.c.h.b16 %v797
    %v863 = vunpack.c.l.b16 %v798
    %v864 = vunpack.c.h.b16 %v798
    %v865 = vunpack.c.l.b16 %v799
    %v866 = vunpack.c.h.b16 %v799
    %v867 = vunpack.c.l.b16 %v800
    %v868 = vunpack.c.h.b16 %v800
    %v869 = vunpack.c.l.b16 %v801
    %v870 = vunpack.c.h.b16 %v801
    %v871 = vunpack.c.l.b16 %v802
    %v872 = vunpack.c.h.b16 %v802
    %v873 = vunpack.c.l.b16 %v803
    %v874 = vunpack.c.h.b16 %v803
    %v875 = vunpack.c.l.b16 %v804
    %v876 = vunpack.c.h.b16 %v804
    %v877 = vunpack.c.l.b16 %v805
    %v878 = vunpack.c.h.b16 %v805
    %v879 = vunpack.c.l.b16 %v806
    %v880 = vunpack.c.h.b16 %v806
    %v881 = vunpack.c.l.b16 %v807
    %v882 = vunpack.c.h.b16 %v807
    %v883 = vunpack.c.l.b16 %v808
    %v884 = vunpack.c.h.b16 %v808
    %v885 = vunpack.c.l.b16 %v809
    %v886 = vunpack.c.h.b16 %v809
    %v887 = vunpack.c.l.b16 %v810
    %v888 = vunpack.c.h.b16 %v810
    %v889 = vunpack.c.l.b16 %v811
    %v890 = vunpack.c.h.b16 %v811
    %v891 = vunpack.c.l.b16 %v812
    %v892 = vunpack.c.h.b16 %v812
    %v893 = vunpack.c.l.b16 %v813
    %v894 = vunpack.c.h.b16 %v813
    %v895 = vunpack.c.l.b16 %v814
    %v896 = vunpack.c.h.b16 %v814
    %v897 = vunpack.c.l.b16 %v815
    %v898 = vunpack.c.h.b16 %v815
    %v899 = vunpack.c.l.b16 %v816
    %v900 = vunpack.c.h.b16 %v816
    %v901 = vunpack.c.l.b16 %v817
    %v902 = vunpack.c.h.b16 %v817
    %v903 = vunpack.c.l.b16 %v818
    %v904 = vunpack.c.h.b16 %v818
    %v905 = vunpack.c.l.b16 %v819
    %v906 = vunpack.c.h.b16 %v819
    %v907 = vunpack.c.l.b16 %v820
    %v908 = vunpack.c.h.b16 %v820
    %v909 = vunpack.c.l.b16 %v821
    %v910 = vunpack.c.h.b16 %v821
    %v911 = vunpack.c.l.b16 %v822
    %v912 = vunpack.c.h.b16 %v822
    %v913 = vunpack.c.l.b16 %v823
    %v914 = vunpack.c.h.b16 %v823
    %v915 = vunpack.c.l.b16 %v824
    %v916 = vunpack.c.h.b16 %v824
    %v917 = vunpack.c.l.b16 %v825
    %v918 = vunpack.c.h.b16 %v825
    %v919 = vunpack.c.l.b16 %v826
    %v920 = vunpack.c.h.b16 %v826
    %v921 = vunpack.c.l.b16 %v827
    %v922 = vunpack.c.h.b16 %v827
    %v923 = vunpack.c.l.b16 %v828
    %v924 = vunpack.c.h.b16 %v828
    %v925 = vpack.c.b16 %v865, %v861
    %v926 = vpack.c.b16 %v866, %v862
    %v927 = vpack.c.b16 %v867, %v863
    %v928 = vpack.c.b16 %v868, %v864
    %v929 = vpack.c.b16 %v873, %v869
    %v930 = vpack.c.b16 %v874, %v870
    %v931 = vpack.c.b16 %v875, %v871
    %v932 = vpack.c.b16 %v876, %v872
    %v933 = vpack.c.b16 %v881, %v877
    %v934 = vpack.c.b16 %v882, %v878
    %v935 = vpack.c.b16 %v883, %v879
    %v936 = vpack.c.b16 %v884, %v880
    %v937 = vpack.c.b16 %v889, %v885
    %v938 = vpack.c.b16 %v890, %v886
    %v939 = vpack.c.b16 %v891, %v887
    %v940 = vpack.c.b16 %v892, %v888
    %v941 = vpack.c.b16 %v897, %v893
    %v942 = vpack.c.b16 %v898, %v894
    %v943 = vpack.c.b16 %v899, %v895
    %v944 = vpack.c.b16 %v900, %v896
    %v945 = vpack.c.b16 %v905, %v901
    %v946 = vpack.c.b16 %v906, %v902
    %v947 = vpack.c.b16 %v907, %v903
    %v948 = vpack.c.b16 %v908, %v904
    %v949 = vpack.c.b16 %v913, %v909
    %v950 = vpack.c.b16 %v914, %v910
    %v951 = vpack.c.b16 %v915, %v911
    %v952 = vpack.c.b16 %v916, %v912
    %v953 = vpack.c.b16 %v921, %v917
    %v954 = vpack.c.b16 %v922, %v918
    %v955 = vpack.c.b16 %v923, %v919
    %v956 = vpack.c.b16 %v924, %v920
    %v958 = vshrl.u32 %v925, 16
    %v960 = vrot.slane %v958, 7
    %v961 = vshll.u32 %v925, 16
    %v963 = vor.u32 %v960, %v961
    %v965 = vshrl.u32 %v926, 16
    %v967 = vrot.slane %v965, 7
    %v968 = vshll.u32 %v926, 16
    %v970 = vor.u32 %v967, %v968
    %v972 = vshrl.u32 %v927, 16
    %v974 = vrot.slane %v972, 7
    %v975 = vshll.u32 %v927, 16
    %v977 = vor.u32 %v974, %v975
    %v979 = vshrl.u32 %v928, 16
    %v981 = vrot.slane %v979, 7
    %v982 = vshll.u32 %v928, 16
    %v984 = vor.u32 %v981, %v982
    %v986 = vshrl.u32 %v929, 16
    %v988 = vrot.slane %v986, 7
    %v989 = vshll.u32 %v929, 16
    %v991 = vor.u32 %v988, %v989
    %v993 = vshrl.u32 %v930, 16
    %v995 = vrot.slane %v993, 7
    %v996 = vshll.u32 %v930, 16
    %v998 = vor.u32 %v995, %v996
    %v1000 = vshrl.u32 %v931, 16
    %v1002 = vrot.slane %v1000, 7
    %v1003 = vshll.u32 %v931, 16
    %v1005 = vor.u32 %v1002, %v1003
    %v1007 = vshrl.u32 %v932, 16
    %v1009 = vrot.slane %v1007, 7
    %v1010 = vshll.u32 %v932, 16
    %v1012 = vor.u32 %v1009, %v1010
    %v1014 = vshrl.u32 %v933, 16
    %v1016 = vrot.slane %v1014, 7
    %v1017 = vshll.u32 %v933, 16
    %v1019 = vor.u32 %v1016, %v1017
    %v1021 = vshrl.u32 %v934, 16
    %v1023 = vrot.slane %v1021, 7
    %v1024 = vshll.u32 %v934, 16
    %v1026 = vor.u32 %v1023, %v1024
    %v1028 = vshrl.u32 %v935, 16
    %v1030 = vrot.slane %v1028, 7
    %v1031 = vshll.u32 %v935, 16
    %v1033 = vor.u32 %v1030, %v1031
    %v1035 = vshrl.u32 %v936, 16
    %v1037 = vrot.slane %v1035, 7
    %v1038 = vshll.u32 %v936, 16
    %v1040 = vor.u32 %v1037, %v1038
    %v1042 = vshrl.u32 %v937, 16
    %v1044 = vrot.slane %v1042, 7
    %v1045 = vshll.u32 %v937, 16
    %v1047 = vor.u32 %v1044, %v1045
    %v1049 = vshrl.u32 %v938, 16
    %v1051 = vrot.slane %v1049, 7
    %v1052 = vshll.u32 %v938, 16
    %v1054 = vor.u32 %v1051, %v1052
    %v1056 = vshrl.u32 %v939, 16
    %v1058 = vrot.slane %v1056, 7
    %v1059 = vshll.u32 %v939, 16
    %v1061 = vor.u32 %v1058, %v1059
    %v1063 = vshrl.u32 %v940, 16
    %v1065 = vrot.slane %v1063, 7
    %v1066 = vshll.u32 %v940, 16
    %v1068 = vor.u32 %v1065, %v1066
    %v1070 = vshrl.u32 %v941, 16
    %v1072 = vrot.slane %v1070, 7
    %v1073 = vshll.u32 %v941, 16
    %v1075 = vor.u32 %v1072, %v1073
    %v1077 = vshrl.u32 %v942, 16
    %v1079 = vrot.slane %v1077, 7
    %v1080 = vshll.u32 %v942, 16
    %v1082 = vor.u32 %v1079, %v1080
    %v1084 = vshrl.u32 %v943, 16
    %v1086 = vrot.slane %v1084, 7
    %v1087 = vshll.u32 %v943, 16
    %v1089 = vor.u32 %v1086, %v1087
    %v1091 = vshrl.u32 %v944, 16
    %v1093 = vrot.slane %v1091, 7
    %v1094 = vshll.u32 %v944, 16
    %v1096 = vor.u32 %v1093, %v1094
    %v1098 = vshrl.u32 %v945, 16
    %v1100 = vrot.slane %v1098, 7
    %v1101 = vshll.u32 %v945, 16
    %v1103 = vor.u32 %v1100, %v1101
    %v1105 = vshrl.u32 %v946, 16
    %v1107 = vrot.slane %v1105, 7
    %v1108 = vshll.u32 %v946, 16
    %v1110 = vor.u32 %v1107, %v1108
    %v1112 = vshrl.u32 %v947, 16
    %v1114 = vrot.slane %v1112, 7
    %v1115 = vshll.u32 %v947, 16
    %v1117 = vor.u32 %v1114, %v1115
    %v1119 = vshrl.u32 %v948, 16
    %v1121 = vrot.slane %v1119, 7
    %v1122 = vshll.u32 %v948, 16
    %v1124 = vor.u32 %v1121, %v1122
    %v1126 = vshrl.u32 %v949, 16
    %v1128 = vrot.slane %v1126, 7
    %v1129 = vshll.u32 %v949, 16
    %v1131 = vor.u32 %v1128, %v1129
    %v1133 = vshrl.u32 %v950, 16
    %v1135 = vrot.slane %v1133, 7
    %v1136 = vshll.u32 %v950, 16
    %v1138 = vor.u32 %v1135, %v1136
    %v1140 = vshrl.u32 %v951, 16
    %v1142 = vrot.slane %v1140, 7
    %v1143 = vshll.u32 %v951, 16
    %v1145 = vor.u32 %v1142, %v1143
    %v1147 = vshrl.u32 %v952, 16
    %v1149 = vrot.slane %v1147, 7
    %v1150 = vshll.u32 %v952, 16
    %v1152 = vor.u32 %v1149, %v1150
    %v1154 = vshrl.u32 %v953, 16
    %v1156 = vrot.slane %v1154, 7
    %v1157 = vshll.u32 %v953, 16
    %v1159 = vor.u32 %v1156, %v1157
    %v1161 = vshrl.u32 %v954, 16
    %v1163 = vrot.slane %v1161, 7
    %v1164 = vshll.u32 %v954, 16
    %v1166 = vor.u32 %v1163, %v1164
    %v1168 = vshrl.u32 %v955, 16
    %v1170 = vrot.slane %v1168, 7
    %v1171 = vshll.u32 %v955, 16
    %v1173 = vor.u32 %v1170, %v1171
    %v1175 = vshrl.u32 %v956, 16
    %v1177 = vrot.slane %v1175, 7
    %v1178 = vshll.u32 %v956, 16
    %v1180 = vor.u32 %v1177, %v1178
    %v1213 = vsel %vm240, 0, %v963
    %v1214 = vsel %vm240, 0, %v970
    %v1215 = vsel %vm240, 0, %v977
    %v1216 = vsel %vm240, 0, %v984
    %v1217 = vsel %vm240, 0, %v991
    %v1218 = vsel %vm240, 0, %v998
    %v1219 = vsel %vm240, 0, %v1005
    %v1220 = vsel %vm240, 0, %v1012
    %v1221 = vsel %vm240, 0, %v1019
    %v1222 = vsel %vm240, 0, %v1026
    %v1223 = vsel %vm240, 0, %v1033
    %v1224 = vsel %vm240, 0, %v1040
    %v1225 = vsel %vm240, 0, %v1047
    %v1226 = vsel %vm240, 0, %v1054
    %v1227 = vsel %vm240, 0, %v1061
    %v1228 = vsel %vm240, 0, %v1068
    %v1229 = vsel %vm240, 0, %v1075
    %v1230 = vsel %vm240, 0, %v1082
    %v1231 = vsel %vm240, 0, %v1089
    %v1232 = vsel %vm240, 0, %v1096
    %v1233 = vsel %vm240, 0, %v1103
    %v1234 = vsel %vm240, 0, %v1110
    %v1235 = vsel %vm240, 0, %v1117
    %v1236 = vsel %vm240, 0, %v1124
    %v1237 = vsel %vm240, 0, %v1131
    %v1238 = vsel %vm240, 0, %v1138
    %v1239 = vsel %vm240, 0, %v1145
    %v1240 = vsel %vm240, 0, %v1152
    %v1241 = vsel %vm240, 0, %v1159
    %v1242 = vsel %vm240, 0, %v1166
    %v1243 = vsel %vm240, 0, %v1173
    %v1244 = vsel %vm240, 0, %v1180
    %v1245 = vrot.slane %v961, 1
    %v1246 = vor.u32 %v958, %v1245
    %v1247 = vrot.slane %v968, 1
    %v1248 = vor.u32 %v965, %v1247
    %v1249 = vrot.slane %v975, 1
    %v1250 = vor.u32 %v972, %v1249
    %v1251 = vrot.slane %v982, 1
    %v1252 = vor.u32 %v979, %v1251
    %v1253 = vrot.slane %v989, 1
    %v1254 = vor.u32 %v986, %v1253
    %v1255 = vrot.slane %v996, 1
    %v1256 = vor.u32 %v993, %v1255
    %v1257 = vrot.slane %v1003, 1
    %v1258 = vor.u32 %v1000, %v1257
    %v1259 = vrot.slane %v1010, 1
    %v1260 = vor.u32 %v1007, %v1259
    %v1261 = vrot.slane %v1017, 1
    %v1262 = vor.u32 %v1014, %v1261
    %v1263 = vrot.slane %v1024, 1
    %v1264 = vor.u32 %v1021, %v1263
    %v1265 = vrot.slane %v1031, 1
    %v1266 = vor.u32 %v1028, %v1265
    %v1267 = vrot.slane %v1038, 1
    %v1268 = vor.u32 %v1035, %v1267
    %v1269 = vrot.slane %v1045, 1
    %v1270 = vor.u32 %v1042, %v1269
    %v1271 = vrot.slane %v1052, 1
    %v1272 = vor.u32 %v1049, %v1271
    %v1273 = vrot.slane %v1059, 1
    %v1274 = vor.u32 %v1056, %v1273
    %v1275 = vrot.slane %v1066, 1
    %v1276 = vor.u32 %v1063, %v1275
    %v1277 = vrot.slane %v1073, 1
    %v1278 = vor.u32 %v1070, %v1277
    %v1279 = vrot.slane %v1080, 1
    %v1280 = vor.u32 %v1077, %v1279
    %v1281 = vrot.slane %v1087, 1
    %v1282 = vor.u32 %v1084, %v1281
    %v1283 = vrot.slane %v1094, 1
    %v1284 = vor.u32 %v1091, %v1283
    %v1285 = vrot.slane %v1101, 1
    %v1286 = vor.u32 %v1098, %v1285
    %v1287 = vrot.slane %v1108, 1
    %v1288 = vor.u32 %v1105, %v1287
    %v1289 = vrot.slane %v1115, 1
    %v1290 = vor.u32 %v1112, %v1289
    %v1291 = vrot.slane %v1122, 1
    %v1292 = vor.u32 %v1119, %v1291
    %v1293 = vrot.slane %v1129, 1
    %v1294 = vor.u32 %v1126, %v1293
    %v1295 = vrot.slane %v1136, 1
    %v1296 = vor.u32 %v1133, %v1295
    %v1297 = vrot.slane %v1143, 1
    %v1298 = vor.u32 %v1140, %v1297
    %v1299 = vrot.slane %v1150, 1
    %v1300 = vor.u32 %v1147, %v1299
    %v1301 = vrot.slane %v1157, 1
    %v1302 = vor.u32 %v1154, %v1301
    %v1303 = vrot.slane %v1164, 1
    %v1304 = vor.u32 %v1161, %v1303
    %v1305 = vrot.slane %v1171, 1
    %v1306 = vor.u32 %v1168, %v1305
    %v1307 = vrot.slane %v1178, 1
    %v1308 = vor.u32 %v1175, %v1307
    %v1341 = vsel %vm275, %v1246, 0
    %v1342 = vsel %vm275, %v1248, 0
    %v1343 = vsel %vm275, %v1250, 0
    %v1344 = vsel %vm275, %v1252, 0
    %v1345 = vsel %vm275, %v1254, 0
    %v1346 = vsel %vm275, %v1256, 0
    %v1347 = vsel %vm275, %v1258, 0
    %v1348 = vsel %vm275, %v1260, 0
    %v1349 = vsel %vm275, %v1262, 0
    %v1350 = vsel %vm275, %v1264, 0
    %v1351 = vsel %vm275, %v1266, 0
    %v1352 = vsel %vm275, %v1268, 0
    %v1353 = vsel %vm275, %v1270, 0
    %v1354 = vsel %vm275, %v1272, 0
    %v1355 = vsel %vm275, %v1274, 0
    %v1356 = vsel %vm275, %v1276, 0
    %v1357 = vsel %vm275, %v1278, 0
    %v1358 = vsel %vm275, %v1280, 0
    %v1359 = vsel %vm275, %v1282, 0
    %v1360 = vsel %vm275, %v1284, 0
    %v1361 = vsel %vm275, %v1286, 0
    %v1362 = vsel %vm275, %v1288, 0
    %v1363 = vsel %vm275, %v1290, 0
    %v1364 = vsel %vm275, %v1292, 0
    %v1365 = vsel %vm275, %v1294, 0
    %v1366 = vsel %vm275, %v1296, 0
    %v1367 = vsel %vm275, %v1298, 0
    %v1368 = vsel %vm275, %v1300, 0
    %v1369 = vsel %vm275, %v1302, 0
    %v1370 = vsel %vm275, %v1304, 0
    %v1371 = vsel %vm275, %v1306, 0
    %v1372 = vsel %vm275, %v1308, 0
    %v1405 = vld [vmem:[#allocation9] sm:$0xff]
    %v1406 = vld [vmem:[#allocation9 + $0x8] sm:$0xff]
    %v1407 = vld [vmem:[#allocation9 + $0x10] sm:$0xff]
    %v1408 = vld [vmem:[#allocation9 + $0x18] sm:$0xff]
    %v1409 = vld [vmem:[#allocation9 + $0x20] sm:$0xff]
    %v1410 = vld [vmem:[#allocation9 + $0x28] sm:$0xff]
    %v1411 = vld [vmem:[#allocation9 + $0x30] sm:$0xff]
    %v1412 = vld [vmem:[#allocation9 + $0x38] sm:$0xff]
    %v1413 = vld [vmem:[#allocation9 + $0x40] sm:$0xff]
    %v1414 = vld [vmem:[#allocation9 + $0x48] sm:$0xff]
    %v1415 = vld [vmem:[#allocation9 + $0x50] sm:$0xff]
    %v1416 = vld [vmem:[#allocation9 + $0x58] sm:$0xff]
    %v1417 = vld [vmem:[#allocation9 + $0x60] sm:$0xff]
    %v1418 = vld [vmem:[#allocation9 + $0x68] sm:$0xff]
    %v1419 = vld [vmem:[#allocation9 + $0x70] sm:$0xff]
    %v1420 = vld [vmem:[#allocation9 + $0x78] sm:$0xff]
    %v1421 = vld [vmem:[#allocation9 + $0x80] sm:$0xff]
    %v1422 = vld [vmem:[#allocation9 + $0x88] sm:$0xff]
    %v1423 = vld [vmem:[#allocation9 + $0x90] sm:$0xff]
    %v1424 = vld [vmem:[#allocation9 + $0x98] sm:$0xff]
    %v1425 = vld [vmem:[#allocation9 + $0xa0] sm:$0xff]
    %v1426 = vld [vmem:[#allocation9 + $0xa8] sm:$0xff]
    %v1427 = vld [vmem:[#allocation9 + $0xb0] sm:$0xff]
    %v1428 = vld [vmem:[#allocation9 + $0xb8] sm:$0xff]
    %v1429 = vld [vmem:[#allocation9 + $0xc0] sm:$0xff]
    %v1430 = vld [vmem:[#allocation9 + $0xc8] sm:$0xff]
    %v1431 = vld [vmem:[#allocation9 + $0xd0] sm:$0xff]
    %v1432 = vld [vmem:[#allocation9 + $0xd8] sm:$0xff]
    %v1433 = vld [vmem:[#allocation9 + $0xe0] sm:$0xff]
    %v1434 = vld [vmem:[#allocation9 + $0xe8] sm:$0xff]
    %v1435 = vld [vmem:[#allocation9 + $0xf0] sm:$0xff]
    %v1436 = vld [vmem:[#allocation9 + $0xf8] sm:$0xff]
    %v1437 = vld [vmem:[#allocation9 + $0x100] sm:$0xff]
    %v1438 = vld [vmem:[#allocation9 + $0x108] sm:$0xff]
    %v1439 = vld [vmem:[#allocation9 + $0x110] sm:$0xff]
    %v1440 = vld [vmem:[#allocation9 + $0x118] sm:$0xff]
    %v1441 = vld [vmem:[#allocation9 + $0x120] sm:$0xff]
    %v1442 = vld [vmem:[#allocation9 + $0x128] sm:$0xff]
    %v1443 = vld [vmem:[#allocation9 + $0x130] sm:$0xff]
    %v1444 = vld [vmem:[#allocation9 + $0x138] sm:$0xff]
    %v1445 = vld [vmem:[#allocation9 + $0x140] sm:$0xff]
    %v1446 = vld [vmem:[#allocation9 + $0x148] sm:$0xff]
    %v1447 = vld [vmem:[#allocation9 + $0x150] sm:$0xff]
    %v1448 = vld [vmem:[#allocation9 + $0x158] sm:$0xff]
    %v1449 = vld [vmem:[#allocation9 + $0x160] sm:$0xff]
    %v1450 = vld [vmem:[#allocation9 + $0x168] sm:$0xff]
    %v1451 = vld [vmem:[#allocation9 + $0x170] sm:$0xff]
    %v1452 = vld [vmem:[#allocation9 + $0x178] sm:$0xff]
    %v1453 = vld [vmem:[#allocation9 + $0x180] sm:$0xff]
    %v1454 = vld [vmem:[#allocation9 + $0x188] sm:$0xff]
    %v1455 = vld [vmem:[#allocation9 + $0x190] sm:$0xff]
    %v1456 = vld [vmem:[#allocation9 + $0x198] sm:$0xff]
    %v1457 = vld [vmem:[#allocation9 + $0x1a0] sm:$0xff]
    %v1458 = vld [vmem:[#allocation9 + $0x1a8] sm:$0xff]
    %v1459 = vld [vmem:[#allocation9 + $0x1b0] sm:$0xff]
    %v1460 = vld [vmem:[#allocation9 + $0x1b8] sm:$0xff]
    %v1461 = vld [vmem:[#allocation9 + $0x1c0] sm:$0xff]
    %v1462 = vld [vmem:[#allocation9 + $0x1c8] sm:$0xff]
    %v1463 = vld [vmem:[#allocation9 + $0x1d0] sm:$0xff]
    %v1464 = vld [vmem:[#allocation9 + $0x1d8] sm:$0xff]
    %v1465 = vld [vmem:[#allocation9 + $0x1e0] sm:$0xff]
    %v1466 = vld [vmem:[#allocation9 + $0x1e8] sm:$0xff]
    %v1467 = vld [vmem:[#allocation9 + $0x1f0] sm:$0xff]
    %v1468 = vld [vmem:[#allocation9 + $0x1f8] sm:$0xff]
    %v1469 = vld [vmem:[#allocation9 + $0x200] sm:$0xff]
    %v1470 = vld [vmem:[#allocation9 + $0x208] sm:$0xff]
    %v1471 = vld [vmem:[#allocation9 + $0x210] sm:$0xff]
    %v1472 = vld [vmem:[#allocation9 + $0x218] sm:$0xff]
    %v1473 = vld [vmem:[#allocation9 + $0x220] sm:$0xff]
    %v1474 = vld [vmem:[#allocation9 + $0x228] sm:$0xff]
    %v1475 = vld [vmem:[#allocation9 + $0x230] sm:$0xff]
    %v1476 = vld [vmem:[#allocation9 + $0x238] sm:$0xff]
    %v1477 = vld [vmem:[#allocation9 + $0x240] sm:$0xff]
    %v1478 = vld [vmem:[#allocation9 + $0x248] sm:$0xff]
    %v1479 = vld [vmem:[#allocation9 + $0x250] sm:$0xff]
    %v1480 = vld [vmem:[#allocation9 + $0x258] sm:$0xff]
    %v1481 = vld [vmem:[#allocation9 + $0x260] sm:$0xff]
    %v1482 = vld [vmem:[#allocation9 + $0x268] sm:$0xff]
    %v1483 = vld [vmem:[#allocation9 + $0x270] sm:$0xff]
    %v1484 = vld [vmem:[#allocation9 + $0x278] sm:$0xff]
    %v1485 = vld [vmem:[#allocation9 + $0x280] sm:$0xff]
    %v1486 = vld [vmem:[#allocation9 + $0x288] sm:$0xff]
    %v1487 = vld [vmem:[#allocation9 + $0x290] sm:$0xff]
    %v1488 = vld [vmem:[#allocation9 + $0x298] sm:$0xff]
    %v1489 = vld [vmem:[#allocation9 + $0x2a0] sm:$0xff]
    %v1490 = vld [vmem:[#allocation9 + $0x2a8] sm:$0xff]
    %v1491 = vld [vmem:[#allocation9 + $0x2b0] sm:$0xff]
    %v1492 = vld [vmem:[#allocation9 + $0x2b8] sm:$0xff]
    %v1493 = vld [vmem:[#allocation9 + $0x2c0] sm:$0xff]
    %v1494 = vld [vmem:[#allocation9 + $0x2c8] sm:$0xff]
    %v1495 = vld [vmem:[#allocation9 + $0x2d0] sm:$0xff]
    %v1496 = vld [vmem:[#allocation9 + $0x2d8] sm:$0xff]
    %v1497 = vld [vmem:[#allocation9 + $0x2e0] sm:$0xff]
    %v1498 = vld [vmem:[#allocation9 + $0x2e8] sm:$0xff]
    %v1499 = vld [vmem:[#allocation9 + $0x2f0] sm:$0xff]
    %v1500 = vld [vmem:[#allocation9 + $0x2f8] sm:$0xff]
    %v1501 = vld [vmem:[#allocation9 + $0x300] sm:$0xff]
    %v1502 = vld [vmem:[#allocation9 + $0x308] sm:$0xff]
    %v1503 = vld [vmem:[#allocation9 + $0x310] sm:$0xff]
    %v1504 = vld [vmem:[#allocation9 + $0x318] sm:$0xff]
    %v1505 = vld [vmem:[#allocation9 + $0x320] sm:$0xff]
    %v1506 = vld [vmem:[#allocation9 + $0x328] sm:$0xff]
    %v1507 = vld [vmem:[#allocation9 + $0x330] sm:$0xff]
    %v1508 = vld [vmem:[#allocation9 + $0x338] sm:$0xff]
    %v1509 = vld [vmem:[#allocation9 + $0x340] sm:$0xff]
    %v1510 = vld [vmem:[#allocation9 + $0x348] sm:$0xff]
    %v1511 = vld [vmem:[#allocation9 + $0x350] sm:$0xff]
    %v1512 = vld [vmem:[#allocation9 + $0x358] sm:$0xff]
    %v1513 = vld [vmem:[#allocation9 + $0x360] sm:$0xff]
    %v1514 = vld [vmem:[#allocation9 + $0x368] sm:$0xff]
    %v1515 = vld [vmem:[#allocation9 + $0x370] sm:$0xff]
    %v1516 = vld [vmem:[#allocation9 + $0x378] sm:$0xff]
    %v1517 = vld [vmem:[#allocation9 + $0x380] sm:$0xff]
    %v1518 = vld [vmem:[#allocation9 + $0x388] sm:$0xff]
    %v1519 = vld [vmem:[#allocation9 + $0x390] sm:$0xff]
    %v1520 = vld [vmem:[#allocation9 + $0x398] sm:$0xff]
    %v1521 = vld [vmem:[#allocation9 + $0x3a0] sm:$0xff]
    %v1522 = vld [vmem:[#allocation9 + $0x3a8] sm:$0xff]
    %v1523 = vld [vmem:[#allocation9 + $0x3b0] sm:$0xff]
    %v1524 = vld [vmem:[#allocation9 + $0x3b8] sm:$0xff]
    %v1525 = vld [vmem:[#allocation9 + $0x3c0] sm:$0xff]
    %v1526 = vld [vmem:[#allocation9 + $0x3c8] sm:$0xff]
    %v1527 = vld [vmem:[#allocation9 + $0x3d0] sm:$0xff]
    %v1528 = vld [vmem:[#allocation9 + $0x3d8] sm:$0xff]
    %v1529 = vld [vmem:[#allocation9 + $0x3e0] sm:$0xff]
    %v1530 = vld [vmem:[#allocation9 + $0x3e8] sm:$0xff]
    %v1531 = vld [vmem:[#allocation9 + $0x3f0] sm:$0xff]
    %v1532 = vld [vmem:[#allocation9 + $0x3f8] sm:$0xff]
    %v1533 = vld [vmem:[#allocation9 + $0x400] sm:$0xff]
    %v1534 = vld [vmem:[#allocation9 + $0x408] sm:$0xff]
    %v1535 = vld [vmem:[#allocation9 + $0x410] sm:$0xff]
    %v1536 = vld [vmem:[#allocation9 + $0x418] sm:$0xff]
    %v1537 = vld [vmem:[#allocation9 + $0x420] sm:$0xff]
    %v1538 = vld [vmem:[#allocation9 + $0x428] sm:$0xff]
    %v1539 = vld [vmem:[#allocation9 + $0x430] sm:$0xff]
    %v1540 = vld [vmem:[#allocation9 + $0x438] sm:$0xff]
    %v1541 = vld [vmem:[#allocation9 + $0x440] sm:$0xff]
    %v1542 = vld [vmem:[#allocation9 + $0x448] sm:$0xff]
    %v1543 = vld [vmem:[#allocation9 + $0x450] sm:$0xff]
    %v1544 = vld [vmem:[#allocation9 + $0x458] sm:$0xff]
    %v1545 = vld [vmem:[#allocation9 + $0x460] sm:$0xff]
    %v1546 = vld [vmem:[#allocation9 + $0x468] sm:$0xff]
    %v1547 = vld [vmem:[#allocation9 + $0x470] sm:$0xff]
    %v1548 = vld [vmem:[#allocation9 + $0x478] sm:$0xff]
    %v1549 = vld [vmem:[#allocation9 + $0x480] sm:$0xff]
    %v1550 = vld [vmem:[#allocation9 + $0x488] sm:$0xff]
    %v1551 = vld [vmem:[#allocation9 + $0x490] sm:$0xff]
    %v1552 = vld [vmem:[#allocation9 + $0x498] sm:$0xff]
    %v1553 = vld [vmem:[#allocation9 + $0x4a0] sm:$0xff]
    %v1554 = vld [vmem:[#allocation9 + $0x4a8] sm:$0xff]
    %v1555 = vld [vmem:[#allocation9 + $0x4b0] sm:$0xff]
    %v1556 = vld [vmem:[#allocation9 + $0x4b8] sm:$0xff]
    %v1557 = vld [vmem:[#allocation9 + $0x4c0] sm:$0xff]
    %v1558 = vld [vmem:[#allocation9 + $0x4c8] sm:$0xff]
    %v1559 = vld [vmem:[#allocation9 + $0x4d0] sm:$0xff]
    %v1560 = vld [vmem:[#allocation9 + $0x4d8] sm:$0xff]
    %v1561 = vld [vmem:[#allocation9 + $0x4e0] sm:$0xff]
    %v1562 = vld [vmem:[#allocation9 + $0x4e8] sm:$0xff]
    %v1563 = vld [vmem:[#allocation9 + $0x4f0] sm:$0xff]
    %v1564 = vld [vmem:[#allocation9 + $0x4f8] sm:$0xff]
    %v1565 = vld [vmem:[#allocation9 + $0x500] sm:$0xff]
    %v1566 = vld [vmem:[#allocation9 + $0x508] sm:$0xff]
    %v1567 = vld [vmem:[#allocation9 + $0x510] sm:$0xff]
    %v1568 = vld [vmem:[#allocation9 + $0x518] sm:$0xff]
    %v1569 = vld [vmem:[#allocation9 + $0x520] sm:$0xff]
    %v1570 = vld [vmem:[#allocation9 + $0x528] sm:$0xff]
    %v1571 = vld [vmem:[#allocation9 + $0x530] sm:$0xff]
    %v1572 = vld [vmem:[#allocation9 + $0x538] sm:$0xff]
    %v1573 = vld [vmem:[#allocation9 + $0x540] sm:$0xff]
    %v1574 = vld [vmem:[#allocation9 + $0x548] sm:$0xff]
    %v1575 = vld [vmem:[#allocation9 + $0x550] sm:$0xff]
    %v1576 = vld [vmem:[#allocation9 + $0x558] sm:$0xff]
    %v1577 = vld [vmem:[#allocation9 + $0x560] sm:$0xff]
    %v1578 = vld [vmem:[#allocation9 + $0x568] sm:$0xff]
    %v1579 = vld [vmem:[#allocation9 + $0x570] sm:$0xff]
    %v1580 = vld [vmem:[#allocation9 + $0x578] sm:$0xff]
    %v1581 = vld [vmem:[#allocation9 + $0x580] sm:$0xff]
    %v1582 = vld [vmem:[#allocation9 + $0x588] sm:$0xff]
    %v1583 = vld [vmem:[#allocation9 + $0x590] sm:$0xff]
    %v1584 = vld [vmem:[#allocation9 + $0x598] sm:$0xff]
    %v1585 = vld [vmem:[#allocation9 + $0x5a0] sm:$0xff]
    %v1586 = vld [vmem:[#allocation9 + $0x5a8] sm:$0xff]
    %v1587 = vld [vmem:[#allocation9 + $0x5b0] sm:$0xff]
    %v1588 = vld [vmem:[#allocation9 + $0x5b8] sm:$0xff]
    %v1589 = vld [vmem:[#allocation9 + $0x5c0] sm:$0xff]
    %v1590 = vld [vmem:[#allocation9 + $0x5c8] sm:$0xff]
    %v1591 = vld [vmem:[#allocation9 + $0x5d0] sm:$0xff]
    %v1592 = vld [vmem:[#allocation9 + $0x5d8] sm:$0xff]
    %v1593 = vld [vmem:[#allocation9 + $0x5e0] sm:$0xff]
    %v1594 = vld [vmem:[#allocation9 + $0x5e8] sm:$0xff]
    %v1595 = vld [vmem:[#allocation9 + $0x5f0] sm:$0xff]
    %v1596 = vld [vmem:[#allocation9 + $0x5f8] sm:$0xff]
    %v1597 = vld [vmem:[#allocation9 + $0x600] sm:$0xff]
    %v1598 = vld [vmem:[#allocation9 + $0x608] sm:$0xff]
    %v1599 = vld [vmem:[#allocation9 + $0x610] sm:$0xff]
    %v1600 = vld [vmem:[#allocation9 + $0x618] sm:$0xff]
    %v1601 = vld [vmem:[#allocation9 + $0x620] sm:$0xff]
    %v1602 = vld [vmem:[#allocation9 + $0x628] sm:$0xff]
    %v1603 = vld [vmem:[#allocation9 + $0x630] sm:$0xff]
    %v1604 = vld [vmem:[#allocation9 + $0x638] sm:$0xff]
    %v1605 = vld [vmem:[#allocation9 + $0x640] sm:$0xff]
    %v1606 = vld [vmem:[#allocation9 + $0x648] sm:$0xff]
    %v1607 = vld [vmem:[#allocation9 + $0x650] sm:$0xff]
    %v1608 = vld [vmem:[#allocation9 + $0x658] sm:$0xff]
    %v1609 = vld [vmem:[#allocation9 + $0x660] sm:$0xff]
    %v1610 = vld [vmem:[#allocation9 + $0x668] sm:$0xff]
    %v1611 = vld [vmem:[#allocation9 + $0x670] sm:$0xff]
    %v1612 = vld [vmem:[#allocation9 + $0x678] sm:$0xff]
    %v1613 = vld [vmem:[#allocation9 + $0x680] sm:$0xff]
    %v1614 = vld [vmem:[#allocation9 + $0x688] sm:$0xff]
    %v1615 = vld [vmem:[#allocation9 + $0x690] sm:$0xff]
    %v1616 = vld [vmem:[#allocation9 + $0x698] sm:$0xff]
    %v1617 = vld [vmem:[#allocation9 + $0x6a0] sm:$0xff]
    %v1618 = vld [vmem:[#allocation9 + $0x6a8] sm:$0xff]
    %v1619 = vld [vmem:[#allocation9 + $0x6b0] sm:$0xff]
    %v1620 = vld [vmem:[#allocation9 + $0x6b8] sm:$0xff]
    %v1621 = vld [vmem:[#allocation9 + $0x6c0] sm:$0xff]
    %v1622 = vld [vmem:[#allocation9 + $0x6c8] sm:$0xff]
    %v1623 = vld [vmem:[#allocation9 + $0x6d0] sm:$0xff]
    %v1624 = vld [vmem:[#allocation9 + $0x6d8] sm:$0xff]
    %v1625 = vld [vmem:[#allocation9 + $0x6e0] sm:$0xff]
    %v1626 = vld [vmem:[#allocation9 + $0x6e8] sm:$0xff]
    %v1627 = vld [vmem:[#allocation9 + $0x6f0] sm:$0xff]
    %v1628 = vld [vmem:[#allocation9 + $0x6f8] sm:$0xff]
    %v1629 = vld [vmem:[#allocation9 + $0x700] sm:$0xff]
    %v1630 = vld [vmem:[#allocation9 + $0x708] sm:$0xff]
    %v1631 = vld [vmem:[#allocation9 + $0x710] sm:$0xff]
    %v1632 = vld [vmem:[#allocation9 + $0x718] sm:$0xff]
    %v1633 = vld [vmem:[#allocation9 + $0x720] sm:$0xff]
    %v1634 = vld [vmem:[#allocation9 + $0x728] sm:$0xff]
    %v1635 = vld [vmem:[#allocation9 + $0x730] sm:$0xff]
    %v1636 = vld [vmem:[#allocation9 + $0x738] sm:$0xff]
    %v1637 = vld [vmem:[#allocation9 + $0x740] sm:$0xff]
    %v1638 = vld [vmem:[#allocation9 + $0x748] sm:$0xff]
    %v1639 = vld [vmem:[#allocation9 + $0x750] sm:$0xff]
    %v1640 = vld [vmem:[#allocation9 + $0x758] sm:$0xff]
    %v1641 = vld [vmem:[#allocation9 + $0x760] sm:$0xff]
    %v1642 = vld [vmem:[#allocation9 + $0x768] sm:$0xff]
    %v1643 = vld [vmem:[#allocation9 + $0x770] sm:$0xff]
    %v1644 = vld [vmem:[#allocation9 + $0x778] sm:$0xff]
    %v1645 = vld [vmem:[#allocation9 + $0x780] sm:$0xff]
    %v1646 = vld [vmem:[#allocation9 + $0x788] sm:$0xff]
    %v1647 = vld [vmem:[#allocation9 + $0x790] sm:$0xff]
    %v1648 = vld [vmem:[#allocation9 + $0x798] sm:$0xff]
    %v1649 = vld [vmem:[#allocation9 + $0x7a0] sm:$0xff]
    %v1650 = vld [vmem:[#allocation9 + $0x7a8] sm:$0xff]
    %v1651 = vld [vmem:[#allocation9 + $0x7b0] sm:$0xff]
    %v1652 = vld [vmem:[#allocation9 + $0x7b8] sm:$0xff]
    %v1653 = vld [vmem:[#allocation9 + $0x7c0] sm:$0xff]
    %v1654 = vld [vmem:[#allocation9 + $0x7c8] sm:$0xff]
    %v1655 = vld [vmem:[#allocation9 + $0x7d0] sm:$0xff]
    %v1656 = vld [vmem:[#allocation9 + $0x7d8] sm:$0xff]
    %v1657 = vld [vmem:[#allocation9 + $0x7e0] sm:$0xff]
    %v1658 = vld [vmem:[#allocation9 + $0x7e8] sm:$0xff]
    %v1659 = vld [vmem:[#allocation9 + $0x7f0] sm:$0xff]
    %v1660 = vld [vmem:[#allocation9 + $0x7f8] sm:$0xff]
    %v1661 = vld [vmem:[#allocation9 + $0x800] sm:$0xff]
    %v1662 = vld [vmem:[#allocation9 + $0x808] sm:$0xff]
    %v1663 = vld [vmem:[#allocation9 + $0x810] sm:$0xff]
    %v1664 = vld [vmem:[#allocation9 + $0x818] sm:$0xff]
    %v1665 = vld [vmem:[#allocation9 + $0x820] sm:$0xff]
    %v1666 = vld [vmem:[#allocation9 + $0x828] sm:$0xff]
    %v1667 = vld [vmem:[#allocation9 + $0x830] sm:$0xff]
    %v1668 = vld [vmem:[#allocation9 + $0x838] sm:$0xff]
    %v1669 = vld [vmem:[#allocation9 + $0x840] sm:$0xff]
    %v1670 = vld [vmem:[#allocation9 + $0x848] sm:$0xff]
    %v1671 = vld [vmem:[#allocation9 + $0x850] sm:$0xff]
    %v1672 = vld [vmem:[#allocation9 + $0x858] sm:$0xff]
    %v1673 = vld [vmem:[#allocation9 + $0x860] sm:$0xff]
    %v1674 = vld [vmem:[#allocation9 + $0x868] sm:$0xff]
    %v1675 = vld [vmem:[#allocation9 + $0x870] sm:$0xff]
    %v1676 = vld [vmem:[#allocation9 + $0x878] sm:$0xff]
    %v1677 = vld [vmem:[#allocation9 + $0x880] sm:$0xff]
    %v1678 = vld [vmem:[#allocation9 + $0x888] sm:$0xff]
    %v1679 = vld [vmem:[#allocation9 + $0x890] sm:$0xff]
    %v1680 = vld [vmem:[#allocation9 + $0x898] sm:$0xff]
    %v1681 = vld [vmem:[#allocation9 + $0x8a0] sm:$0xff]
    %v1682 = vld [vmem:[#allocation9 + $0x8a8] sm:$0xff]
    %v1683 = vld [vmem:[#allocation9 + $0x8b0] sm:$0xff]
    %v1684 = vld [vmem:[#allocation9 + $0x8b8] sm:$0xff]
    %v1685 = vld [vmem:[#allocation9 + $0x8c0] sm:$0xff]
    %v1686 = vld [vmem:[#allocation9 + $0x8c8] sm:$0xff]
    %v1687 = vld [vmem:[#allocation9 + $0x8d0] sm:$0xff]
    %v1688 = vld [vmem:[#allocation9 + $0x8d8] sm:$0xff]
    %v1689 = vld [vmem:[#allocation9 + $0x8e0] sm:$0xff]
    %v1690 = vld [vmem:[#allocation9 + $0x8e8] sm:$0xff]
    %v1691 = vld [vmem:[#allocation9 + $0x8f0] sm:$0xff]
    %v1692 = vld [vmem:[#allocation9 + $0x8f8] sm:$0xff]
    %v1693 = vld [vmem:[#allocation9 + $0x900] sm:$0xff]
    %v1694 = vld [vmem:[#allocation9 + $0x908] sm:$0xff]
    %v1695 = vld [vmem:[#allocation9 + $0x910] sm:$0xff]
    %v1696 = vld [vmem:[#allocation9 + $0x918] sm:$0xff]
    %v1697 = vld [vmem:[#allocation9 + $0x920] sm:$0xff]
    %v1698 = vld [vmem:[#allocation9 + $0x928] sm:$0xff]
    %v1699 = vld [vmem:[#allocation9 + $0x930] sm:$0xff]
    %v1700 = vld [vmem:[#allocation9 + $0x938] sm:$0xff]
    %v1701 = vld [vmem:[#allocation9 + $0x940] sm:$0xff]
    %v1702 = vld [vmem:[#allocation9 + $0x948] sm:$0xff]
    %v1703 = vld [vmem:[#allocation9 + $0x950] sm:$0xff]
    %v1704 = vld [vmem:[#allocation9 + $0x958] sm:$0xff]
    %v1705 = vld [vmem:[#allocation9 + $0x960] sm:$0xff]
    %v1706 = vld [vmem:[#allocation9 + $0x968] sm:$0xff]
    %v1707 = vld [vmem:[#allocation9 + $0x970] sm:$0xff]
    %v1708 = vld [vmem:[#allocation9 + $0x978] sm:$0xff]
    %v1709 = vld [vmem:[#allocation9 + $0x980] sm:$0xff]
    %v1710 = vld [vmem:[#allocation9 + $0x988] sm:$0xff]
    %v1711 = vld [vmem:[#allocation9 + $0x990] sm:$0xff]
    %v1712 = vld [vmem:[#allocation9 + $0x998] sm:$0xff]
    %v1713 = vld [vmem:[#allocation9 + $0x9a0] sm:$0xff]
    %v1714 = vld [vmem:[#allocation9 + $0x9a8] sm:$0xff]
    %v1715 = vld [vmem:[#allocation9 + $0x9b0] sm:$0xff]
    %v1716 = vld [vmem:[#allocation9 + $0x9b8] sm:$0xff]
    %v1717 = vld [vmem:[#allocation9 + $0x9c0] sm:$0xff]
    %v1718 = vld [vmem:[#allocation9 + $0x9c8] sm:$0xff]
    %v1719 = vld [vmem:[#allocation9 + $0x9d0] sm:$0xff]
    %v1720 = vld [vmem:[#allocation9 + $0x9d8] sm:$0xff]
    %v1721 = vld [vmem:[#allocation9 + $0x9e0] sm:$0xff]
    %v1722 = vld [vmem:[#allocation9 + $0x9e8] sm:$0xff]
    %v1723 = vld [vmem:[#allocation9 + $0x9f0] sm:$0xff]
    %v1724 = vld [vmem:[#allocation9 + $0x9f8] sm:$0xff]
    %v1725 = vld [vmem:[#allocation9 + $0xa00] sm:$0xff]
    %v1726 = vld [vmem:[#allocation9 + $0xa08] sm:$0xff]
    %v1727 = vld [vmem:[#allocation9 + $0xa10] sm:$0xff]
    %v1728 = vld [vmem:[#allocation9 + $0xa18] sm:$0xff]
    %v1729 = vld [vmem:[#allocation9 + $0xa20] sm:$0xff]
    %v1730 = vld [vmem:[#allocation9 + $0xa28] sm:$0xff]
    %v1731 = vld [vmem:[#allocation9 + $0xa30] sm:$0xff]
    %v1732 = vld [vmem:[#allocation9 + $0xa38] sm:$0xff]
    %v1733 = vld [vmem:[#allocation9 + $0xa40] sm:$0xff]
    %v1734 = vld [vmem:[#allocation9 + $0xa48] sm:$0xff]
    %v1735 = vld [vmem:[#allocation9 + $0xa50] sm:$0xff]
    %v1736 = vld [vmem:[#allocation9 + $0xa58] sm:$0xff]
    %v1737 = vld [vmem:[#allocation9 + $0xa60] sm:$0xff]
    %v1738 = vld [vmem:[#allocation9 + $0xa68] sm:$0xff]
    %v1739 = vld [vmem:[#allocation9 + $0xa70] sm:$0xff]
    %v1740 = vld [vmem:[#allocation9 + $0xa78] sm:$0xff]
    %v1741 = vld [vmem:[#allocation9 + $0xa80] sm:$0xff]
    %v1742 = vld [vmem:[#allocation9 + $0xa88] sm:$0xff]
    %v1743 = vld [vmem:[#allocation9 + $0xa90] sm:$0xff]
    %v1744 = vld [vmem:[#allocation9 + $0xa98] sm:$0xff]
    %v1745 = vld [vmem:[#allocation9 + $0xaa0] sm:$0xff]
    %v1746 = vld [vmem:[#allocation9 + $0xaa8] sm:$0xff]
    %v1747 = vld [vmem:[#allocation9 + $0xab0] sm:$0xff]
    %v1748 = vld [vmem:[#allocation9 + $0xab8] sm:$0xff]
    %v1749 = vld [vmem:[#allocation9 + $0xac0] sm:$0xff]
    %v1750 = vld [vmem:[#allocation9 + $0xac8] sm:$0xff]
    %v1751 = vld [vmem:[#allocation9 + $0xad0] sm:$0xff]
    %v1752 = vld [vmem:[#allocation9 + $0xad8] sm:$0xff]
    %v1753 = vld [vmem:[#allocation9 + $0xae0] sm:$0xff]
    %v1754 = vld [vmem:[#allocation9 + $0xae8] sm:$0xff]
    %v1755 = vld [vmem:[#allocation9 + $0xaf0] sm:$0xff]
    %v1756 = vld [vmem:[#allocation9 + $0xaf8] sm:$0xff]
    %v1757 = vld [vmem:[#allocation9 + $0xb00] sm:$0xff]
    %v1758 = vld [vmem:[#allocation9 + $0xb08] sm:$0xff]
    %v1759 = vld [vmem:[#allocation9 + $0xb10] sm:$0xff]
    %v1760 = vld [vmem:[#allocation9 + $0xb18] sm:$0xff]
    %v1761 = vld [vmem:[#allocation9 + $0xb20] sm:$0xff]
    %v1762 = vld [vmem:[#allocation9 + $0xb28] sm:$0xff]
    %v1763 = vld [vmem:[#allocation9 + $0xb30] sm:$0xff]
    %v1764 = vld [vmem:[#allocation9 + $0xb38] sm:$0xff]
    %v1765 = vld [vmem:[#allocation9 + $0xb40] sm:$0xff]
    %v1766 = vld [vmem:[#allocation9 + $0xb48] sm:$0xff]
    %v1767 = vld [vmem:[#allocation9 + $0xb50] sm:$0xff]
    %v1768 = vld [vmem:[#allocation9 + $0xb58] sm:$0xff]
    %v1769 = vld [vmem:[#allocation9 + $0xb60] sm:$0xff]
    %v1770 = vld [vmem:[#allocation9 + $0xb68] sm:$0xff]
    %v1771 = vld [vmem:[#allocation9 + $0xb70] sm:$0xff]
    %v1772 = vld [vmem:[#allocation9 + $0xb78] sm:$0xff]
    %v1773 = vld [vmem:[#allocation9 + $0xb80] sm:$0xff]
    %v1774 = vld [vmem:[#allocation9 + $0xb88] sm:$0xff]
    %v1775 = vld [vmem:[#allocation9 + $0xb90] sm:$0xff]
    %v1776 = vld [vmem:[#allocation9 + $0xb98] sm:$0xff]
    %v1777 = vld [vmem:[#allocation9 + $0xba0] sm:$0xff]
    %v1778 = vld [vmem:[#allocation9 + $0xba8] sm:$0xff]
    %v1779 = vld [vmem:[#allocation9 + $0xbb0] sm:$0xff]
    %v1780 = vld [vmem:[#allocation9 + $0xbb8] sm:$0xff]
    %v1781 = vld [vmem:[#allocation9 + $0xbc0] sm:$0xff]
    %v1782 = vld [vmem:[#allocation9 + $0xbc8] sm:$0xff]
    %v1783 = vld [vmem:[#allocation9 + $0xbd0] sm:$0xff]
    %v1784 = vld [vmem:[#allocation9 + $0xbd8] sm:$0xff]
    %v1785 = vld [vmem:[#allocation9 + $0xbe0] sm:$0xff]
    %v1786 = vld [vmem:[#allocation9 + $0xbe8] sm:$0xff]
    %v1787 = vld [vmem:[#allocation9 + $0xbf0] sm:$0xff]
    %v1788 = vld [vmem:[#allocation9 + $0xbf8] sm:$0xff]
    %v1789 = vld [vmem:[#allocation9 + $0xc00] sm:$0xff]
    %v1790 = vld [vmem:[#allocation9 + $0xc08] sm:$0xff]
    %v1791 = vld [vmem:[#allocation9 + $0xc10] sm:$0xff]
    %v1792 = vld [vmem:[#allocation9 + $0xc18] sm:$0xff]
    %v1793 = vld [vmem:[#allocation9 + $0xc20] sm:$0xff]
    %v1794 = vld [vmem:[#allocation9 + $0xc28] sm:$0xff]
    %v1795 = vld [vmem:[#allocation9 + $0xc30] sm:$0xff]
    %v1796 = vld [vmem:[#allocation9 + $0xc38] sm:$0xff]
    %v1797 = vld [vmem:[#allocation9 + $0xc40] sm:$0xff]
    %v1798 = vld [vmem:[#allocation9 + $0xc48] sm:$0xff]
    %v1799 = vld [vmem:[#allocation9 + $0xc50] sm:$0xff]
    %v1800 = vld [vmem:[#allocation9 + $0xc58] sm:$0xff]
    %v1801 = vld [vmem:[#allocation9 + $0xc60] sm:$0xff]
    %v1802 = vld [vmem:[#allocation9 + $0xc68] sm:$0xff]
    %v1803 = vld [vmem:[#allocation9 + $0xc70] sm:$0xff]
    %v1804 = vld [vmem:[#allocation9 + $0xc78] sm:$0xff]
    %v1805 = vld [vmem:[#allocation9 + $0xc80] sm:$0xff]
    %v1806 = vld [vmem:[#allocation9 + $0xc88] sm:$0xff]
    %v1807 = vld [vmem:[#allocation9 + $0xc90] sm:$0xff]
    %v1808 = vld [vmem:[#allocation9 + $0xc98] sm:$0xff]
    %v1809 = vld [vmem:[#allocation9 + $0xca0] sm:$0xff]
    %v1810 = vld [vmem:[#allocation9 + $0xca8] sm:$0xff]
    %v1811 = vld [vmem:[#allocation9 + $0xcb0] sm:$0xff]
    %v1812 = vld [vmem:[#allocation9 + $0xcb8] sm:$0xff]
    %v1813 = vld [vmem:[#allocation9 + $0xcc0] sm:$0xff]
    %v1814 = vld [vmem:[#allocation9 + $0xcc8] sm:$0xff]
    %v1815 = vld [vmem:[#allocation9 + $0xcd0] sm:$0xff]
    %v1816 = vld [vmem:[#allocation9 + $0xcd8] sm:$0xff]
    %v1817 = vld [vmem:[#allocation9 + $0xce0] sm:$0xff]
    %v1818 = vld [vmem:[#allocation9 + $0xce8] sm:$0xff]
    %v1819 = vld [vmem:[#allocation9 + $0xcf0] sm:$0xff]
    %v1820 = vld [vmem:[#allocation9 + $0xcf8] sm:$0xff]
    %v1821 = vld [vmem:[#allocation9 + $0xd00] sm:$0xff]
    %v1822 = vld [vmem:[#allocation9 + $0xd08] sm:$0xff]
    %v1823 = vld [vmem:[#allocation9 + $0xd10] sm:$0xff]
    %v1824 = vld [vmem:[#allocation9 + $0xd18] sm:$0xff]
    %v1825 = vld [vmem:[#allocation9 + $0xd20] sm:$0xff]
    %v1826 = vld [vmem:[#allocation9 + $0xd28] sm:$0xff]
    %v1827 = vld [vmem:[#allocation9 + $0xd30] sm:$0xff]
    %v1828 = vld [vmem:[#allocation9 + $0xd38] sm:$0xff]
    %v1829 = vld [vmem:[#allocation9 + $0xd40] sm:$0xff]
    %v1830 = vld [vmem:[#allocation9 + $0xd48] sm:$0xff]
    %v1831 = vld [vmem:[#allocation9 + $0xd50] sm:$0xff]
    %v1832 = vld [vmem:[#allocation9 + $0xd58] sm:$0xff]
    %v1833 = vld [vmem:[#allocation9 + $0xd60] sm:$0xff]
    %v1834 = vld [vmem:[#allocation9 + $0xd68] sm:$0xff]
    %v1835 = vld [vmem:[#allocation9 + $0xd70] sm:$0xff]
    %v1836 = vld [vmem:[#allocation9 + $0xd78] sm:$0xff]
    %v1837 = vld [vmem:[#allocation9 + $0xd80] sm:$0xff]
    %v1838 = vld [vmem:[#allocation9 + $0xd88] sm:$0xff]
    %v1839 = vld [vmem:[#allocation9 + $0xd90] sm:$0xff]
    %v1840 = vld [vmem:[#allocation9 + $0xd98] sm:$0xff]
    %v1841 = vld [vmem:[#allocation9 + $0xda0] sm:$0xff]
    %v1842 = vld [vmem:[#allocation9 + $0xda8] sm:$0xff]
    %v1843 = vld [vmem:[#allocation9 + $0xdb0] sm:$0xff]
    %v1844 = vld [vmem:[#allocation9 + $0xdb8] sm:$0xff]
    %v1845 = vld [vmem:[#allocation9 + $0xdc0] sm:$0xff]
    %v1846 = vld [vmem:[#allocation9 + $0xdc8] sm:$0xff]
    %v1847 = vld [vmem:[#allocation9 + $0xdd0] sm:$0xff]
    %v1848 = vld [vmem:[#allocation9 + $0xdd8] sm:$0xff]
    %v1849 = vld [vmem:[#allocation9 + $0xde0] sm:$0xff]
    %v1850 = vld [vmem:[#allocation9 + $0xde8] sm:$0xff]
    %v1851 = vld [vmem:[#allocation9 + $0xdf0] sm:$0xff]
    %v1852 = vld [vmem:[#allocation9 + $0xdf8] sm:$0xff]
    %v1853 = vld [vmem:[#allocation9 + $0xe00] sm:$0xff]
    %v1854 = vld [vmem:[#allocation9 + $0xe08] sm:$0xff]
    %v1855 = vld [vmem:[#allocation9 + $0xe10] sm:$0xff]
    %v1856 = vld [vmem:[#allocation9 + $0xe18] sm:$0xff]
    %v1857 = vld [vmem:[#allocation9 + $0xe20] sm:$0xff]
    %v1858 = vld [vmem:[#allocation9 + $0xe28] sm:$0xff]
    %v1859 = vld [vmem:[#allocation9 + $0xe30] sm:$0xff]
    %v1860 = vld [vmem:[#allocation9 + $0xe38] sm:$0xff]
    %v1861 = vld [vmem:[#allocation9 + $0xe40] sm:$0xff]
    %v1862 = vld [vmem:[#allocation9 + $0xe48] sm:$0xff]
    %v1863 = vld [vmem:[#allocation9 + $0xe50] sm:$0xff]
    %v1864 = vld [vmem:[#allocation9 + $0xe58] sm:$0xff]
    %v1865 = vld [vmem:[#allocation9 + $0xe60] sm:$0xff]
    %v1866 = vld [vmem:[#allocation9 + $0xe68] sm:$0xff]
    %v1867 = vld [vmem:[#allocation9 + $0xe70] sm:$0xff]
    %v1868 = vld [vmem:[#allocation9 + $0xe78] sm:$0xff]
    %v1869 = vld [vmem:[#allocation9 + $0xe80] sm:$0xff]
    %v1870 = vld [vmem:[#allocation9 + $0xe88] sm:$0xff]
    %v1871 = vld [vmem:[#allocation9 + $0xe90] sm:$0xff]
    %v1872 = vld [vmem:[#allocation9 + $0xe98] sm:$0xff]
    %v1873 = vld [vmem:[#allocation9 + $0xea0] sm:$0xff]
    %v1874 = vld [vmem:[#allocation9 + $0xea8] sm:$0xff]
    %v1875 = vld [vmem:[#allocation9 + $0xeb0] sm:$0xff]
    %v1876 = vld [vmem:[#allocation9 + $0xeb8] sm:$0xff]
    %v1877 = vld [vmem:[#allocation9 + $0xec0] sm:$0xff]
    %v1878 = vld [vmem:[#allocation9 + $0xec8] sm:$0xff]
    %v1879 = vld [vmem:[#allocation9 + $0xed0] sm:$0xff]
    %v1880 = vld [vmem:[#allocation9 + $0xed8] sm:$0xff]
    %v1881 = vld [vmem:[#allocation9 + $0xee0] sm:$0xff]
    %v1882 = vld [vmem:[#allocation9 + $0xee8] sm:$0xff]
    %v1883 = vld [vmem:[#allocation9 + $0xef0] sm:$0xff]
    %v1884 = vld [vmem:[#allocation9 + $0xef8] sm:$0xff]
    %v1885 = vld [vmem:[#allocation9 + $0xf00] sm:$0xff]
    %v1886 = vld [vmem:[#allocation9 + $0xf08] sm:$0xff]
    %v1887 = vld [vmem:[#allocation9 + $0xf10] sm:$0xff]
    %v1888 = vld [vmem:[#allocation9 + $0xf18] sm:$0xff]
    %v1889 = vld [vmem:[#allocation9 + $0xf20] sm:$0xff]
    %v1890 = vld [vmem:[#allocation9 + $0xf28] sm:$0xff]
    %v1891 = vld [vmem:[#allocation9 + $0xf30] sm:$0xff]
    %v1892 = vld [vmem:[#allocation9 + $0xf38] sm:$0xff]
    %v1893 = vld [vmem:[#allocation9 + $0xf40] sm:$0xff]
    %v1894 = vld [vmem:[#allocation9 + $0xf48] sm:$0xff]
    %v1895 = vld [vmem:[#allocation9 + $0xf50] sm:$0xff]
    %v1896 = vld [vmem:[#allocation9 + $0xf58] sm:$0xff]
    %v1897 = vld [vmem:[#allocation9 + $0xf60] sm:$0xff]
    %v1898 = vld [vmem:[#allocation9 + $0xf68] sm:$0xff]
    %v1899 = vld [vmem:[#allocation9 + $0xf70] sm:$0xff]
    %v1900 = vld [vmem:[#allocation9 + $0xf78] sm:$0xff]
    %v1901 = vld [vmem:[#allocation9 + $0xf80] sm:$0xff]
    %v1902 = vld [vmem:[#allocation9 + $0xf88] sm:$0xff]
    %v1903 = vld [vmem:[#allocation9 + $0xf90] sm:$0xff]
    %v1904 = vld [vmem:[#allocation9 + $0xf98] sm:$0xff]
    %v1905 = vld [vmem:[#allocation9 + $0xfa0] sm:$0xff]
    %v1906 = vld [vmem:[#allocation9 + $0xfa8] sm:$0xff]
    %v1907 = vld [vmem:[#allocation9 + $0xfb0] sm:$0xff]
    %v1908 = vld [vmem:[#allocation9 + $0xfb8] sm:$0xff]
    %v1909 = vld [vmem:[#allocation9 + $0xfc0] sm:$0xff]
    %v1910 = vld [vmem:[#allocation9 + $0xfc8] sm:$0xff]
    %v1911 = vld [vmem:[#allocation9 + $0xfd0] sm:$0xff]
    %v1912 = vld [vmem:[#allocation9 + $0xfd8] sm:$0xff]
    %v1913 = vld [vmem:[#allocation9 + $0xfe0] sm:$0xff]
    %v1914 = vld [vmem:[#allocation9 + $0xfe8] sm:$0xff]
    %v1915 = vld [vmem:[#allocation9 + $0xff0] sm:$0xff]
    %v1916 = vld [vmem:[#allocation9 + $0xff8] sm:$0xff]
    %v1917 = vld [vmem:[#allocation9 + $0x1000] sm:$0xff]
    %v1918 = vld [vmem:[#allocation9 + $0x1008] sm:$0xff]
    %v1919 = vld [vmem:[#allocation9 + $0x1010] sm:$0xff]
    %v1920 = vld [vmem:[#allocation9 + $0x1018] sm:$0xff]
    %v1921 = vld [vmem:[#allocation9 + $0x1020] sm:$0xff]
    %v1922 = vld [vmem:[#allocation9 + $0x1028] sm:$0xff]
    %v1923 = vld [vmem:[#allocation9 + $0x1030] sm:$0xff]
    %v1924 = vld [vmem:[#allocation9 + $0x1038] sm:$0xff]
    %v1925 = vld [vmem:[#allocation9 + $0x1040] sm:$0xff]
    %v1926 = vld [vmem:[#allocation9 + $0x1048] sm:$0xff]
    %v1927 = vld [vmem:[#allocation9 + $0x1050] sm:$0xff]
    %v1928 = vld [vmem:[#allocation9 + $0x1058] sm:$0xff]
    %v1929 = vld [vmem:[#allocation9 + $0x1060] sm:$0xff]
    %v1930 = vld [vmem:[#allocation9 + $0x1068] sm:$0xff]
    %v1931 = vld [vmem:[#allocation9 + $0x1070] sm:$0xff]
    %v1932 = vld [vmem:[#allocation9 + $0x1078] sm:$0xff]
    %v1933 = vld [vmem:[#allocation9 + $0x1080] sm:$0xff]
    %v1934 = vld [vmem:[#allocation9 + $0x1088] sm:$0xff]
    %v1935 = vld [vmem:[#allocation9 + $0x1090] sm:$0xff]
    %v1936 = vld [vmem:[#allocation9 + $0x1098] sm:$0xff]
    %v1937 = vld [vmem:[#allocation9 + $0x10a0] sm:$0xff]
    %v1938 = vld [vmem:[#allocation9 + $0x10a8] sm:$0xff]
    %v1939 = vld [vmem:[#allocation9 + $0x10b0] sm:$0xff]
    %v1940 = vld [vmem:[#allocation9 + $0x10b8] sm:$0xff]
    %v1941 = vld [vmem:[#allocation9 + $0x10c0] sm:$0xff]
    %v1942 = vld [vmem:[#allocation9 + $0x10c8] sm:$0xff]
    %v1943 = vld [vmem:[#allocation9 + $0x10d0] sm:$0xff]
    %v1944 = vld [vmem:[#allocation9 + $0x10d8] sm:$0xff]
    %v1945 = vld [vmem:[#allocation9 + $0x10e0] sm:$0xff]
    %v1946 = vld [vmem:[#allocation9 + $0x10e8] sm:$0xff]
    %v1947 = vld [vmem:[#allocation9 + $0x10f0] sm:$0xff]
    %v1948 = vld [vmem:[#allocation9 + $0x10f8] sm:$0xff]
    %v1949 = vld [vmem:[#allocation9 + $0x1100] sm:$0xff]
    %v1950 = vld [vmem:[#allocation9 + $0x1108] sm:$0xff]
    %v1951 = vld [vmem:[#allocation9 + $0x1110] sm:$0xff]
    %v1952 = vld [vmem:[#allocation9 + $0x1118] sm:$0xff]
    %v1953 = vld [vmem:[#allocation9 + $0x1120] sm:$0xff]
    %v1954 = vld [vmem:[#allocation9 + $0x1128] sm:$0xff]
    %v1955 = vld [vmem:[#allocation9 + $0x1130] sm:$0xff]
    %v1956 = vld [vmem:[#allocation9 + $0x1138] sm:$0xff]
    %v1957 = vld [vmem:[#allocation9 + $0x1140] sm:$0xff]
    %v1958 = vld [vmem:[#allocation9 + $0x1148] sm:$0xff]
    %v1959 = vld [vmem:[#allocation9 + $0x1150] sm:$0xff]
    %v1960 = vld [vmem:[#allocation9 + $0x1158] sm:$0xff]
    %v1961 = vld [vmem:[#allocation9 + $0x1160] sm:$0xff]
    %v1962 = vld [vmem:[#allocation9 + $0x1168] sm:$0xff]
    %v1963 = vld [vmem:[#allocation9 + $0x1170] sm:$0xff]
    %v1964 = vld [vmem:[#allocation9 + $0x1178] sm:$0xff]
    %v1965 = vld [vmem:[#allocation9 + $0x1180] sm:$0xff]
    %v1966 = vld [vmem:[#allocation9 + $0x1188] sm:$0xff]
    %v1967 = vld [vmem:[#allocation9 + $0x1190] sm:$0xff]
    %v1968 = vld [vmem:[#allocation9 + $0x1198] sm:$0xff]
    %v1969 = vld [vmem:[#allocation9 + $0x11a0] sm:$0xff]
    %v1970 = vld [vmem:[#allocation9 + $0x11a8] sm:$0xff]
    %v1971 = vld [vmem:[#allocation9 + $0x11b0] sm:$0xff]
    %v1972 = vld [vmem:[#allocation9 + $0x11b8] sm:$0xff]
    %v1973 = vld [vmem:[#allocation9 + $0x11c0] sm:$0xff]
    %v1974 = vld [vmem:[#allocation9 + $0x11c8] sm:$0xff]
    %v1975 = vld [vmem:[#allocation9 + $0x11d0] sm:$0xff]
    %v1976 = vld [vmem:[#allocation9 + $0x11d8] sm:$0xff]
    %v1977 = vld [vmem:[#allocation9 + $0x11e0] sm:$0xff]
    %v1978 = vld [vmem:[#allocation9 + $0x11e8] sm:$0xff]
    %v1979 = vld [vmem:[#allocation9 + $0x11f0] sm:$0xff]
    %v1980 = vld [vmem:[#allocation9 + $0x11f8] sm:$0xff]
    %v1981 = vld [vmem:[#allocation9 + $0x1200] sm:$0xff]
    %v1982 = vld [vmem:[#allocation9 + $0x1208] sm:$0xff]
    %v1983 = vld [vmem:[#allocation9 + $0x1210] sm:$0xff]
    %v1984 = vld [vmem:[#allocation9 + $0x1218] sm:$0xff]
    %v1985 = vld [vmem:[#allocation9 + $0x1220] sm:$0xff]
    %v1986 = vld [vmem:[#allocation9 + $0x1228] sm:$0xff]
    %v1987 = vld [vmem:[#allocation9 + $0x1230] sm:$0xff]
    %v1988 = vld [vmem:[#allocation9 + $0x1238] sm:$0xff]
    %v1989 = vld [vmem:[#allocation9 + $0x1240] sm:$0xff]
    %v1990 = vld [vmem:[#allocation9 + $0x1248] sm:$0xff]
    %v1991 = vld [vmem:[#allocation9 + $0x1250] sm:$0xff]
    %v1992 = vld [vmem:[#allocation9 + $0x1258] sm:$0xff]
    %v1993 = vld [vmem:[#allocation9 + $0x1260] sm:$0xff]
    %v1994 = vld [vmem:[#allocation9 + $0x1268] sm:$0xff]
    %v1995 = vld [vmem:[#allocation9 + $0x1270] sm:$0xff]
    %v1996 = vld [vmem:[#allocation9 + $0x1278] sm:$0xff]
    %v1997 = vld [vmem:[#allocation9 + $0x1280] sm:$0xff]
    %v1998 = vld [vmem:[#allocation9 + $0x1288] sm:$0xff]
    %v1999 = vld [vmem:[#allocation9 + $0x1290] sm:$0xff]
    %v2000 = vld [vmem:[#allocation9 + $0x1298] sm:$0xff]
    %v2001 = vld [vmem:[#allocation9 + $0x12a0] sm:$0xff]
    %v2002 = vld [vmem:[#allocation9 + $0x12a8] sm:$0xff]
    %v2003 = vld [vmem:[#allocation9 + $0x12b0] sm:$0xff]
    %v2004 = vld [vmem:[#allocation9 + $0x12b8] sm:$0xff]
    %v2005 = vld [vmem:[#allocation9 + $0x12c0] sm:$0xff]
    %v2006 = vld [vmem:[#allocation9 + $0x12c8] sm:$0xff]
    %v2007 = vld [vmem:[#allocation9 + $0x12d0] sm:$0xff]
    %v2008 = vld [vmem:[#allocation9 + $0x12d8] sm:$0xff]
    %v2009 = vld [vmem:[#allocation9 + $0x12e0] sm:$0xff]
    %v2010 = vld [vmem:[#allocation9 + $0x12e8] sm:$0xff]
    %v2011 = vld [vmem:[#allocation9 + $0x12f0] sm:$0xff]
    %v2012 = vld [vmem:[#allocation9 + $0x12f8] sm:$0xff]
    %v2013 = vld [vmem:[#allocation9 + $0x1300] sm:$0xff]
    %v2014 = vld [vmem:[#allocation9 + $0x1308] sm:$0xff]
    %v2015 = vld [vmem:[#allocation9 + $0x1310] sm:$0xff]
    %v2016 = vld [vmem:[#allocation9 + $0x1318] sm:$0xff]
    %v2017 = vld [vmem:[#allocation9 + $0x1320] sm:$0xff]
    %v2018 = vld [vmem:[#allocation9 + $0x1328] sm:$0xff]
    %v2019 = vld [vmem:[#allocation9 + $0x1330] sm:$0xff]
    %v2020 = vld [vmem:[#allocation9 + $0x1338] sm:$0xff]
    %v2021 = vld [vmem:[#allocation9 + $0x1340] sm:$0xff]
    %v2022 = vld [vmem:[#allocation9 + $0x1348] sm:$0xff]
    %v2023 = vld [vmem:[#allocation9 + $0x1350] sm:$0xff]
    %v2024 = vld [vmem:[#allocation9 + $0x1358] sm:$0xff]
    %v2025 = vld [vmem:[#allocation9 + $0x1360] sm:$0xff]
    %v2026 = vld [vmem:[#allocation9 + $0x1368] sm:$0xff]
    %v2027 = vld [vmem:[#allocation9 + $0x1370] sm:$0xff]
    %v2028 = vld [vmem:[#allocation9 + $0x1378] sm:$0xff]
    %v2029 = vld [vmem:[#allocation9 + $0x1380] sm:$0xff]
    %v2030 = vld [vmem:[#allocation9 + $0x1388] sm:$0xff]
    %v2031 = vld [vmem:[#allocation9 + $0x1390] sm:$0xff]
    %v2032 = vld [vmem:[#allocation9 + $0x1398] sm:$0xff]
    %v2033 = vld [vmem:[#allocation9 + $0x13a0] sm:$0xff]
    %v2034 = vld [vmem:[#allocation9 + $0x13a8] sm:$0xff]
    %v2035 = vld [vmem:[#allocation9 + $0x13b0] sm:$0xff]
    %v2036 = vld [vmem:[#allocation9 + $0x13b8] sm:$0xff]
    %v2037 = vld [vmem:[#allocation9 + $0x13c0] sm:$0xff]
    %v2038 = vld [vmem:[#allocation9 + $0x13c8] sm:$0xff]
    %v2039 = vld [vmem:[#allocation9 + $0x13d0] sm:$0xff]
    %v2040 = vld [vmem:[#allocation9 + $0x13d8] sm:$0xff]
    %v2041 = vld [vmem:[#allocation9 + $0x13e0] sm:$0xff]
    %v2042 = vld [vmem:[#allocation9 + $0x13e8] sm:$0xff]
    %v2043 = vld [vmem:[#allocation9 + $0x13f0] sm:$0xff]
    %v2044 = vld [vmem:[#allocation9 + $0x13f8] sm:$0xff]
    %v2045 = vld [vmem:[#allocation9 + $0x1400] sm:$0xff]
    %v2046 = vld [vmem:[#allocation9 + $0x1408] sm:$0xff]
    %v2047 = vld [vmem:[#allocation9 + $0x1410] sm:$0xff]
    %v2048 = vld [vmem:[#allocation9 + $0x1418] sm:$0xff]
    %v2049 = vld [vmem:[#allocation9 + $0x1420] sm:$0xff]
    %v2050 = vld [vmem:[#allocation9 + $0x1428] sm:$0xff]
    %v2051 = vld [vmem:[#allocation9 + $0x1430] sm:$0xff]
    %v2052 = vld [vmem:[#allocation9 + $0x1438] sm:$0xff]
    %v2053 = vld [vmem:[#allocation9 + $0x1440] sm:$0xff]
    %v2054 = vld [vmem:[#allocation9 + $0x1448] sm:$0xff]
    %v2055 = vld [vmem:[#allocation9 + $0x1450] sm:$0xff]
    %v2056 = vld [vmem:[#allocation9 + $0x1458] sm:$0xff]
    %v2057 = vld [vmem:[#allocation9 + $0x1460] sm:$0xff]
    %v2058 = vld [vmem:[#allocation9 + $0x1468] sm:$0xff]
    %v2059 = vld [vmem:[#allocation9 + $0x1470] sm:$0xff]
    %v2060 = vld [vmem:[#allocation9 + $0x1478] sm:$0xff]
    %v2061 = vld [vmem:[#allocation9 + $0x1480] sm:$0xff]
    %v2062 = vld [vmem:[#allocation9 + $0x1488] sm:$0xff]
    %v2063 = vld [vmem:[#allocation9 + $0x1490] sm:$0xff]
    %v2064 = vld [vmem:[#allocation9 + $0x1498] sm:$0xff]
    %v2065 = vld [vmem:[#allocation9 + $0x14a0] sm:$0xff]
    %v2066 = vld [vmem:[#allocation9 + $0x14a8] sm:$0xff]
    %v2067 = vld [vmem:[#allocation9 + $0x14b0] sm:$0xff]
    %v2068 = vld [vmem:[#allocation9 + $0x14b8] sm:$0xff]
    %v2069 = vld [vmem:[#allocation9 + $0x14c0] sm:$0xff]
    %v2070 = vld [vmem:[#allocation9 + $0x14c8] sm:$0xff]
    %v2071 = vld [vmem:[#allocation9 + $0x14d0] sm:$0xff]
    %v2072 = vld [vmem:[#allocation9 + $0x14d8] sm:$0xff]
    %v2073 = vld [vmem:[#allocation9 + $0x14e0] sm:$0xff]
    %v2074 = vld [vmem:[#allocation9 + $0x14e8] sm:$0xff]
    %v2075 = vld [vmem:[#allocation9 + $0x14f0] sm:$0xff]
    %v2076 = vld [vmem:[#allocation9 + $0x14f8] sm:$0xff]
    %v2077 = vld [vmem:[#allocation9 + $0x1500] sm:$0xff]
    %v2078 = vld [vmem:[#allocation9 + $0x1508] sm:$0xff]
    %v2079 = vld [vmem:[#allocation9 + $0x1510] sm:$0xff]
    %v2080 = vld [vmem:[#allocation9 + $0x1518] sm:$0xff]
    %v2081 = vld [vmem:[#allocation9 + $0x1520] sm:$0xff]
    %v2082 = vld [vmem:[#allocation9 + $0x1528] sm:$0xff]
    %v2083 = vld [vmem:[#allocation9 + $0x1530] sm:$0xff]
    %v2084 = vld [vmem:[#allocation9 + $0x1538] sm:$0xff]
    %v2085 = vld [vmem:[#allocation9 + $0x1540] sm:$0xff]
    %v2086 = vld [vmem:[#allocation9 + $0x1548] sm:$0xff]
    %v2087 = vld [vmem:[#allocation9 + $0x1550] sm:$0xff]
    %v2088 = vld [vmem:[#allocation9 + $0x1558] sm:$0xff]
    %v2089 = vld [vmem:[#allocation9 + $0x1560] sm:$0xff]
    %v2090 = vld [vmem:[#allocation9 + $0x1568] sm:$0xff]
    %v2091 = vld [vmem:[#allocation9 + $0x1570] sm:$0xff]
    %v2092 = vld [vmem:[#allocation9 + $0x1578] sm:$0xff]
    %v2093 = vld [vmem:[#allocation9 + $0x1580] sm:$0xff]
    %v2094 = vld [vmem:[#allocation9 + $0x1588] sm:$0xff]
    %v2095 = vld [vmem:[#allocation9 + $0x1590] sm:$0xff]
    %v2096 = vld [vmem:[#allocation9 + $0x1598] sm:$0xff]
    %v2097 = vld [vmem:[#allocation9 + $0x15a0] sm:$0xff]
    %v2098 = vld [vmem:[#allocation9 + $0x15a8] sm:$0xff]
    %v2099 = vld [vmem:[#allocation9 + $0x15b0] sm:$0xff]
    %v2100 = vld [vmem:[#allocation9 + $0x15b8] sm:$0xff]
    %v2101 = vld [vmem:[#allocation9 + $0x15c0] sm:$0xff]
    %v2102 = vld [vmem:[#allocation9 + $0x15c8] sm:$0xff]
    %v2103 = vld [vmem:[#allocation9 + $0x15d0] sm:$0xff]
    %v2104 = vld [vmem:[#allocation9 + $0x15d8] sm:$0xff]
    %v2105 = vld [vmem:[#allocation9 + $0x15e0] sm:$0xff]
    %v2106 = vld [vmem:[#allocation9 + $0x15e8] sm:$0xff]
    %v2107 = vld [vmem:[#allocation9 + $0x15f0] sm:$0xff]
    %v2108 = vld [vmem:[#allocation9 + $0x15f8] sm:$0xff]
    %v2109 = vld [vmem:[#allocation9 + $0x1600] sm:$0xff]
    %v2110 = vld [vmem:[#allocation9 + $0x1608] sm:$0xff]
    %v2111 = vld [vmem:[#allocation9 + $0x1610] sm:$0xff]
    %v2112 = vld [vmem:[#allocation9 + $0x1618] sm:$0xff]
    %v2113 = vld [vmem:[#allocation9 + $0x1620] sm:$0xff]
    %v2114 = vld [vmem:[#allocation9 + $0x1628] sm:$0xff]
    %v2115 = vld [vmem:[#allocation9 + $0x1630] sm:$0xff]
    %v2116 = vld [vmem:[#allocation9 + $0x1638] sm:$0xff]
    %v2117 = vld [vmem:[#allocation9 + $0x1640] sm:$0xff]
    %v2118 = vld [vmem:[#allocation9 + $0x1648] sm:$0xff]
    %v2119 = vld [vmem:[#allocation9 + $0x1650] sm:$0xff]
    %v2120 = vld [vmem:[#allocation9 + $0x1658] sm:$0xff]
    %v2121 = vld [vmem:[#allocation9 + $0x1660] sm:$0xff]
    %v2122 = vld [vmem:[#allocation9 + $0x1668] sm:$0xff]
    %v2123 = vld [vmem:[#allocation9 + $0x1670] sm:$0xff]
    %v2124 = vld [vmem:[#allocation9 + $0x1678] sm:$0xff]
    %v2125 = vld [vmem:[#allocation9 + $0x1680] sm:$0xff]
    %v2126 = vld [vmem:[#allocation9 + $0x1688] sm:$0xff]
    %v2127 = vld [vmem:[#allocation9 + $0x1690] sm:$0xff]
    %v2128 = vld [vmem:[#allocation9 + $0x1698] sm:$0xff]
    %v2129 = vld [vmem:[#allocation9 + $0x16a0] sm:$0xff]
    %v2130 = vld [vmem:[#allocation9 + $0x16a8] sm:$0xff]
    %v2131 = vld [vmem:[#allocation9 + $0x16b0] sm:$0xff]
    %v2132 = vld [vmem:[#allocation9 + $0x16b8] sm:$0xff]
    %v2133 = vld [vmem:[#allocation9 + $0x16c0] sm:$0xff]
    %v2134 = vld [vmem:[#allocation9 + $0x16c8] sm:$0xff]
    %v2135 = vld [vmem:[#allocation9 + $0x16d0] sm:$0xff]
    %v2136 = vld [vmem:[#allocation9 + $0x16d8] sm:$0xff]
    %v2137 = vld [vmem:[#allocation9 + $0x16e0] sm:$0xff]
    %v2138 = vld [vmem:[#allocation9 + $0x16e8] sm:$0xff]
    %v2139 = vld [vmem:[#allocation9 + $0x16f0] sm:$0xff]
    %v2140 = vld [vmem:[#allocation9 + $0x16f8] sm:$0xff]
    %v2141 = vld [vmem:[#allocation9 + $0x1700] sm:$0xff]
    %v2142 = vld [vmem:[#allocation9 + $0x1708] sm:$0xff]
    %v2143 = vld [vmem:[#allocation9 + $0x1710] sm:$0xff]
    %v2144 = vld [vmem:[#allocation9 + $0x1718] sm:$0xff]
    %v2145 = vld [vmem:[#allocation9 + $0x1720] sm:$0xff]
    %v2146 = vld [vmem:[#allocation9 + $0x1728] sm:$0xff]
    %v2147 = vld [vmem:[#allocation9 + $0x1730] sm:$0xff]
    %v2148 = vld [vmem:[#allocation9 + $0x1738] sm:$0xff]
    %v2149 = vld [vmem:[#allocation9 + $0x1740] sm:$0xff]
    %v2150 = vld [vmem:[#allocation9 + $0x1748] sm:$0xff]
    %v2151 = vld [vmem:[#allocation9 + $0x1750] sm:$0xff]
    %v2152 = vld [vmem:[#allocation9 + $0x1758] sm:$0xff]
    %v2153 = vld [vmem:[#allocation9 + $0x1760] sm:$0xff]
    %v2154 = vld [vmem:[#allocation9 + $0x1768] sm:$0xff]
    %v2155 = vld [vmem:[#allocation9 + $0x1770] sm:$0xff]
    %v2156 = vld [vmem:[#allocation9 + $0x1778] sm:$0xff]
    %v2157 = vld [vmem:[#allocation9 + $0x1780] sm:$0xff]
    %v2158 = vld [vmem:[#allocation9 + $0x1788] sm:$0xff]
    %v2159 = vld [vmem:[#allocation9 + $0x1790] sm:$0xff]
    %v2160 = vld [vmem:[#allocation9 + $0x1798] sm:$0xff]
    %v2161 = vld [vmem:[#allocation9 + $0x17a0] sm:$0xff]
    %v2162 = vld [vmem:[#allocation9 + $0x17a8] sm:$0xff]
    %v2163 = vld [vmem:[#allocation9 + $0x17b0] sm:$0xff]
    %v2164 = vld [vmem:[#allocation9 + $0x17b8] sm:$0xff]
    %v2165 = vld [vmem:[#allocation9 + $0x17c0] sm:$0xff]
    %v2166 = vld [vmem:[#allocation9 + $0x17c8] sm:$0xff]
    %v2167 = vld [vmem:[#allocation9 + $0x17d0] sm:$0xff]
    %v2168 = vld [vmem:[#allocation9 + $0x17d8] sm:$0xff]
    %v2169 = vld [vmem:[#allocation9 + $0x17e0] sm:$0xff]
    %v2170 = vld [vmem:[#allocation9 + $0x17e8] sm:$0xff]
    %v2171 = vld [vmem:[#allocation9 + $0x17f0] sm:$0xff]
    %v2172 = vld [vmem:[#allocation9 + $0x17f8] sm:$0xff]
    %v2173 = vld [vmem:[#allocation11] sm:$0xff]
    %v2175 = vperm.slane %v2173, 0
    %v2176 = vperm.slane %v2173, 1
    %v2177 = vperm.slane %v2173, 2
    %v2178 = vperm.slane %v2173, 3
    %v2179 = vperm.slane %v2173, 4
    %v2180 = vperm.slane %v2173, 5
    %v2181 = vperm.slane %v2173, 6
    %v2182 = vperm.slane %v2173, 7
    %v2959 = vunpack.c.l.b16 %v1405
    %v2960 = vunpack.c.h.b16 %v1405
    %v2961 = vunpack.c.l.b16 %v1406
    %v2962 = vunpack.c.h.b16 %v1406
    %v2963 = vunpack.c.l.b16 %v1407
    %v2964 = vunpack.c.h.b16 %v1407
    %v2965 = vunpack.c.l.b16 %v1408
    %v2966 = vunpack.c.h.b16 %v1408
    %v2967 = vunpack.c.l.b16 %v1409
    %v2968 = vunpack.c.h.b16 %v1409
    %v2969 = vunpack.c.l.b16 %v1410
    %v2970 = vunpack.c.h.b16 %v1410
    %v2971 = vunpack.c.l.b16 %v1411
    %v2972 = vunpack.c.h.b16 %v1411
    %v2973 = vunpack.c.l.b16 %v1412
    %v2974 = vunpack.c.h.b16 %v1412
    %v2975 = vunpack.c.l.b16 %v1413
    %v2976 = vunpack.c.h.b16 %v1413
    %v2977 = vunpack.c.l.b16 %v1414
    %v2978 = vunpack.c.h.b16 %v1414
    %v2979 = vunpack.c.l.b16 %v1415
    %v2980 = vunpack.c.h.b16 %v1415
    %v2981 = vunpack.c.l.b16 %v1416
    %v2982 = vunpack.c.h.b16 %v1416
    %v2983 = vunpack.c.l.b16 %v1417
    %v2984 = vunpack.c.h.b16 %v1417
    %v2985 = vunpack.c.l.b16 %v1418
    %v2986 = vunpack.c.h.b16 %v1418
    %v2987 = vunpack.c.l.b16 %v1419
    %v2988 = vunpack.c.h.b16 %v1419
    %v2989 = vunpack.c.l.b16 %v1420
    %v2990 = vunpack.c.h.b16 %v1420
    %v2991 = vunpack.c.l.b16 %v1421
    %v2992 = vunpack.c.h.b16 %v1421
    %v2993 = vunpack.c.l.b16 %v1422
    %v2994 = vunpack.c.h.b16 %v1422
    %v2995 = vunpack.c.l.b16 %v1423
    %v2996 = vunpack.c.h.b16 %v1423
    %v2997 = vunpack.c.l.b16 %v1424
    %v2998 = vunpack.c.h.b16 %v1424
    %v2999 = vunpack.c.l.b16 %v1425
    %v3000 = vunpack.c.h.b16 %v1425
    %v3001 = vunpack.c.l.b16 %v1426
    %v3002 = vunpack.c.h.b16 %v1426
    %v3003 = vunpack.c.l.b16 %v1427
    %v3004 = vunpack.c.h.b16 %v1427
    %v3005 = vunpack.c.l.b16 %v1428
    %v3006 = vunpack.c.h.b16 %v1428
    %v3007 = vunpack.c.l.b16 %v1429
    %v3008 = vunpack.c.h.b16 %v1429
    %v3009 = vunpack.c.l.b16 %v1430
    %v3010 = vunpack.c.h.b16 %v1430
    %v3011 = vunpack.c.l.b16 %v1431
    %v3012 = vunpack.c.h.b16 %v1431
    %v3013 = vunpack.c.l.b16 %v1432
    %v3014 = vunpack.c.h.b16 %v1432
    %v3015 = vunpack.c.l.b16 %v1433
    %v3016 = vunpack.c.h.b16 %v1433
    %v3017 = vunpack.c.l.b16 %v1434
    %v3018 = vunpack.c.h.b16 %v1434
    %v3019 = vunpack.c.l.b16 %v1435
    %v3020 = vunpack.c.h.b16 %v1435
    %v3021 = vunpack.c.l.b16 %v1436
    %v3022 = vunpack.c.h.b16 %v1436
    %v3023 = vunpack.c.l.b16 %v1437
    %v3024 = vunpack.c.h.b16 %v1437
    %v3025 = vunpack.c.l.b16 %v1438
    %v3026 = vunpack.c.h.b16 %v1438
    %v3027 = vunpack.c.l.b16 %v1439
    %v3028 = vunpack.c.h.b16 %v1439
    %v3029 = vunpack.c.l.b16 %v1440
    %v3030 = vunpack.c.h.b16 %v1440
    %v3031 = vunpack.c.l.b16 %v1441
    %v3032 = vunpack.c.h.b16 %v1441
    %v3033 = vunpack.c.l.b16 %v1442
    %v3034 = vunpack.c.h.b16 %v1442
    %v3035 = vunpack.c.l.b16 %v1443
    %v3036 = vunpack.c.h.b16 %v1443
    %v3037 = vunpack.c.l.b16 %v1444
    %v3038 = vunpack.c.h.b16 %v1444
    %v3039 = vunpack.c.l.b16 %v1445
    %v3040 = vunpack.c.h.b16 %v1445
    %v3041 = vunpack.c.l.b16 %v1446
    %v3042 = vunpack.c.h.b16 %v1446
    %v3043 = vunpack.c.l.b16 %v1447
    %v3044 = vunpack.c.h.b16 %v1447
    %v3045 = vunpack.c.l.b16 %v1448
    %v3046 = vunpack.c.h.b16 %v1448
    %v3047 = vunpack.c.l.b16 %v1449
    %v3048 = vunpack.c.h.b16 %v1449
    %v3049 = vunpack.c.l.b16 %v1450
    %v3050 = vunpack.c.h.b16 %v1450
    %v3051 = vunpack.c.l.b16 %v1451
    %v3052 = vunpack.c.h.b16 %v1451
    %v3053 = vunpack.c.l.b16 %v1452
    %v3054 = vunpack.c.h.b16 %v1452
    %v3055 = vunpack.c.l.b16 %v1453
    %v3056 = vunpack.c.h.b16 %v1453
    %v3057 = vunpack.c.l.b16 %v1454
    %v3058 = vunpack.c.h.b16 %v1454
    %v3059 = vunpack.c.l.b16 %v1455
    %v3060 = vunpack.c.h.b16 %v1455
    %v3061 = vunpack.c.l.b16 %v1456
    %v3062 = vunpack.c.h.b16 %v1456
    %v3063 = vunpack.c.l.b16 %v1457
    %v3064 = vunpack.c.h.b16 %v1457
    %v3065 = vunpack.c.l.b16 %v1458
    %v3066 = vunpack.c.h.b16 %v1458
    %v3067 = vunpack.c.l.b16 %v1459
    %v3068 = vunpack.c.h.b16 %v1459
    %v3069 = vunpack.c.l.b16 %v1460
    %v3070 = vunpack.c.h.b16 %v1460
    %v3071 = vunpack.c.l.b16 %v1461
    %v3072 = vunpack.c.h.b16 %v1461
    %v3073 = vunpack.c.l.b16 %v1462
    %v3074 = vunpack.c.h.b16 %v1462
    %v3075 = vunpack.c.l.b16 %v1463
    %v3076 = vunpack.c.h.b16 %v1463
    %v3077 = vunpack.c.l.b16 %v1464
    %v3078 = vunpack.c.h.b16 %v1464
    %v3079 = vunpack.c.l.b16 %v1465
    %v3080 = vunpack.c.h.b16 %v1465
    %v3081 = vunpack.c.l.b16 %v1466
    %v3082 = vunpack.c.h.b16 %v1466
    %v3083 = vunpack.c.l.b16 %v1467
    %v3084 = vunpack.c.h.b16 %v1467
    %v3085 = vunpack.c.l.b16 %v1468
    %v3086 = vunpack.c.h.b16 %v1468
    %v3087 = vunpack.c.l.b16 %v1469
    %v3088 = vunpack.c.h.b16 %v1469
    %v3089 = vunpack.c.l.b16 %v1470
    %v3090 = vunpack.c.h.b16 %v1470
    %v3091 = vunpack.c.l.b16 %v1471
    %v3092 = vunpack.c.h.b16 %v1471
    %v3093 = vunpack.c.l.b16 %v1472
    %v3094 = vunpack.c.h.b16 %v1472
    %v3095 = vunpack.c.l.b16 %v1473
    %v3096 = vunpack.c.h.b16 %v1473
    %v3097 = vunpack.c.l.b16 %v1474
    %v3098 = vunpack.c.h.b16 %v1474
    %v3099 = vunpack.c.l.b16 %v1475
    %v3100 = vunpack.c.h.b16 %v1475
    %v3101 = vunpack.c.l.b16 %v1476
    %v3102 = vunpack.c.h.b16 %v1476
    %v3103 = vunpack.c.l.b16 %v1477
    %v3104 = vunpack.c.h.b16 %v1477
    %v3105 = vunpack.c.l.b16 %v1478
    %v3106 = vunpack.c.h.b16 %v1478
    %v3107 = vunpack.c.l.b16 %v1479
    %v3108 = vunpack.c.h.b16 %v1479
    %v3109 = vunpack.c.l.b16 %v1480
    %v3110 = vunpack.c.h.b16 %v1480
    %v3111 = vunpack.c.l.b16 %v1481
    %v3112 = vunpack.c.h.b16 %v1481
    %v3113 = vunpack.c.l.b16 %v1482
    %v3114 = vunpack.c.h.b16 %v1482
    %v3115 = vunpack.c.l.b16 %v1483
    %v3116 = vunpack.c.h.b16 %v1483
    %v3117 = vunpack.c.l.b16 %v1484
    %v3118 = vunpack.c.h.b16 %v1484
    %v3119 = vunpack.c.l.b16 %v1485
    %v3120 = vunpack.c.h.b16 %v1485
    %v3121 = vunpack.c.l.b16 %v1486
    %v3122 = vunpack.c.h.b16 %v1486
    %v3123 = vunpack.c.l.b16 %v1487
    %v3124 = vunpack.c.h.b16 %v1487
    %v3125 = vunpack.c.l.b16 %v1488
    %v3126 = vunpack.c.h.b16 %v1488
    %v3127 = vunpack.c.l.b16 %v1489
    %v3128 = vunpack.c.h.b16 %v1489
    %v3129 = vunpack.c.l.b16 %v1490
    %v3130 = vunpack.c.h.b16 %v1490
    %v3131 = vunpack.c.l.b16 %v1491
    %v3132 = vunpack.c.h.b16 %v1491
    %v3133 = vunpack.c.l.b16 %v1492
    %v3134 = vunpack.c.h.b16 %v1492
    %v3135 = vunpack.c.l.b16 %v1493
    %v3136 = vunpack.c.h.b16 %v1493
    %v3137 = vunpack.c.l.b16 %v1494
    %v3138 = vunpack.c.h.b16 %v1494
    %v3139 = vunpack.c.l.b16 %v1495
    %v3140 = vunpack.c.h.b16 %v1495
    %v3141 = vunpack.c.l.b16 %v1496
    %v3142 = vunpack.c.h.b16 %v1496
    %v3143 = vunpack.c.l.b16 %v1497
    %v3144 = vunpack.c.h.b16 %v1497
    %v3145 = vunpack.c.l.b16 %v1498
    %v3146 = vunpack.c.h.b16 %v1498
    %v3147 = vunpack.c.l.b16 %v1499
    %v3148 = vunpack.c.h.b16 %v1499
    %v3149 = vunpack.c.l.b16 %v1500
    %v3150 = vunpack.c.h.b16 %v1500
    %v3151 = vunpack.c.l.b16 %v1501
    %v3152 = vunpack.c.h.b16 %v1501
    %v3153 = vunpack.c.l.b16 %v1502
    %v3154 = vunpack.c.h.b16 %v1502
    %v3155 = vunpack.c.l.b16 %v1503
    %v3156 = vunpack.c.h.b16 %v1503
    %v3157 = vunpack.c.l.b16 %v1504
    %v3158 = vunpack.c.h.b16 %v1504
    %v3159 = vunpack.c.l.b16 %v1505
    %v3160 = vunpack.c.h.b16 %v1505
    %v3161 = vunpack.c.l.b16 %v1506
    %v3162 = vunpack.c.h.b16 %v1506
    %v3163 = vunpack.c.l.b16 %v1507
    %v3164 = vunpack.c.h.b16 %v1507
    %v3165 = vunpack.c.l.b16 %v1508
    %v3166 = vunpack.c.h.b16 %v1508
    %v3167 = vunpack.c.l.b16 %v1509
    %v3168 = vunpack.c.h.b16 %v1509
    %v3169 = vunpack.c.l.b16 %v1510
    %v3170 = vunpack.c.h.b16 %v1510
    %v3171 = vunpack.c.l.b16 %v1511
    %v3172 = vunpack.c.h.b16 %v1511
    %v3173 = vunpack.c.l.b16 %v1512
    %v3174 = vunpack.c.h.b16 %v1512
    %v3175 = vunpack.c.l.b16 %v1513
    %v3176 = vunpack.c.h.b16 %v1513
    %v3177 = vunpack.c.l.b16 %v1514
    %v3178 = vunpack.c.h.b16 %v1514
    %v3179 = vunpack.c.l.b16 %v1515
    %v3180 = vunpack.c.h.b16 %v1515
    %v3181 = vunpack.c.l.b16 %v1516
    %v3182 = vunpack.c.h.b16 %v1516
    %v3183 = vunpack.c.l.b16 %v1517
    %v3184 = vunpack.c.h.b16 %v1517
    %v3185 = vunpack.c.l.b16 %v1518
    %v3186 = vunpack.c.h.b16 %v1518
    %v3187 = vunpack.c.l.b16 %v1519
    %v3188 = vunpack.c.h.b16 %v1519
    %v3189 = vunpack.c.l.b16 %v1520
    %v3190 = vunpack.c.h.b16 %v1520
    %v3191 = vunpack.c.l.b16 %v1521
    %v3192 = vunpack.c.h.b16 %v1521
    %v3193 = vunpack.c.l.b16 %v1522
    %v3194 = vunpack.c.h.b16 %v1522
    %v3195 = vunpack.c.l.b16 %v1523
    %v3196 = vunpack.c.h.b16 %v1523
    %v3197 = vunpack.c.l.b16 %v1524
    %v3198 = vunpack.c.h.b16 %v1524
    %v3199 = vunpack.c.l.b16 %v1525
    %v3200 = vunpack.c.h.b16 %v1525
    %v3201 = vunpack.c.l.b16 %v1526
    %v3202 = vunpack.c.h.b16 %v1526
    %v3203 = vunpack.c.l.b16 %v1527
    %v3204 = vunpack.c.h.b16 %v1527
    %v3205 = vunpack.c.l.b16 %v1528
    %v3206 = vunpack.c.h.b16 %v1528
    %v3207 = vunpack.c.l.b16 %v1529
    %v3208 = vunpack.c.h.b16 %v1529
    %v3209 = vunpack.c.l.b16 %v1530
    %v3210 = vunpack.c.h.b16 %v1530
    %v3211 = vunpack.c.l.b16 %v1531
    %v3212 = vunpack.c.h.b16 %v1531
    %v3213 = vunpack.c.l.b16 %v1532
    %v3214 = vunpack.c.h.b16 %v1532
    %v3215 = vunpack.c.l.b16 %v1533
    %v3216 = vunpack.c.h.b16 %v1533
    %v3217 = vunpack.c.l.b16 %v1534
    %v3218 = vunpack.c.h.b16 %v1534
    %v3219 = vunpack.c.l.b16 %v1535
    %v3220 = vunpack.c.h.b16 %v1535
    %v3221 = vunpack.c.l.b16 %v1536
    %v3222 = vunpack.c.h.b16 %v1536
    %v3223 = vunpack.c.l.b16 %v1537
    %v3224 = vunpack.c.h.b16 %v1537
    %v3225 = vunpack.c.l.b16 %v1538
    %v3226 = vunpack.c.h.b16 %v1538
    %v3227 = vunpack.c.l.b16 %v1539
    %v3228 = vunpack.c.h.b16 %v1539
    %v3229 = vunpack.c.l.b16 %v1540
    %v3230 = vunpack.c.h.b16 %v1540
    %v3231 = vunpack.c.l.b16 %v1541
    %v3232 = vunpack.c.h.b16 %v1541
    %v3233 = vunpack.c.l.b16 %v1542
    %v3234 = vunpack.c.h.b16 %v1542
    %v3235 = vunpack.c.l.b16 %v1543
    %v3236 = vunpack.c.h.b16 %v1543
    %v3237 = vunpack.c.l.b16 %v1544
    %v3238 = vunpack.c.h.b16 %v1544
    %v3239 = vunpack.c.l.b16 %v1545
    %v3240 = vunpack.c.h.b16 %v1545
    %v3241 = vunpack.c.l.b16 %v1546
    %v3242 = vunpack.c.h.b16 %v1546
    %v3243 = vunpack.c.l.b16 %v1547
    %v3244 = vunpack.c.h.b16 %v1547
    %v3245 = vunpack.c.l.b16 %v1548
    %v3246 = vunpack.c.h.b16 %v1548
    %v3247 = vunpack.c.l.b16 %v1549
    %v3248 = vunpack.c.h.b16 %v1549
    %v3249 = vunpack.c.l.b16 %v1550
    %v3250 = vunpack.c.h.b16 %v1550
    %v3251 = vunpack.c.l.b16 %v1551
    %v3252 = vunpack.c.h.b16 %v1551
    %v3253 = vunpack.c.l.b16 %v1552
    %v3254 = vunpack.c.h.b16 %v1552
    %v3255 = vunpack.c.l.b16 %v1553
    %v3256 = vunpack.c.h.b16 %v1553
    %v3257 = vunpack.c.l.b16 %v1554
    %v3258 = vunpack.c.h.b16 %v1554
    %v3259 = vunpack.c.l.b16 %v1555
    %v3260 = vunpack.c.h.b16 %v1555
    %v3261 = vunpack.c.l.b16 %v1556
    %v3262 = vunpack.c.h.b16 %v1556
    %v3263 = vunpack.c.l.b16 %v1557
    %v3264 = vunpack.c.h.b16 %v1557
    %v3265 = vunpack.c.l.b16 %v1558
    %v3266 = vunpack.c.h.b16 %v1558
    %v3267 = vunpack.c.l.b16 %v1559
    %v3268 = vunpack.c.h.b16 %v1559
    %v3269 = vunpack.c.l.b16 %v1560
    %v3270 = vunpack.c.h.b16 %v1560
    %v3271 = vunpack.c.l.b16 %v1561
    %v3272 = vunpack.c.h.b16 %v1561
    %v3273 = vunpack.c.l.b16 %v1562
    %v3274 = vunpack.c.h.b16 %v1562
    %v3275 = vunpack.c.l.b16 %v1563
    %v3276 = vunpack.c.h.b16 %v1563
    %v3277 = vunpack.c.l.b16 %v1564
    %v3278 = vunpack.c.h.b16 %v1564
    %v3279 = vunpack.c.l.b16 %v1565
    %v3280 = vunpack.c.h.b16 %v1565
    %v3281 = vunpack.c.l.b16 %v1566
    %v3282 = vunpack.c.h.b16 %v1566
    %v3283 = vunpack.c.l.b16 %v1567
    %v3284 = vunpack.c.h.b16 %v1567
    %v3285 = vunpack.c.l.b16 %v1568
    %v3286 = vunpack.c.h.b16 %v1568
    %v3287 = vunpack.c.l.b16 %v1569
    %v3288 = vunpack.c.h.b16 %v1569
    %v3289 = vunpack.c.l.b16 %v1570
    %v3290 = vunpack.c.h.b16 %v1570
    %v3291 = vunpack.c.l.b16 %v1571
    %v3292 = vunpack.c.h.b16 %v1571
    %v3293 = vunpack.c.l.b16 %v1572
    %v3294 = vunpack.c.h.b16 %v1572
    %v3295 = vunpack.c.l.b16 %v1573
    %v3296 = vunpack.c.h.b16 %v1573
    %v3297 = vunpack.c.l.b16 %v1574
    %v3298 = vunpack.c.h.b16 %v1574
    %v3299 = vunpack.c.l.b16 %v1575
    %v3300 = vunpack.c.h.b16 %v1575
    %v3301 = vunpack.c.l.b16 %v1576
    %v3302 = vunpack.c.h.b16 %v1576
    %v3303 = vunpack.c.l.b16 %v1577
    %v3304 = vunpack.c.h.b16 %v1577
    %v3305 = vunpack.c.l.b16 %v1578
    %v3306 = vunpack.c.h.b16 %v1578
    %v3307 = vunpack.c.l.b16 %v1579
    %v3308 = vunpack.c.h.b16 %v1579
    %v3309 = vunpack.c.l.b16 %v1580
    %v3310 = vunpack.c.h.b16 %v1580
    %v3311 = vunpack.c.l.b16 %v1581
    %v3312 = vunpack.c.h.b16 %v1581
    %v3313 = vunpack.c.l.b16 %v1582
    %v3314 = vunpack.c.h.b16 %v1582
    %v3315 = vunpack.c.l.b16 %v1583
    %v3316 = vunpack.c.h.b16 %v1583
    %v3317 = vunpack.c.l.b16 %v1584
    %v3318 = vunpack.c.h.b16 %v1584
    %v3319 = vunpack.c.l.b16 %v1585
    %v3320 = vunpack.c.h.b16 %v1585
    %v3321 = vunpack.c.l.b16 %v1586
    %v3322 = vunpack.c.h.b16 %v1586
    %v3323 = vunpack.c.l.b16 %v1587
    %v3324 = vunpack.c.h.b16 %v1587
    %v3325 = vunpack.c.l.b16 %v1588
    %v3326 = vunpack.c.h.b16 %v1588
    %v3327 = vunpack.c.l.b16 %v1589
    %v3328 = vunpack.c.h.b16 %v1589
    %v3329 = vunpack.c.l.b16 %v1590
    %v3330 = vunpack.c.h.b16 %v1590
    %v3331 = vunpack.c.l.b16 %v1591
    %v3332 = vunpack.c.h.b16 %v1591
    %v3333 = vunpack.c.l.b16 %v1592
    %v3334 = vunpack.c.h.b16 %v1592
    %v3335 = vunpack.c.l.b16 %v1593
    %v3336 = vunpack.c.h.b16 %v1593
    %v3337 = vunpack.c.l.b16 %v1594
    %v3338 = vunpack.c.h.b16 %v1594
    %v3339 = vunpack.c.l.b16 %v1595
    %v3340 = vunpack.c.h.b16 %v1595
    %v3341 = vunpack.c.l.b16 %v1596
    %v3342 = vunpack.c.h.b16 %v1596
    %v3343 = vunpack.c.l.b16 %v1597
    %v3344 = vunpack.c.h.b16 %v1597
    %v3345 = vunpack.c.l.b16 %v1598
    %v3346 = vunpack.c.h.b16 %v1598
    %v3347 = vunpack.c.l.b16 %v1599
    %v3348 = vunpack.c.h.b16 %v1599
    %v3349 = vunpack.c.l.b16 %v1600
    %v3350 = vunpack.c.h.b16 %v1600
    %v3351 = vunpack.c.l.b16 %v1601
    %v3352 = vunpack.c.h.b16 %v1601
    %v3353 = vunpack.c.l.b16 %v1602
    %v3354 = vunpack.c.h.b16 %v1602
    %v3355 = vunpack.c.l.b16 %v1603
    %v3356 = vunpack.c.h.b16 %v1603
    %v3357 = vunpack.c.l.b16 %v1604
    %v3358 = vunpack.c.h.b16 %v1604
    %v3359 = vunpack.c.l.b16 %v1605
    %v3360 = vunpack.c.h.b16 %v1605
    %v3361 = vunpack.c.l.b16 %v1606
    %v3362 = vunpack.c.h.b16 %v1606
    %v3363 = vunpack.c.l.b16 %v1607
    %v3364 = vunpack.c.h.b16 %v1607
    %v3365 = vunpack.c.l.b16 %v1608
    %v3366 = vunpack.c.h.b16 %v1608
    %v3367 = vunpack.c.l.b16 %v1609
    %v3368 = vunpack.c.h.b16 %v1609
    %v3369 = vunpack.c.l.b16 %v1610
    %v3370 = vunpack.c.h.b16 %v1610
    %v3371 = vunpack.c.l.b16 %v1611
    %v3372 = vunpack.c.h.b16 %v1611
    %v3373 = vunpack.c.l.b16 %v1612
    %v3374 = vunpack.c.h.b16 %v1612
    %v3375 = vunpack.c.l.b16 %v1613
    %v3376 = vunpack.c.h.b16 %v1613
    %v3377 = vunpack.c.l.b16 %v1614
    %v3378 = vunpack.c.h.b16 %v1614
    %v3379 = vunpack.c.l.b16 %v1615
    %v3380 = vunpack.c.h.b16 %v1615
    %v3381 = vunpack.c.l.b16 %v1616
    %v3382 = vunpack.c.h.b16 %v1616
    %v3383 = vunpack.c.l.b16 %v1617
    %v3384 = vunpack.c.h.b16 %v1617
    %v3385 = vunpack.c.l.b16 %v1618
    %v3386 = vunpack.c.h.b16 %v1618
    %v3387 = vunpack.c.l.b16 %v1619
    %v3388 = vunpack.c.h.b16 %v1619
    %v3389 = vunpack.c.l.b16 %v1620
    %v3390 = vunpack.c.h.b16 %v1620
    %v3391 = vunpack.c.l.b16 %v1621
    %v3392 = vunpack.c.h.b16 %v1621
    %v3393 = vunpack.c.l.b16 %v1622
    %v3394 = vunpack.c.h.b16 %v1622
    %v3395 = vunpack.c.l.b16 %v1623
    %v3396 = vunpack.c.h.b16 %v1623
    %v3397 = vunpack.c.l.b16 %v1624
    %v3398 = vunpack.c.h.b16 %v1624
    %v3399 = vunpack.c.l.b16 %v1625
    %v3400 = vunpack.c.h.b16 %v1625
    %v3401 = vunpack.c.l.b16 %v1626
    %v3402 = vunpack.c.h.b16 %v1626
    %v3403 = vunpack.c.l.b16 %v1627
    %v3404 = vunpack.c.h.b16 %v1627
    %v3405 = vunpack.c.l.b16 %v1628
    %v3406 = vunpack.c.h.b16 %v1628
    %v3407 = vunpack.c.l.b16 %v1629
    %v3408 = vunpack.c.h.b16 %v1629
    %v3409 = vunpack.c.l.b16 %v1630
    %v3410 = vunpack.c.h.b16 %v1630
    %v3411 = vunpack.c.l.b16 %v1631
    %v3412 = vunpack.c.h.b16 %v1631
    %v3413 = vunpack.c.l.b16 %v1632
    %v3414 = vunpack.c.h.b16 %v1632
    %v3415 = vunpack.c.l.b16 %v1633
    %v3416 = vunpack.c.h.b16 %v1633
    %v3417 = vunpack.c.l.b16 %v1634
    %v3418 = vunpack.c.h.b16 %v1634
    %v3419 = vunpack.c.l.b16 %v1635
    %v3420 = vunpack.c.h.b16 %v1635
    %v3421 = vunpack.c.l.b16 %v1636
    %v3422 = vunpack.c.h.b16 %v1636
    %v3423 = vunpack.c.l.b16 %v1637
    %v3424 = vunpack.c.h.b16 %v1637
    %v3425 = vunpack.c.l.b16 %v1638
    %v3426 = vunpack.c.h.b16 %v1638
    %v3427 = vunpack.c.l.b16 %v1639
    %v3428 = vunpack.c.h.b16 %v1639
    %v3429 = vunpack.c.l.b16 %v1640
    %v3430 = vunpack.c.h.b16 %v1640
    %v3431 = vunpack.c.l.b16 %v1641
    %v3432 = vunpack.c.h.b16 %v1641
    %v3433 = vunpack.c.l.b16 %v1642
    %v3434 = vunpack.c.h.b16 %v1642
    %v3435 = vunpack.c.l.b16 %v1643
    %v3436 = vunpack.c.h.b16 %v1643
    %v3437 = vunpack.c.l.b16 %v1644
    %v3438 = vunpack.c.h.b16 %v1644
    %v3439 = vunpack.c.l.b16 %v1645
    %v3440 = vunpack.c.h.b16 %v1645
    %v3441 = vunpack.c.l.b16 %v1646
    %v3442 = vunpack.c.h.b16 %v1646
    %v3443 = vunpack.c.l.b16 %v1647
    %v3444 = vunpack.c.h.b16 %v1647
    %v3445 = vunpack.c.l.b16 %v1648
    %v3446 = vunpack.c.h.b16 %v1648
    %v3447 = vunpack.c.l.b16 %v1649
    %v3448 = vunpack.c.h.b16 %v1649
    %v3449 = vunpack.c.l.b16 %v1650
    %v3450 = vunpack.c.h.b16 %v1650
    %v3451 = vunpack.c.l.b16 %v1651
    %v3452 = vunpack.c.h.b16 %v1651
    %v3453 = vunpack.c.l.b16 %v1652
    %v3454 = vunpack.c.h.b16 %v1652
    %v3455 = vunpack.c.l.b16 %v1653
    %v3456 = vunpack.c.h.b16 %v1653
    %v3457 = vunpack.c.l.b16 %v1654
    %v3458 = vunpack.c.h.b16 %v1654
    %v3459 = vunpack.c.l.b16 %v1655
    %v3460 = vunpack.c.h.b16 %v1655
    %v3461 = vunpack.c.l.b16 %v1656
    %v3462 = vunpack.c.h.b16 %v1656
    %v3463 = vunpack.c.l.b16 %v1657
    %v3464 = vunpack.c.h.b16 %v1657
    %v3465 = vunpack.c.l.b16 %v1658
    %v3466 = vunpack.c.h.b16 %v1658
    %v3467 = vunpack.c.l.b16 %v1659
    %v3468 = vunpack.c.h.b16 %v1659
    %v3469 = vunpack.c.l.b16 %v1660
    %v3470 = vunpack.c.h.b16 %v1660
    %v3471 = vunpack.c.l.b16 %v1661
    %v3472 = vunpack.c.h.b16 %v1661
    %v3473 = vunpack.c.l.b16 %v1662
    %v3474 = vunpack.c.h.b16 %v1662
    %v3475 = vunpack.c.l.b16 %v1663
    %v3476 = vunpack.c.h.b16 %v1663
    %v3477 = vunpack.c.l.b16 %v1664
    %v3478 = vunpack.c.h.b16 %v1664
    %v3479 = vunpack.c.l.b16 %v1665
    %v3480 = vunpack.c.h.b16 %v1665
    %v3481 = vunpack.c.l.b16 %v1666
    %v3482 = vunpack.c.h.b16 %v1666
    %v3483 = vunpack.c.l.b16 %v1667
    %v3484 = vunpack.c.h.b16 %v1667
    %v3485 = vunpack.c.l.b16 %v1668
    %v3486 = vunpack.c.h.b16 %v1668
    %v3487 = vunpack.c.l.b16 %v1669
    %v3488 = vunpack.c.h.b16 %v1669
    %v3489 = vunpack.c.l.b16 %v1670
    %v3490 = vunpack.c.h.b16 %v1670
    %v3491 = vunpack.c.l.b16 %v1671
    %v3492 = vunpack.c.h.b16 %v1671
    %v3493 = vunpack.c.l.b16 %v1672
    %v3494 = vunpack.c.h.b16 %v1672
    %v3495 = vunpack.c.l.b16 %v1673
    %v3496 = vunpack.c.h.b16 %v1673
    %v3497 = vunpack.c.l.b16 %v1674
    %v3498 = vunpack.c.h.b16 %v1674
    %v3499 = vunpack.c.l.b16 %v1675
    %v3500 = vunpack.c.h.b16 %v1675
    %v3501 = vunpack.c.l.b16 %v1676
    %v3502 = vunpack.c.h.b16 %v1676
    %v3503 = vunpack.c.l.b16 %v1677
    %v3504 = vunpack.c.h.b16 %v1677
    %v3505 = vunpack.c.l.b16 %v1678
    %v3506 = vunpack.c.h.b16 %v1678
    %v3507 = vunpack.c.l.b16 %v1679
    %v3508 = vunpack.c.h.b16 %v1679
    %v3509 = vunpack.c.l.b16 %v1680
    %v3510 = vunpack.c.h.b16 %v1680
    %v3511 = vunpack.c.l.b16 %v1681
    %v3512 = vunpack.c.h.b16 %v1681
    %v3513 = vunpack.c.l.b16 %v1682
    %v3514 = vunpack.c.h.b16 %v1682
    %v3515 = vunpack.c.l.b16 %v1683
    %v3516 = vunpack.c.h.b16 %v1683
    %v3517 = vunpack.c.l.b16 %v1684
    %v3518 = vunpack.c.h.b16 %v1684
    %v3519 = vunpack.c.l.b16 %v1685
    %v3520 = vunpack.c.h.b16 %v1685
    %v3521 = vunpack.c.l.b16 %v1686
    %v3522 = vunpack.c.h.b16 %v1686
    %v3523 = vunpack.c.l.b16 %v1687
    %v3524 = vunpack.c.h.b16 %v1687
    %v3525 = vunpack.c.l.b16 %v1688
    %v3526 = vunpack.c.h.b16 %v1688
    %v3527 = vunpack.c.l.b16 %v1689
    %v3528 = vunpack.c.h.b16 %v1689
    %v3529 = vunpack.c.l.b16 %v1690
    %v3530 = vunpack.c.h.b16 %v1690
    %v3531 = vunpack.c.l.b16 %v1691
    %v3532 = vunpack.c.h.b16 %v1691
    %v3533 = vunpack.c.l.b16 %v1692
    %v3534 = vunpack.c.h.b16 %v1692
    %v3535 = vunpack.c.l.b16 %v1693
    %v3536 = vunpack.c.h.b16 %v1693
    %v3537 = vunpack.c.l.b16 %v1694
    %v3538 = vunpack.c.h.b16 %v1694
    %v3539 = vunpack.c.l.b16 %v1695
    %v3540 = vunpack.c.h.b16 %v1695
    %v3541 = vunpack.c.l.b16 %v1696
    %v3542 = vunpack.c.h.b16 %v1696
    %v3543 = vunpack.c.l.b16 %v1697
    %v3544 = vunpack.c.h.b16 %v1697
    %v3545 = vunpack.c.l.b16 %v1698
    %v3546 = vunpack.c.h.b16 %v1698
    %v3547 = vunpack.c.l.b16 %v1699
    %v3548 = vunpack.c.h.b16 %v1699
    %v3549 = vunpack.c.l.b16 %v1700
    %v3550 = vunpack.c.h.b16 %v1700
    %v3551 = vunpack.c.l.b16 %v1701
    %v3552 = vunpack.c.h.b16 %v1701
    %v3553 = vunpack.c.l.b16 %v1702
    %v3554 = vunpack.c.h.b16 %v1702
    %v3555 = vunpack.c.l.b16 %v1703
    %v3556 = vunpack.c.h.b16 %v1703
    %v3557 = vunpack.c.l.b16 %v1704
    %v3558 = vunpack.c.h.b16 %v1704
    %v3559 = vunpack.c.l.b16 %v1705
    %v3560 = vunpack.c.h.b16 %v1705
    %v3561 = vunpack.c.l.b16 %v1706
    %v3562 = vunpack.c.h.b16 %v1706
    %v3563 = vunpack.c.l.b16 %v1707
    %v3564 = vunpack.c.h.b16 %v1707
    %v3565 = vunpack.c.l.b16 %v1708
    %v3566 = vunpack.c.h.b16 %v1708
    %v3567 = vunpack.c.l.b16 %v1709
    %v3568 = vunpack.c.h.b16 %v1709
    %v3569 = vunpack.c.l.b16 %v1710
    %v3570 = vunpack.c.h.b16 %v1710
    %v3571 = vunpack.c.l.b16 %v1711
    %v3572 = vunpack.c.h.b16 %v1711
    %v3573 = vunpack.c.l.b16 %v1712
    %v3574 = vunpack.c.h.b16 %v1712
    %v3575 = vunpack.c.l.b16 %v1713
    %v3576 = vunpack.c.h.b16 %v1713
    %v3577 = vunpack.c.l.b16 %v1714
    %v3578 = vunpack.c.h.b16 %v1714
    %v3579 = vunpack.c.l.b16 %v1715
    %v3580 = vunpack.c.h.b16 %v1715
    %v3581 = vunpack.c.l.b16 %v1716
    %v3582 = vunpack.c.h.b16 %v1716
    %v3583 = vunpack.c.l.b16 %v1717
    %v3584 = vunpack.c.h.b16 %v1717
    %v3585 = vunpack.c.l.b16 %v1718
    %v3586 = vunpack.c.h.b16 %v1718
    %v3587 = vunpack.c.l.b16 %v1719
    %v3588 = vunpack.c.h.b16 %v1719
    %v3589 = vunpack.c.l.b16 %v1720
    %v3590 = vunpack.c.h.b16 %v1720
    %v3591 = vunpack.c.l.b16 %v1721
    %v3592 = vunpack.c.h.b16 %v1721
    %v3593 = vunpack.c.l.b16 %v1722
    %v3594 = vunpack.c.h.b16 %v1722
    %v3595 = vunpack.c.l.b16 %v1723
    %v3596 = vunpack.c.h.b16 %v1723
    %v3597 = vunpack.c.l.b16 %v1724
    %v3598 = vunpack.c.h.b16 %v1724
    %v3599 = vunpack.c.l.b16 %v1725
    %v3600 = vunpack.c.h.b16 %v1725
    %v3601 = vunpack.c.l.b16 %v1726
    %v3602 = vunpack.c.h.b16 %v1726
    %v3603 = vunpack.c.l.b16 %v1727
    %v3604 = vunpack.c.h.b16 %v1727
    %v3605 = vunpack.c.l.b16 %v1728
    %v3606 = vunpack.c.h.b16 %v1728
    %v3607 = vunpack.c.l.b16 %v1729
    %v3608 = vunpack.c.h.b16 %v1729
    %v3609 = vunpack.c.l.b16 %v1730
    %v3610 = vunpack.c.h.b16 %v1730
    %v3611 = vunpack.c.l.b16 %v1731
    %v3612 = vunpack.c.h.b16 %v1731
    %v3613 = vunpack.c.l.b16 %v1732
    %v3614 = vunpack.c.h.b16 %v1732
    %v3615 = vunpack.c.l.b16 %v1733
    %v3616 = vunpack.c.h.b16 %v1733
    %v3617 = vunpack.c.l.b16 %v1734
    %v3618 = vunpack.c.h.b16 %v1734
    %v3619 = vunpack.c.l.b16 %v1735
    %v3620 = vunpack.c.h.b16 %v1735
    %v3621 = vunpack.c.l.b16 %v1736
    %v3622 = vunpack.c.h.b16 %v1736
    %v3623 = vunpack.c.l.b16 %v1737
    %v3624 = vunpack.c.h.b16 %v1737
    %v3625 = vunpack.c.l.b16 %v1738
    %v3626 = vunpack.c.h.b16 %v1738
    %v3627 = vunpack.c.l.b16 %v1739
    %v3628 = vunpack.c.h.b16 %v1739
    %v3629 = vunpack.c.l.b16 %v1740
    %v3630 = vunpack.c.h.b16 %v1740
    %v3631 = vunpack.c.l.b16 %v1741
    %v3632 = vunpack.c.h.b16 %v1741
    %v3633 = vunpack.c.l.b16 %v1742
    %v3634 = vunpack.c.h.b16 %v1742
    %v3635 = vunpack.c.l.b16 %v1743
    %v3636 = vunpack.c.h.b16 %v1743
    %v3637 = vunpack.c.l.b16 %v1744
    %v3638 = vunpack.c.h.b16 %v1744
    %v3639 = vunpack.c.l.b16 %v1745
    %v3640 = vunpack.c.h.b16 %v1745
    %v3641 = vunpack.c.l.b16 %v1746
    %v3642 = vunpack.c.h.b16 %v1746
    %v3643 = vunpack.c.l.b16 %v1747
    %v3644 = vunpack.c.h.b16 %v1747
    %v3645 = vunpack.c.l.b16 %v1748
    %v3646 = vunpack.c.h.b16 %v1748
    %v3647 = vunpack.c.l.b16 %v1749
    %v3648 = vunpack.c.h.b16 %v1749
    %v3649 = vunpack.c.l.b16 %v1750
    %v3650 = vunpack.c.h.b16 %v1750
    %v3651 = vunpack.c.l.b16 %v1751
    %v3652 = vunpack.c.h.b16 %v1751
    %v3653 = vunpack.c.l.b16 %v1752
    %v3654 = vunpack.c.h.b16 %v1752
    %v3655 = vunpack.c.l.b16 %v1753
    %v3656 = vunpack.c.h.b16 %v1753
    %v3657 = vunpack.c.l.b16 %v1754
    %v3658 = vunpack.c.h.b16 %v1754
    %v3659 = vunpack.c.l.b16 %v1755
    %v3660 = vunpack.c.h.b16 %v1755
    %v3661 = vunpack.c.l.b16 %v1756
    %v3662 = vunpack.c.h.b16 %v1756
    %v3663 = vunpack.c.l.b16 %v1757
    %v3664 = vunpack.c.h.b16 %v1757
    %v3665 = vunpack.c.l.b16 %v1758
    %v3666 = vunpack.c.h.b16 %v1758
    %v3667 = vunpack.c.l.b16 %v1759
    %v3668 = vunpack.c.h.b16 %v1759
    %v3669 = vunpack.c.l.b16 %v1760
    %v3670 = vunpack.c.h.b16 %v1760
    %v3671 = vunpack.c.l.b16 %v1761
    %v3672 = vunpack.c.h.b16 %v1761
    %v3673 = vunpack.c.l.b16 %v1762
    %v3674 = vunpack.c.h.b16 %v1762
    %v3675 = vunpack.c.l.b16 %v1763
    %v3676 = vunpack.c.h.b16 %v1763
    %v3677 = vunpack.c.l.b16 %v1764
    %v3678 = vunpack.c.h.b16 %v1764
    %v3679 = vunpack.c.l.b16 %v1765
    %v3680 = vunpack.c.h.b16 %v1765
    %v3681 = vunpack.c.l.b16 %v1766
    %v3682 = vunpack.c.h.b16 %v1766
    %v3683 = vunpack.c.l.b16 %v1767
    %v3684 = vunpack.c.h.b16 %v1767
    %v3685 = vunpack.c.l.b16 %v1768
    %v3686 = vunpack.c.h.b16 %v1768
    %v3687 = vunpack.c.l.b16 %v1769
    %v3688 = vunpack.c.h.b16 %v1769
    %v3689 = vunpack.c.l.b16 %v1770
    %v3690 = vunpack.c.h.b16 %v1770
    %v3691 = vunpack.c.l.b16 %v1771
    %v3692 = vunpack.c.h.b16 %v1771
    %v3693 = vunpack.c.l.b16 %v1772
    %v3694 = vunpack.c.h.b16 %v1772
    %v3695 = vunpack.c.l.b16 %v1773
    %v3696 = vunpack.c.h.b16 %v1773
    %v3697 = vunpack.c.l.b16 %v1774
    %v3698 = vunpack.c.h.b16 %v1774
    %v3699 = vunpack.c.l.b16 %v1775
    %v3700 = vunpack.c.h.b16 %v1775
    %v3701 = vunpack.c.l.b16 %v1776
    %v3702 = vunpack.c.h.b16 %v1776
    %v3703 = vunpack.c.l.b16 %v1777
    %v3704 = vunpack.c.h.b16 %v1777
    %v3705 = vunpack.c.l.b16 %v1778
    %v3706 = vunpack.c.h.b16 %v1778
    %v3707 = vunpack.c.l.b16 %v1779
    %v3708 = vunpack.c.h.b16 %v1779
    %v3709 = vunpack.c.l.b16 %v1780
    %v3710 = vunpack.c.h.b16 %v1780
    %v3711 = vunpack.c.l.b16 %v1781
    %v3712 = vunpack.c.h.b16 %v1781
    %v3713 = vunpack.c.l.b16 %v1782
    %v3714 = vunpack.c.h.b16 %v1782
    %v3715 = vunpack.c.l.b16 %v1783
    %v3716 = vunpack.c.h.b16 %v1783
    %v3717 = vunpack.c.l.b16 %v1784
    %v3718 = vunpack.c.h.b16 %v1784
    %v3719 = vunpack.c.l.b16 %v1785
    %v3720 = vunpack.c.h.b16 %v1785
    %v3721 = vunpack.c.l.b16 %v1786
    %v3722 = vunpack.c.h.b16 %v1786
    %v3723 = vunpack.c.l.b16 %v1787
    %v3724 = vunpack.c.h.b16 %v1787
    %v3725 = vunpack.c.l.b16 %v1788
    %v3726 = vunpack.c.h.b16 %v1788
    %v3727 = vunpack.c.l.b16 %v1789
    %v3728 = vunpack.c.h.b16 %v1789
    %v3729 = vunpack.c.l.b16 %v1790
    %v3730 = vunpack.c.h.b16 %v1790
    %v3731 = vunpack.c.l.b16 %v1791
    %v3732 = vunpack.c.h.b16 %v1791
    %v3733 = vunpack.c.l.b16 %v1792
    %v3734 = vunpack.c.h.b16 %v1792
    %v3735 = vunpack.c.l.b16 %v1793
    %v3736 = vunpack.c.h.b16 %v1793
    %v3737 = vunpack.c.l.b16 %v1794
    %v3738 = vunpack.c.h.b16 %v1794
    %v3739 = vunpack.c.l.b16 %v1795
    %v3740 = vunpack.c.h.b16 %v1795
    %v3741 = vunpack.c.l.b16 %v1796
    %v3742 = vunpack.c.h.b16 %v1796
    %v3743 = vunpack.c.l.b16 %v1797
    %v3744 = vunpack.c.h.b16 %v1797
    %v3745 = vunpack.c.l.b16 %v1798
    %v3746 = vunpack.c.h.b16 %v1798
    %v3747 = vunpack.c.l.b16 %v1799
    %v3748 = vunpack.c.h.b16 %v1799
    %v3749 = vunpack.c.l.b16 %v1800
    %v3750 = vunpack.c.h.b16 %v1800
    %v3751 = vunpack.c.l.b16 %v1801
    %v3752 = vunpack.c.h.b16 %v1801
    %v3753 = vunpack.c.l.b16 %v1802
    %v3754 = vunpack.c.h.b16 %v1802
    %v3755 = vunpack.c.l.b16 %v1803
    %v3756 = vunpack.c.h.b16 %v1803
    %v3757 = vunpack.c.l.b16 %v1804
    %v3758 = vunpack.c.h.b16 %v1804
    %v3759 = vunpack.c.l.b16 %v1805
    %v3760 = vunpack.c.h.b16 %v1805
    %v3761 = vunpack.c.l.b16 %v1806
    %v3762 = vunpack.c.h.b16 %v1806
    %v3763 = vunpack.c.l.b16 %v1807
    %v3764 = vunpack.c.h.b16 %v1807
    %v3765 = vunpack.c.l.b16 %v1808
    %v3766 = vunpack.c.h.b16 %v1808
    %v3767 = vunpack.c.l.b16 %v1809
    %v3768 = vunpack.c.h.b16 %v1809
    %v3769 = vunpack.c.l.b16 %v1810
    %v3770 = vunpack.c.h.b16 %v1810
    %v3771 = vunpack.c.l.b16 %v1811
    %v3772 = vunpack.c.h.b16 %v1811
    %v3773 = vunpack.c.l.b16 %v1812
    %v3774 = vunpack.c.h.b16 %v1812
    %v3775 = vunpack.c.l.b16 %v1813
    %v3776 = vunpack.c.h.b16 %v1813
    %v3777 = vunpack.c.l.b16 %v1814
    %v3778 = vunpack.c.h.b16 %v1814
    %v3779 = vunpack.c.l.b16 %v1815
    %v3780 = vunpack.c.h.b16 %v1815
    %v3781 = vunpack.c.l.b16 %v1816
    %v3782 = vunpack.c.h.b16 %v1816
    %v3783 = vunpack.c.l.b16 %v1817
    %v3784 = vunpack.c.h.b16 %v1817
    %v3785 = vunpack.c.l.b16 %v1818
    %v3786 = vunpack.c.h.b16 %v1818
    %v3787 = vunpack.c.l.b16 %v1819
    %v3788 = vunpack.c.h.b16 %v1819
    %v3789 = vunpack.c.l.b16 %v1820
    %v3790 = vunpack.c.h.b16 %v1820
    %v3791 = vunpack.c.l.b16 %v1821
    %v3792 = vunpack.c.h.b16 %v1821
    %v3793 = vunpack.c.l.b16 %v1822
    %v3794 = vunpack.c.h.b16 %v1822
    %v3795 = vunpack.c.l.b16 %v1823
    %v3796 = vunpack.c.h.b16 %v1823
    %v3797 = vunpack.c.l.b16 %v1824
    %v3798 = vunpack.c.h.b16 %v1824
    %v3799 = vunpack.c.l.b16 %v1825
    %v3800 = vunpack.c.h.b16 %v1825
    %v3801 = vunpack.c.l.b16 %v1826
    %v3802 = vunpack.c.h.b16 %v1826
    %v3803 = vunpack.c.l.b16 %v1827
    %v3804 = vunpack.c.h.b16 %v1827
    %v3805 = vunpack.c.l.b16 %v1828
    %v3806 = vunpack.c.h.b16 %v1828
    %v3807 = vunpack.c.l.b16 %v1829
    %v3808 = vunpack.c.h.b16 %v1829
    %v3809 = vunpack.c.l.b16 %v1830
    %v3810 = vunpack.c.h.b16 %v1830
    %v3811 = vunpack.c.l.b16 %v1831
    %v3812 = vunpack.c.h.b16 %v1831
    %v3813 = vunpack.c.l.b16 %v1832
    %v3814 = vunpack.c.h.b16 %v1832
    %v3815 = vunpack.c.l.b16 %v1833
    %v3816 = vunpack.c.h.b16 %v1833
    %v3817 = vunpack.c.l.b16 %v1834
    %v3818 = vunpack.c.h.b16 %v1834
    %v3819 = vunpack.c.l.b16 %v1835
    %v3820 = vunpack.c.h.b16 %v1835
    %v3821 = vunpack.c.l.b16 %v1836
    %v3822 = vunpack.c.h.b16 %v1836
    %v3823 = vunpack.c.l.b16 %v1837
    %v3824 = vunpack.c.h.b16 %v1837
    %v3825 = vunpack.c.l.b16 %v1838
    %v3826 = vunpack.c.h.b16 %v1838
    %v3827 = vunpack.c.l.b16 %v1839
    %v3828 = vunpack.c.h.b16 %v1839
    %v3829 = vunpack.c.l.b16 %v1840
    %v3830 = vunpack.c.h.b16 %v1840
    %v3831 = vunpack.c.l.b16 %v1841
    %v3832 = vunpack.c.h.b16 %v1841
    %v3833 = vunpack.c.l.b16 %v1842
    %v3834 = vunpack.c.h.b16 %v1842
    %v3835 = vunpack.c.l.b16 %v1843
    %v3836 = vunpack.c.h.b16 %v1843
    %v3837 = vunpack.c.l.b16 %v1844
    %v3838 = vunpack.c.h.b16 %v1844
    %v3839 = vunpack.c.l.b16 %v1845
    %v3840 = vunpack.c.h.b16 %v1845
    %v3841 = vunpack.c.l.b16 %v1846
    %v3842 = vunpack.c.h.b16 %v1846
    %v3843 = vunpack.c.l.b16 %v1847
    %v3844 = vunpack.c.h.b16 %v1847
    %v3845 = vunpack.c.l.b16 %v1848
    %v3846 = vunpack.c.h.b16 %v1848
    %v3847 = vunpack.c.l.b16 %v1849
    %v3848 = vunpack.c.h.b16 %v1849
    %v3849 = vunpack.c.l.b16 %v1850
    %v3850 = vunpack.c.h.b16 %v1850
    %v3851 = vunpack.c.l.b16 %v1851
    %v3852 = vunpack.c.h.b16 %v1851
    %v3853 = vunpack.c.l.b16 %v1852
    %v3854 = vunpack.c.h.b16 %v1852
    %v3855 = vunpack.c.l.b16 %v1853
    %v3856 = vunpack.c.h.b16 %v1853
    %v3857 = vunpack.c.l.b16 %v1854
    %v3858 = vunpack.c.h.b16 %v1854
    %v3859 = vunpack.c.l.b16 %v1855
    %v3860 = vunpack.c.h.b16 %v1855
    %v3861 = vunpack.c.l.b16 %v1856
    %v3862 = vunpack.c.h.b16 %v1856
    %v3863 = vunpack.c.l.b16 %v1857
    %v3864 = vunpack.c.h.b16 %v1857
    %v3865 = vunpack.c.l.b16 %v1858
    %v3866 = vunpack.c.h.b16 %v1858
    %v3867 = vunpack.c.l.b16 %v1859
    %v3868 = vunpack.c.h.b16 %v1859
    %v3869 = vunpack.c.l.b16 %v1860
    %v3870 = vunpack.c.h.b16 %v1860
    %v3871 = vunpack.c.l.b16 %v1861
    %v3872 = vunpack.c.h.b16 %v1861
    %v3873 = vunpack.c.l.b16 %v1862
    %v3874 = vunpack.c.h.b16 %v1862
    %v3875 = vunpack.c.l.b16 %v1863
    %v3876 = vunpack.c.h.b16 %v1863
    %v3877 = vunpack.c.l.b16 %v1864
    %v3878 = vunpack.c.h.b16 %v1864
    %v3879 = vunpack.c.l.b16 %v1865
    %v3880 = vunpack.c.h.b16 %v1865
    %v3881 = vunpack.c.l.b16 %v1866
    %v3882 = vunpack.c.h.b16 %v1866
    %v3883 = vunpack.c.l.b16 %v1867
    %v3884 = vunpack.c.h.b16 %v1867
    %v3885 = vunpack.c.l.b16 %v1868
    %v3886 = vunpack.c.h.b16 %v1868
    %v3887 = vunpack.c.l.b16 %v1869
    %v3888 = vunpack.c.h.b16 %v1869
    %v3889 = vunpack.c.l.b16 %v1870
    %v3890 = vunpack.c.h.b16 %v1870
    %v3891 = vunpack.c.l.b16 %v1871
    %v3892 = vunpack.c.h.b16 %v1871
    %v3893 = vunpack.c.l.b16 %v1872
    %v3894 = vunpack.c.h.b16 %v1872
    %v3895 = vunpack.c.l.b16 %v1873
    %v3896 = vunpack.c.h.b16 %v1873
    %v3897 = vunpack.c.l.b16 %v1874
    %v3898 = vunpack.c.h.b16 %v1874
    %v3899 = vunpack.c.l.b16 %v1875
    %v3900 = vunpack.c.h.b16 %v1875
    %v3901 = vunpack.c.l.b16 %v1876
    %v3902 = vunpack.c.h.b16 %v1876
    %v3903 = vunpack.c.l.b16 %v1877
    %v3904 = vunpack.c.h.b16 %v1877
    %v3905 = vunpack.c.l.b16 %v1878
    %v3906 = vunpack.c.h.b16 %v1878
    %v3907 = vunpack.c.l.b16 %v1879
    %v3908 = vunpack.c.h.b16 %v1879
    %v3909 = vunpack.c.l.b16 %v1880
    %v3910 = vunpack.c.h.b16 %v1880
    %v3911 = vunpack.c.l.b16 %v1881
    %v3912 = vunpack.c.h.b16 %v1881
    %v3913 = vunpack.c.l.b16 %v1882
    %v3914 = vunpack.c.h.b16 %v1882
    %v3915 = vunpack.c.l.b16 %v1883
    %v3916 = vunpack.c.h.b16 %v1883
    %v3917 = vunpack.c.l.b16 %v1884
    %v3918 = vunpack.c.h.b16 %v1884
    %v3919 = vunpack.c.l.b16 %v1885
    %v3920 = vunpack.c.h.b16 %v1885
    %v3921 = vunpack.c.l.b16 %v1886
    %v3922 = vunpack.c.h.b16 %v1886
    %v3923 = vunpack.c.l.b16 %v1887
    %v3924 = vunpack.c.h.b16 %v1887
    %v3925 = vunpack.c.l.b16 %v1888
    %v3926 = vunpack.c.h.b16 %v1888
    %v3927 = vunpack.c.l.b16 %v1889
    %v3928 = vunpack.c.h.b16 %v1889
    %v3929 = vunpack.c.l.b16 %v1890
    %v3930 = vunpack.c.h.b16 %v1890
    %v3931 = vunpack.c.l.b16 %v1891
    %v3932 = vunpack.c.h.b16 %v1891
    %v3933 = vunpack.c.l.b16 %v1892
    %v3934 = vunpack.c.h.b16 %v1892
    %v3935 = vunpack.c.l.b16 %v1893
    %v3936 = vunpack.c.h.b16 %v1893
    %v3937 = vunpack.c.l.b16 %v1894
    %v3938 = vunpack.c.h.b16 %v1894
    %v3939 = vunpack.c.l.b16 %v1895
    %v3940 = vunpack.c.h.b16 %v1895
    %v3941 = vunpack.c.l.b16 %v1896
    %v3942 = vunpack.c.h.b16 %v1896
    %v3943 = vunpack.c.l.b16 %v1897
    %v3944 = vunpack.c.h.b16 %v1897
    %v3945 = vunpack.c.l.b16 %v1898
    %v3946 = vunpack.c.h.b16 %v1898
    %v3947 = vunpack.c.l.b16 %v1899
    %v3948 = vunpack.c.h.b16 %v1899
    %v3949 = vunpack.c.l.b16 %v1900
    %v3950 = vunpack.c.h.b16 %v1900
    %v3951 = vunpack.c.l.b16 %v1901
    %v3952 = vunpack.c.h.b16 %v1901
    %v3953 = vunpack.c.l.b16 %v1902
    %v3954 = vunpack.c.h.b16 %v1902
    %v3955 = vunpack.c.l.b16 %v1903
    %v3956 = vunpack.c.h.b16 %v1903
    %v3957 = vunpack.c.l.b16 %v1904
    %v3958 = vunpack.c.h.b16 %v1904
    %v3959 = vunpack.c.l.b16 %v1905
    %v3960 = vunpack.c.h.b16 %v1905
    %v3961 = vunpack.c.l.b16 %v1906
    %v3962 = vunpack.c.h.b16 %v1906
    %v3963 = vunpack.c.l.b16 %v1907
    %v3964 = vunpack.c.h.b16 %v1907
    %v3965 = vunpack.c.l.b16 %v1908
    %v3966 = vunpack.c.h.b16 %v1908
    %v3967 = vunpack.c.l.b16 %v1909
    %v3968 = vunpack.c.h.b16 %v1909
    %v3969 = vunpack.c.l.b16 %v1910
    %v3970 = vunpack.c.h.b16 %v1910
    %v3971 = vunpack.c.l.b16 %v1911
    %v3972 = vunpack.c.h.b16 %v1911
    %v3973 = vunpack.c.l.b16 %v1912
    %v3974 = vunpack.c.h.b16 %v1912
    %v3975 = vunpack.c.l.b16 %v1913
    %v3976 = vunpack.c.h.b16 %v1913
    %v3977 = vunpack.c.l.b16 %v1914
    %v3978 = vunpack.c.h.b16 %v1914
    %v3979 = vunpack.c.l.b16 %v1915
    %v3980 = vunpack.c.h.b16 %v1915
    %v3981 = vunpack.c.l.b16 %v1916
    %v3982 = vunpack.c.h.b16 %v1916
    %v3983 = vunpack.c.l.b16 %v1917
    %v3984 = vunpack.c.h.b16 %v1917
    %v3985 = vunpack.c.l.b16 %v1918
    %v3986 = vunpack.c.h.b16 %v1918
    %v3987 = vunpack.c.l.b16 %v1919
    %v3988 = vunpack.c.h.b16 %v1919
    %v3989 = vunpack.c.l.b16 %v1920
    %v3990 = vunpack.c.h.b16 %v1920
    %v3991 = vunpack.c.l.b16 %v1921
    %v3992 = vunpack.c.h.b16 %v1921
    %v3993 = vunpack.c.l.b16 %v1922
    %v3994 = vunpack.c.h.b16 %v1922
    %v3995 = vunpack.c.l.b16 %v1923
    %v3996 = vunpack.c.h.b16 %v1923
    %v3997 = vunpack.c.l.b16 %v1924
    %v3998 = vunpack.c.h.b16 %v1924
    %v3999 = vunpack.c.l.b16 %v1925
    %v4000 = vunpack.c.h.b16 %v1925
    %v4001 = vunpack.c.l.b16 %v1926
    %v4002 = vunpack.c.h.b16 %v1926
    %v4003 = vunpack.c.l.b16 %v1927
    %v4004 = vunpack.c.h.b16 %v1927
    %v4005 = vunpack.c.l.b16 %v1928
    %v4006 = vunpack.c.h.b16 %v1928
    %v4007 = vunpack.c.l.b16 %v1929
    %v4008 = vunpack.c.h.b16 %v1929
    %v4009 = vunpack.c.l.b16 %v1930
    %v4010 = vunpack.c.h.b16 %v1930
    %v4011 = vunpack.c.l.b16 %v1931
    %v4012 = vunpack.c.h.b16 %v1931
    %v4013 = vunpack.c.l.b16 %v1932
    %v4014 = vunpack.c.h.b16 %v1932
    %v4015 = vunpack.c.l.b16 %v1933
    %v4016 = vunpack.c.h.b16 %v1933
    %v4017 = vunpack.c.l.b16 %v1934
    %v4018 = vunpack.c.h.b16 %v1934
    %v4019 = vunpack.c.l.b16 %v1935
    %v4020 = vunpack.c.h.b16 %v1935
    %v4021 = vunpack.c.l.b16 %v1936
    %v4022 = vunpack.c.h.b16 %v1936
    %v4023 = vunpack.c.l.b16 %v1937
    %v4024 = vunpack.c.h.b16 %v1937
    %v4025 = vunpack.c.l.b16 %v1938
    %v4026 = vunpack.c.h.b16 %v1938
    %v4027 = vunpack.c.l.b16 %v1939
    %v4028 = vunpack.c.h.b16 %v1939
    %v4029 = vunpack.c.l.b16 %v1940
    %v4030 = vunpack.c.h.b16 %v1940
    %v4031 = vunpack.c.l.b16 %v1941
    %v4032 = vunpack.c.h.b16 %v1941
    %v4033 = vunpack.c.l.b16 %v1942
    %v4034 = vunpack.c.h.b16 %v1942
    %v4035 = vunpack.c.l.b16 %v1943
    %v4036 = vunpack.c.h.b16 %v1943
    %v4037 = vunpack.c.l.b16 %v1944
    %v4038 = vunpack.c.h.b16 %v1944
    %v4039 = vunpack.c.l.b16 %v1945
    %v4040 = vunpack.c.h.b16 %v1945
    %v4041 = vunpack.c.l.b16 %v1946
    %v4042 = vunpack.c.h.b16 %v1946
    %v4043 = vunpack.c.l.b16 %v1947
    %v4044 = vunpack.c.h.b16 %v1947
    %v4045 = vunpack.c.l.b16 %v1948
    %v4046 = vunpack.c.h.b16 %v1948
    %v4047 = vunpack.c.l.b16 %v1949
    %v4048 = vunpack.c.h.b16 %v1949
    %v4049 = vunpack.c.l.b16 %v1950
    %v4050 = vunpack.c.h.b16 %v1950
    %v4051 = vunpack.c.l.b16 %v1951
    %v4052 = vunpack.c.h.b16 %v1951
    %v4053 = vunpack.c.l.b16 %v1952
    %v4054 = vunpack.c.h.b16 %v1952
    %v4055 = vunpack.c.l.b16 %v1953
    %v4056 = vunpack.c.h.b16 %v1953
    %v4057 = vunpack.c.l.b16 %v1954
    %v4058 = vunpack.c.h.b16 %v1954
    %v4059 = vunpack.c.l.b16 %v1955
    %v4060 = vunpack.c.h.b16 %v1955
    %v4061 = vunpack.c.l.b16 %v1956
    %v4062 = vunpack.c.h.b16 %v1956
    %v4063 = vunpack.c.l.b16 %v1957
    %v4064 = vunpack.c.h.b16 %v1957
    %v4065 = vunpack.c.l.b16 %v1958
    %v4066 = vunpack.c.h.b16 %v1958
    %v4067 = vunpack.c.l.b16 %v1959
    %v4068 = vunpack.c.h.b16 %v1959
    %v4069 = vunpack.c.l.b16 %v1960
    %v4070 = vunpack.c.h.b16 %v1960
    %v4071 = vunpack.c.l.b16 %v1961
    %v4072 = vunpack.c.h.b16 %v1961
    %v4073 = vunpack.c.l.b16 %v1962
    %v4074 = vunpack.c.h.b16 %v1962
    %v4075 = vunpack.c.l.b16 %v1963
    %v4076 = vunpack.c.h.b16 %v1963
    %v4077 = vunpack.c.l.b16 %v1964
    %v4078 = vunpack.c.h.b16 %v1964
    %v4079 = vunpack.c.l.b16 %v1965
    %v4080 = vunpack.c.h.b16 %v1965
    %v4081 = vunpack.c.l.b16 %v1966
    %v4082 = vunpack.c.h.b16 %v1966
    %v4083 = vunpack.c.l.b16 %v1967
    %v4084 = vunpack.c.h.b16 %v1967
    %v4085 = vunpack.c.l.b16 %v1968
    %v4086 = vunpack.c.h.b16 %v1968
    %v4087 = vunpack.c.l.b16 %v1969
    %v4088 = vunpack.c.h.b16 %v1969
    %v4089 = vunpack.c.l.b16 %v1970
    %v4090 = vunpack.c.h.b16 %v1970
    %v4091 = vunpack.c.l.b16 %v1971
    %v4092 = vunpack.c.h.b16 %v1971
    %v4093 = vunpack.c.l.b16 %v1972
    %v4094 = vunpack.c.h.b16 %v1972
    %v4095 = vunpack.c.l.b16 %v1973
    %v4096 = vunpack.c.h.b16 %v1973
    %v4097 = vunpack.c.l.b16 %v1974
    %v4098 = vunpack.c.h.b16 %v1974
    %v4099 = vunpack.c.l.b16 %v1975
    %v4100 = vunpack.c.h.b16 %v1975
    %v4101 = vunpack.c.l.b16 %v1976
    %v4102 = vunpack.c.h.b16 %v1976
    %v4103 = vunpack.c.l.b16 %v1977
    %v4104 = vunpack.c.h.b16 %v1977
    %v4105 = vunpack.c.l.b16 %v1978
    %v4106 = vunpack.c.h.b16 %v1978
    %v4107 = vunpack.c.l.b16 %v1979
    %v4108 = vunpack.c.h.b16 %v1979
    %v4109 = vunpack.c.l.b16 %v1980
    %v4110 = vunpack.c.h.b16 %v1980
    %v4111 = vunpack.c.l.b16 %v1981
    %v4112 = vunpack.c.h.b16 %v1981
    %v4113 = vunpack.c.l.b16 %v1982
    %v4114 = vunpack.c.h.b16 %v1982
    %v4115 = vunpack.c.l.b16 %v1983
    %v4116 = vunpack.c.h.b16 %v1983
    %v4117 = vunpack.c.l.b16 %v1984
    %v4118 = vunpack.c.h.b16 %v1984
    %v4119 = vunpack.c.l.b16 %v1985
    %v4120 = vunpack.c.h.b16 %v1985
    %v4121 = vunpack.c.l.b16 %v1986
    %v4122 = vunpack.c.h.b16 %v1986
    %v4123 = vunpack.c.l.b16 %v1987
    %v4124 = vunpack.c.h.b16 %v1987
    %v4125 = vunpack.c.l.b16 %v1988
    %v4126 = vunpack.c.h.b16 %v1988
    %v4127 = vunpack.c.l.b16 %v1989
    %v4128 = vunpack.c.h.b16 %v1989
    %v4129 = vunpack.c.l.b16 %v1990
    %v4130 = vunpack.c.h.b16 %v1990
    %v4131 = vunpack.c.l.b16 %v1991
    %v4132 = vunpack.c.h.b16 %v1991
    %v4133 = vunpack.c.l.b16 %v1992
    %v4134 = vunpack.c.h.b16 %v1992
    %v4135 = vunpack.c.l.b16 %v1993
    %v4136 = vunpack.c.h.b16 %v1993
    %v4137 = vunpack.c.l.b16 %v1994
    %v4138 = vunpack.c.h.b16 %v1994
    %v4139 = vunpack.c.l.b16 %v1995
    %v4140 = vunpack.c.h.b16 %v1995
    %v4141 = vunpack.c.l.b16 %v1996
    %v4142 = vunpack.c.h.b16 %v1996
    %v4143 = vunpack.c.l.b16 %v1997
    %v4144 = vunpack.c.h.b16 %v1997
    %v4145 = vunpack.c.l.b16 %v1998
    %v4146 = vunpack.c.h.b16 %v1998
    %v4147 = vunpack.c.l.b16 %v1999
    %v4148 = vunpack.c.h.b16 %v1999
    %v4149 = vunpack.c.l.b16 %v2000
    %v4150 = vunpack.c.h.b16 %v2000
    %v4151 = vunpack.c.l.b16 %v2001
    %v4152 = vunpack.c.h.b16 %v2001
    %v4153 = vunpack.c.l.b16 %v2002
    %v4154 = vunpack.c.h.b16 %v2002
    %v4155 = vunpack.c.l.b16 %v2003
    %v4156 = vunpack.c.h.b16 %v2003
    %v4157 = vunpack.c.l.b16 %v2004
    %v4158 = vunpack.c.h.b16 %v2004
    %v4159 = vunpack.c.l.b16 %v2005
    %v4160 = vunpack.c.h.b16 %v2005
    %v4161 = vunpack.c.l.b16 %v2006
    %v4162 = vunpack.c.h.b16 %v2006
    %v4163 = vunpack.c.l.b16 %v2007
    %v4164 = vunpack.c.h.b16 %v2007
    %v4165 = vunpack.c.l.b16 %v2008
    %v4166 = vunpack.c.h.b16 %v2008
    %v4167 = vunpack.c.l.b16 %v2009
    %v4168 = vunpack.c.h.b16 %v2009
    %v4169 = vunpack.c.l.b16 %v2010
    %v4170 = vunpack.c.h.b16 %v2010
    %v4171 = vunpack.c.l.b16 %v2011
    %v4172 = vunpack.c.h.b16 %v2011
    %v4173 = vunpack.c.l.b16 %v2012
    %v4174 = vunpack.c.h.b16 %v2012
    %v4175 = vunpack.c.l.b16 %v2013
    %v4176 = vunpack.c.h.b16 %v2013
    %v4177 = vunpack.c.l.b16 %v2014
    %v4178 = vunpack.c.h.b16 %v2014
    %v4179 = vunpack.c.l.b16 %v2015
    %v4180 = vunpack.c.h.b16 %v2015
    %v4181 = vunpack.c.l.b16 %v2016
    %v4182 = vunpack.c.h.b16 %v2016
    %v4183 = vunpack.c.l.b16 %v2017
    %v4184 = vunpack.c.h.b16 %v2017
    %v4185 = vunpack.c.l.b16 %v2018
    %v4186 = vunpack.c.h.b16 %v2018
    %v4187 = vunpack.c.l.b16 %v2019
    %v4188 = vunpack.c.h.b16 %v2019
    %v4189 = vunpack.c.l.b16 %v2020
    %v4190 = vunpack.c.h.b16 %v2020
    %v4191 = vunpack.c.l.b16 %v2021
    %v4192 = vunpack.c.h.b16 %v2021
    %v4193 = vunpack.c.l.b16 %v2022
    %v4194 = vunpack.c.h.b16 %v2022
    %v4195 = vunpack.c.l.b16 %v2023
    %v4196 = vunpack.c.h.b16 %v2023
    %v4197 = vunpack.c.l.b16 %v2024
    %v4198 = vunpack.c.h.b16 %v2024
    %v4199 = vunpack.c.l.b16 %v2025
    %v4200 = vunpack.c.h.b16 %v2025
    %v4201 = vunpack.c.l.b16 %v2026
    %v4202 = vunpack.c.h.b16 %v2026
    %v4203 = vunpack.c.l.b16 %v2027
    %v4204 = vunpack.c.h.b16 %v2027
    %v4205 = vunpack.c.l.b16 %v2028
    %v4206 = vunpack.c.h.b16 %v2028
    %v4207 = vunpack.c.l.b16 %v2029
    %v4208 = vunpack.c.h.b16 %v2029
    %v4209 = vunpack.c.l.b16 %v2030
    %v4210 = vunpack.c.h.b16 %v2030
    %v4211 = vunpack.c.l.b16 %v2031
    %v4212 = vunpack.c.h.b16 %v2031
    %v4213 = vunpack.c.l.b16 %v2032
    %v4214 = vunpack.c.h.b16 %v2032
    %v4215 = vunpack.c.l.b16 %v2033
    %v4216 = vunpack.c.h.b16 %v2033
    %v4217 = vunpack.c.l.b16 %v2034
    %v4218 = vunpack.c.h.b16 %v2034
    %v4219 = vunpack.c.l.b16 %v2035
    %v4220 = vunpack.c.h.b16 %v2035
    %v4221 = vunpack.c.l.b16 %v2036
    %v4222 = vunpack.c.h.b16 %v2036
    %v4223 = vunpack.c.l.b16 %v2037
    %v4224 = vunpack.c.h.b16 %v2037
    %v4225 = vunpack.c.l.b16 %v2038
    %v4226 = vunpack.c.h.b16 %v2038
    %v4227 = vunpack.c.l.b16 %v2039
    %v4228 = vunpack.c.h.b16 %v2039
    %v4229 = vunpack.c.l.b16 %v2040
    %v4230 = vunpack.c.h.b16 %v2040
    %v4231 = vunpack.c.l.b16 %v2041
    %v4232 = vunpack.c.h.b16 %v2041
    %v4233 = vunpack.c.l.b16 %v2042
    %v4234 = vunpack.c.h.b16 %v2042
    %v4235 = vunpack.c.l.b16 %v2043
    %v4236 = vunpack.c.h.b16 %v2043
    %v4237 = vunpack.c.l.b16 %v2044
    %v4238 = vunpack.c.h.b16 %v2044
    %v4239 = vunpack.c.l.b16 %v2045
    %v4240 = vunpack.c.h.b16 %v2045
    %v4241 = vunpack.c.l.b16 %v2046
    %v4242 = vunpack.c.h.b16 %v2046
    %v4243 = vunpack.c.l.b16 %v2047
    %v4244 = vunpack.c.h.b16 %v2047
    %v4245 = vunpack.c.l.b16 %v2048
    %v4246 = vunpack.c.h.b16 %v2048
    %v4247 = vunpack.c.l.b16 %v2049
    %v4248 = vunpack.c.h.b16 %v2049
    %v4249 = vunpack.c.l.b16 %v2050
    %v4250 = vunpack.c.h.b16 %v2050
    %v4251 = vunpack.c.l.b16 %v2051
    %v4252 = vunpack.c.h.b16 %v2051
    %v4253 = vunpack.c.l.b16 %v2052
    %v4254 = vunpack.c.h.b16 %v2052
    %v4255 = vunpack.c.l.b16 %v2053
    %v4256 = vunpack.c.h.b16 %v2053
    %v4257 = vunpack.c.l.b16 %v2054
    %v4258 = vunpack.c.h.b16 %v2054
    %v4259 = vunpack.c.l.b16 %v2055
    %v4260 = vunpack.c.h.b16 %v2055
    %v4261 = vunpack.c.l.b16 %v2056
    %v4262 = vunpack.c.h.b16 %v2056
    %v4263 = vunpack.c.l.b16 %v2057
    %v4264 = vunpack.c.h.b16 %v2057
    %v4265 = vunpack.c.l.b16 %v2058
    %v4266 = vunpack.c.h.b16 %v2058
    %v4267 = vunpack.c.l.b16 %v2059
    %v4268 = vunpack.c.h.b16 %v2059
    %v4269 = vunpack.c.l.b16 %v2060
    %v4270 = vunpack.c.h.b16 %v2060
    %v4271 = vunpack.c.l.b16 %v2061
    %v4272 = vunpack.c.h.b16 %v2061
    %v4273 = vunpack.c.l.b16 %v2062
    %v4274 = vunpack.c.h.b16 %v2062
    %v4275 = vunpack.c.l.b16 %v2063
    %v4276 = vunpack.c.h.b16 %v2063
    %v4277 = vunpack.c.l.b16 %v2064
    %v4278 = vunpack.c.h.b16 %v2064
    %v4279 = vunpack.c.l.b16 %v2065
    %v4280 = vunpack.c.h.b16 %v2065
    %v4281 = vunpack.c.l.b16 %v2066
    %v4282 = vunpack.c.h.b16 %v2066
    %v4283 = vunpack.c.l.b16 %v2067
    %v4284 = vunpack.c.h.b16 %v2067
    %v4285 = vunpack.c.l.b16 %v2068
    %v4286 = vunpack.c.h.b16 %v2068
    %v4287 = vunpack.c.l.b16 %v2069
    %v4288 = vunpack.c.h.b16 %v2069
    %v4289 = vunpack.c.l.b16 %v2070
    %v4290 = vunpack.c.h.b16 %v2070
    %v4291 = vunpack.c.l.b16 %v2071
    %v4292 = vunpack.c.h.b16 %v2071
    %v4293 = vunpack.c.l.b16 %v2072
    %v4294 = vunpack.c.h.b16 %v2072
    %v4295 = vunpack.c.l.b16 %v2073
    %v4296 = vunpack.c.h.b16 %v2073
    %v4297 = vunpack.c.l.b16 %v2074
    %v4298 = vunpack.c.h.b16 %v2074
    %v4299 = vunpack.c.l.b16 %v2075
    %v4300 = vunpack.c.h.b16 %v2075
    %v4301 = vunpack.c.l.b16 %v2076
    %v4302 = vunpack.c.h.b16 %v2076
    %v4303 = vunpack.c.l.b16 %v2077
    %v4304 = vunpack.c.h.b16 %v2077
    %v4305 = vunpack.c.l.b16 %v2078
    %v4306 = vunpack.c.h.b16 %v2078
    %v4307 = vunpack.c.l.b16 %v2079
    %v4308 = vunpack.c.h.b16 %v2079
    %v4309 = vunpack.c.l.b16 %v2080
    %v4310 = vunpack.c.h.b16 %v2080
    %v4311 = vunpack.c.l.b16 %v2081
    %v4312 = vunpack.c.h.b16 %v2081
    %v4313 = vunpack.c.l.b16 %v2082
    %v4314 = vunpack.c.h.b16 %v2082
    %v4315 = vunpack.c.l.b16 %v2083
    %v4316 = vunpack.c.h.b16 %v2083
    %v4317 = vunpack.c.l.b16 %v2084
    %v4318 = vunpack.c.h.b16 %v2084
    %v4319 = vunpack.c.l.b16 %v2085
    %v4320 = vunpack.c.h.b16 %v2085
    %v4321 = vunpack.c.l.b16 %v2086
    %v4322 = vunpack.c.h.b16 %v2086
    %v4323 = vunpack.c.l.b16 %v2087
    %v4324 = vunpack.c.h.b16 %v2087
    %v4325 = vunpack.c.l.b16 %v2088
    %v4326 = vunpack.c.h.b16 %v2088
    %v4327 = vunpack.c.l.b16 %v2089
    %v4328 = vunpack.c.h.b16 %v2089
    %v4329 = vunpack.c.l.b16 %v2090
    %v4330 = vunpack.c.h.b16 %v2090
    %v4331 = vunpack.c.l.b16 %v2091
    %v4332 = vunpack.c.h.b16 %v2091
    %v4333 = vunpack.c.l.b16 %v2092
    %v4334 = vunpack.c.h.b16 %v2092
    %v4335 = vunpack.c.l.b16 %v2093
    %v4336 = vunpack.c.h.b16 %v2093
    %v4337 = vunpack.c.l.b16 %v2094
    %v4338 = vunpack.c.h.b16 %v2094
    %v4339 = vunpack.c.l.b16 %v2095
    %v4340 = vunpack.c.h.b16 %v2095
    %v4341 = vunpack.c.l.b16 %v2096
    %v4342 = vunpack.c.h.b16 %v2096
    %v4343 = vunpack.c.l.b16 %v2097
    %v4344 = vunpack.c.h.b16 %v2097
    %v4345 = vunpack.c.l.b16 %v2098
    %v4346 = vunpack.c.h.b16 %v2098
    %v4347 = vunpack.c.l.b16 %v2099
    %v4348 = vunpack.c.h.b16 %v2099
    %v4349 = vunpack.c.l.b16 %v2100
    %v4350 = vunpack.c.h.b16 %v2100
    %v4351 = vunpack.c.l.b16 %v2101
    %v4352 = vunpack.c.h.b16 %v2101
    %v4353 = vunpack.c.l.b16 %v2102
    %v4354 = vunpack.c.h.b16 %v2102
    %v4355 = vunpack.c.l.b16 %v2103
    %v4356 = vunpack.c.h.b16 %v2103
    %v4357 = vunpack.c.l.b16 %v2104
    %v4358 = vunpack.c.h.b16 %v2104
    %v4359 = vunpack.c.l.b16 %v2105
    %v4360 = vunpack.c.h.b16 %v2105
    %v4361 = vunpack.c.l.b16 %v2106
    %v4362 = vunpack.c.h.b16 %v2106
    %v4363 = vunpack.c.l.b16 %v2107
    %v4364 = vunpack.c.h.b16 %v2107
    %v4365 = vunpack.c.l.b16 %v2108
    %v4366 = vunpack.c.h.b16 %v2108
    %v4367 = vunpack.c.l.b16 %v2109
    %v4368 = vunpack.c.h.b16 %v2109
    %v4369 = vunpack.c.l.b16 %v2110
    %v4370 = vunpack.c.h.b16 %v2110
    %v4371 = vunpack.c.l.b16 %v2111
    %v4372 = vunpack.c.h.b16 %v2111
    %v4373 = vunpack.c.l.b16 %v2112
    %v4374 = vunpack.c.h.b16 %v2112
    %v4375 = vunpack.c.l.b16 %v2113
    %v4376 = vunpack.c.h.b16 %v2113
    %v4377 = vunpack.c.l.b16 %v2114
    %v4378 = vunpack.c.h.b16 %v2114
    %v4379 = vunpack.c.l.b16 %v2115
    %v4380 = vunpack.c.h.b16 %v2115
    %v4381 = vunpack.c.l.b16 %v2116
    %v4382 = vunpack.c.h.b16 %v2116
    %v4383 = vunpack.c.l.b16 %v2117
    %v4384 = vunpack.c.h.b16 %v2117
    %v4385 = vunpack.c.l.b16 %v2118
    %v4386 = vunpack.c.h.b16 %v2118
    %v4387 = vunpack.c.l.b16 %v2119
    %v4388 = vunpack.c.h.b16 %v2119
    %v4389 = vunpack.c.l.b16 %v2120
    %v4390 = vunpack.c.h.b16 %v2120
    %v4391 = vunpack.c.l.b16 %v2121
    %v4392 = vunpack.c.h.b16 %v2121
    %v4393 = vunpack.c.l.b16 %v2122
    %v4394 = vunpack.c.h.b16 %v2122
    %v4395 = vunpack.c.l.b16 %v2123
    %v4396 = vunpack.c.h.b16 %v2123
    %v4397 = vunpack.c.l.b16 %v2124
    %v4398 = vunpack.c.h.b16 %v2124
    %v4399 = vunpack.c.l.b16 %v2125
    %v4400 = vunpack.c.h.b16 %v2125
    %v4401 = vunpack.c.l.b16 %v2126
    %v4402 = vunpack.c.h.b16 %v2126
    %v4403 = vunpack.c.l.b16 %v2127
    %v4404 = vunpack.c.h.b16 %v2127
    %v4405 = vunpack.c.l.b16 %v2128
    %v4406 = vunpack.c.h.b16 %v2128
    %v4407 = vunpack.c.l.b16 %v2129
    %v4408 = vunpack.c.h.b16 %v2129
    %v4409 = vunpack.c.l.b16 %v2130
    %v4410 = vunpack.c.h.b16 %v2130
    %v4411 = vunpack.c.l.b16 %v2131
    %v4412 = vunpack.c.h.b16 %v2131
    %v4413 = vunpack.c.l.b16 %v2132
    %v4414 = vunpack.c.h.b16 %v2132
    %v4415 = vunpack.c.l.b16 %v2133
    %v4416 = vunpack.c.h.b16 %v2133
    %v4417 = vunpack.c.l.b16 %v2134
    %v4418 = vunpack.c.h.b16 %v2134
    %v4419 = vunpack.c.l.b16 %v2135
    %v4420 = vunpack.c.h.b16 %v2135
    %v4421 = vunpack.c.l.b16 %v2136
    %v4422 = vunpack.c.h.b16 %v2136
    %v4423 = vunpack.c.l.b16 %v2137
    %v4424 = vunpack.c.h.b16 %v2137
    %v4425 = vunpack.c.l.b16 %v2138
    %v4426 = vunpack.c.h.b16 %v2138
    %v4427 = vunpack.c.l.b16 %v2139
    %v4428 = vunpack.c.h.b16 %v2139
    %v4429 = vunpack.c.l.b16 %v2140
    %v4430 = vunpack.c.h.b16 %v2140
    %v4431 = vunpack.c.l.b16 %v2141
    %v4432 = vunpack.c.h.b16 %v2141
    %v4433 = vunpack.c.l.b16 %v2142
    %v4434 = vunpack.c.h.b16 %v2142
    %v4435 = vunpack.c.l.b16 %v2143
    %v4436 = vunpack.c.h.b16 %v2143
    %v4437 = vunpack.c.l.b16 %v2144
    %v4438 = vunpack.c.h.b16 %v2144
    %v4439 = vunpack.c.l.b16 %v2145
    %v4440 = vunpack.c.h.b16 %v2145
    %v4441 = vunpack.c.l.b16 %v2146
    %v4442 = vunpack.c.h.b16 %v2146
    %v4443 = vunpack.c.l.b16 %v2147
    %v4444 = vunpack.c.h.b16 %v2147
    %v4445 = vunpack.c.l.b16 %v2148
    %v4446 = vunpack.c.h.b16 %v2148
    %v4447 = vunpack.c.l.b16 %v2149
    %v4448 = vunpack.c.h.b16 %v2149
    %v4449 = vunpack.c.l.b16 %v2150
    %v4450 = vunpack.c.h.b16 %v2150
    %v4451 = vunpack.c.l.b16 %v2151
    %v4452 = vunpack.c.h.b16 %v2151
    %v4453 = vunpack.c.l.b16 %v2152
    %v4454 = vunpack.c.h.b16 %v2152
    %v4455 = vunpack.c.l.b16 %v2153
    %v4456 = vunpack.c.h.b16 %v2153
    %v4457 = vunpack.c.l.b16 %v2154
    %v4458 = vunpack.c.h.b16 %v2154
    %v4459 = vunpack.c.l.b16 %v2155
    %v4460 = vunpack.c.h.b16 %v2155
    %v4461 = vunpack.c.l.b16 %v2156
    %v4462 = vunpack.c.h.b16 %v2156
    %v4463 = vunpack.c.l.b16 %v2157
    %v4464 = vunpack.c.h.b16 %v2157
    %v4465 = vunpack.c.l.b16 %v2158
    %v4466 = vunpack.c.h.b16 %v2158
    %v4467 = vunpack.c.l.b16 %v2159
    %v4468 = vunpack.c.h.b16 %v2159
    %v4469 = vunpack.c.l.b16 %v2160
    %v4470 = vunpack.c.h.b16 %v2160
    %v4471 = vunpack.c.l.b16 %v2161
    %v4472 = vunpack.c.h.b16 %v2161
    %v4473 = vunpack.c.l.b16 %v2162
    %v4474 = vunpack.c.h.b16 %v2162
    %v4475 = vunpack.c.l.b16 %v2163
    %v4476 = vunpack.c.h.b16 %v2163
    %v4477 = vunpack.c.l.b16 %v2164
    %v4478 = vunpack.c.h.b16 %v2164
    %v4479 = vunpack.c.l.b16 %v2165
    %v4480 = vunpack.c.h.b16 %v2165
    %v4481 = vunpack.c.l.b16 %v2166
    %v4482 = vunpack.c.h.b16 %v2166
    %v4483 = vunpack.c.l.b16 %v2167
    %v4484 = vunpack.c.h.b16 %v2167
    %v4485 = vunpack.c.l.b16 %v2168
    %v4486 = vunpack.c.h.b16 %v2168
    %v4487 = vunpack.c.l.b16 %v2169
    %v4488 = vunpack.c.h.b16 %v2169
    %v4489 = vunpack.c.l.b16 %v2170
    %v4490 = vunpack.c.h.b16 %v2170
    %v4491 = vunpack.c.l.b16 %v2171
    %v4492 = vunpack.c.h.b16 %v2171
    %v4493 = vunpack.c.l.b16 %v2172
    %v4494 = vunpack.c.h.b16 %v2172
    %v4495 = vpack.c.b16 %v2967, %v2959
    %v4496 = vpack.c.b16 %v2968, %v2960
    %v4497 = vpack.c.b16 %v2969, %v2961
    %v4498 = vpack.c.b16 %v2970, %v2962
    %v4499 = vpack.c.b16 %v2971, %v2963
    %v4500 = vpack.c.b16 %v2972, %v2964
    %v4501 = vpack.c.b16 %v2973, %v2965
    %v4502 = vpack.c.b16 %v2974, %v2966
    %v4503 = vpack.c.b16 %v2983, %v2975
    %v4504 = vpack.c.b16 %v2984, %v2976
    %v4505 = vpack.c.b16 %v2985, %v2977
    %v4506 = vpack.c.b16 %v2986, %v2978
    %v4507 = vpack.c.b16 %v2987, %v2979
    %v4508 = vpack.c.b16 %v2988, %v2980
    %v4509 = vpack.c.b16 %v2989, %v2981
    %v4510 = vpack.c.b16 %v2990, %v2982
    %v4511 = vpack.c.b16 %v2999, %v2991
    %v4512 = vpack.c.b16 %v3000, %v2992
    %v4513 = vpack.c.b16 %v3001, %v2993
    %v4514 = vpack.c.b16 %v3002, %v2994
    %v4515 = vpack.c.b16 %v3003, %v2995
    %v4516 = vpack.c.b16 %v3004, %v2996
    %v4517 = vpack.c.b16 %v3005, %v2997
    %v4518 = vpack.c.b16 %v3006, %v2998
    %v4519 = vpack.c.b16 %v3015, %v3007
    %v4520 = vpack.c.b16 %v3016, %v3008
    %v4521 = vpack.c.b16 %v3017, %v3009
    %v4522 = vpack.c.b16 %v3018, %v3010
    %v4523 = vpack.c.b16 %v3019, %v3011
    %v4524 = vpack.c.b16 %v3020, %v3012
    %v4525 = vpack.c.b16 %v3021, %v3013
    %v4526 = vpack.c.b16 %v3022, %v3014
    %v4527 = vpack.c.b16 %v3031, %v3023
    %v4528 = vpack.c.b16 %v3032, %v3024
    %v4529 = vpack.c.b16 %v3033, %v3025
    %v4530 = vpack.c.b16 %v3034, %v3026
    %v4531 = vpack.c.b16 %v3035, %v3027
    %v4532 = vpack.c.b16 %v3036, %v3028
    %v4533 = vpack.c.b16 %v3037, %v3029
    %v4534 = vpack.c.b16 %v3038, %v3030
    %v4535 = vpack.c.b16 %v3047, %v3039
    %v4536 = vpack.c.b16 %v3048, %v3040
    %v4537 = vpack.c.b16 %v3049, %v3041
    %v4538 = vpack.c.b16 %v3050, %v3042
    %v4539 = vpack.c.b16 %v3051, %v3043
    %v4540 = vpack.c.b16 %v3052, %v3044
    %v4541 = vpack.c.b16 %v3053, %v3045
    %v4542 = vpack.c.b16 %v3054, %v3046
    %v4543 = vpack.c.b16 %v3063, %v3055
    %v4544 = vpack.c.b16 %v3064, %v3056
    %v4545 = vpack.c.b16 %v3065, %v3057
    %v4546 = vpack.c.b16 %v3066, %v3058
    %v4547 = vpack.c.b16 %v3067, %v3059
    %v4548 = vpack.c.b16 %v3068, %v3060
    %v4549 = vpack.c.b16 %v3069, %v3061
    %v4550 = vpack.c.b16 %v3070, %v3062
    %v4551 = vpack.c.b16 %v3079, %v3071
    %v4552 = vpack.c.b16 %v3080, %v3072
    %v4553 = vpack.c.b16 %v3081, %v3073
    %v4554 = vpack.c.b16 %v3082, %v3074
    %v4555 = vpack.c.b16 %v3083, %v3075
    %v4556 = vpack.c.b16 %v3084, %v3076
    %v4557 = vpack.c.b16 %v3085, %v3077
    %v4558 = vpack.c.b16 %v3086, %v3078
    %v4559 = vpack.c.b16 %v3095, %v3087
    %v4560 = vpack.c.b16 %v3096, %v3088
    %v4561 = vpack.c.b16 %v3097, %v3089
    %v4562 = vpack.c.b16 %v3098, %v3090
    %v4563 = vpack.c.b16 %v3099, %v3091
    %v4564 = vpack.c.b16 %v3100, %v3092
    %v4565 = vpack.c.b16 %v3101, %v3093
    %v4566 = vpack.c.b16 %v3102, %v3094
    %v4567 = vpack.c.b16 %v3111, %v3103
    %v4568 = vpack.c.b16 %v3112, %v3104
    %v4569 = vpack.c.b16 %v3113, %v3105
    %v4570 = vpack.c.b16 %v3114, %v3106
    %v4571 = vpack.c.b16 %v3115, %v3107
    %v4572 = vpack.c.b16 %v3116, %v3108
    %v4573 = vpack.c.b16 %v3117, %v3109
    %v4574 = vpack.c.b16 %v3118, %v3110
    %v4575 = vpack.c.b16 %v3127, %v3119
    %v4576 = vpack.c.b16 %v3128, %v3120
    %v4577 = vpack.c.b16 %v3129, %v3121
    %v4578 = vpack.c.b16 %v3130, %v3122
    %v4579 = vpack.c.b16 %v3131, %v3123
    %v4580 = vpack.c.b16 %v3132, %v3124
    %v4581 = vpack.c.b16 %v3133, %v3125
    %v4582 = vpack.c.b16 %v3134, %v3126
    %v4583 = vpack.c.b16 %v3143, %v3135
    %v4584 = vpack.c.b16 %v3144, %v3136
    %v4585 = vpack.c.b16 %v3145, %v3137
    %v4586 = vpack.c.b16 %v3146, %v3138
    %v4587 = vpack.c.b16 %v3147, %v3139
    %v4588 = vpack.c.b16 %v3148, %v3140
    %v4589 = vpack.c.b16 %v3149, %v3141
    %v4590 = vpack.c.b16 %v3150, %v3142
    %v4591 = vpack.c.b16 %v3159, %v3151
    %v4592 = vpack.c.b16 %v3160, %v3152
    %v4593 = vpack.c.b16 %v3161, %v3153
    %v4594 = vpack.c.b16 %v3162, %v3154
    %v4595 = vpack.c.b16 %v3163, %v3155
    %v4596 = vpack.c.b16 %v3164, %v3156
    %v4597 = vpack.c.b16 %v3165, %v3157
    %v4598 = vpack.c.b16 %v3166, %v3158
    %v4599 = vpack.c.b16 %v3175, %v3167
    %v4600 = vpack.c.b16 %v3176, %v3168
    %v4601 = vpack.c.b16 %v3177, %v3169
    %v4602 = vpack.c.b16 %v3178, %v3170
    %v4603 = vpack.c.b16 %v3179, %v3171
    %v4604 = vpack.c.b16 %v3180, %v3172
    %v4605 = vpack.c.b16 %v3181, %v3173
    %v4606 = vpack.c.b16 %v3182, %v3174
    %v4607 = vpack.c.b16 %v3191, %v3183
    %v4608 = vpack.c.b16 %v3192, %v3184
    %v4609 = vpack.c.b16 %v3193, %v3185
    %v4610 = vpack.c.b16 %v3194, %v3186
    %v4611 = vpack.c.b16 %v3195, %v3187
    %v4612 = vpack.c.b16 %v3196, %v3188
    %v4613 = vpack.c.b16 %v3197, %v3189
    %v4614 = vpack.c.b16 %v3198, %v3190
    %v4615 = vpack.c.b16 %v3207, %v3199
    %v4616 = vpack.c.b16 %v3208, %v3200
    %v4617 = vpack.c.b16 %v3209, %v3201
    %v4618 = vpack.c.b16 %v3210, %v3202
    %v4619 = vpack.c.b16 %v3211, %v3203
    %v4620 = vpack.c.b16 %v3212, %v3204
    %v4621 = vpack.c.b16 %v3213, %v3205
    %v4622 = vpack.c.b16 %v3214, %v3206
    %v4623 = vpack.c.b16 %v3223, %v3215
    %v4624 = vpack.c.b16 %v3224, %v3216
    %v4625 = vpack.c.b16 %v3225, %v3217
    %v4626 = vpack.c.b16 %v3226, %v3218
    %v4627 = vpack.c.b16 %v3227, %v3219
    %v4628 = vpack.c.b16 %v3228, %v3220
    %v4629 = vpack.c.b16 %v3229, %v3221
    %v4630 = vpack.c.b16 %v3230, %v3222
    %v4631 = vpack.c.b16 %v3239, %v3231
    %v4632 = vpack.c.b16 %v3240, %v3232
    %v4633 = vpack.c.b16 %v3241, %v3233
    %v4634 = vpack.c.b16 %v3242, %v3234
    %v4635 = vpack.c.b16 %v3243, %v3235
    %v4636 = vpack.c.b16 %v3244, %v3236
    %v4637 = vpack.c.b16 %v3245, %v3237
    %v4638 = vpack.c.b16 %v3246, %v3238
    %v4639 = vpack.c.b16 %v3255, %v3247
    %v4640 = vpack.c.b16 %v3256, %v3248
    %v4641 = vpack.c.b16 %v3257, %v3249
    %v4642 = vpack.c.b16 %v3258, %v3250
    %v4643 = vpack.c.b16 %v3259, %v3251
    %v4644 = vpack.c.b16 %v3260, %v3252
    %v4645 = vpack.c.b16 %v3261, %v3253
    %v4646 = vpack.c.b16 %v3262, %v3254
    %v4647 = vpack.c.b16 %v3271, %v3263
    %v4648 = vpack.c.b16 %v3272, %v3264
    %v4649 = vpack.c.b16 %v3273, %v3265
    %v4650 = vpack.c.b16 %v3274, %v3266
    %v4651 = vpack.c.b16 %v3275, %v3267
    %v4652 = vpack.c.b16 %v3276, %v3268
    %v4653 = vpack.c.b16 %v3277, %v3269
    %v4654 = vpack.c.b16 %v3278, %v3270
    %v4655 = vpack.c.b16 %v3287, %v3279
    %v4656 = vpack.c.b16 %v3288, %v3280
    %v4657 = vpack.c.b16 %v3289, %v3281
    %v4658 = vpack.c.b16 %v3290, %v3282
    %v4659 = vpack.c.b16 %v3291, %v3283
    %v4660 = vpack.c.b16 %v3292, %v3284
    %v4661 = vpack.c.b16 %v3293, %v3285
    %v4662 = vpack.c.b16 %v3294, %v3286
    %v4663 = vpack.c.b16 %v3303, %v3295
    %v4664 = vpack.c.b16 %v3304, %v3296
    %v4665 = vpack.c.b16 %v3305, %v3297
    %v4666 = vpack.c.b16 %v3306, %v3298
    %v4667 = vpack.c.b16 %v3307, %v3299
    %v4668 = vpack.c.b16 %v3308, %v3300
    %v4669 = vpack.c.b16 %v3309, %v3301
    %v4670 = vpack.c.b16 %v3310, %v3302
    %v4671 = vpack.c.b16 %v3319, %v3311
    %v4672 = vpack.c.b16 %v3320, %v3312
    %v4673 = vpack.c.b16 %v3321, %v3313
    %v4674 = vpack.c.b16 %v3322, %v3314
    %v4675 = vpack.c.b16 %v3323, %v3315
    %v4676 = vpack.c.b16 %v3324, %v3316
    %v4677 = vpack.c.b16 %v3325, %v3317
    %v4678 = vpack.c.b16 %v3326, %v3318
    %v4679 = vpack.c.b16 %v3335, %v3327
    %v4680 = vpack.c.b16 %v3336, %v3328
    %v4681 = vpack.c.b16 %v3337, %v3329
    %v4682 = vpack.c.b16 %v3338, %v3330
    %v4683 = vpack.c.b16 %v3339, %v3331
    %v4684 = vpack.c.b16 %v3340, %v3332
    %v4685 = vpack.c.b16 %v3341, %v3333
    %v4686 = vpack.c.b16 %v3342, %v3334
    %v4687 = vpack.c.b16 %v3351, %v3343
    %v4688 = vpack.c.b16 %v3352, %v3344
    %v4689 = vpack.c.b16 %v3353, %v3345
    %v4690 = vpack.c.b16 %v3354, %v3346
    %v4691 = vpack.c.b16 %v3355, %v3347
    %v4692 = vpack.c.b16 %v3356, %v3348
    %v4693 = vpack.c.b16 %v3357, %v3349
    %v4694 = vpack.c.b16 %v3358, %v3350
    %v4695 = vpack.c.b16 %v3367, %v3359
    %v4696 = vpack.c.b16 %v3368, %v3360
    %v4697 = vpack.c.b16 %v3369, %v3361
    %v4698 = vpack.c.b16 %v3370, %v3362
    %v4699 = vpack.c.b16 %v3371, %v3363
    %v4700 = vpack.c.b16 %v3372, %v3364
    %v4701 = vpack.c.b16 %v3373, %v3365
    %v4702 = vpack.c.b16 %v3374, %v3366
    %v4703 = vpack.c.b16 %v3383, %v3375
    %v4704 = vpack.c.b16 %v3384, %v3376
    %v4705 = vpack.c.b16 %v3385, %v3377
    %v4706 = vpack.c.b16 %v3386, %v3378
    %v4707 = vpack.c.b16 %v3387, %v3379
    %v4708 = vpack.c.b16 %v3388, %v3380
    %v4709 = vpack.c.b16 %v3389, %v3381
    %v4710 = vpack.c.b16 %v3390, %v3382
    %v4711 = vpack.c.b16 %v3399, %v3391
    %v4712 = vpack.c.b16 %v3400, %v3392
    %v4713 = vpack.c.b16 %v3401, %v3393
    %v4714 = vpack.c.b16 %v3402, %v3394
    %v4715 = vpack.c.b16 %v3403, %v3395
    %v4716 = vpack.c.b16 %v3404, %v3396
    %v4717 = vpack.c.b16 %v3405, %v3397
    %v4718 = vpack.c.b16 %v3406, %v3398
    %v4719 = vpack.c.b16 %v3415, %v3407
    %v4720 = vpack.c.b16 %v3416, %v3408
    %v4721 = vpack.c.b16 %v3417, %v3409
    %v4722 = vpack.c.b16 %v3418, %v3410
    %v4723 = vpack.c.b16 %v3419, %v3411
    %v4724 = vpack.c.b16 %v3420, %v3412
    %v4725 = vpack.c.b16 %v3421, %v3413
    %v4726 = vpack.c.b16 %v3422, %v3414
    %v4727 = vpack.c.b16 %v3431, %v3423
    %v4728 = vpack.c.b16 %v3432, %v3424
    %v4729 = vpack.c.b16 %v3433, %v3425
    %v4730 = vpack.c.b16 %v3434, %v3426
    %v4731 = vpack.c.b16 %v3435, %v3427
    %v4732 = vpack.c.b16 %v3436, %v3428
    %v4733 = vpack.c.b16 %v3437, %v3429
    %v4734 = vpack.c.b16 %v3438, %v3430
    %v4735 = vpack.c.b16 %v3447, %v3439
    %v4736 = vpack.c.b16 %v3448, %v3440
    %v4737 = vpack.c.b16 %v3449, %v3441
    %v4738 = vpack.c.b16 %v3450, %v3442
    %v4739 = vpack.c.b16 %v3451, %v3443
    %v4740 = vpack.c.b16 %v3452, %v3444
    %v4741 = vpack.c.b16 %v3453, %v3445
    %v4742 = vpack.c.b16 %v3454, %v3446
    %v4743 = vpack.c.b16 %v3463, %v3455
    %v4744 = vpack.c.b16 %v3464, %v3456
    %v4745 = vpack.c.b16 %v3465, %v3457
    %v4746 = vpack.c.b16 %v3466, %v3458
    %v4747 = vpack.c.b16 %v3467, %v3459
    %v4748 = vpack.c.b16 %v3468, %v3460
    %v4749 = vpack.c.b16 %v3469, %v3461
    %v4750 = vpack.c.b16 %v3470, %v3462
    %v4751 = vpack.c.b16 %v3479, %v3471
    %v4752 = vpack.c.b16 %v3480, %v3472
    %v4753 = vpack.c.b16 %v3481, %v3473
    %v4754 = vpack.c.b16 %v3482, %v3474
    %v4755 = vpack.c.b16 %v3483, %v3475
    %v4756 = vpack.c.b16 %v3484, %v3476
    %v4757 = vpack.c.b16 %v3485, %v3477
    %v4758 = vpack.c.b16 %v3486, %v3478
    %v4759 = vpack.c.b16 %v3495, %v3487
    %v4760 = vpack.c.b16 %v3496, %v3488
    %v4761 = vpack.c.b16 %v3497, %v3489
    %v4762 = vpack.c.b16 %v3498, %v3490
    %v4763 = vpack.c.b16 %v3499, %v3491
    %v4764 = vpack.c.b16 %v3500, %v3492
    %v4765 = vpack.c.b16 %v3501, %v3493
    %v4766 = vpack.c.b16 %v3502, %v3494
    %v4767 = vpack.c.b16 %v3511, %v3503
    %v4768 = vpack.c.b16 %v3512, %v3504
    %v4769 = vpack.c.b16 %v3513, %v3505
    %v4770 = vpack.c.b16 %v3514, %v3506
    %v4771 = vpack.c.b16 %v3515, %v3507
    %v4772 = vpack.c.b16 %v3516, %v3508
    %v4773 = vpack.c.b16 %v3517, %v3509
    %v4774 = vpack.c.b16 %v3518, %v3510
    %v4775 = vpack.c.b16 %v3527, %v3519
    %v4776 = vpack.c.b16 %v3528, %v3520
    %v4777 = vpack.c.b16 %v3529, %v3521
    %v4778 = vpack.c.b16 %v3530, %v3522
    %v4779 = vpack.c.b16 %v3531, %v3523
    %v4780 = vpack.c.b16 %v3532, %v3524
    %v4781 = vpack.c.b16 %v3533, %v3525
    %v4782 = vpack.c.b16 %v3534, %v3526
    %v4783 = vpack.c.b16 %v3543, %v3535
    %v4784 = vpack.c.b16 %v3544, %v3536
    %v4785 = vpack.c.b16 %v3545, %v3537
    %v4786 = vpack.c.b16 %v3546, %v3538
    %v4787 = vpack.c.b16 %v3547, %v3539
    %v4788 = vpack.c.b16 %v3548, %v3540
    %v4789 = vpack.c.b16 %v3549, %v3541
    %v4790 = vpack.c.b16 %v3550, %v3542
    %v4791 = vpack.c.b16 %v3559, %v3551
    %v4792 = vpack.c.b16 %v3560, %v3552
    %v4793 = vpack.c.b16 %v3561, %v3553
    %v4794 = vpack.c.b16 %v3562, %v3554
    %v4795 = vpack.c.b16 %v3563, %v3555
    %v4796 = vpack.c.b16 %v3564, %v3556
    %v4797 = vpack.c.b16 %v3565, %v3557
    %v4798 = vpack.c.b16 %v3566, %v3558
    %v4799 = vpack.c.b16 %v3575, %v3567
    %v4800 = vpack.c.b16 %v3576, %v3568
    %v4801 = vpack.c.b16 %v3577, %v3569
    %v4802 = vpack.c.b16 %v3578, %v3570
    %v4803 = vpack.c.b16 %v3579, %v3571
    %v4804 = vpack.c.b16 %v3580, %v3572
    %v4805 = vpack.c.b16 %v3581, %v3573
    %v4806 = vpack.c.b16 %v3582, %v3574
    %v4807 = vpack.c.b16 %v3591, %v3583
    %v4808 = vpack.c.b16 %v3592, %v3584
    %v4809 = vpack.c.b16 %v3593, %v3585
    %v4810 = vpack.c.b16 %v3594, %v3586
    %v4811 = vpack.c.b16 %v3595, %v3587
    %v4812 = vpack.c.b16 %v3596, %v3588
    %v4813 = vpack.c.b16 %v3597, %v3589
    %v4814 = vpack.c.b16 %v3598, %v3590
    %v4815 = vpack.c.b16 %v3607, %v3599
    %v4816 = vpack.c.b16 %v3608, %v3600
    %v4817 = vpack.c.b16 %v3609, %v3601
    %v4818 = vpack.c.b16 %v3610, %v3602
    %v4819 = vpack.c.b16 %v3611, %v3603
    %v4820 = vpack.c.b16 %v3612, %v3604
    %v4821 = vpack.c.b16 %v3613, %v3605
    %v4822 = vpack.c.b16 %v3614, %v3606
    %v4823 = vpack.c.b16 %v3623, %v3615
    %v4824 = vpack.c.b16 %v3624, %v3616
    %v4825 = vpack.c.b16 %v3625, %v3617
    %v4826 = vpack.c.b16 %v3626, %v3618
    %v4827 = vpack.c.b16 %v3627, %v3619
    %v4828 = vpack.c.b16 %v3628, %v3620
    %v4829 = vpack.c.b16 %v3629, %v3621
    %v4830 = vpack.c.b16 %v3630, %v3622
    %v4831 = vpack.c.b16 %v3639, %v3631
    %v4832 = vpack.c.b16 %v3640, %v3632
    %v4833 = vpack.c.b16 %v3641, %v3633
    %v4834 = vpack.c.b16 %v3642, %v3634
    %v4835 = vpack.c.b16 %v3643, %v3635
    %v4836 = vpack.c.b16 %v3644, %v3636
    %v4837 = vpack.c.b16 %v3645, %v3637
    %v4838 = vpack.c.b16 %v3646, %v3638
    %v4839 = vpack.c.b16 %v3655, %v3647
    %v4840 = vpack.c.b16 %v3656, %v3648
    %v4841 = vpack.c.b16 %v3657, %v3649
    %v4842 = vpack.c.b16 %v3658, %v3650
    %v4843 = vpack.c.b16 %v3659, %v3651
    %v4844 = vpack.c.b16 %v3660, %v3652
    %v4845 = vpack.c.b16 %v3661, %v3653
    %v4846 = vpack.c.b16 %v3662, %v3654
    %v4847 = vpack.c.b16 %v3671, %v3663
    %v4848 = vpack.c.b16 %v3672, %v3664
    %v4849 = vpack.c.b16 %v3673, %v3665
    %v4850 = vpack.c.b16 %v3674, %v3666
    %v4851 = vpack.c.b16 %v3675, %v3667
    %v4852 = vpack.c.b16 %v3676, %v3668
    %v4853 = vpack.c.b16 %v3677, %v3669
    %v4854 = vpack.c.b16 %v3678, %v3670
    %v4855 = vpack.c.b16 %v3687, %v3679
    %v4856 = vpack.c.b16 %v3688, %v3680
    %v4857 = vpack.c.b16 %v3689, %v3681
    %v4858 = vpack.c.b16 %v3690, %v3682
    %v4859 = vpack.c.b16 %v3691, %v3683
    %v4860 = vpack.c.b16 %v3692, %v3684
    %v4861 = vpack.c.b16 %v3693, %v3685
    %v4862 = vpack.c.b16 %v3694, %v3686
    %v4863 = vpack.c.b16 %v3703, %v3695
    %v4864 = vpack.c.b16 %v3704, %v3696
    %v4865 = vpack.c.b16 %v3705, %v3697
    %v4866 = vpack.c.b16 %v3706, %v3698
    %v4867 = vpack.c.b16 %v3707, %v3699
    %v4868 = vpack.c.b16 %v3708, %v3700
    %v4869 = vpack.c.b16 %v3709, %v3701
    %v4870 = vpack.c.b16 %v3710, %v3702
    %v4871 = vpack.c.b16 %v3719, %v3711
    %v4872 = vpack.c.b16 %v3720, %v3712
    %v4873 = vpack.c.b16 %v3721, %v3713
    %v4874 = vpack.c.b16 %v3722, %v3714
    %v4875 = vpack.c.b16 %v3723, %v3715
    %v4876 = vpack.c.b16 %v3724, %v3716
    %v4877 = vpack.c.b16 %v3725, %v3717
    %v4878 = vpack.c.b16 %v3726, %v3718
    %v4879 = vpack.c.b16 %v3735, %v3727
    %v4880 = vpack.c.b16 %v3736, %v3728
    %v4881 = vpack.c.b16 %v3737, %v3729
    %v4882 = vpack.c.b16 %v3738, %v3730
    %v4883 = vpack.c.b16 %v3739, %v3731
    %v4884 = vpack.c.b16 %v3740, %v3732
    %v4885 = vpack.c.b16 %v3741, %v3733
    %v4886 = vpack.c.b16 %v3742, %v3734
    %v4887 = vpack.c.b16 %v3751, %v3743
    %v4888 = vpack.c.b16 %v3752, %v3744
    %v4889 = vpack.c.b16 %v3753, %v3745
    %v4890 = vpack.c.b16 %v3754, %v3746
    %v4891 = vpack.c.b16 %v3755, %v3747
    %v4892 = vpack.c.b16 %v3756, %v3748
    %v4893 = vpack.c.b16 %v3757, %v3749
    %v4894 = vpack.c.b16 %v3758, %v3750
    %v4895 = vpack.c.b16 %v3767, %v3759
    %v4896 = vpack.c.b16 %v3768, %v3760
    %v4897 = vpack.c.b16 %v3769, %v3761
    %v4898 = vpack.c.b16 %v3770, %v3762
    %v4899 = vpack.c.b16 %v3771, %v3763
    %v4900 = vpack.c.b16 %v3772, %v3764
    %v4901 = vpack.c.b16 %v3773, %v3765
    %v4902 = vpack.c.b16 %v3774, %v3766
    %v4903 = vpack.c.b16 %v3783, %v3775
    %v4904 = vpack.c.b16 %v3784, %v3776
    %v4905 = vpack.c.b16 %v3785, %v3777
    %v4906 = vpack.c.b16 %v3786, %v3778
    %v4907 = vpack.c.b16 %v3787, %v3779
    %v4908 = vpack.c.b16 %v3788, %v3780
    %v4909 = vpack.c.b16 %v3789, %v3781
    %v4910 = vpack.c.b16 %v3790, %v3782
    %v4911 = vpack.c.b16 %v3799, %v3791
    %v4912 = vpack.c.b16 %v3800, %v3792
    %v4913 = vpack.c.b16 %v3801, %v3793
    %v4914 = vpack.c.b16 %v3802, %v3794
    %v4915 = vpack.c.b16 %v3803, %v3795
    %v4916 = vpack.c.b16 %v3804, %v3796
    %v4917 = vpack.c.b16 %v3805, %v3797
    %v4918 = vpack.c.b16 %v3806, %v3798
    %v4919 = vpack.c.b16 %v3815, %v3807
    %v4920 = vpack.c.b16 %v3816, %v3808
    %v4921 = vpack.c.b16 %v3817, %v3809
    %v4922 = vpack.c.b16 %v3818, %v3810
    %v4923 = vpack.c.b16 %v3819, %v3811
    %v4924 = vpack.c.b16 %v3820, %v3812
    %v4925 = vpack.c.b16 %v3821, %v3813
    %v4926 = vpack.c.b16 %v3822, %v3814
    %v4927 = vpack.c.b16 %v3831, %v3823
    %v4928 = vpack.c.b16 %v3832, %v3824
    %v4929 = vpack.c.b16 %v3833, %v3825
    %v4930 = vpack.c.b16 %v3834, %v3826
    %v4931 = vpack.c.b16 %v3835, %v3827
    %v4932 = vpack.c.b16 %v3836, %v3828
    %v4933 = vpack.c.b16 %v3837, %v3829
    %v4934 = vpack.c.b16 %v3838, %v3830
    %v4935 = vpack.c.b16 %v3847, %v3839
    %v4936 = vpack.c.b16 %v3848, %v3840
    %v4937 = vpack.c.b16 %v3849, %v3841
    %v4938 = vpack.c.b16 %v3850, %v3842
    %v4939 = vpack.c.b16 %v3851, %v3843
    %v4940 = vpack.c.b16 %v3852, %v3844
    %v4941 = vpack.c.b16 %v3853, %v3845
    %v4942 = vpack.c.b16 %v3854, %v3846
    %v4943 = vpack.c.b16 %v3863, %v3855
    %v4944 = vpack.c.b16 %v3864, %v3856
    %v4945 = vpack.c.b16 %v3865, %v3857
    %v4946 = vpack.c.b16 %v3866, %v3858
    %v4947 = vpack.c.b16 %v3867, %v3859
    %v4948 = vpack.c.b16 %v3868, %v3860
    %v4949 = vpack.c.b16 %v3869, %v3861
    %v4950 = vpack.c.b16 %v3870, %v3862
    %v4951 = vpack.c.b16 %v3879, %v3871
    %v4952 = vpack.c.b16 %v3880, %v3872
    %v4953 = vpack.c.b16 %v3881, %v3873
    %v4954 = vpack.c.b16 %v3882, %v3874
    %v4955 = vpack.c.b16 %v3883, %v3875
    %v4956 = vpack.c.b16 %v3884, %v3876
    %v4957 = vpack.c.b16 %v3885, %v3877
    %v4958 = vpack.c.b16 %v3886, %v3878
    %v4959 = vpack.c.b16 %v3895, %v3887
    %v4960 = vpack.c.b16 %v3896, %v3888
    %v4961 = vpack.c.b16 %v3897, %v3889
    %v4962 = vpack.c.b16 %v3898, %v3890
    %v4963 = vpack.c.b16 %v3899, %v3891
    %v4964 = vpack.c.b16 %v3900, %v3892
    %v4965 = vpack.c.b16 %v3901, %v3893
    %v4966 = vpack.c.b16 %v3902, %v3894
    %v4967 = vpack.c.b16 %v3911, %v3903
    %v4968 = vpack.c.b16 %v3912, %v3904
    %v4969 = vpack.c.b16 %v3913, %v3905
    %v4970 = vpack.c.b16 %v3914, %v3906
    %v4971 = vpack.c.b16 %v3915, %v3907
    %v4972 = vpack.c.b16 %v3916, %v3908
    %v4973 = vpack.c.b16 %v3917, %v3909
    %v4974 = vpack.c.b16 %v3918, %v3910
    %v4975 = vpack.c.b16 %v3927, %v3919
    %v4976 = vpack.c.b16 %v3928, %v3920
    %v4977 = vpack.c.b16 %v3929, %v3921
    %v4978 = vpack.c.b16 %v3930, %v3922
    %v4979 = vpack.c.b16 %v3931, %v3923
    %v4980 = vpack.c.b16 %v3932, %v3924
    %v4981 = vpack.c.b16 %v3933, %v3925
    %v4982 = vpack.c.b16 %v3934, %v3926
    %v4983 = vpack.c.b16 %v3943, %v3935
    %v4984 = vpack.c.b16 %v3944, %v3936
    %v4985 = vpack.c.b16 %v3945, %v3937
    %v4986 = vpack.c.b16 %v3946, %v3938
    %v4987 = vpack.c.b16 %v3947, %v3939
    %v4988 = vpack.c.b16 %v3948, %v3940
    %v4989 = vpack.c.b16 %v3949, %v3941
    %v4990 = vpack.c.b16 %v3950, %v3942
    %v4991 = vpack.c.b16 %v3959, %v3951
    %v4992 = vpack.c.b16 %v3960, %v3952
    %v4993 = vpack.c.b16 %v3961, %v3953
    %v4994 = vpack.c.b16 %v3962, %v3954
    %v4995 = vpack.c.b16 %v3963, %v3955
    %v4996 = vpack.c.b16 %v3964, %v3956
    %v4997 = vpack.c.b16 %v3965, %v3957
    %v4998 = vpack.c.b16 %v3966, %v3958
    %v4999 = vpack.c.b16 %v3975, %v3967
    %v5000 = vpack.c.b16 %v3976, %v3968
    %v5001 = vpack.c.b16 %v3977, %v3969
    %v5002 = vpack.c.b16 %v3978, %v3970
    %v5003 = vpack.c.b16 %v3979, %v3971
    %v5004 = vpack.c.b16 %v3980, %v3972
    %v5005 = vpack.c.b16 %v3981, %v3973
    %v5006 = vpack.c.b16 %v3982, %v3974
    %v5007 = vpack.c.b16 %v3991, %v3983
    %v5008 = vpack.c.b16 %v3992, %v3984
    %v5009 = vpack.c.b16 %v3993, %v3985
    %v5010 = vpack.c.b16 %v3994, %v3986
    %v5011 = vpack.c.b16 %v3995, %v3987
    %v5012 = vpack.c.b16 %v3996, %v3988
    %v5013 = vpack.c.b16 %v3997, %v3989
    %v5014 = vpack.c.b16 %v3998, %v3990
    %v5015 = vpack.c.b16 %v4007, %v3999
    %v5016 = vpack.c.b16 %v4008, %v4000
    %v5017 = vpack.c.b16 %v4009, %v4001
    %v5018 = vpack.c.b16 %v4010, %v4002
    %v5019 = vpack.c.b16 %v4011, %v4003
    %v5020 = vpack.c.b16 %v4012, %v4004
    %v5021 = vpack.c.b16 %v4013, %v4005
    %v5022 = vpack.c.b16 %v4014, %v4006
    %v5023 = vpack.c.b16 %v4023, %v4015
    %v5024 = vpack.c.b16 %v4024, %v4016
    %v5025 = vpack.c.b16 %v4025, %v4017
    %v5026 = vpack.c.b16 %v4026, %v4018
    %v5027 = vpack.c.b16 %v4027, %v4019
    %v5028 = vpack.c.b16 %v4028, %v4020
    %v5029 = vpack.c.b16 %v4029, %v4021
    %v5030 = vpack.c.b16 %v4030, %v4022
    %v5031 = vpack.c.b16 %v4039, %v4031
    %v5032 = vpack.c.b16 %v4040, %v4032
    %v5033 = vpack.c.b16 %v4041, %v4033
    %v5034 = vpack.c.b16 %v4042, %v4034
    %v5035 = vpack.c.b16 %v4043, %v4035
    %v5036 = vpack.c.b16 %v4044, %v4036
    %v5037 = vpack.c.b16 %v4045, %v4037
    %v5038 = vpack.c.b16 %v4046, %v4038
    %v5039 = vpack.c.b16 %v4055, %v4047
    %v5040 = vpack.c.b16 %v4056, %v4048
    %v5041 = vpack.c.b16 %v4057, %v4049
    %v5042 = vpack.c.b16 %v4058, %v4050
    %v5043 = vpack.c.b16 %v4059, %v4051
    %v5044 = vpack.c.b16 %v4060, %v4052
    %v5045 = vpack.c.b16 %v4061, %v4053
    %v5046 = vpack.c.b16 %v4062, %v4054
    %v5047 = vpack.c.b16 %v4071, %v4063
    %v5048 = vpack.c.b16 %v4072, %v4064
    %v5049 = vpack.c.b16 %v4073, %v4065
    %v5050 = vpack.c.b16 %v4074, %v4066
    %v5051 = vpack.c.b16 %v4075, %v4067
    %v5052 = vpack.c.b16 %v4076, %v4068
    %v5053 = vpack.c.b16 %v4077, %v4069
    %v5054 = vpack.c.b16 %v4078, %v4070
    %v5055 = vpack.c.b16 %v4087, %v4079
    %v5056 = vpack.c.b16 %v4088, %v4080
    %v5057 = vpack.c.b16 %v4089, %v4081
    %v5058 = vpack.c.b16 %v4090, %v4082
    %v5059 = vpack.c.b16 %v4091, %v4083
    %v5060 = vpack.c.b16 %v4092, %v4084
    %v5061 = vpack.c.b16 %v4093, %v4085
    %v5062 = vpack.c.b16 %v4094, %v4086
    %v5063 = vpack.c.b16 %v4103, %v4095
    %v5064 = vpack.c.b16 %v4104, %v4096
    %v5065 = vpack.c.b16 %v4105, %v4097
    %v5066 = vpack.c.b16 %v4106, %v4098
    %v5067 = vpack.c.b16 %v4107, %v4099
    %v5068 = vpack.c.b16 %v4108, %v4100
    %v5069 = vpack.c.b16 %v4109, %v4101
    %v5070 = vpack.c.b16 %v4110, %v4102
    %v5071 = vpack.c.b16 %v4119, %v4111
    %v5072 = vpack.c.b16 %v4120, %v4112
    %v5073 = vpack.c.b16 %v4121, %v4113
    %v5074 = vpack.c.b16 %v4122, %v4114
    %v5075 = vpack.c.b16 %v4123, %v4115
    %v5076 = vpack.c.b16 %v4124, %v4116
    %v5077 = vpack.c.b16 %v4125, %v4117
    %v5078 = vpack.c.b16 %v4126, %v4118
    %v5079 = vpack.c.b16 %v4135, %v4127
    %v5080 = vpack.c.b16 %v4136, %v4128
    %v5081 = vpack.c.b16 %v4137, %v4129
    %v5082 = vpack.c.b16 %v4138, %v4130
    %v5083 = vpack.c.b16 %v4139, %v4131
    %v5084 = vpack.c.b16 %v4140, %v4132
    %v5085 = vpack.c.b16 %v4141, %v4133
    %v5086 = vpack.c.b16 %v4142, %v4134
    %v5087 = vpack.c.b16 %v4151, %v4143
    %v5088 = vpack.c.b16 %v4152, %v4144
    %v5089 = vpack.c.b16 %v4153, %v4145
    %v5090 = vpack.c.b16 %v4154, %v4146
    %v5091 = vpack.c.b16 %v4155, %v4147
    %v5092 = vpack.c.b16 %v4156, %v4148
    %v5093 = vpack.c.b16 %v4157, %v4149
    %v5094 = vpack.c.b16 %v4158, %v4150
    %v5095 = vpack.c.b16 %v4167, %v4159
    %v5096 = vpack.c.b16 %v4168, %v4160
    %v5097 = vpack.c.b16 %v4169, %v4161
    %v5098 = vpack.c.b16 %v4170, %v4162
    %v5099 = vpack.c.b16 %v4171, %v4163
    %v5100 = vpack.c.b16 %v4172, %v4164
    %v5101 = vpack.c.b16 %v4173, %v4165
    %v5102 = vpack.c.b16 %v4174, %v4166
    %v5103 = vpack.c.b16 %v4183, %v4175
    %v5104 = vpack.c.b16 %v4184, %v4176
    %v5105 = vpack.c.b16 %v4185, %v4177
    %v5106 = vpack.c.b16 %v4186, %v4178
    %v5107 = vpack.c.b16 %v4187, %v4179
    %v5108 = vpack.c.b16 %v4188, %v4180
    %v5109 = vpack.c.b16 %v4189, %v4181
    %v5110 = vpack.c.b16 %v4190, %v4182
    %v5111 = vpack.c.b16 %v4199, %v4191
    %v5112 = vpack.c.b16 %v4200, %v4192
    %v5113 = vpack.c.b16 %v4201, %v4193
    %v5114 = vpack.c.b16 %v4202, %v4194
    %v5115 = vpack.c.b16 %v4203, %v4195
    %v5116 = vpack.c.b16 %v4204, %v4196
    %v5117 = vpack.c.b16 %v4205, %v4197
    %v5118 = vpack.c.b16 %v4206, %v4198
    %v5119 = vpack.c.b16 %v4215, %v4207
    %v5120 = vpack.c.b16 %v4216, %v4208
    %v5121 = vpack.c.b16 %v4217, %v4209
    %v5122 = vpack.c.b16 %v4218, %v4210
    %v5123 = vpack.c.b16 %v4219, %v4211
    %v5124 = vpack.c.b16 %v4220, %v4212
    %v5125 = vpack.c.b16 %v4221, %v4213
    %v5126 = vpack.c.b16 %v4222, %v4214
    %v5127 = vpack.c.b16 %v4231, %v4223
    %v5128 = vpack.c.b16 %v4232, %v4224
    %v5129 = vpack.c.b16 %v4233, %v4225
    %v5130 = vpack.c.b16 %v4234, %v4226
    %v5131 = vpack.c.b16 %v4235, %v4227
    %v5132 = vpack.c.b16 %v4236, %v4228
    %v5133 = vpack.c.b16 %v4237, %v4229
    %v5134 = vpack.c.b16 %v4238, %v4230
    %v5135 = vpack.c.b16 %v4247, %v4239
    %v5136 = vpack.c.b16 %v4248, %v4240
    %v5137 = vpack.c.b16 %v4249, %v4241
    %v5138 = vpack.c.b16 %v4250, %v4242
    %v5139 = vpack.c.b16 %v4251, %v4243
    %v5140 = vpack.c.b16 %v4252, %v4244
    %v5141 = vpack.c.b16 %v4253, %v4245
    %v5142 = vpack.c.b16 %v4254, %v4246
    %v5143 = vpack.c.b16 %v4263, %v4255
    %v5144 = vpack.c.b16 %v4264, %v4256
    %v5145 = vpack.c.b16 %v4265, %v4257
    %v5146 = vpack.c.b16 %v4266, %v4258
    %v5147 = vpack.c.b16 %v4267, %v4259
    %v5148 = vpack.c.b16 %v4268, %v4260
    %v5149 = vpack.c.b16 %v4269, %v4261
    %v5150 = vpack.c.b16 %v4270, %v4262
    %v5151 = vpack.c.b16 %v4279, %v4271
    %v5152 = vpack.c.b16 %v4280, %v4272
    %v5153 = vpack.c.b16 %v4281, %v4273
    %v5154 = vpack.c.b16 %v4282, %v4274
    %v5155 = vpack.c.b16 %v4283, %v4275
    %v5156 = vpack.c.b16 %v4284, %v4276
    %v5157 = vpack.c.b16 %v4285, %v4277
    %v5158 = vpack.c.b16 %v4286, %v4278
    %v5159 = vpack.c.b16 %v4295, %v4287
    %v5160 = vpack.c.b16 %v4296, %v4288
    %v5161 = vpack.c.b16 %v4297, %v4289
    %v5162 = vpack.c.b16 %v4298, %v4290
    %v5163 = vpack.c.b16 %v4299, %v4291
    %v5164 = vpack.c.b16 %v4300, %v4292
    %v5165 = vpack.c.b16 %v4301, %v4293
    %v5166 = vpack.c.b16 %v4302, %v4294
    %v5167 = vpack.c.b16 %v4311, %v4303
    %v5168 = vpack.c.b16 %v4312, %v4304
    %v5169 = vpack.c.b16 %v4313, %v4305
    %v5170 = vpack.c.b16 %v4314, %v4306
    %v5171 = vpack.c.b16 %v4315, %v4307
    %v5172 = vpack.c.b16 %v4316, %v4308
    %v5173 = vpack.c.b16 %v4317, %v4309
    %v5174 = vpack.c.b16 %v4318, %v4310
    %v5175 = vpack.c.b16 %v4327, %v4319
    %v5176 = vpack.c.b16 %v4328, %v4320
    %v5177 = vpack.c.b16 %v4329, %v4321
    %v5178 = vpack.c.b16 %v4330, %v4322
    %v5179 = vpack.c.b16 %v4331, %v4323
    %v5180 = vpack.c.b16 %v4332, %v4324
    %v5181 = vpack.c.b16 %v4333, %v4325
    %v5182 = vpack.c.b16 %v4334, %v4326
    %v5183 = vpack.c.b16 %v4343, %v4335
    %v5184 = vpack.c.b16 %v4344, %v4336
    %v5185 = vpack.c.b16 %v4345, %v4337
    %v5186 = vpack.c.b16 %v4346, %v4338
    %v5187 = vpack.c.b16 %v4347, %v4339
    %v5188 = vpack.c.b16 %v4348, %v4340
    %v5189 = vpack.c.b16 %v4349, %v4341
    %v5190 = vpack.c.b16 %v4350, %v4342
    %v5191 = vpack.c.b16 %v4359, %v4351
    %v5192 = vpack.c.b16 %v4360, %v4352
    %v5193 = vpack.c.b16 %v4361, %v4353
    %v5194 = vpack.c.b16 %v4362, %v4354
    %v5195 = vpack.c.b16 %v4363, %v4355
    %v5196 = vpack.c.b16 %v4364, %v4356
    %v5197 = vpack.c.b16 %v4365, %v4357
    %v5198 = vpack.c.b16 %v4366, %v4358
    %v5199 = vpack.c.b16 %v4375, %v4367
    %v5200 = vpack.c.b16 %v4376, %v4368
    %v5201 = vpack.c.b16 %v4377, %v4369
    %v5202 = vpack.c.b16 %v4378, %v4370
    %v5203 = vpack.c.b16 %v4379, %v4371
    %v5204 = vpack.c.b16 %v4380, %v4372
    %v5205 = vpack.c.b16 %v4381, %v4373
    %v5206 = vpack.c.b16 %v4382, %v4374
    %v5207 = vpack.c.b16 %v4391, %v4383
    %v5208 = vpack.c.b16 %v4392, %v4384
    %v5209 = vpack.c.b16 %v4393, %v4385
    %v5210 = vpack.c.b16 %v4394, %v4386
    %v5211 = vpack.c.b16 %v4395, %v4387
    %v5212 = vpack.c.b16 %v4396, %v4388
    %v5213 = vpack.c.b16 %v4397, %v4389
    %v5214 = vpack.c.b16 %v4398, %v4390
    %v5215 = vpack.c.b16 %v4407, %v4399
    %v5216 = vpack.c.b16 %v4408, %v4400
    %v5217 = vpack.c.b16 %v4409, %v4401
    %v5218 = vpack.c.b16 %v4410, %v4402
    %v5219 = vpack.c.b16 %v4411, %v4403
    %v5220 = vpack.c.b16 %v4412, %v4404
    %v5221 = vpack.c.b16 %v4413, %v4405
    %v5222 = vpack.c.b16 %v4414, %v4406
    %v5223 = vpack.c.b16 %v4423, %v4415
    %v5224 = vpack.c.b16 %v4424, %v4416
    %v5225 = vpack.c.b16 %v4425, %v4417
    %v5226 = vpack.c.b16 %v4426, %v4418
    %v5227 = vpack.c.b16 %v4427, %v4419
    %v5228 = vpack.c.b16 %v4428, %v4420
    %v5229 = vpack.c.b16 %v4429, %v4421
    %v5230 = vpack.c.b16 %v4430, %v4422
    %v5231 = vpack.c.b16 %v4439, %v4431
    %v5232 = vpack.c.b16 %v4440, %v4432
    %v5233 = vpack.c.b16 %v4441, %v4433
    %v5234 = vpack.c.b16 %v4442, %v4434
    %v5235 = vpack.c.b16 %v4443, %v4435
    %v5236 = vpack.c.b16 %v4444, %v4436
    %v5237 = vpack.c.b16 %v4445, %v4437
    %v5238 = vpack.c.b16 %v4446, %v4438
    %v5239 = vpack.c.b16 %v4455, %v4447
    %v5240 = vpack.c.b16 %v4456, %v4448
    %v5241 = vpack.c.b16 %v4457, %v4449
    %v5242 = vpack.c.b16 %v4458, %v4450
    %v5243 = vpack.c.b16 %v4459, %v4451
    %v5244 = vpack.c.b16 %v4460, %v4452
    %v5245 = vpack.c.b16 %v4461, %v4453
    %v5246 = vpack.c.b16 %v4462, %v4454
    %v5247 = vpack.c.b16 %v4471, %v4463
    %v5248 = vpack.c.b16 %v4472, %v4464
    %v5249 = vpack.c.b16 %v4473, %v4465
    %v5250 = vpack.c.b16 %v4474, %v4466
    %v5251 = vpack.c.b16 %v4475, %v4467
    %v5252 = vpack.c.b16 %v4476, %v4468
    %v5253 = vpack.c.b16 %v4477, %v4469
    %v5254 = vpack.c.b16 %v4478, %v4470
    %v5255 = vpack.c.b16 %v4487, %v4479
    %v5256 = vpack.c.b16 %v4488, %v4480
    %v5257 = vpack.c.b16 %v4489, %v4481
    %v5258 = vpack.c.b16 %v4490, %v4482
    %v5259 = vpack.c.b16 %v4491, %v4483
    %v5260 = vpack.c.b16 %v4492, %v4484
    %v5261 = vpack.c.b16 %v4493, %v4485
    %v5262 = vpack.c.b16 %v4494, %v4486
    %6031 = vmatpush.bf16.msra.mxu0 %v4551
    %6032 = vmatpush.bf16.msra.mxu0 %v4543
    %6033 = vmatpush.bf16.msra.mxu0 %v4535
    %6034 = vmatpush.bf16.msra.mxu0 %v4527
    %6035 = vmatpush.bf16.msra.mxu0 %v4519
    %6036 = vmatpush.bf16.msra.mxu0 %v4511
    %6037 = vmatpush.bf16.msra.mxu0 %v4503
    %6038 = vmatpush.bf16.msra.mxu0 %v4495
    %6039 = vmatmul.bf16.gmra.mxu0 %v1213
    %v6040 = vpop.f32.mrf.mxu0
    %v6041 = vadd.f32 %v2175, %v6040
    %v6042 = vpop.f32.mrf.mxu0
    %v6043 = vadd.f32 %v2175, %v6042
    %6044 = vmatmul.bf16.gmra.mxu0 %v1217
    %v6045 = vpop.f32.mrf.mxu0
    %v6046 = vadd.f32 %v2175, %v6045
    %v6047 = vpop.f32.mrf.mxu0
    %v6048 = vadd.f32 %v2175, %v6047
    %6049 = vmatmul.bf16.gmra.mxu0 %v1221
    %v6050 = vpop.f32.mrf.mxu0
    %v6051 = vadd.f32 %v2175, %v6050
    %v6052 = vpop.f32.mrf.mxu0
    %v6053 = vadd.f32 %v2175, %v6052
    %6054 = vmatmul.bf16.gmra.mxu0 %v1225
    %v6055 = vpop.f32.mrf.mxu0
    %v6056 = vadd.f32 %v2175, %v6055
    %v6057 = vpop.f32.mrf.mxu0
    %v6058 = vadd.f32 %v2175, %v6057
    %6059 = vmatmul.bf16.gmra.mxu0 %v1229
    %v6060 = vpop.f32.mrf.mxu0
    %v6061 = vadd.f32 %v2175, %v6060
    %v6062 = vpop.f32.mrf.mxu0
    %v6063 = vadd.f32 %v2175, %v6062
    %6064 = vmatmul.bf16.gmra.mxu0 %v1233
    %v6065 = vpop.f32.mrf.mxu0
    %v6066 = vadd.f32 %v2175, %v6065
    %v6067 = vpop.f32.mrf.mxu0
    %v6068 = vadd.f32 %v2175, %v6067
    %6069 = vmatmul.bf16.gmra.mxu0 %v1237
    %v6070 = vpop.f32.mrf.mxu0
    %v6071 = vadd.f32 %v2175, %v6070
    %v6072 = vpop.f32.mrf.mxu0
    %v6073 = vadd.f32 %v2175, %v6072
    %6074 = vmatmul.bf16.gmra.mxu0 %v1241
    %v6075 = vpop.f32.mrf.mxu0
    %v6076 = vadd.f32 %v2175, %v6075
    %v6077 = vpop.f32.mrf.mxu0
    %v6078 = vadd.f32 %v2175, %v6077
    %6079 = vdwg.mxu0
    %6080 = vmatpush.bf16.msra.mxu0 %v4615
    %6081 = vmatpush.bf16.msra.mxu0 %v4607
    %6082 = vmatpush.bf16.msra.mxu0 %v4599
    %6083 = vmatpush.bf16.msra.mxu0 %v4591
    %6084 = vmatpush.bf16.msra.mxu0 %v4583
    %6085 = vmatpush.bf16.msra.mxu0 %v4575
    %6086 = vmatpush.bf16.msra.mxu0 %v4567
    %6087 = vmatpush.bf16.msra.mxu0 %v4559
    %6088 = vmatmul.bf16.gmra.mxu0 %v1214
    %v6089 = vpop.f32.mrf.mxu0
    %v6090 = vadd.f32 %v6041, %v6089
    %v6091 = vpop.f32.mrf.mxu0
    %v6092 = vadd.f32 %v6043, %v6091
    %6093 = vmatmul.bf16.gmra.mxu0 %v1218
    %v6094 = vpop.f32.mrf.mxu0
    %v6095 = vadd.f32 %v6046, %v6094
    %v6096 = vpop.f32.mrf.mxu0
    %v6097 = vadd.f32 %v6048, %v6096
    %6098 = vmatmul.bf16.gmra.mxu0 %v1222
    %v6099 = vpop.f32.mrf.mxu0
    %v6100 = vadd.f32 %v6051, %v6099
    %v6101 = vpop.f32.mrf.mxu0
    %v6102 = vadd.f32 %v6053, %v6101
    %6103 = vmatmul.bf16.gmra.mxu0 %v1226
    %v6104 = vpop.f32.mrf.mxu0
    %v6105 = vadd.f32 %v6056, %v6104
    %v6106 = vpop.f32.mrf.mxu0
    %v6107 = vadd.f32 %v6058, %v6106
    %6108 = vmatmul.bf16.gmra.mxu0 %v1230
    %v6109 = vpop.f32.mrf.mxu0
    %v6110 = vadd.f32 %v6061, %v6109
    %v6111 = vpop.f32.mrf.mxu0
    %v6112 = vadd.f32 %v6063, %v6111
    %6113 = vmatmul.bf16.gmra.mxu0 %v1234
    %v6114 = vpop.f32.mrf.mxu0
    %v6115 = vadd.f32 %v6066, %v6114
    %v6116 = vpop.f32.mrf.mxu0
    %v6117 = vadd.f32 %v6068, %v6116
    %6118 = vmatmul.bf16.gmra.mxu0 %v1238
    %v6119 = vpop.f32.mrf.mxu0
    %v6120 = vadd.f32 %v6071, %v6119
    %v6121 = vpop.f32.mrf.mxu0
    %v6122 = vadd.f32 %v6073, %v6121
    %6123 = vmatmul.bf16.gmra.mxu0 %v1242
    %v6124 = vpop.f32.mrf.mxu0
    %v6125 = vadd.f32 %v6076, %v6124
    %v6126 = vpop.f32.mrf.mxu0
    %v6127 = vadd.f32 %v6078, %v6126
    %6128 = vdwg.mxu0
    %6129 = vmatpush.bf16.msra.mxu0 %v4679
    %6130 = vmatpush.bf16.msra.mxu0 %v4671
    %6131 = vmatpush.bf16.msra.mxu0 %v4663
    %6132 = vmatpush.bf16.msra.mxu0 %v4655
    %6133 = vmatpush.bf16.msra.mxu0 %v4647
    %6134 = vmatpush.bf16.msra.mxu0 %v4639
    %6135 = vmatpush.bf16.msra.mxu0 %v4631
    %6136 = vmatpush.bf16.msra.mxu0 %v4623
    %6137 = vmatmul.bf16.gmra.mxu0 %v1215
    %v6138 = vpop.f32.mrf.mxu0
    %v6139 = vadd.f32 %v6090, %v6138
    %v6140 = vpop.f32.mrf.mxu0
    %v6141 = vadd.f32 %v6092, %v6140
    %6142 = vmatmul.bf16.gmra.mxu0 %v1219
    %v6143 = vpop.f32.mrf.mxu0
    %v6144 = vadd.f32 %v6095, %v6143
    %v6145 = vpop.f32.mrf.mxu0
    %v6146 = vadd.f32 %v6097, %v6145
    %6147 = vmatmul.bf16.gmra.mxu0 %v1223
    %v6148 = vpop.f32.mrf.mxu0
    %v6149 = vadd.f32 %v6100, %v6148
    %v6150 = vpop.f32.mrf.mxu0
    %v6151 = vadd.f32 %v6102, %v6150
    %6152 = vmatmul.bf16.gmra.mxu0 %v1227
    %v6153 = vpop.f32.mrf.mxu0
    %v6154 = vadd.f32 %v6105, %v6153
    %v6155 = vpop.f32.mrf.mxu0
    %v6156 = vadd.f32 %v6107, %v6155
    %6157 = vmatmul.bf16.gmra.mxu0 %v1231
    %v6158 = vpop.f32.mrf.mxu0
    %v6159 = vadd.f32 %v6110, %v6158
    %v6160 = vpop.f32.mrf.mxu0
    %v6161 = vadd.f32 %v6112, %v6160
    %6162 = vmatmul.bf16.gmra.mxu0 %v1235
    %v6163 = vpop.f32.mrf.mxu0
    %v6164 = vadd.f32 %v6115, %v6163
    %v6165 = vpop.f32.mrf.mxu0
    %v6166 = vadd.f32 %v6117, %v6165
    %6167 = vmatmul.bf16.gmra.mxu0 %v1239
    %v6168 = vpop.f32.mrf.mxu0
    %v6169 = vadd.f32 %v6120, %v6168
    %v6170 = vpop.f32.mrf.mxu0
    %v6171 = vadd.f32 %v6122, %v6170
    %6172 = vmatmul.bf16.gmra.mxu0 %v1243
    %v6173 = vpop.f32.mrf.mxu0
    %v6174 = vadd.f32 %v6125, %v6173
    %v6175 = vpop.f32.mrf.mxu0
    %v6176 = vadd.f32 %v6127, %v6175
    %6177 = vdwg.mxu0
    %6178 = vmatpush.bf16.msra.mxu0 %v4743
    %6179 = vmatpush.bf16.msra.mxu0 %v4735
    %6180 = vmatpush.bf16.msra.mxu0 %v4727
    %6181 = vmatpush.bf16.msra.mxu0 %v4719
    %6182 = vmatpush.bf16.msra.mxu0 %v4711
    %6183 = vmatpush.bf16.msra.mxu0 %v4703
    %6184 = vmatpush.bf16.msra.mxu0 %v4695
    %6185 = vmatpush.bf16.msra.mxu0 %v4687
    %6186 = vmatmul.bf16.gmra.mxu0 %v1216
    %v6187 = vpop.f32.mrf.mxu0
    %v6188 = vadd.f32 %v6139, %v6187
    %v6189 = vpop.f32.mrf.mxu0
    %v6190 = vadd.f32 %v6141, %v6189
    %6191 = vmatmul.bf16.gmra.mxu0 %v1220
    %v6192 = vpop.f32.mrf.mxu0
    %v6193 = vadd.f32 %v6144, %v6192
    %v6194 = vpop.f32.mrf.mxu0
    %v6195 = vadd.f32 %v6146, %v6194
    %6196 = vmatmul.bf16.gmra.mxu0 %v1224
    %v6197 = vpop.f32.mrf.mxu0
    %v6198 = vadd.f32 %v6149, %v6197
    %v6199 = vpop.f32.mrf.mxu0
    %v6200 = vadd.f32 %v6151, %v6199
    %6201 = vmatmul.bf16.gmra.mxu0 %v1228
    %v6202 = vpop.f32.mrf.mxu0
    %v6203 = vadd.f32 %v6154, %v6202
    %v6204 = vpop.f32.mrf.mxu0
    %v6205 = vadd.f32 %v6156, %v6204
    %6206 = vmatmul.bf16.gmra.mxu0 %v1232
    %v6207 = vpop.f32.mrf.mxu0
    %v6208 = vadd.f32 %v6159, %v6207
    %v6209 = vpop.f32.mrf.mxu0
    %v6210 = vadd.f32 %v6161, %v6209
    %6211 = vmatmul.bf16.gmra.mxu0 %v1236
    %v6212 = vpop.f32.mrf.mxu0
    %v6213 = vadd.f32 %v6164, %v6212
    %v6214 = vpop.f32.mrf.mxu0
    %v6215 = vadd.f32 %v6166, %v6214
    %6216 = vmatmul.bf16.gmra.mxu0 %v1240
    %v6217 = vpop.f32.mrf.mxu0
    %v6218 = vadd.f32 %v6169, %v6217
    %v6219 = vpop.f32.mrf.mxu0
    %v6220 = vadd.f32 %v6171, %v6219
    %6221 = vmatmul.bf16.gmra.mxu0 %v1244
    %v6222 = vpop.f32.mrf.mxu0
    %v6223 = vadd.f32 %v6174, %v6222
    %v6224 = vpop.f32.mrf.mxu0
    %v6225 = vadd.f32 %v6176, %v6224
    %6226 = vdwg.mxu0
    %6227 = vmatpush.bf16.msra.mxu0 %v4807
    %6228 = vmatpush.bf16.msra.mxu0 %v4799
    %6229 = vmatpush.bf16.msra.mxu0 %v4791
    %6230 = vmatpush.bf16.msra.mxu0 %v4783
    %6231 = vmatpush.bf16.msra.mxu0 %v4775
    %6232 = vmatpush.bf16.msra.mxu0 %v4767
    %6233 = vmatpush.bf16.msra.mxu0 %v4759
    %6234 = vmatpush.bf16.msra.mxu0 %v4751
    %6235 = vmatmul.bf16.gmra.mxu0 %v925
    %v6236 = vpop.f32.mrf.mxu0
    %v6237 = vadd.f32 %v6188, %v6236
    %v6238 = vpop.f32.mrf.mxu0
    %v6239 = vadd.f32 %v6190, %v6238
    %6240 = vmatmul.bf16.gmra.mxu0 %v929
    %v6241 = vpop.f32.mrf.mxu0
    %v6242 = vadd.f32 %v6193, %v6241
    %v6243 = vpop.f32.mrf.mxu0
    %v6244 = vadd.f32 %v6195, %v6243
    %6245 = vmatmul.bf16.gmra.mxu0 %v933
    %v6246 = vpop.f32.mrf.mxu0
    %v6247 = vadd.f32 %v6198, %v6246
    %v6248 = vpop.f32.mrf.mxu0
    %v6249 = vadd.f32 %v6200, %v6248
    %6250 = vmatmul.bf16.gmra.mxu0 %v937
    %v6251 = vpop.f32.mrf.mxu0
    %v6252 = vadd.f32 %v6203, %v6251
    %v6253 = vpop.f32.mrf.mxu0
    %v6254 = vadd.f32 %v6205, %v6253
    %6255 = vmatmul.bf16.gmra.mxu0 %v941
    %v6256 = vpop.f32.mrf.mxu0
    %v6257 = vadd.f32 %v6208, %v6256
    %v6258 = vpop.f32.mrf.mxu0
    %v6259 = vadd.f32 %v6210, %v6258
    %6260 = vmatmul.bf16.gmra.mxu0 %v945
    %v6261 = vpop.f32.mrf.mxu0
    %v6262 = vadd.f32 %v6213, %v6261
    %v6263 = vpop.f32.mrf.mxu0
    %v6264 = vadd.f32 %v6215, %v6263
    %6265 = vmatmul.bf16.gmra.mxu0 %v949
    %v6266 = vpop.f32.mrf.mxu0
    %v6267 = vadd.f32 %v6218, %v6266
    %v6268 = vpop.f32.mrf.mxu0
    %v6269 = vadd.f32 %v6220, %v6268
    %6270 = vmatmul.bf16.gmra.mxu0 %v953
    %v6271 = vpop.f32.mrf.mxu0
    %v6272 = vadd.f32 %v6223, %v6271
    %v6273 = vpop.f32.mrf.mxu0
    %v6274 = vadd.f32 %v6225, %v6273
    %6275 = vdwg.mxu0
    %6276 = vmatpush.bf16.msra.mxu0 %v4871
    %6277 = vmatpush.bf16.msra.mxu0 %v4863
    %6278 = vmatpush.bf16.msra.mxu0 %v4855
    %6279 = vmatpush.bf16.msra.mxu0 %v4847
    %6280 = vmatpush.bf16.msra.mxu0 %v4839
    %6281 = vmatpush.bf16.msra.mxu0 %v4831
    %6282 = vmatpush.bf16.msra.mxu0 %v4823
    %6283 = vmatpush.bf16.msra.mxu0 %v4815
    %6284 = vmatmul.bf16.gmra.mxu0 %v926
    %v6285 = vpop.f32.mrf.mxu0
    %v6286 = vadd.f32 %v6237, %v6285
    %v6287 = vpop.f32.mrf.mxu0
    %v6288 = vadd.f32 %v6239, %v6287
    %6289 = vmatmul.bf16.gmra.mxu0 %v930
    %v6290 = vpop.f32.mrf.mxu0
    %v6291 = vadd.f32 %v6242, %v6290
    %v6292 = vpop.f32.mrf.mxu0
    %v6293 = vadd.f32 %v6244, %v6292
    %6294 = vmatmul.bf16.gmra.mxu0 %v934
    %v6295 = vpop.f32.mrf.mxu0
    %v6296 = vadd.f32 %v6247, %v6295
    %v6297 = vpop.f32.mrf.mxu0
    %v6298 = vadd.f32 %v6249, %v6297
    %6299 = vmatmul.bf16.gmra.mxu0 %v938
    %v6300 = vpop.f32.mrf.mxu0
    %v6301 = vadd.f32 %v6252, %v6300
    %v6302 = vpop.f32.mrf.mxu0
    %v6303 = vadd.f32 %v6254, %v6302
    %6304 = vmatmul.bf16.gmra.mxu0 %v942
    %v6305 = vpop.f32.mrf.mxu0
    %v6306 = vadd.f32 %v6257, %v6305
    %v6307 = vpop.f32.mrf.mxu0
    %v6308 = vadd.f32 %v6259, %v6307
    %6309 = vmatmul.bf16.gmra.mxu0 %v946
    %v6310 = vpop.f32.mrf.mxu0
    %v6311 = vadd.f32 %v6262, %v6310
    %v6312 = vpop.f32.mrf.mxu0
    %v6313 = vadd.f32 %v6264, %v6312
    %6314 = vmatmul.bf16.gmra.mxu0 %v950
    %v6315 = vpop.f32.mrf.mxu0
    %v6316 = vadd.f32 %v6267, %v6315
    %v6317 = vpop.f32.mrf.mxu0
    %v6318 = vadd.f32 %v6269, %v6317
    %6319 = vmatmul.bf16.gmra.mxu0 %v954
    %v6320 = vpop.f32.mrf.mxu0
    %v6321 = vadd.f32 %v6272, %v6320
    %v6322 = vpop.f32.mrf.mxu0
    %v6323 = vadd.f32 %v6274, %v6322
    %6324 = vdwg.mxu0
    %6325 = vmatpush.bf16.msra.mxu0 %v4935
    %6326 = vmatpush.bf16.msra.mxu0 %v4927
    %6327 = vmatpush.bf16.msra.mxu0 %v4919
    %6328 = vmatpush.bf16.msra.mxu0 %v4911
    %6329 = vmatpush.bf16.msra.mxu0 %v4903
    %6330 = vmatpush.bf16.msra.mxu0 %v4895
    %6331 = vmatpush.bf16.msra.mxu0 %v4887
    %6332 = vmatpush.bf16.msra.mxu0 %v4879
    %6333 = vmatmul.bf16.gmra.mxu0 %v927
    %v6334 = vpop.f32.mrf.mxu0
    %v6335 = vadd.f32 %v6286, %v6334
    %v6336 = vpop.f32.mrf.mxu0
    %v6337 = vadd.f32 %v6288, %v6336
    %6338 = vmatmul.bf16.gmra.mxu0 %v931
    %v6339 = vpop.f32.mrf.mxu0
    %v6340 = vadd.f32 %v6291, %v6339
    %v6341 = vpop.f32.mrf.mxu0
    %v6342 = vadd.f32 %v6293, %v6341
    %6343 = vmatmul.bf16.gmra.mxu0 %v935
    %v6344 = vpop.f32.mrf.mxu0
    %v6345 = vadd.f32 %v6296, %v6344
    %v6346 = vpop.f32.mrf.mxu0
    %v6347 = vadd.f32 %v6298, %v6346
    %6348 = vmatmul.bf16.gmra.mxu0 %v939
    %v6349 = vpop.f32.mrf.mxu0
    %v6350 = vadd.f32 %v6301, %v6349
    %v6351 = vpop.f32.mrf.mxu0
    %v6352 = vadd.f32 %v6303, %v6351
    %6353 = vmatmul.bf16.gmra.mxu0 %v943
    %v6354 = vpop.f32.mrf.mxu0
    %v6355 = vadd.f32 %v6306, %v6354
    %v6356 = vpop.f32.mrf.mxu0
    %v6357 = vadd.f32 %v6308, %v6356
    %6358 = vmatmul.bf16.gmra.mxu0 %v947
    %v6359 = vpop.f32.mrf.mxu0
    %v6360 = vadd.f32 %v6311, %v6359
    %v6361 = vpop.f32.mrf.mxu0
    %v6362 = vadd.f32 %v6313, %v6361
    %6363 = vmatmul.bf16.gmra.mxu0 %v951
    %v6364 = vpop.f32.mrf.mxu0
    %v6365 = vadd.f32 %v6316, %v6364
    %v6366 = vpop.f32.mrf.mxu0
    %v6367 = vadd.f32 %v6318, %v6366
    %6368 = vmatmul.bf16.gmra.mxu0 %v955
    %v6369 = vpop.f32.mrf.mxu0
    %v6370 = vadd.f32 %v6321, %v6369
    %v6371 = vpop.f32.mrf.mxu0
    %v6372 = vadd.f32 %v6323, %v6371
    %6373 = vdwg.mxu0
    %6374 = vmatpush.bf16.msra.mxu0 %v4999
    %6375 = vmatpush.bf16.msra.mxu0 %v4991
    %6376 = vmatpush.bf16.msra.mxu0 %v4983
    %6377 = vmatpush.bf16.msra.mxu0 %v4975
    %6378 = vmatpush.bf16.msra.mxu0 %v4967
    %6379 = vmatpush.bf16.msra.mxu0 %v4959
    %6380 = vmatpush.bf16.msra.mxu0 %v4951
    %6381 = vmatpush.bf16.msra.mxu0 %v4943
    %6382 = vmatmul.bf16.gmra.mxu0 %v928
    %v6383 = vpop.f32.mrf.mxu0
    %v6384 = vadd.f32 %v6335, %v6383
    %v6385 = vpop.f32.mrf.mxu0
    %v6386 = vadd.f32 %v6337, %v6385
    %6387 = vmatmul.bf16.gmra.mxu0 %v932
    %v6388 = vpop.f32.mrf.mxu0
    %v6389 = vadd.f32 %v6340, %v6388
    %v6390 = vpop.f32.mrf.mxu0
    %v6391 = vadd.f32 %v6342, %v6390
    %6392 = vmatmul.bf16.gmra.mxu0 %v936
    %v6393 = vpop.f32.mrf.mxu0
    %v6394 = vadd.f32 %v6345, %v6393
    %v6395 = vpop.f32.mrf.mxu0
    %v6396 = vadd.f32 %v6347, %v6395
    %6397 = vmatmul.bf16.gmra.mxu0 %v940
    %v6398 = vpop.f32.mrf.mxu0
    %v6399 = vadd.f32 %v6350, %v6398
    %v6400 = vpop.f32.mrf.mxu0
    %v6401 = vadd.f32 %v6352, %v6400
    %6402 = vmatmul.bf16.gmra.mxu0 %v944
    %v6403 = vpop.f32.mrf.mxu0
    %v6404 = vadd.f32 %v6355, %v6403
    %v6405 = vpop.f32.mrf.mxu0
    %v6406 = vadd.f32 %v6357, %v6405
    %6407 = vmatmul.bf16.gmra.mxu0 %v948
    %v6408 = vpop.f32.mrf.mxu0
    %v6409 = vadd.f32 %v6360, %v6408
    %v6410 = vpop.f32.mrf.mxu0
    %v6411 = vadd.f32 %v6362, %v6410
    %6412 = vmatmul.bf16.gmra.mxu0 %v952
    %v6413 = vpop.f32.mrf.mxu0
    %v6414 = vadd.f32 %v6365, %v6413
    %v6415 = vpop.f32.mrf.mxu0
    %v6416 = vadd.f32 %v6367, %v6415
    %6417 = vmatmul.bf16.gmra.mxu0 %v956
    %v6418 = vpop.f32.mrf.mxu0
    %v6419 = vadd.f32 %v6370, %v6418
    %v6420 = vpop.f32.mrf.mxu0
    %v6421 = vadd.f32 %v6372, %v6420
    %6422 = vdwg.mxu0
    %6423 = vmatpush.bf16.msra.mxu0 %v5063
    %6424 = vmatpush.bf16.msra.mxu0 %v5055
    %6425 = vmatpush.bf16.msra.mxu0 %v5047
    %6426 = vmatpush.bf16.msra.mxu0 %v5039
    %6427 = vmatpush.bf16.msra.mxu0 %v5031
    %6428 = vmatpush.bf16.msra.mxu0 %v5023
    %6429 = vmatpush.bf16.msra.mxu0 %v5015
    %6430 = vmatpush.bf16.msra.mxu0 %v5007
    %6431 = vmatmul.bf16.gmra.mxu0 %v1341
    %v6432 = vpop.f32.mrf.mxu0
    %v6433 = vadd.f32 %v6384, %v6432
    %v6434 = vpop.f32.mrf.mxu0
    %v6435 = vadd.f32 %v6386, %v6434
    %6436 = vmatmul.bf16.gmra.mxu0 %v1345
    %v6437 = vpop.f32.mrf.mxu0
    %v6438 = vadd.f32 %v6389, %v6437
    %v6439 = vpop.f32.mrf.mxu0
    %v6440 = vadd.f32 %v6391, %v6439
    %6441 = vmatmul.bf16.gmra.mxu0 %v1349
    %v6442 = vpop.f32.mrf.mxu0
    %v6443 = vadd.f32 %v6394, %v6442
    %v6444 = vpop.f32.mrf.mxu0
    %v6445 = vadd.f32 %v6396, %v6444
    %6446 = vmatmul.bf16.gmra.mxu0 %v1353
    %v6447 = vpop.f32.mrf.mxu0
    %v6448 = vadd.f32 %v6399, %v6447
    %v6449 = vpop.f32.mrf.mxu0
    %v6450 = vadd.f32 %v6401, %v6449
    %6451 = vmatmul.bf16.gmra.mxu0 %v1357
    %v6452 = vpop.f32.mrf.mxu0
    %v6453 = vadd.f32 %v6404, %v6452
    %v6454 = vpop.f32.mrf.mxu0
    %v6455 = vadd.f32 %v6406, %v6454
    %6456 = vmatmul.bf16.gmra.mxu0 %v1361
    %v6457 = vpop.f32.mrf.mxu0
    %v6458 = vadd.f32 %v6409, %v6457
    %v6459 = vpop.f32.mrf.mxu0
    %v6460 = vadd.f32 %v6411, %v6459
    %6461 = vmatmul.bf16.gmra.mxu0 %v1365
    %v6462 = vpop.f32.mrf.mxu0
    %v6463 = vadd.f32 %v6414, %v6462
    %v6464 = vpop.f32.mrf.mxu0
    %v6465 = vadd.f32 %v6416, %v6464
    %6466 = vmatmul.bf16.gmra.mxu0 %v1369
    %v6467 = vpop.f32.mrf.mxu0
    %v6468 = vadd.f32 %v6419, %v6467
    %v6469 = vpop.f32.mrf.mxu0
    %v6470 = vadd.f32 %v6421, %v6469
    %6471 = vdwg.mxu0
    %6472 = vmatpush.bf16.msra.mxu0 %v5127
    %6473 = vmatpush.bf16.msra.mxu0 %v5119
    %6474 = vmatpush.bf16.msra.mxu0 %v5111
    %6475 = vmatpush.bf16.msra.mxu0 %v5103
    %6476 = vmatpush.bf16.msra.mxu0 %v5095
    %6477 = vmatpush.bf16.msra.mxu0 %v5087
    %6478 = vmatpush.bf16.msra.mxu0 %v5079
    %6479 = vmatpush.bf16.msra.mxu0 %v5071
    %6480 = vmatmul.bf16.gmra.mxu0 %v1342
    %v6481 = vpop.f32.mrf.mxu0
    %v6482 = vadd.f32 %v6433, %v6481
    %v6483 = vpop.f32.mrf.mxu0
    %v6484 = vadd.f32 %v6435, %v6483
    %6485 = vmatmul.bf16.gmra.mxu0 %v1346
    %v6486 = vpop.f32.mrf.mxu0
    %v6487 = vadd.f32 %v6438, %v6486
    %v6488 = vpop.f32.mrf.mxu0
    %v6489 = vadd.f32 %v6440, %v6488
    %6490 = vmatmul.bf16.gmra.mxu0 %v1350
    %v6491 = vpop.f32.mrf.mxu0
    %v6492 = vadd.f32 %v6443, %v6491
    %v6493 = vpop.f32.mrf.mxu0
    %v6494 = vadd.f32 %v6445, %v6493
    %6495 = vmatmul.bf16.gmra.mxu0 %v1354
    %v6496 = vpop.f32.mrf.mxu0
    %v6497 = vadd.f32 %v6448, %v6496
    %v6498 = vpop.f32.mrf.mxu0
    %v6499 = vadd.f32 %v6450, %v6498
    %6500 = vmatmul.bf16.gmra.mxu0 %v1358
    %v6501 = vpop.f32.mrf.mxu0
    %v6502 = vadd.f32 %v6453, %v6501
    %v6503 = vpop.f32.mrf.mxu0
    %v6504 = vadd.f32 %v6455, %v6503
    %6505 = vmatmul.bf16.gmra.mxu0 %v1362
    %v6506 = vpop.f32.mrf.mxu0
    %v6507 = vadd.f32 %v6458, %v6506
    %v6508 = vpop.f32.mrf.mxu0
    %v6509 = vadd.f32 %v6460, %v6508
    %6510 = vmatmul.bf16.gmra.mxu0 %v1366
    %v6511 = vpop.f32.mrf.mxu0
    %v6512 = vadd.f32 %v6463, %v6511
    %v6513 = vpop.f32.mrf.mxu0
    %v6514 = vadd.f32 %v6465, %v6513
    %6515 = vmatmul.bf16.gmra.mxu0 %v1370
    %v6516 = vpop.f32.mrf.mxu0
    %v6517 = vadd.f32 %v6468, %v6516
    %v6518 = vpop.f32.mrf.mxu0
    %v6519 = vadd.f32 %v6470, %v6518
    %6520 = vdwg.mxu0
    %6521 = vmatpush.bf16.msra.mxu0 %v5191
    %6522 = vmatpush.bf16.msra.mxu0 %v5183
    %6523 = vmatpush.bf16.msra.mxu0 %v5175
    %6524 = vmatpush.bf16.msra.mxu0 %v5167
    %6525 = vmatpush.bf16.msra.mxu0 %v5159
    %6526 = vmatpush.bf16.msra.mxu0 %v5151
    %6527 = vmatpush.bf16.msra.mxu0 %v5143
    %6528 = vmatpush.bf16.msra.mxu0 %v5135
    %6529 = vmatmul.bf16.gmra.mxu0 %v1343
    %v6530 = vpop.f32.mrf.mxu0
    %v6531 = vadd.f32 %v6482, %v6530
    %v6532 = vpop.f32.mrf.mxu0
    %v6533 = vadd.f32 %v6484, %v6532
    %6534 = vmatmul.bf16.gmra.mxu0 %v1347
    %v6535 = vpop.f32.mrf.mxu0
    %v6536 = vadd.f32 %v6487, %v6535
    %v6537 = vpop.f32.mrf.mxu0
    %v6538 = vadd.f32 %v6489, %v6537
    %6539 = vmatmul.bf16.gmra.mxu0 %v1351
    %v6540 = vpop.f32.mrf.mxu0
    %v6541 = vadd.f32 %v6492, %v6540
    %v6542 = vpop.f32.mrf.mxu0
    %v6543 = vadd.f32 %v6494, %v6542
    %6544 = vmatmul.bf16.gmra.mxu0 %v1355
    %v6545 = vpop.f32.mrf.mxu0
    %v6546 = vadd.f32 %v6497, %v6545
    %v6547 = vpop.f32.mrf.mxu0
    %v6548 = vadd.f32 %v6499, %v6547
    %6549 = vmatmul.bf16.gmra.mxu0 %v1359
    %v6550 = vpop.f32.mrf.mxu0
    %v6551 = vadd.f32 %v6502, %v6550
    %v6552 = vpop.f32.mrf.mxu0
    %v6553 = vadd.f32 %v6504, %v6552
    %6554 = vmatmul.bf16.gmra.mxu0 %v1363
    %v6555 = vpop.f32.mrf.mxu0
    %v6556 = vadd.f32 %v6507, %v6555
    %v6557 = vpop.f32.mrf.mxu0
    %v6558 = vadd.f32 %v6509, %v6557
    %6559 = vmatmul.bf16.gmra.mxu0 %v1367
    %v6560 = vpop.f32.mrf.mxu0
    %v6561 = vadd.f32 %v6512, %v6560
    %v6562 = vpop.f32.mrf.mxu0
    %v6563 = vadd.f32 %v6514, %v6562
    %6564 = vmatmul.bf16.gmra.mxu0 %v1371
    %v6565 = vpop.f32.mrf.mxu0
    %v6566 = vadd.f32 %v6517, %v6565
    %v6567 = vpop.f32.mrf.mxu0
    %v6568 = vadd.f32 %v6519, %v6567
    %6569 = vdwg.mxu0
    %6570 = vmatpush.bf16.msra.mxu0 %v5255
    %6571 = vmatpush.bf16.msra.mxu0 %v5247
    %6572 = vmatpush.bf16.msra.mxu0 %v5239
    %6573 = vmatpush.bf16.msra.mxu0 %v5231
    %6574 = vmatpush.bf16.msra.mxu0 %v5223
    %6575 = vmatpush.bf16.msra.mxu0 %v5215
    %6576 = vmatpush.bf16.msra.mxu0 %v5207
    %6577 = vmatpush.bf16.msra.mxu0 %v5199
    %6578 = vmatmul.bf16.gmra.mxu0 %v1344
    %v6579 = vpop.f32.mrf.mxu0
    %v6580 = vadd.f32 %v6531, %v6579
    %v6581 = vpop.f32.mrf.mxu0
    %v6582 = vadd.f32 %v6533, %v6581
    %6583 = vmatmul.bf16.gmra.mxu0 %v1348
    %v6584 = vpop.f32.mrf.mxu0
    %v6585 = vadd.f32 %v6536, %v6584
    %v6586 = vpop.f32.mrf.mxu0
    %v6587 = vadd.f32 %v6538, %v6586
    %6588 = vmatmul.bf16.gmra.mxu0 %v1352
    %v6589 = vpop.f32.mrf.mxu0
    %v6590 = vadd.f32 %v6541, %v6589
    %v6591 = vpop.f32.mrf.mxu0
    %v6592 = vadd.f32 %v6543, %v6591
    %6593 = vmatmul.bf16.gmra.mxu0 %v1356
    %v6594 = vpop.f32.mrf.mxu0
    %v6595 = vadd.f32 %v6546, %v6594
    %v6596 = vpop.f32.mrf.mxu0
    %v6597 = vadd.f32 %v6548, %v6596
    %6598 = vmatmul.bf16.gmra.mxu0 %v1360
    %v6599 = vpop.f32.mrf.mxu0
    %v6600 = vadd.f32 %v6551, %v6599
    %v6601 = vpop.f32.mrf.mxu0
    %v6602 = vadd.f32 %v6553, %v6601
    %6603 = vmatmul.bf16.gmra.mxu0 %v1364
    %v6604 = vpop.f32.mrf.mxu0
    %v6605 = vadd.f32 %v6556, %v6604
    %v6606 = vpop.f32.mrf.mxu0
    %v6607 = vadd.f32 %v6558, %v6606
    %6608 = vmatmul.bf16.gmra.mxu0 %v1368
    %v6609 = vpop.f32.mrf.mxu0
    %v6610 = vadd.f32 %v6561, %v6609
    %v6611 = vpop.f32.mrf.mxu0
    %v6612 = vadd.f32 %v6563, %v6611
    %6613 = vmatmul.bf16.gmra.mxu0 %v1372
    %v6614 = vpop.f32.mrf.mxu0
    %v6615 = vadd.f32 %v6566, %v6614
    %v6616 = vpop.f32.mrf.mxu0
    %v6617 = vadd.f32 %v6568, %v6616
    %6618 = vdwg.mxu0
    %6619 = vmatpush.bf16.msra.mxu0 %v4552
    %6620 = vmatpush.bf16.msra.mxu0 %v4544
    %6621 = vmatpush.bf16.msra.mxu0 %v4536
    %6622 = vmatpush.bf16.msra.mxu0 %v4528
    %6623 = vmatpush.bf16.msra.mxu0 %v4520
    %6624 = vmatpush.bf16.msra.mxu0 %v4512
    %6625 = vmatpush.bf16.msra.mxu0 %v4504
    %6626 = vmatpush.bf16.msra.mxu0 %v4496
    %6627 = vmatmul.bf16.gmra.mxu0 %v1213
    %v6628 = vpop.f32.mrf.mxu0
    %v6629 = vadd.f32 %v2176, %v6628
    %v6630 = vpop.f32.mrf.mxu0
    %v6631 = vadd.f32 %v2176, %v6630
    %6632 = vmatmul.bf16.gmra.mxu0 %v1217
    %v6633 = vpop.f32.mrf.mxu0
    %v6634 = vadd.f32 %v2176, %v6633
    %v6635 = vpop.f32.mrf.mxu0
    %v6636 = vadd.f32 %v2176, %v6635
    %6637 = vmatmul.bf16.gmra.mxu0 %v1221
    %v6638 = vpop.f32.mrf.mxu0
    %v6639 = vadd.f32 %v2176, %v6638
    %v6640 = vpop.f32.mrf.mxu0
    %v6641 = vadd.f32 %v2176, %v6640
    %6642 = vmatmul.bf16.gmra.mxu0 %v1225
    %v6643 = vpop.f32.mrf.mxu0
    %v6644 = vadd.f32 %v2176, %v6643
    %v6645 = vpop.f32.mrf.mxu0
    %v6646 = vadd.f32 %v2176, %v6645
    %6647 = vmatmul.bf16.gmra.mxu0 %v1229
    %v6648 = vpop.f32.mrf.mxu0
    %v6649 = vadd.f32 %v2176, %v6648
    %v6650 = vpop.f32.mrf.mxu0
    %v6651 = vadd.f32 %v2176, %v6650
    %6652 = vmatmul.bf16.gmra.mxu0 %v1233
    %v6653 = vpop.f32.mrf.mxu0
    %v6654 = vadd.f32 %v2176, %v6653
    %v6655 = vpop.f32.mrf.mxu0
    %v6656 = vadd.f32 %v2176, %v6655
    %6657 = vmatmul.bf16.gmra.mxu0 %v1237
    %v6658 = vpop.f32.mrf.mxu0
    %v6659 = vadd.f32 %v2176, %v6658
    %v6660 = vpop.f32.mrf.mxu0
    %v6661 = vadd.f32 %v2176, %v6660
    %6662 = vmatmul.bf16.gmra.mxu0 %v1241
    %v6663 = vpop.f32.mrf.mxu0
    %v6664 = vadd.f32 %v2176, %v6663
    %v6665 = vpop.f32.mrf.mxu0
    %v6666 = vadd.f32 %v2176, %v6665
    %6667 = vdwg.mxu0
    %6668 = vmatpush.bf16.msra.mxu0 %v4616
    %6669 = vmatpush.bf16.msra.mxu0 %v4608
    %6670 = vmatpush.bf16.msra.mxu0 %v4600
    %6671 = vmatpush.bf16.msra.mxu0 %v4592
    %6672 = vmatpush.bf16.msra.mxu0 %v4584
    %6673 = vmatpush.bf16.msra.mxu0 %v4576
    %6674 = vmatpush.bf16.msra.mxu0 %v4568
    %6675 = vmatpush.bf16.msra.mxu0 %v4560
    %6676 = vmatmul.bf16.gmra.mxu0 %v1214
    %v6677 = vpop.f32.mrf.mxu0
    %v6678 = vadd.f32 %v6629, %v6677
    %v6679 = vpop.f32.mrf.mxu0
    %v6680 = vadd.f32 %v6631, %v6679
    %6681 = vmatmul.bf16.gmra.mxu0 %v1218
    %v6682 = vpop.f32.mrf.mxu0
    %v6683 = vadd.f32 %v6634, %v6682
    %v6684 = vpop.f32.mrf.mxu0
    %v6685 = vadd.f32 %v6636, %v6684
    %6686 = vmatmul.bf16.gmra.mxu0 %v1222
    %v6687 = vpop.f32.mrf.mxu0
    %v6688 = vadd.f32 %v6639, %v6687
    %v6689 = vpop.f32.mrf.mxu0
    %v6690 = vadd.f32 %v6641, %v6689
    %6691 = vmatmul.bf16.gmra.mxu0 %v1226
    %v6692 = vpop.f32.mrf.mxu0
    %v6693 = vadd.f32 %v6644, %v6692
    %v6694 = vpop.f32.mrf.mxu0
    %v6695 = vadd.f32 %v6646, %v6694
    %6696 = vmatmul.bf16.gmra.mxu0 %v1230
    %v6697 = vpop.f32.mrf.mxu0
    %v6698 = vadd.f32 %v6649, %v6697
    %v6699 = vpop.f32.mrf.mxu0
    %v6700 = vadd.f32 %v6651, %v6699
    %6701 = vmatmul.bf16.gmra.mxu0 %v1234
    %v6702 = vpop.f32.mrf.mxu0
    %v6703 = vadd.f32 %v6654, %v6702
    %v6704 = vpop.f32.mrf.mxu0
    %v6705 = vadd.f32 %v6656, %v6704
    %6706 = vmatmul.bf16.gmra.mxu0 %v1238
    %v6707 = vpop.f32.mrf.mxu0
    %v6708 = vadd.f32 %v6659, %v6707
    %v6709 = vpop.f32.mrf.mxu0
    %v6710 = vadd.f32 %v6661, %v6709
    %6711 = vmatmul.bf16.gmra.mxu0 %v1242
    %v6712 = vpop.f32.mrf.mxu0
    %v6713 = vadd.f32 %v6664, %v6712
    %v6714 = vpop.f32.mrf.mxu0
    %v6715 = vadd.f32 %v6666, %v6714
    %6716 = vdwg.mxu0
    %6717 = vmatpush.bf16.msra.mxu0 %v4680
    %6718 = vmatpush.bf16.msra.mxu0 %v4672
    %6719 = vmatpush.bf16.msra.mxu0 %v4664
    %6720 = vmatpush.bf16.msra.mxu0 %v4656
    %6721 = vmatpush.bf16.msra.mxu0 %v4648
    %6722 = vmatpush.bf16.msra.mxu0 %v4640
    %6723 = vmatpush.bf16.msra.mxu0 %v4632
    %6724 = vmatpush.bf16.msra.mxu0 %v4624
    %6725 = vmatmul.bf16.gmra.mxu0 %v1215
    %v6726 = vpop.f32.mrf.mxu0
    %v6727 = vadd.f32 %v6678, %v6726
    %v6728 = vpop.f32.mrf.mxu0
    %v6729 = vadd.f32 %v6680, %v6728
    %6730 = vmatmul.bf16.gmra.mxu0 %v1219
    %v6731 = vpop.f32.mrf.mxu0
    %v6732 = vadd.f32 %v6683, %v6731
    %v6733 = vpop.f32.mrf.mxu0
    %v6734 = vadd.f32 %v6685, %v6733
    %6735 = vmatmul.bf16.gmra.mxu0 %v1223
    %v6736 = vpop.f32.mrf.mxu0
    %v6737 = vadd.f32 %v6688, %v6736
    %v6738 = vpop.f32.mrf.mxu0
    %v6739 = vadd.f32 %v6690, %v6738
    %6740 = vmatmul.bf16.gmra.mxu0 %v1227
    %v6741 = vpop.f32.mrf.mxu0
    %v6742 = vadd.f32 %v6693, %v6741
    %v6743 = vpop.f32.mrf.mxu0
    %v6744 = vadd.f32 %v6695, %v6743
    %6745 = vmatmul.bf16.gmra.mxu0 %v1231
    %v6746 = vpop.f32.mrf.mxu0
    %v6747 = vadd.f32 %v6698, %v6746
    %v6748 = vpop.f32.mrf.mxu0
    %v6749 = vadd.f32 %v6700, %v6748
    %6750 = vmatmul.bf16.gmra.mxu0 %v1235
    %v6751 = vpop.f32.mrf.mxu0
    %v6752 = vadd.f32 %v6703, %v6751
    %v6753 = vpop.f32.mrf.mxu0
    %v6754 = vadd.f32 %v6705, %v6753
    %6755 = vmatmul.bf16.gmra.mxu0 %v1239
    %v6756 = vpop.f32.mrf.mxu0
    %v6757 = vadd.f32 %v6708, %v6756
    %v6758 = vpop.f32.mrf.mxu0
    %v6759 = vadd.f32 %v6710, %v6758
    %6760 = vmatmul.bf16.gmra.mxu0 %v1243
    %v6761 = vpop.f32.mrf.mxu0
    %v6762 = vadd.f32 %v6713, %v6761
    %v6763 = vpop.f32.mrf.mxu0
    %v6764 = vadd.f32 %v6715, %v6763
    %6765 = vdwg.mxu0
    %6766 = vmatpush.bf16.msra.mxu0 %v4744
    %6767 = vmatpush.bf16.msra.mxu0 %v4736
    %6768 = vmatpush.bf16.msra.mxu0 %v4728
    %6769 = vmatpush.bf16.msra.mxu0 %v4720
    %6770 = vmatpush.bf16.msra.mxu0 %v4712
    %6771 = vmatpush.bf16.msra.mxu0 %v4704
    %6772 = vmatpush.bf16.msra.mxu0 %v4696
    %6773 = vmatpush.bf16.msra.mxu0 %v4688
    %6774 = vmatmul.bf16.gmra.mxu0 %v1216
    %v6775 = vpop.f32.mrf.mxu0
    %v6776 = vadd.f32 %v6727, %v6775
    %v6777 = vpop.f32.mrf.mxu0
    %v6778 = vadd.f32 %v6729, %v6777
    %6779 = vmatmul.bf16.gmra.mxu0 %v1220
    %v6780 = vpop.f32.mrf.mxu0
    %v6781 = vadd.f32 %v6732, %v6780
    %v6782 = vpop.f32.mrf.mxu0
    %v6783 = vadd.f32 %v6734, %v6782
    %6784 = vmatmul.bf16.gmra.mxu0 %v1224
    %v6785 = vpop.f32.mrf.mxu0
    %v6786 = vadd.f32 %v6737, %v6785
    %v6787 = vpop.f32.mrf.mxu0
    %v6788 = vadd.f32 %v6739, %v6787
    %6789 = vmatmul.bf16.gmra.mxu0 %v1228
    %v6790 = vpop.f32.mrf.mxu0
    %v6791 = vadd.f32 %v6742, %v6790
    %v6792 = vpop.f32.mrf.mxu0
    %v6793 = vadd.f32 %v6744, %v6792
    %6794 = vmatmul.bf16.gmra.mxu0 %v1232
    %v6795 = vpop.f32.mrf.mxu0
    %v6796 = vadd.f32 %v6747, %v6795
    %v6797 = vpop.f32.mrf.mxu0
    %v6798 = vadd.f32 %v6749, %v6797
    %6799 = vmatmul.bf16.gmra.mxu0 %v1236
    %v6800 = vpop.f32.mrf.mxu0
    %v6801 = vadd.f32 %v6752, %v6800
    %v6802 = vpop.f32.mrf.mxu0
    %v6803 = vadd.f32 %v6754, %v6802
    %6804 = vmatmul.bf16.gmra.mxu0 %v1240
    %v6805 = vpop.f32.mrf.mxu0
    %v6806 = vadd.f32 %v6757, %v6805
    %v6807 = vpop.f32.mrf.mxu0
    %v6808 = vadd.f32 %v6759, %v6807
    %6809 = vmatmul.bf16.gmra.mxu0 %v1244
    %v6810 = vpop.f32.mrf.mxu0
    %v6811 = vadd.f32 %v6762, %v6810
    %v6812 = vpop.f32.mrf.mxu0
    %v6813 = vadd.f32 %v6764, %v6812
    %6814 = vdwg.mxu0
    %6815 = vmatpush.bf16.msra.mxu0 %v4808
    %6816 = vmatpush.bf16.msra.mxu0 %v4800
    %6817 = vmatpush.bf16.msra.mxu0 %v4792
    %6818 = vmatpush.bf16.msra.mxu0 %v4784
    %6819 = vmatpush.bf16.msra.mxu0 %v4776
    %6820 = vmatpush.bf16.msra.mxu0 %v4768
    %6821 = vmatpush.bf16.msra.mxu0 %v4760
    %6822 = vmatpush.bf16.msra.mxu0 %v4752
    %6823 = vmatmul.bf16.gmra.mxu0 %v925
    %v6824 = vpop.f32.mrf.mxu0
    %v6825 = vadd.f32 %v6776, %v6824
    %v6826 = vpop.f32.mrf.mxu0
    %v6827 = vadd.f32 %v6778, %v6826
    %6828 = vmatmul.bf16.gmra.mxu0 %v929
    %v6829 = vpop.f32.mrf.mxu0
    %v6830 = vadd.f32 %v6781, %v6829
    %v6831 = vpop.f32.mrf.mxu0
    %v6832 = vadd.f32 %v6783, %v6831
    %6833 = vmatmul.bf16.gmra.mxu0 %v933
    %v6834 = vpop.f32.mrf.mxu0
    %v6835 = vadd.f32 %v6786, %v6834
    %v6836 = vpop.f32.mrf.mxu0
    %v6837 = vadd.f32 %v6788, %v6836
    %6838 = vmatmul.bf16.gmra.mxu0 %v937
    %v6839 = vpop.f32.mrf.mxu0
    %v6840 = vadd.f32 %v6791, %v6839
    %v6841 = vpop.f32.mrf.mxu0
    %v6842 = vadd.f32 %v6793, %v6841
    %6843 = vmatmul.bf16.gmra.mxu0 %v941
    %v6844 = vpop.f32.mrf.mxu0
    %v6845 = vadd.f32 %v6796, %v6844
    %v6846 = vpop.f32.mrf.mxu0
    %v6847 = vadd.f32 %v6798, %v6846
    %6848 = vmatmul.bf16.gmra.mxu0 %v945
    %v6849 = vpop.f32.mrf.mxu0
    %v6850 = vadd.f32 %v6801, %v6849
    %v6851 = vpop.f32.mrf.mxu0
    %v6852 = vadd.f32 %v6803, %v6851
    %6853 = vmatmul.bf16.gmra.mxu0 %v949
    %v6854 = vpop.f32.mrf.mxu0
    %v6855 = vadd.f32 %v6806, %v6854
    %v6856 = vpop.f32.mrf.mxu0
    %v6857 = vadd.f32 %v6808, %v6856
    %6858 = vmatmul.bf16.gmra.mxu0 %v953
    %v6859 = vpop.f32.mrf.mxu0
    %v6860 = vadd.f32 %v6811, %v6859
    %v6861 = vpop.f32.mrf.mxu0
    %v6862 = vadd.f32 %v6813, %v6861
    %6863 = vdwg.mxu0
    %6864 = vmatpush.bf16.msra.mxu0 %v4872
    %6865 = vmatpush.bf16.msra.mxu0 %v4864
    %6866 = vmatpush.bf16.msra.mxu0 %v4856
    %6867 = vmatpush.bf16.msra.mxu0 %v4848
    %6868 = vmatpush.bf16.msra.mxu0 %v4840
    %6869 = vmatpush.bf16.msra.mxu0 %v4832
    %6870 = vmatpush.bf16.msra.mxu0 %v4824
    %6871 = vmatpush.bf16.msra.mxu0 %v4816
    %6872 = vmatmul.bf16.gmra.mxu0 %v926
    %v6873 = vpop.f32.mrf.mxu0
    %v6874 = vadd.f32 %v6825, %v6873
    %v6875 = vpop.f32.mrf.mxu0
    %v6876 = vadd.f32 %v6827, %v6875
    %6877 = vmatmul.bf16.gmra.mxu0 %v930
    %v6878 = vpop.f32.mrf.mxu0
    %v6879 = vadd.f32 %v6830, %v6878
    %v6880 = vpop.f32.mrf.mxu0
    %v6881 = vadd.f32 %v6832, %v6880
    %6882 = vmatmul.bf16.gmra.mxu0 %v934
    %v6883 = vpop.f32.mrf.mxu0
    %v6884 = vadd.f32 %v6835, %v6883
    %v6885 = vpop.f32.mrf.mxu0
    %v6886 = vadd.f32 %v6837, %v6885
    %6887 = vmatmul.bf16.gmra.mxu0 %v938
    %v6888 = vpop.f32.mrf.mxu0
    %v6889 = vadd.f32 %v6840, %v6888
    %v6890 = vpop.f32.mrf.mxu0
    %v6891 = vadd.f32 %v6842, %v6890
    %6892 = vmatmul.bf16.gmra.mxu0 %v942
    %v6893 = vpop.f32.mrf.mxu0
    %v6894 = vadd.f32 %v6845, %v6893
    %v6895 = vpop.f32.mrf.mxu0
    %v6896 = vadd.f32 %v6847, %v6895
    %6897 = vmatmul.bf16.gmra.mxu0 %v946
    %v6898 = vpop.f32.mrf.mxu0
    %v6899 = vadd.f32 %v6850, %v6898
    %v6900 = vpop.f32.mrf.mxu0
    %v6901 = vadd.f32 %v6852, %v6900
    %6902 = vmatmul.bf16.gmra.mxu0 %v950
    %v6903 = vpop.f32.mrf.mxu0
    %v6904 = vadd.f32 %v6855, %v6903
    %v6905 = vpop.f32.mrf.mxu0
    %v6906 = vadd.f32 %v6857, %v6905
    %6907 = vmatmul.bf16.gmra.mxu0 %v954
    %v6908 = vpop.f32.mrf.mxu0
    %v6909 = vadd.f32 %v6860, %v6908
    %v6910 = vpop.f32.mrf.mxu0
    %v6911 = vadd.f32 %v6862, %v6910
    %6912 = vdwg.mxu0
    %6913 = vmatpush.bf16.msra.mxu0 %v4936
    %6914 = vmatpush.bf16.msra.mxu0 %v4928
    %6915 = vmatpush.bf16.msra.mxu0 %v4920
    %6916 = vmatpush.bf16.msra.mxu0 %v4912
    %6917 = vmatpush.bf16.msra.mxu0 %v4904
    %6918 = vmatpush.bf16.msra.mxu0 %v4896
    %6919 = vmatpush.bf16.msra.mxu0 %v4888
    %6920 = vmatpush.bf16.msra.mxu0 %v4880
    %6921 = vmatmul.bf16.gmra.mxu0 %v927
    %v6922 = vpop.f32.mrf.mxu0
    %v6923 = vadd.f32 %v6874, %v6922
    %v6924 = vpop.f32.mrf.mxu0
    %v6925 = vadd.f32 %v6876, %v6924
    %6926 = vmatmul.bf16.gmra.mxu0 %v931
    %v6927 = vpop.f32.mrf.mxu0
    %v6928 = vadd.f32 %v6879, %v6927
    %v6929 = vpop.f32.mrf.mxu0
    %v6930 = vadd.f32 %v6881, %v6929
    %6931 = vmatmul.bf16.gmra.mxu0 %v935
    %v6932 = vpop.f32.mrf.mxu0
    %v6933 = vadd.f32 %v6884, %v6932
    %v6934 = vpop.f32.mrf.mxu0
    %v6935 = vadd.f32 %v6886, %v6934
    %6936 = vmatmul.bf16.gmra.mxu0 %v939
    %v6937 = vpop.f32.mrf.mxu0
    %v6938 = vadd.f32 %v6889, %v6937
    %v6939 = vpop.f32.mrf.mxu0
    %v6940 = vadd.f32 %v6891, %v6939
    %6941 = vmatmul.bf16.gmra.mxu0 %v943
    %v6942 = vpop.f32.mrf.mxu0
    %v6943 = vadd.f32 %v6894, %v6942
    %v6944 = vpop.f32.mrf.mxu0
    %v6945 = vadd.f32 %v6896, %v6944
    %6946 = vmatmul.bf16.gmra.mxu0 %v947
    %v6947 = vpop.f32.mrf.mxu0
    %v6948 = vadd.f32 %v6899, %v6947
    %v6949 = vpop.f32.mrf.mxu0
    %v6950 = vadd.f32 %v6901, %v6949
    %6951 = vmatmul.bf16.gmra.mxu0 %v951
    %v6952 = vpop.f32.mrf.mxu0
    %v6953 = vadd.f32 %v6904, %v6952
    %v6954 = vpop.f32.mrf.mxu0
    %v6955 = vadd.f32 %v6906, %v6954
    %6956 = vmatmul.bf16.gmra.mxu0 %v955
    %v6957 = vpop.f32.mrf.mxu0
    %v6958 = vadd.f32 %v6909, %v6957
    %v6959 = vpop.f32.mrf.mxu0
    %v6960 = vadd.f32 %v6911, %v6959
    %6961 = vdwg.mxu0
    %6962 = vmatpush.bf16.msra.mxu0 %v5000
    %6963 = vmatpush.bf16.msra.mxu0 %v4992
    %6964 = vmatpush.bf16.msra.mxu0 %v4984
    %6965 = vmatpush.bf16.msra.mxu0 %v4976
    %6966 = vmatpush.bf16.msra.mxu0 %v4968
    %6967 = vmatpush.bf16.msra.mxu0 %v4960
    %6968 = vmatpush.bf16.msra.mxu0 %v4952
    %6969 = vmatpush.bf16.msra.mxu0 %v4944
    %6970 = vmatmul.bf16.gmra.mxu0 %v928
    %v6971 = vpop.f32.mrf.mxu0
    %v6972 = vadd.f32 %v6923, %v6971
    %v6973 = vpop.f32.mrf.mxu0
    %v6974 = vadd.f32 %v6925, %v6973
    %6975 = vmatmul.bf16.gmra.mxu0 %v932
    %v6976 = vpop.f32.mrf.mxu0
    %v6977 = vadd.f32 %v6928, %v6976
    %v6978 = vpop.f32.mrf.mxu0
    %v6979 = vadd.f32 %v6930, %v6978
    %6980 = vmatmul.bf16.gmra.mxu0 %v936
    %v6981 = vpop.f32.mrf.mxu0
    %v6982 = vadd.f32 %v6933, %v6981
    %v6983 = vpop.f32.mrf.mxu0
    %v6984 = vadd.f32 %v6935, %v6983
    %6985 = vmatmul.bf16.gmra.mxu0 %v940
    %v6986 = vpop.f32.mrf.mxu0
    %v6987 = vadd.f32 %v6938, %v6986
    %v6988 = vpop.f32.mrf.mxu0
    %v6989 = vadd.f32 %v6940, %v6988
    %6990 = vmatmul.bf16.gmra.mxu0 %v944
    %v6991 = vpop.f32.mrf.mxu0
    %v6992 = vadd.f32 %v6943, %v6991
    %v6993 = vpop.f32.mrf.mxu0
    %v6994 = vadd.f32 %v6945, %v6993
    %6995 = vmatmul.bf16.gmra.mxu0 %v948
    %v6996 = vpop.f32.mrf.mxu0
    %v6997 = vadd.f32 %v6948, %v6996
    %v6998 = vpop.f32.mrf.mxu0
    %v6999 = vadd.f32 %v6950, %v6998
    %7000 = vmatmul.bf16.gmra.mxu0 %v952
    %v7001 = vpop.f32.mrf.mxu0
    %v7002 = vadd.f32 %v6953, %v7001
    %v7003 = vpop.f32.mrf.mxu0
    %v7004 = vadd.f32 %v6955, %v7003
    %7005 = vmatmul.bf16.gmra.mxu0 %v956
    %v7006 = vpop.f32.mrf.mxu0
    %v7007 = vadd.f32 %v6958, %v7006
    %v7008 = vpop.f32.mrf.mxu0
    %v7009 = vadd.f32 %v6960, %v7008
    %7010 = vdwg.mxu0
    %7011 = vmatpush.bf16.msra.mxu0 %v5064
    %7012 = vmatpush.bf16.msra.mxu0 %v5056
    %7013 = vmatpush.bf16.msra.mxu0 %v5048
    %7014 = vmatpush.bf16.msra.mxu0 %v5040
    %7015 = vmatpush.bf16.msra.mxu0 %v5032
    %7016 = vmatpush.bf16.msra.mxu0 %v5024
    %7017 = vmatpush.bf16.msra.mxu0 %v5016
    %7018 = vmatpush.bf16.msra.mxu0 %v5008
    %7019 = vmatmul.bf16.gmra.mxu0 %v1341
    %v7020 = vpop.f32.mrf.mxu0
    %v7021 = vadd.f32 %v6972, %v7020
    %v7022 = vpop.f32.mrf.mxu0
    %v7023 = vadd.f32 %v6974, %v7022
    %7024 = vmatmul.bf16.gmra.mxu0 %v1345
    %v7025 = vpop.f32.mrf.mxu0
    %v7026 = vadd.f32 %v6977, %v7025
    %v7027 = vpop.f32.mrf.mxu0
    %v7028 = vadd.f32 %v6979, %v7027
    %7029 = vmatmul.bf16.gmra.mxu0 %v1349
    %v7030 = vpop.f32.mrf.mxu0
    %v7031 = vadd.f32 %v6982, %v7030
    %v7032 = vpop.f32.mrf.mxu0
    %v7033 = vadd.f32 %v6984, %v7032
    %7034 = vmatmul.bf16.gmra.mxu0 %v1353
    %v7035 = vpop.f32.mrf.mxu0
    %v7036 = vadd.f32 %v6987, %v7035
    %v7037 = vpop.f32.mrf.mxu0
    %v7038 = vadd.f32 %v6989, %v7037
    %7039 = vmatmul.bf16.gmra.mxu0 %v1357
    %v7040 = vpop.f32.mrf.mxu0
    %v7041 = vadd.f32 %v6992, %v7040
    %v7042 = vpop.f32.mrf.mxu0
    %v7043 = vadd.f32 %v6994, %v7042
    %7044 = vmatmul.bf16.gmra.mxu0 %v1361
    %v7045 = vpop.f32.mrf.mxu0
    %v7046 = vadd.f32 %v6997, %v7045
    %v7047 = vpop.f32.mrf.mxu0
    %v7048 = vadd.f32 %v6999, %v7047
    %7049 = vmatmul.bf16.gmra.mxu0 %v1365
    %v7050 = vpop.f32.mrf.mxu0
    %v7051 = vadd.f32 %v7002, %v7050
    %v7052 = vpop.f32.mrf.mxu0
    %v7053 = vadd.f32 %v7004, %v7052
    %7054 = vmatmul.bf16.gmra.mxu0 %v1369
    %v7055 = vpop.f32.mrf.mxu0
    %v7056 = vadd.f32 %v7007, %v7055
    %v7057 = vpop.f32.mrf.mxu0
    %v7058 = vadd.f32 %v7009, %v7057
    %7059 = vdwg.mxu0
    %7060 = vmatpush.bf16.msra.mxu0 %v5128
    %7061 = vmatpush.bf16.msra.mxu0 %v5120
    %7062 = vmatpush.bf16.msra.mxu0 %v5112
    %7063 = vmatpush.bf16.msra.mxu0 %v5104
    %7064 = vmatpush.bf16.msra.mxu0 %v5096
    %7065 = vmatpush.bf16.msra.mxu0 %v5088
    %7066 = vmatpush.bf16.msra.mxu0 %v5080
    %7067 = vmatpush.bf16.msra.mxu0 %v5072
    %7068 = vmatmul.bf16.gmra.mxu0 %v1342
    %v7069 = vpop.f32.mrf.mxu0
    %v7070 = vadd.f32 %v7021, %v7069
    %v7071 = vpop.f32.mrf.mxu0
    %v7072 = vadd.f32 %v7023, %v7071
    %7073 = vmatmul.bf16.gmra.mxu0 %v1346
    %v7074 = vpop.f32.mrf.mxu0
    %v7075 = vadd.f32 %v7026, %v7074
    %v7076 = vpop.f32.mrf.mxu0
    %v7077 = vadd.f32 %v7028, %v7076
    %7078 = vmatmul.bf16.gmra.mxu0 %v1350
    %v7079 = vpop.f32.mrf.mxu0
    %v7080 = vadd.f32 %v7031, %v7079
    %v7081 = vpop.f32.mrf.mxu0
    %v7082 = vadd.f32 %v7033, %v7081
    %7083 = vmatmul.bf16.gmra.mxu0 %v1354
    %v7084 = vpop.f32.mrf.mxu0
    %v7085 = vadd.f32 %v7036, %v7084
    %v7086 = vpop.f32.mrf.mxu0
    %v7087 = vadd.f32 %v7038, %v7086
    %7088 = vmatmul.bf16.gmra.mxu0 %v1358
    %v7089 = vpop.f32.mrf.mxu0
    %v7090 = vadd.f32 %v7041, %v7089
    %v7091 = vpop.f32.mrf.mxu0
    %v7092 = vadd.f32 %v7043, %v7091
    %7093 = vmatmul.bf16.gmra.mxu0 %v1362
    %v7094 = vpop.f32.mrf.mxu0
    %v7095 = vadd.f32 %v7046, %v7094
    %v7096 = vpop.f32.mrf.mxu0
    %v7097 = vadd.f32 %v7048, %v7096
    %7098 = vmatmul.bf16.gmra.mxu0 %v1366
    %v7099 = vpop.f32.mrf.mxu0
    %v7100 = vadd.f32 %v7051, %v7099
    %v7101 = vpop.f32.mrf.mxu0
    %v7102 = vadd.f32 %v7053, %v7101
    %7103 = vmatmul.bf16.gmra.mxu0 %v1370
    %v7104 = vpop.f32.mrf.mxu0
    %v7105 = vadd.f32 %v7056, %v7104
    %v7106 = vpop.f32.mrf.mxu0
    %v7107 = vadd.f32 %v7058, %v7106
    %7108 = vdwg.mxu0
    %7109 = vmatpush.bf16.msra.mxu0 %v5192
    %7110 = vmatpush.bf16.msra.mxu0 %v5184
    %7111 = vmatpush.bf16.msra.mxu0 %v5176
    %7112 = vmatpush.bf16.msra.mxu0 %v5168
    %7113 = vmatpush.bf16.msra.mxu0 %v5160
    %7114 = vmatpush.bf16.msra.mxu0 %v5152
    %7115 = vmatpush.bf16.msra.mxu0 %v5144
    %7116 = vmatpush.bf16.msra.mxu0 %v5136
    %7117 = vmatmul.bf16.gmra.mxu0 %v1343
    %v7118 = vpop.f32.mrf.mxu0
    %v7119 = vadd.f32 %v7070, %v7118
    %v7120 = vpop.f32.mrf.mxu0
    %v7121 = vadd.f32 %v7072, %v7120
    %7122 = vmatmul.bf16.gmra.mxu0 %v1347
    %v7123 = vpop.f32.mrf.mxu0
    %v7124 = vadd.f32 %v7075, %v7123
    %v7125 = vpop.f32.mrf.mxu0
    %v7126 = vadd.f32 %v7077, %v7125
    %7127 = vmatmul.bf16.gmra.mxu0 %v1351
    %v7128 = vpop.f32.mrf.mxu0
    %v7129 = vadd.f32 %v7080, %v7128
    %v7130 = vpop.f32.mrf.mxu0
    %v7131 = vadd.f32 %v7082, %v7130
    %7132 = vmatmul.bf16.gmra.mxu0 %v1355
    %v7133 = vpop.f32.mrf.mxu0
    %v7134 = vadd.f32 %v7085, %v7133
    %v7135 = vpop.f32.mrf.mxu0
    %v7136 = vadd.f32 %v7087, %v7135
    %7137 = vmatmul.bf16.gmra.mxu0 %v1359
    %v7138 = vpop.f32.mrf.mxu0
    %v7139 = vadd.f32 %v7090, %v7138
    %v7140 = vpop.f32.mrf.mxu0
    %v7141 = vadd.f32 %v7092, %v7140
    %7142 = vmatmul.bf16.gmra.mxu0 %v1363
    %v7143 = vpop.f32.mrf.mxu0
    %v7144 = vadd.f32 %v7095, %v7143
    %v7145 = vpop.f32.mrf.mxu0
    %v7146 = vadd.f32 %v7097, %v7145
    %7147 = vmatmul.bf16.gmra.mxu0 %v1367
    %v7148 = vpop.f32.mrf.mxu0
    %v7149 = vadd.f32 %v7100, %v7148
    %v7150 = vpop.f32.mrf.mxu0
    %v7151 = vadd.f32 %v7102, %v7150
    %7152 = vmatmul.bf16.gmra.mxu0 %v1371
    %v7153 = vpop.f32.mrf.mxu0
    %v7154 = vadd.f32 %v7105, %v7153
    %v7155 = vpop.f32.mrf.mxu0
    %v7156 = vadd.f32 %v7107, %v7155
    %7157 = vdwg.mxu0
    %7158 = vmatpush.bf16.msra.mxu0 %v5256
    %7159 = vmatpush.bf16.msra.mxu0 %v5248
    %7160 = vmatpush.bf16.msra.mxu0 %v5240
    %7161 = vmatpush.bf16.msra.mxu0 %v5232
    %7162 = vmatpush.bf16.msra.mxu0 %v5224
    %7163 = vmatpush.bf16.msra.mxu0 %v5216
    %7164 = vmatpush.bf16.msra.mxu0 %v5208
    %7165 = vmatpush.bf16.msra.mxu0 %v5200
    %7166 = vmatmul.bf16.gmra.mxu0 %v1344
    %v7167 = vpop.f32.mrf.mxu0
    %v7168 = vadd.f32 %v7119, %v7167
    %v7169 = vpop.f32.mrf.mxu0
    %v7170 = vadd.f32 %v7121, %v7169
    %7171 = vmatmul.bf16.gmra.mxu0 %v1348
    %v7172 = vpop.f32.mrf.mxu0
    %v7173 = vadd.f32 %v7124, %v7172
    %v7174 = vpop.f32.mrf.mxu0
    %v7175 = vadd.f32 %v7126, %v7174
    %7176 = vmatmul.bf16.gmra.mxu0 %v1352
    %v7177 = vpop.f32.mrf.mxu0
    %v7178 = vadd.f32 %v7129, %v7177
    %v7179 = vpop.f32.mrf.mxu0
    %v7180 = vadd.f32 %v7131, %v7179
    %7181 = vmatmul.bf16.gmra.mxu0 %v1356
    %v7182 = vpop.f32.mrf.mxu0
    %v7183 = vadd.f32 %v7134, %v7182
    %v7184 = vpop.f32.mrf.mxu0
    %v7185 = vadd.f32 %v7136, %v7184
    %7186 = vmatmul.bf16.gmra.mxu0 %v1360
    %v7187 = vpop.f32.mrf.mxu0
    %v7188 = vadd.f32 %v7139, %v7187
    %v7189 = vpop.f32.mrf.mxu0
    %v7190 = vadd.f32 %v7141, %v7189
    %7191 = vmatmul.bf16.gmra.mxu0 %v1364
    %v7192 = vpop.f32.mrf.mxu0
    %v7193 = vadd.f32 %v7144, %v7192
    %v7194 = vpop.f32.mrf.mxu0
    %v7195 = vadd.f32 %v7146, %v7194
    %7196 = vmatmul.bf16.gmra.mxu0 %v1368
    %v7197 = vpop.f32.mrf.mxu0
    %v7198 = vadd.f32 %v7149, %v7197
    %v7199 = vpop.f32.mrf.mxu0
    %v7200 = vadd.f32 %v7151, %v7199
    %7201 = vmatmul.bf16.gmra.mxu0 %v1372
    %v7202 = vpop.f32.mrf.mxu0
    %v7203 = vadd.f32 %v7154, %v7202
    %v7204 = vpop.f32.mrf.mxu0
    %v7205 = vadd.f32 %v7156, %v7204
    %7206 = vdwg.mxu0
    %7207 = vmatpush.bf16.msra.mxu0 %v4553
    %7208 = vmatpush.bf16.msra.mxu0 %v4545
    %7209 = vmatpush.bf16.msra.mxu0 %v4537
    %7210 = vmatpush.bf16.msra.mxu0 %v4529
    %7211 = vmatpush.bf16.msra.mxu0 %v4521
    %7212 = vmatpush.bf16.msra.mxu0 %v4513
    %7213 = vmatpush.bf16.msra.mxu0 %v4505
    %7214 = vmatpush.bf16.msra.mxu0 %v4497
    %7215 = vmatmul.bf16.gmra.mxu0 %v1213
    %v7216 = vpop.f32.mrf.mxu0
    %v7217 = vadd.f32 %v2177, %v7216
    %v7218 = vpop.f32.mrf.mxu0
    %v7219 = vadd.f32 %v2177, %v7218
    %7220 = vmatmul.bf16.gmra.mxu0 %v1217
    %v7221 = vpop.f32.mrf.mxu0
    %v7222 = vadd.f32 %v2177, %v7221
    %v7223 = vpop.f32.mrf.mxu0
    %v7224 = vadd.f32 %v2177, %v7223
    %7225 = vmatmul.bf16.gmra.mxu0 %v1221
    %v7226 = vpop.f32.mrf.mxu0
    %v7227 = vadd.f32 %v2177, %v7226
    %v7228 = vpop.f32.mrf.mxu0
    %v7229 = vadd.f32 %v2177, %v7228
    %7230 = vmatmul.bf16.gmra.mxu0 %v1225
    %v7231 = vpop.f32.mrf.mxu0
    %v7232 = vadd.f32 %v2177, %v7231
    %v7233 = vpop.f32.mrf.mxu0
    %v7234 = vadd.f32 %v2177, %v7233
    %7235 = vmatmul.bf16.gmra.mxu0 %v1229
    %v7236 = vpop.f32.mrf.mxu0
    %v7237 = vadd.f32 %v2177, %v7236
    %v7238 = vpop.f32.mrf.mxu0
    %v7239 = vadd.f32 %v2177, %v7238
    %7240 = vmatmul.bf16.gmra.mxu0 %v1233
    %v7241 = vpop.f32.mrf.mxu0
    %v7242 = vadd.f32 %v2177, %v7241
    %v7243 = vpop.f32.mrf.mxu0
    %v7244 = vadd.f32 %v2177, %v7243
    %7245 = vmatmul.bf16.gmra.mxu0 %v1237
    %v7246 = vpop.f32.mrf.mxu0
    %v7247 = vadd.f32 %v2177, %v7246
    %v7248 = vpop.f32.mrf.mxu0
    %v7249 = vadd.f32 %v2177, %v7248
    %7250 = vmatmul.bf16.gmra.mxu0 %v1241
    %v7251 = vpop.f32.mrf.mxu0
    %v7252 = vadd.f32 %v2177, %v7251
    %v7253 = vpop.f32.mrf.mxu0
    %v7254 = vadd.f32 %v2177, %v7253
    %7255 = vdwg.mxu0
    %7256 = vmatpush.bf16.msra.mxu0 %v4617
    %7257 = vmatpush.bf16.msra.mxu0 %v4609
    %7258 = vmatpush.bf16.msra.mxu0 %v4601
    %7259 = vmatpush.bf16.msra.mxu0 %v4593
    %7260 = vmatpush.bf16.msra.mxu0 %v4585
    %7261 = vmatpush.bf16.msra.mxu0 %v4577
    %7262 = vmatpush.bf16.msra.mxu0 %v4569
    %7263 = vmatpush.bf16.msra.mxu0 %v4561
    %7264 = vmatmul.bf16.gmra.mxu0 %v1214
    %v7265 = vpop.f32.mrf.mxu0
    %v7266 = vadd.f32 %v7217, %v7265
    %v7267 = vpop.f32.mrf.mxu0
    %v7268 = vadd.f32 %v7219, %v7267
    %7269 = vmatmul.bf16.gmra.mxu0 %v1218
    %v7270 = vpop.f32.mrf.mxu0
    %v7271 = vadd.f32 %v7222, %v7270
    %v7272 = vpop.f32.mrf.mxu0
    %v7273 = vadd.f32 %v7224, %v7272
    %7274 = vmatmul.bf16.gmra.mxu0 %v1222
    %v7275 = vpop.f32.mrf.mxu0
    %v7276 = vadd.f32 %v7227, %v7275
    %v7277 = vpop.f32.mrf.mxu0
    %v7278 = vadd.f32 %v7229, %v7277
    %7279 = vmatmul.bf16.gmra.mxu0 %v1226
    %v7280 = vpop.f32.mrf.mxu0
    %v7281 = vadd.f32 %v7232, %v7280
    %v7282 = vpop.f32.mrf.mxu0
    %v7283 = vadd.f32 %v7234, %v7282
    %7284 = vmatmul.bf16.gmra.mxu0 %v1230
    %v7285 = vpop.f32.mrf.mxu0
    %v7286 = vadd.f32 %v7237, %v7285
    %v7287 = vpop.f32.mrf.mxu0
    %v7288 = vadd.f32 %v7239, %v7287
    %7289 = vmatmul.bf16.gmra.mxu0 %v1234
    %v7290 = vpop.f32.mrf.mxu0
    %v7291 = vadd.f32 %v7242, %v7290
    %v7292 = vpop.f32.mrf.mxu0
    %v7293 = vadd.f32 %v7244, %v7292
    %7294 = vmatmul.bf16.gmra.mxu0 %v1238
    %v7295 = vpop.f32.mrf.mxu0
    %v7296 = vadd.f32 %v7247, %v7295
    %v7297 = vpop.f32.mrf.mxu0
    %v7298 = vadd.f32 %v7249, %v7297
    %7299 = vmatmul.bf16.gmra.mxu0 %v1242
    %v7300 = vpop.f32.mrf.mxu0
    %v7301 = vadd.f32 %v7252, %v7300
    %v7302 = vpop.f32.mrf.mxu0
    %v7303 = vadd.f32 %v7254, %v7302
    %7304 = vdwg.mxu0
    %7305 = vmatpush.bf16.msra.mxu0 %v4681
    %7306 = vmatpush.bf16.msra.mxu0 %v4673
    %7307 = vmatpush.bf16.msra.mxu0 %v4665
    %7308 = vmatpush.bf16.msra.mxu0 %v4657
    %7309 = vmatpush.bf16.msra.mxu0 %v4649
    %7310 = vmatpush.bf16.msra.mxu0 %v4641
    %7311 = vmatpush.bf16.msra.mxu0 %v4633
    %7312 = vmatpush.bf16.msra.mxu0 %v4625
    %7313 = vmatmul.bf16.gmra.mxu0 %v1215
    %v7314 = vpop.f32.mrf.mxu0
    %v7315 = vadd.f32 %v7266, %v7314
    %v7316 = vpop.f32.mrf.mxu0
    %v7317 = vadd.f32 %v7268, %v7316
    %7318 = vmatmul.bf16.gmra.mxu0 %v1219
    %v7319 = vpop.f32.mrf.mxu0
    %v7320 = vadd.f32 %v7271, %v7319
    %v7321 = vpop.f32.mrf.mxu0
    %v7322 = vadd.f32 %v7273, %v7321
    %7323 = vmatmul.bf16.gmra.mxu0 %v1223
    %v7324 = vpop.f32.mrf.mxu0
    %v7325 = vadd.f32 %v7276, %v7324
    %v7326 = vpop.f32.mrf.mxu0
    %v7327 = vadd.f32 %v7278, %v7326
    %7328 = vmatmul.bf16.gmra.mxu0 %v1227
    %v7329 = vpop.f32.mrf.mxu0
    %v7330 = vadd.f32 %v7281, %v7329
    %v7331 = vpop.f32.mrf.mxu0
    %v7332 = vadd.f32 %v7283, %v7331
    %7333 = vmatmul.bf16.gmra.mxu0 %v1231
    %v7334 = vpop.f32.mrf.mxu0
    %v7335 = vadd.f32 %v7286, %v7334
    %v7336 = vpop.f32.mrf.mxu0
    %v7337 = vadd.f32 %v7288, %v7336
    %7338 = vmatmul.bf16.gmra.mxu0 %v1235
    %v7339 = vpop.f32.mrf.mxu0
    %v7340 = vadd.f32 %v7291, %v7339
    %v7341 = vpop.f32.mrf.mxu0
    %v7342 = vadd.f32 %v7293, %v7341
    %7343 = vmatmul.bf16.gmra.mxu0 %v1239
    %v7344 = vpop.f32.mrf.mxu0
    %v7345 = vadd.f32 %v7296, %v7344
    %v7346 = vpop.f32.mrf.mxu0
    %v7347 = vadd.f32 %v7298, %v7346
    %7348 = vmatmul.bf16.gmra.mxu0 %v1243
    %v7349 = vpop.f32.mrf.mxu0
    %v7350 = vadd.f32 %v7301, %v7349
    %v7351 = vpop.f32.mrf.mxu0
    %v7352 = vadd.f32 %v7303, %v7351
    %7353 = vdwg.mxu0
    %7354 = vmatpush.bf16.msra.mxu0 %v4745
    %7355 = vmatpush.bf16.msra.mxu0 %v4737
    %7356 = vmatpush.bf16.msra.mxu0 %v4729
    %7357 = vmatpush.bf16.msra.mxu0 %v4721
    %7358 = vmatpush.bf16.msra.mxu0 %v4713
    %7359 = vmatpush.bf16.msra.mxu0 %v4705
    %7360 = vmatpush.bf16.msra.mxu0 %v4697
    %7361 = vmatpush.bf16.msra.mxu0 %v4689
    %7362 = vmatmul.bf16.gmra.mxu0 %v1216
    %v7363 = vpop.f32.mrf.mxu0
    %v7364 = vadd.f32 %v7315, %v7363
    %v7365 = vpop.f32.mrf.mxu0
    %v7366 = vadd.f32 %v7317, %v7365
    %7367 = vmatmul.bf16.gmra.mxu0 %v1220
    %v7368 = vpop.f32.mrf.mxu0
    %v7369 = vadd.f32 %v7320, %v7368
    %v7370 = vpop.f32.mrf.mxu0
    %v7371 = vadd.f32 %v7322, %v7370
    %7372 = vmatmul.bf16.gmra.mxu0 %v1224
    %v7373 = vpop.f32.mrf.mxu0
    %v7374 = vadd.f32 %v7325, %v7373
    %v7375 = vpop.f32.mrf.mxu0
    %v7376 = vadd.f32 %v7327, %v7375
    %7377 = vmatmul.bf16.gmra.mxu0 %v1228
    %v7378 = vpop.f32.mrf.mxu0
    %v7379 = vadd.f32 %v7330, %v7378
    %v7380 = vpop.f32.mrf.mxu0
    %v7381 = vadd.f32 %v7332, %v7380
    %7382 = vmatmul.bf16.gmra.mxu0 %v1232
    %v7383 = vpop.f32.mrf.mxu0
    %v7384 = vadd.f32 %v7335, %v7383
    %v7385 = vpop.f32.mrf.mxu0
    %v7386 = vadd.f32 %v7337, %v7385
    %7387 = vmatmul.bf16.gmra.mxu0 %v1236
    %v7388 = vpop.f32.mrf.mxu0
    %v7389 = vadd.f32 %v7340, %v7388
    %v7390 = vpop.f32.mrf.mxu0
    %v7391 = vadd.f32 %v7342, %v7390
    %7392 = vmatmul.bf16.gmra.mxu0 %v1240
    %v7393 = vpop.f32.mrf.mxu0
    %v7394 = vadd.f32 %v7345, %v7393
    %v7395 = vpop.f32.mrf.mxu0
    %v7396 = vadd.f32 %v7347, %v7395
    %7397 = vmatmul.bf16.gmra.mxu0 %v1244
    %v7398 = vpop.f32.mrf.mxu0
    %v7399 = vadd.f32 %v7350, %v7398
    %v7400 = vpop.f32.mrf.mxu0
    %v7401 = vadd.f32 %v7352, %v7400
    %7402 = vdwg.mxu0
    %7403 = vmatpush.bf16.msra.mxu0 %v4809
    %7404 = vmatpush.bf16.msra.mxu0 %v4801
    %7405 = vmatpush.bf16.msra.mxu0 %v4793
    %7406 = vmatpush.bf16.msra.mxu0 %v4785
    %7407 = vmatpush.bf16.msra.mxu0 %v4777
    %7408 = vmatpush.bf16.msra.mxu0 %v4769
    %7409 = vmatpush.bf16.msra.mxu0 %v4761
    %7410 = vmatpush.bf16.msra.mxu0 %v4753
    %7411 = vmatmul.bf16.gmra.mxu0 %v925
    %v7412 = vpop.f32.mrf.mxu0
    %v7413 = vadd.f32 %v7364, %v7412
    %v7414 = vpop.f32.mrf.mxu0
    %v7415 = vadd.f32 %v7366, %v7414
    %7416 = vmatmul.bf16.gmra.mxu0 %v929
    %v7417 = vpop.f32.mrf.mxu0
    %v7418 = vadd.f32 %v7369, %v7417
    %v7419 = vpop.f32.mrf.mxu0
    %v7420 = vadd.f32 %v7371, %v7419
    %7421 = vmatmul.bf16.gmra.mxu0 %v933
    %v7422 = vpop.f32.mrf.mxu0
    %v7423 = vadd.f32 %v7374, %v7422
    %v7424 = vpop.f32.mrf.mxu0
    %v7425 = vadd.f32 %v7376, %v7424
    %7426 = vmatmul.bf16.gmra.mxu0 %v937
    %v7427 = vpop.f32.mrf.mxu0
    %v7428 = vadd.f32 %v7379, %v7427
    %v7429 = vpop.f32.mrf.mxu0
    %v7430 = vadd.f32 %v7381, %v7429
    %7431 = vmatmul.bf16.gmra.mxu0 %v941
    %v7432 = vpop.f32.mrf.mxu0
    %v7433 = vadd.f32 %v7384, %v7432
    %v7434 = vpop.f32.mrf.mxu0
    %v7435 = vadd.f32 %v7386, %v7434
    %7436 = vmatmul.bf16.gmra.mxu0 %v945
    %v7437 = vpop.f32.mrf.mxu0
    %v7438 = vadd.f32 %v7389, %v7437
    %v7439 = vpop.f32.mrf.mxu0
    %v7440 = vadd.f32 %v7391, %v7439
    %7441 = vmatmul.bf16.gmra.mxu0 %v949
    %v7442 = vpop.f32.mrf.mxu0
    %v7443 = vadd.f32 %v7394, %v7442
    %v7444 = vpop.f32.mrf.mxu0
    %v7445 = vadd.f32 %v7396, %v7444
    %7446 = vmatmul.bf16.gmra.mxu0 %v953
    %v7447 = vpop.f32.mrf.mxu0
    %v7448 = vadd.f32 %v7399, %v7447
    %v7449 = vpop.f32.mrf.mxu0
    %v7450 = vadd.f32 %v7401, %v7449
    %7451 = vdwg.mxu0
    %7452 = vmatpush.bf16.msra.mxu0 %v4873
    %7453 = vmatpush.bf16.msra.mxu0 %v4865
    %7454 = vmatpush.bf16.msra.mxu0 %v4857
    %7455 = vmatpush.bf16.msra.mxu0 %v4849
    %7456 = vmatpush.bf16.msra.mxu0 %v4841
    %7457 = vmatpush.bf16.msra.mxu0 %v4833
    %7458 = vmatpush.bf16.msra.mxu0 %v4825
    %7459 = vmatpush.bf16.msra.mxu0 %v4817
    %7460 = vmatmul.bf16.gmra.mxu0 %v926
    %v7461 = vpop.f32.mrf.mxu0
    %v7462 = vadd.f32 %v7413, %v7461
    %v7463 = vpop.f32.mrf.mxu0
    %v7464 = vadd.f32 %v7415, %v7463
    %7465 = vmatmul.bf16.gmra.mxu0 %v930
    %v7466 = vpop.f32.mrf.mxu0
    %v7467 = vadd.f32 %v7418, %v7466
    %v7468 = vpop.f32.mrf.mxu0
    %v7469 = vadd.f32 %v7420, %v7468
    %7470 = vmatmul.bf16.gmra.mxu0 %v934
    %v7471 = vpop.f32.mrf.mxu0
    %v7472 = vadd.f32 %v7423, %v7471
    %v7473 = vpop.f32.mrf.mxu0
    %v7474 = vadd.f32 %v7425, %v7473
    %7475 = vmatmul.bf16.gmra.mxu0 %v938
    %v7476 = vpop.f32.mrf.mxu0
    %v7477 = vadd.f32 %v7428, %v7476
    %v7478 = vpop.f32.mrf.mxu0
    %v7479 = vadd.f32 %v7430, %v7478
    %7480 = vmatmul.bf16.gmra.mxu0 %v942
    %v7481 = vpop.f32.mrf.mxu0
    %v7482 = vadd.f32 %v7433, %v7481
    %v7483 = vpop.f32.mrf.mxu0
    %v7484 = vadd.f32 %v7435, %v7483
    %7485 = vmatmul.bf16.gmra.mxu0 %v946
    %v7486 = vpop.f32.mrf.mxu0
    %v7487 = vadd.f32 %v7438, %v7486
    %v7488 = vpop.f32.mrf.mxu0
    %v7489 = vadd.f32 %v7440, %v7488
    %7490 = vmatmul.bf16.gmra.mxu0 %v950
    %v7491 = vpop.f32.mrf.mxu0
    %v7492 = vadd.f32 %v7443, %v7491
    %v7493 = vpop.f32.mrf.mxu0
    %v7494 = vadd.f32 %v7445, %v7493
    %7495 = vmatmul.bf16.gmra.mxu0 %v954
    %v7496 = vpop.f32.mrf.mxu0
    %v7497 = vadd.f32 %v7448, %v7496
    %v7498 = vpop.f32.mrf.mxu0
    %v7499 = vadd.f32 %v7450, %v7498
    %7500 = vdwg.mxu0
    %7501 = vmatpush.bf16.msra.mxu0 %v4937
    %7502 = vmatpush.bf16.msra.mxu0 %v4929
    %7503 = vmatpush.bf16.msra.mxu0 %v4921
    %7504 = vmatpush.bf16.msra.mxu0 %v4913
    %7505 = vmatpush.bf16.msra.mxu0 %v4905
    %7506 = vmatpush.bf16.msra.mxu0 %v4897
    %7507 = vmatpush.bf16.msra.mxu0 %v4889
    %7508 = vmatpush.bf16.msra.mxu0 %v4881
    %7509 = vmatmul.bf16.gmra.mxu0 %v927
    %v7510 = vpop.f32.mrf.mxu0
    %v7511 = vadd.f32 %v7462, %v7510
    %v7512 = vpop.f32.mrf.mxu0
    %v7513 = vadd.f32 %v7464, %v7512
    %7514 = vmatmul.bf16.gmra.mxu0 %v931
    %v7515 = vpop.f32.mrf.mxu0
    %v7516 = vadd.f32 %v7467, %v7515
    %v7517 = vpop.f32.mrf.mxu0
    %v7518 = vadd.f32 %v7469, %v7517
    %7519 = vmatmul.bf16.gmra.mxu0 %v935
    %v7520 = vpop.f32.mrf.mxu0
    %v7521 = vadd.f32 %v7472, %v7520
    %v7522 = vpop.f32.mrf.mxu0
    %v7523 = vadd.f32 %v7474, %v7522
    %7524 = vmatmul.bf16.gmra.mxu0 %v939
    %v7525 = vpop.f32.mrf.mxu0
    %v7526 = vadd.f32 %v7477, %v7525
    %v7527 = vpop.f32.mrf.mxu0
    %v7528 = vadd.f32 %v7479, %v7527
    %7529 = vmatmul.bf16.gmra.mxu0 %v943
    %v7530 = vpop.f32.mrf.mxu0
    %v7531 = vadd.f32 %v7482, %v7530
    %v7532 = vpop.f32.mrf.mxu0
    %v7533 = vadd.f32 %v7484, %v7532
    %7534 = vmatmul.bf16.gmra.mxu0 %v947
    %v7535 = vpop.f32.mrf.mxu0
    %v7536 = vadd.f32 %v7487, %v7535
    %v7537 = vpop.f32.mrf.mxu0
    %v7538 = vadd.f32 %v7489, %v7537
    %7539 = vmatmul.bf16.gmra.mxu0 %v951
    %v7540 = vpop.f32.mrf.mxu0
    %v7541 = vadd.f32 %v7492, %v7540
    %v7542 = vpop.f32.mrf.mxu0
    %v7543 = vadd.f32 %v7494, %v7542
    %7544 = vmatmul.bf16.gmra.mxu0 %v955
    %v7545 = vpop.f32.mrf.mxu0
    %v7546 = vadd.f32 %v7497, %v7545
    %v7547 = vpop.f32.mrf.mxu0
    %v7548 = vadd.f32 %v7499, %v7547
    %7549 = vdwg.mxu0
    %7550 = vmatpush.bf16.msra.mxu0 %v5001
    %7551 = vmatpush.bf16.msra.mxu0 %v4993
    %7552 = vmatpush.bf16.msra.mxu0 %v4985
    %7553 = vmatpush.bf16.msra.mxu0 %v4977
    %7554 = vmatpush.bf16.msra.mxu0 %v4969
    %7555 = vmatpush.bf16.msra.mxu0 %v4961
    %7556 = vmatpush.bf16.msra.mxu0 %v4953
    %7557 = vmatpush.bf16.msra.mxu0 %v4945
    %7558 = vmatmul.bf16.gmra.mxu0 %v928
    %v7559 = vpop.f32.mrf.mxu0
    %v7560 = vadd.f32 %v7511, %v7559
    %v7561 = vpop.f32.mrf.mxu0
    %v7562 = vadd.f32 %v7513, %v7561
    %7563 = vmatmul.bf16.gmra.mxu0 %v932
    %v7564 = vpop.f32.mrf.mxu0
    %v7565 = vadd.f32 %v7516, %v7564
    %v7566 = vpop.f32.mrf.mxu0
    %v7567 = vadd.f32 %v7518, %v7566
    %7568 = vmatmul.bf16.gmra.mxu0 %v936
    %v7569 = vpop.f32.mrf.mxu0
    %v7570 = vadd.f32 %v7521, %v7569
    %v7571 = vpop.f32.mrf.mxu0
    %v7572 = vadd.f32 %v7523, %v7571
    %7573 = vmatmul.bf16.gmra.mxu0 %v940
    %v7574 = vpop.f32.mrf.mxu0
    %v7575 = vadd.f32 %v7526, %v7574
    %v7576 = vpop.f32.mrf.mxu0
    %v7577 = vadd.f32 %v7528, %v7576
    %7578 = vmatmul.bf16.gmra.mxu0 %v944
    %v7579 = vpop.f32.mrf.mxu0
    %v7580 = vadd.f32 %v7531, %v7579
    %v7581 = vpop.f32.mrf.mxu0
    %v7582 = vadd.f32 %v7533, %v7581
    %7583 = vmatmul.bf16.gmra.mxu0 %v948
    %v7584 = vpop.f32.mrf.mxu0
    %v7585 = vadd.f32 %v7536, %v7584
    %v7586 = vpop.f32.mrf.mxu0
    %v7587 = vadd.f32 %v7538, %v7586
    %7588 = vmatmul.bf16.gmra.mxu0 %v952
    %v7589 = vpop.f32.mrf.mxu0
    %v7590 = vadd.f32 %v7541, %v7589
    %v7591 = vpop.f32.mrf.mxu0
    %v7592 = vadd.f32 %v7543, %v7591
    %7593 = vmatmul.bf16.gmra.mxu0 %v956
    %v7594 = vpop.f32.mrf.mxu0
    %v7595 = vadd.f32 %v7546, %v7594
    %v7596 = vpop.f32.mrf.mxu0
    %v7597 = vadd.f32 %v7548, %v7596
    %7598 = vdwg.mxu0
    %7599 = vmatpush.bf16.msra.mxu0 %v5065
    %7600 = vmatpush.bf16.msra.mxu0 %v5057
    %7601 = vmatpush.bf16.msra.mxu0 %v5049
    %7602 = vmatpush.bf16.msra.mxu0 %v5041
    %7603 = vmatpush.bf16.msra.mxu0 %v5033
    %7604 = vmatpush.bf16.msra.mxu0 %v5025
    %7605 = vmatpush.bf16.msra.mxu0 %v5017
    %7606 = vmatpush.bf16.msra.mxu0 %v5009
    %7607 = vmatmul.bf16.gmra.mxu0 %v1341
    %v7608 = vpop.f32.mrf.mxu0
    %v7609 = vadd.f32 %v7560, %v7608
    %v7610 = vpop.f32.mrf.mxu0
    %v7611 = vadd.f32 %v7562, %v7610
    %7612 = vmatmul.bf16.gmra.mxu0 %v1345
    %v7613 = vpop.f32.mrf.mxu0
    %v7614 = vadd.f32 %v7565, %v7613
    %v7615 = vpop.f32.mrf.mxu0
    %v7616 = vadd.f32 %v7567, %v7615
    %7617 = vmatmul.bf16.gmra.mxu0 %v1349
    %v7618 = vpop.f32.mrf.mxu0
    %v7619 = vadd.f32 %v7570, %v7618
    %v7620 = vpop.f32.mrf.mxu0
    %v7621 = vadd.f32 %v7572, %v7620
    %7622 = vmatmul.bf16.gmra.mxu0 %v1353
    %v7623 = vpop.f32.mrf.mxu0
    %v7624 = vadd.f32 %v7575, %v7623
    %v7625 = vpop.f32.mrf.mxu0
    %v7626 = vadd.f32 %v7577, %v7625
    %7627 = vmatmul.bf16.gmra.mxu0 %v1357
    %v7628 = vpop.f32.mrf.mxu0
    %v7629 = vadd.f32 %v7580, %v7628
    %v7630 = vpop.f32.mrf.mxu0
    %v7631 = vadd.f32 %v7582, %v7630
    %7632 = vmatmul.bf16.gmra.mxu0 %v1361
    %v7633 = vpop.f32.mrf.mxu0
    %v7634 = vadd.f32 %v7585, %v7633
    %v7635 = vpop.f32.mrf.mxu0
    %v7636 = vadd.f32 %v7587, %v7635
    %7637 = vmatmul.bf16.gmra.mxu0 %v1365
    %v7638 = vpop.f32.mrf.mxu0
    %v7639 = vadd.f32 %v7590, %v7638
    %v7640 = vpop.f32.mrf.mxu0
    %v7641 = vadd.f32 %v7592, %v7640
    %7642 = vmatmul.bf16.gmra.mxu0 %v1369
    %v7643 = vpop.f32.mrf.mxu0
    %v7644 = vadd.f32 %v7595, %v7643
    %v7645 = vpop.f32.mrf.mxu0
    %v7646 = vadd.f32 %v7597, %v7645
    %7647 = vdwg.mxu0
    %7648 = vmatpush.bf16.msra.mxu0 %v5129
    %7649 = vmatpush.bf16.msra.mxu0 %v5121
    %7650 = vmatpush.bf16.msra.mxu0 %v5113
    %7651 = vmatpush.bf16.msra.mxu0 %v5105
    %7652 = vmatpush.bf16.msra.mxu0 %v5097
    %7653 = vmatpush.bf16.msra.mxu0 %v5089
    %7654 = vmatpush.bf16.msra.mxu0 %v5081
    %7655 = vmatpush.bf16.msra.mxu0 %v5073
    %7656 = vmatmul.bf16.gmra.mxu0 %v1342
    %v7657 = vpop.f32.mrf.mxu0
    %v7658 = vadd.f32 %v7609, %v7657
    %v7659 = vpop.f32.mrf.mxu0
    %v7660 = vadd.f32 %v7611, %v7659
    %7661 = vmatmul.bf16.gmra.mxu0 %v1346
    %v7662 = vpop.f32.mrf.mxu0
    %v7663 = vadd.f32 %v7614, %v7662
    %v7664 = vpop.f32.mrf.mxu0
    %v7665 = vadd.f32 %v7616, %v7664
    %7666 = vmatmul.bf16.gmra.mxu0 %v1350
    %v7667 = vpop.f32.mrf.mxu0
    %v7668 = vadd.f32 %v7619, %v7667
    %v7669 = vpop.f32.mrf.mxu0
    %v7670 = vadd.f32 %v7621, %v7669
    %7671 = vmatmul.bf16.gmra.mxu0 %v1354
    %v7672 = vpop.f32.mrf.mxu0
    %v7673 = vadd.f32 %v7624, %v7672
    %v7674 = vpop.f32.mrf.mxu0
    %v7675 = vadd.f32 %v7626, %v7674
    %7676 = vmatmul.bf16.gmra.mxu0 %v1358
    %v7677 = vpop.f32.mrf.mxu0
    %v7678 = vadd.f32 %v7629, %v7677
    %v7679 = vpop.f32.mrf.mxu0
    %v7680 = vadd.f32 %v7631, %v7679
    %7681 = vmatmul.bf16.gmra.mxu0 %v1362
    %v7682 = vpop.f32.mrf.mxu0
    %v7683 = vadd.f32 %v7634, %v7682
    %v7684 = vpop.f32.mrf.mxu0
    %v7685 = vadd.f32 %v7636, %v7684
    %7686 = vmatmul.bf16.gmra.mxu0 %v1366
    %v7687 = vpop.f32.mrf.mxu0
    %v7688 = vadd.f32 %v7639, %v7687
    %v7689 = vpop.f32.mrf.mxu0
    %v7690 = vadd.f32 %v7641, %v7689
    %7691 = vmatmul.bf16.gmra.mxu0 %v1370
    %v7692 = vpop.f32.mrf.mxu0
    %v7693 = vadd.f32 %v7644, %v7692
    %v7694 = vpop.f32.mrf.mxu0
    %v7695 = vadd.f32 %v7646, %v7694
    %7696 = vdwg.mxu0
    %7697 = vmatpush.bf16.msra.mxu0 %v5193
    %7698 = vmatpush.bf16.msra.mxu0 %v5185
    %7699 = vmatpush.bf16.msra.mxu0 %v5177
    %7700 = vmatpush.bf16.msra.mxu0 %v5169
    %7701 = vmatpush.bf16.msra.mxu0 %v5161
    %7702 = vmatpush.bf16.msra.mxu0 %v5153
    %7703 = vmatpush.bf16.msra.mxu0 %v5145
    %7704 = vmatpush.bf16.msra.mxu0 %v5137
    %7705 = vmatmul.bf16.gmra.mxu0 %v1343
    %v7706 = vpop.f32.mrf.mxu0
    %v7707 = vadd.f32 %v7658, %v7706
    %v7708 = vpop.f32.mrf.mxu0
    %v7709 = vadd.f32 %v7660, %v7708
    %7710 = vmatmul.bf16.gmra.mxu0 %v1347
    %v7711 = vpop.f32.mrf.mxu0
    %v7712 = vadd.f32 %v7663, %v7711
    %v7713 = vpop.f32.mrf.mxu0
    %v7714 = vadd.f32 %v7665, %v7713
    %7715 = vmatmul.bf16.gmra.mxu0 %v1351
    %v7716 = vpop.f32.mrf.mxu0
    %v7717 = vadd.f32 %v7668, %v7716
    %v7718 = vpop.f32.mrf.mxu0
    %v7719 = vadd.f32 %v7670, %v7718
    %7720 = vmatmul.bf16.gmra.mxu0 %v1355
    %v7721 = vpop.f32.mrf.mxu0
    %v7722 = vadd.f32 %v7673, %v7721
    %v7723 = vpop.f32.mrf.mxu0
    %v7724 = vadd.f32 %v7675, %v7723
    %7725 = vmatmul.bf16.gmra.mxu0 %v1359
    %v7726 = vpop.f32.mrf.mxu0
    %v7727 = vadd.f32 %v7678, %v7726
    %v7728 = vpop.f32.mrf.mxu0
    %v7729 = vadd.f32 %v7680, %v7728
    %7730 = vmatmul.bf16.gmra.mxu0 %v1363
    %v7731 = vpop.f32.mrf.mxu0
    %v7732 = vadd.f32 %v7683, %v7731
    %v7733 = vpop.f32.mrf.mxu0
    %v7734 = vadd.f32 %v7685, %v7733
    %7735 = vmatmul.bf16.gmra.mxu0 %v1367
    %v7736 = vpop.f32.mrf.mxu0
    %v7737 = vadd.f32 %v7688, %v7736
    %v7738 = vpop.f32.mrf.mxu0
    %v7739 = vadd.f32 %v7690, %v7738
    %7740 = vmatmul.bf16.gmra.mxu0 %v1371
    %v7741 = vpop.f32.mrf.mxu0
    %v7742 = vadd.f32 %v7693, %v7741
    %v7743 = vpop.f32.mrf.mxu0
    %v7744 = vadd.f32 %v7695, %v7743
    %7745 = vdwg.mxu0
    %7746 = vmatpush.bf16.msra.mxu0 %v5257
    %7747 = vmatpush.bf16.msra.mxu0 %v5249
    %7748 = vmatpush.bf16.msra.mxu0 %v5241
    %7749 = vmatpush.bf16.msra.mxu0 %v5233
    %7750 = vmatpush.bf16.msra.mxu0 %v5225
    %7751 = vmatpush.bf16.msra.mxu0 %v5217
    %7752 = vmatpush.bf16.msra.mxu0 %v5209
    %7753 = vmatpush.bf16.msra.mxu0 %v5201
    %7754 = vmatmul.bf16.gmra.mxu0 %v1344
    %v7755 = vpop.f32.mrf.mxu0
    %v7756 = vadd.f32 %v7707, %v7755
    %v7757 = vpop.f32.mrf.mxu0
    %v7758 = vadd.f32 %v7709, %v7757
    %7759 = vmatmul.bf16.gmra.mxu0 %v1348
    %v7760 = vpop.f32.mrf.mxu0
    %v7761 = vadd.f32 %v7712, %v7760
    %v7762 = vpop.f32.mrf.mxu0
    %v7763 = vadd.f32 %v7714, %v7762
    %7764 = vmatmul.bf16.gmra.mxu0 %v1352
    %v7765 = vpop.f32.mrf.mxu0
    %v7766 = vadd.f32 %v7717, %v7765
    %v7767 = vpop.f32.mrf.mxu0
    %v7768 = vadd.f32 %v7719, %v7767
    %7769 = vmatmul.bf16.gmra.mxu0 %v1356
    %v7770 = vpop.f32.mrf.mxu0
    %v7771 = vadd.f32 %v7722, %v7770
    %v7772 = vpop.f32.mrf.mxu0
    %v7773 = vadd.f32 %v7724, %v7772
    %7774 = vmatmul.bf16.gmra.mxu0 %v1360
    %v7775 = vpop.f32.mrf.mxu0
    %v7776 = vadd.f32 %v7727, %v7775
    %v7777 = vpop.f32.mrf.mxu0
    %v7778 = vadd.f32 %v7729, %v7777
    %7779 = vmatmul.bf16.gmra.mxu0 %v1364
    %v7780 = vpop.f32.mrf.mxu0
    %v7781 = vadd.f32 %v7732, %v7780
    %v7782 = vpop.f32.mrf.mxu0
    %v7783 = vadd.f32 %v7734, %v7782
    %7784 = vmatmul.bf16.gmra.mxu0 %v1368
    %v7785 = vpop.f32.mrf.mxu0
    %v7786 = vadd.f32 %v7737, %v7785
    %v7787 = vpop.f32.mrf.mxu0
    %v7788 = vadd.f32 %v7739, %v7787
    %7789 = vmatmul.bf16.gmra.mxu0 %v1372
    %v7790 = vpop.f32.mrf.mxu0
    %v7791 = vadd.f32 %v7742, %v7790
    %v7792 = vpop.f32.mrf.mxu0
    %v7793 = vadd.f32 %v7744, %v7792
    %7794 = vdwg.mxu0
    %7795 = vmatpush.bf16.msra.mxu0 %v4554
    %7796 = vmatpush.bf16.msra.mxu0 %v4546
    %7797 = vmatpush.bf16.msra.mxu0 %v4538
    %7798 = vmatpush.bf16.msra.mxu0 %v4530
    %7799 = vmatpush.bf16.msra.mxu0 %v4522
    %7800 = vmatpush.bf16.msra.mxu0 %v4514
    %7801 = vmatpush.bf16.msra.mxu0 %v4506
    %7802 = vmatpush.bf16.msra.mxu0 %v4498
    %7803 = vmatmul.bf16.gmra.mxu0 %v1213
    %v7804 = vpop.f32.mrf.mxu0
    %v7805 = vadd.f32 %v2178, %v7804
    %v7806 = vpop.f32.mrf.mxu0
    %v7807 = vadd.f32 %v2178, %v7806
    %7808 = vmatmul.bf16.gmra.mxu0 %v1217
    %v7809 = vpop.f32.mrf.mxu0
    %v7810 = vadd.f32 %v2178, %v7809
    %v7811 = vpop.f32.mrf.mxu0
    %v7812 = vadd.f32 %v2178, %v7811
    %7813 = vmatmul.bf16.gmra.mxu0 %v1221
    %v7814 = vpop.f32.mrf.mxu0
    %v7815 = vadd.f32 %v2178, %v7814
    %v7816 = vpop.f32.mrf.mxu0
    %v7817 = vadd.f32 %v2178, %v7816
    %7818 = vmatmul.bf16.gmra.mxu0 %v1225
    %v7819 = vpop.f32.mrf.mxu0
    %v7820 = vadd.f32 %v2178, %v7819
    %v7821 = vpop.f32.mrf.mxu0
    %v7822 = vadd.f32 %v2178, %v7821
    %7823 = vmatmul.bf16.gmra.mxu0 %v1229
    %v7824 = vpop.f32.mrf.mxu0
    %v7825 = vadd.f32 %v2178, %v7824
    %v7826 = vpop.f32.mrf.mxu0
    %v7827 = vadd.f32 %v2178, %v7826
    %7828 = vmatmul.bf16.gmra.mxu0 %v1233
    %v7829 = vpop.f32.mrf.mxu0
    %v7830 = vadd.f32 %v2178, %v7829
    %v7831 = vpop.f32.mrf.mxu0
    %v7832 = vadd.f32 %v2178, %v7831
    %7833 = vmatmul.bf16.gmra.mxu0 %v1237
    %v7834 = vpop.f32.mrf.mxu0
    %v7835 = vadd.f32 %v2178, %v7834
    %v7836 = vpop.f32.mrf.mxu0
    %v7837 = vadd.f32 %v2178, %v7836
    %7838 = vmatmul.bf16.gmra.mxu0 %v1241
    %v7839 = vpop.f32.mrf.mxu0
    %v7840 = vadd.f32 %v2178, %v7839
    %v7841 = vpop.f32.mrf.mxu0
    %v7842 = vadd.f32 %v2178, %v7841
    %7843 = vdwg.mxu0
    %7844 = vmatpush.bf16.msra.mxu0 %v4618
    %7845 = vmatpush.bf16.msra.mxu0 %v4610
    %7846 = vmatpush.bf16.msra.mxu0 %v4602
    %7847 = vmatpush.bf16.msra.mxu0 %v4594
    %7848 = vmatpush.bf16.msra.mxu0 %v4586
    %7849 = vmatpush.bf16.msra.mxu0 %v4578
    %7850 = vmatpush.bf16.msra.mxu0 %v4570
    %7851 = vmatpush.bf16.msra.mxu0 %v4562
    %7852 = vmatmul.bf16.gmra.mxu0 %v1214
    %v7853 = vpop.f32.mrf.mxu0
    %v7854 = vadd.f32 %v7805, %v7853
    %v7855 = vpop.f32.mrf.mxu0
    %v7856 = vadd.f32 %v7807, %v7855
    %7857 = vmatmul.bf16.gmra.mxu0 %v1218
    %v7858 = vpop.f32.mrf.mxu0
    %v7859 = vadd.f32 %v7810, %v7858
    %v7860 = vpop.f32.mrf.mxu0
    %v7861 = vadd.f32 %v7812, %v7860
    %7862 = vmatmul.bf16.gmra.mxu0 %v1222
    %v7863 = vpop.f32.mrf.mxu0
    %v7864 = vadd.f32 %v7815, %v7863
    %v7865 = vpop.f32.mrf.mxu0
    %v7866 = vadd.f32 %v7817, %v7865
    %7867 = vmatmul.bf16.gmra.mxu0 %v1226
    %v7868 = vpop.f32.mrf.mxu0
    %v7869 = vadd.f32 %v7820, %v7868
    %v7870 = vpop.f32.mrf.mxu0
    %v7871 = vadd.f32 %v7822, %v7870
    %7872 = vmatmul.bf16.gmra.mxu0 %v1230
    %v7873 = vpop.f32.mrf.mxu0
    %v7874 = vadd.f32 %v7825, %v7873
    %v7875 = vpop.f32.mrf.mxu0
    %v7876 = vadd.f32 %v7827, %v7875
    %7877 = vmatmul.bf16.gmra.mxu0 %v1234
    %v7878 = vpop.f32.mrf.mxu0
    %v7879 = vadd.f32 %v7830, %v7878
    %v7880 = vpop.f32.mrf.mxu0
    %v7881 = vadd.f32 %v7832, %v7880
    %7882 = vmatmul.bf16.gmra.mxu0 %v1238
    %v7883 = vpop.f32.mrf.mxu0
    %v7884 = vadd.f32 %v7835, %v7883
    %v7885 = vpop.f32.mrf.mxu0
    %v7886 = vadd.f32 %v7837, %v7885
    %7887 = vmatmul.bf16.gmra.mxu0 %v1242
    %v7888 = vpop.f32.mrf.mxu0
    %v7889 = vadd.f32 %v7840, %v7888
    %v7890 = vpop.f32.mrf.mxu0
    %v7891 = vadd.f32 %v7842, %v7890
    %7892 = vdwg.mxu0
    %7893 = vmatpush.bf16.msra.mxu0 %v4682
    %7894 = vmatpush.bf16.msra.mxu0 %v4674
    %7895 = vmatpush.bf16.msra.mxu0 %v4666
    %7896 = vmatpush.bf16.msra.mxu0 %v4658
    %7897 = vmatpush.bf16.msra.mxu0 %v4650
    %7898 = vmatpush.bf16.msra.mxu0 %v4642
    %7899 = vmatpush.bf16.msra.mxu0 %v4634
    %7900 = vmatpush.bf16.msra.mxu0 %v4626
    %7901 = vmatmul.bf16.gmra.mxu0 %v1215
    %v7902 = vpop.f32.mrf.mxu0
    %v7903 = vadd.f32 %v7854, %v7902
    %v7904 = vpop.f32.mrf.mxu0
    %v7905 = vadd.f32 %v7856, %v7904
    %7906 = vmatmul.bf16.gmra.mxu0 %v1219
    %v7907 = vpop.f32.mrf.mxu0
    %v7908 = vadd.f32 %v7859, %v7907
    %v7909 = vpop.f32.mrf.mxu0
    %v7910 = vadd.f32 %v7861, %v7909
    %7911 = vmatmul.bf16.gmra.mxu0 %v1223
    %v7912 = vpop.f32.mrf.mxu0
    %v7913 = vadd.f32 %v7864, %v7912
    %v7914 = vpop.f32.mrf.mxu0
    %v7915 = vadd.f32 %v7866, %v7914
    %7916 = vmatmul.bf16.gmra.mxu0 %v1227
    %v7917 = vpop.f32.mrf.mxu0
    %v7918 = vadd.f32 %v7869, %v7917
    %v7919 = vpop.f32.mrf.mxu0
    %v7920 = vadd.f32 %v7871, %v7919
    %7921 = vmatmul.bf16.gmra.mxu0 %v1231
    %v7922 = vpop.f32.mrf.mxu0
    %v7923 = vadd.f32 %v7874, %v7922
    %v7924 = vpop.f32.mrf.mxu0
    %v7925 = vadd.f32 %v7876, %v7924
    %7926 = vmatmul.bf16.gmra.mxu0 %v1235
    %v7927 = vpop.f32.mrf.mxu0
    %v7928 = vadd.f32 %v7879, %v7927
    %v7929 = vpop.f32.mrf.mxu0
    %v7930 = vadd.f32 %v7881, %v7929
    %7931 = vmatmul.bf16.gmra.mxu0 %v1239
    %v7932 = vpop.f32.mrf.mxu0
    %v7933 = vadd.f32 %v7884, %v7932
    %v7934 = vpop.f32.mrf.mxu0
    %v7935 = vadd.f32 %v7886, %v7934
    %7936 = vmatmul.bf16.gmra.mxu0 %v1243
    %v7937 = vpop.f32.mrf.mxu0
    %v7938 = vadd.f32 %v7889, %v7937
    %v7939 = vpop.f32.mrf.mxu0
    %v7940 = vadd.f32 %v7891, %v7939
    %7941 = vdwg.mxu0
    %7942 = vmatpush.bf16.msra.mxu0 %v4746
    %7943 = vmatpush.bf16.msra.mxu0 %v4738
    %7944 = vmatpush.bf16.msra.mxu0 %v4730
    %7945 = vmatpush.bf16.msra.mxu0 %v4722
    %7946 = vmatpush.bf16.msra.mxu0 %v4714
    %7947 = vmatpush.bf16.msra.mxu0 %v4706
    %7948 = vmatpush.bf16.msra.mxu0 %v4698
    %7949 = vmatpush.bf16.msra.mxu0 %v4690
    %7950 = vmatmul.bf16.gmra.mxu0 %v1216
    %v7951 = vpop.f32.mrf.mxu0
    %v7952 = vadd.f32 %v7903, %v7951
    %v7953 = vpop.f32.mrf.mxu0
    %v7954 = vadd.f32 %v7905, %v7953
    %7955 = vmatmul.bf16.gmra.mxu0 %v1220
    %v7956 = vpop.f32.mrf.mxu0
    %v7957 = vadd.f32 %v7908, %v7956
    %v7958 = vpop.f32.mrf.mxu0
    %v7959 = vadd.f32 %v7910, %v7958
    %7960 = vmatmul.bf16.gmra.mxu0 %v1224
    %v7961 = vpop.f32.mrf.mxu0
    %v7962 = vadd.f32 %v7913, %v7961
    %v7963 = vpop.f32.mrf.mxu0
    %v7964 = vadd.f32 %v7915, %v7963
    %7965 = vmatmul.bf16.gmra.mxu0 %v1228
    %v7966 = vpop.f32.mrf.mxu0
    %v7967 = vadd.f32 %v7918, %v7966
    %v7968 = vpop.f32.mrf.mxu0
    %v7969 = vadd.f32 %v7920, %v7968
    %7970 = vmatmul.bf16.gmra.mxu0 %v1232
    %v7971 = vpop.f32.mrf.mxu0
    %v7972 = vadd.f32 %v7923, %v7971
    %v7973 = vpop.f32.mrf.mxu0
    %v7974 = vadd.f32 %v7925, %v7973
    %7975 = vmatmul.bf16.gmra.mxu0 %v1236
    %v7976 = vpop.f32.mrf.mxu0
    %v7977 = vadd.f32 %v7928, %v7976
    %v7978 = vpop.f32.mrf.mxu0
    %v7979 = vadd.f32 %v7930, %v7978
    %7980 = vmatmul.bf16.gmra.mxu0 %v1240
    %v7981 = vpop.f32.mrf.mxu0
    %v7982 = vadd.f32 %v7933, %v7981
    %v7983 = vpop.f32.mrf.mxu0
    %v7984 = vadd.f32 %v7935, %v7983
    %7985 = vmatmul.bf16.gmra.mxu0 %v1244
    %v7986 = vpop.f32.mrf.mxu0
    %v7987 = vadd.f32 %v7938, %v7986
    %v7988 = vpop.f32.mrf.mxu0
    %v7989 = vadd.f32 %v7940, %v7988
    %7990 = vdwg.mxu0
    %7991 = vmatpush.bf16.msra.mxu0 %v4810
    %7992 = vmatpush.bf16.msra.mxu0 %v4802
    %7993 = vmatpush.bf16.msra.mxu0 %v4794
    %7994 = vmatpush.bf16.msra.mxu0 %v4786
    %7995 = vmatpush.bf16.msra.mxu0 %v4778
    %7996 = vmatpush.bf16.msra.mxu0 %v4770
    %7997 = vmatpush.bf16.msra.mxu0 %v4762
    %7998 = vmatpush.bf16.msra.mxu0 %v4754
    %7999 = vmatmul.bf16.gmra.mxu0 %v925
    %v8000 = vpop.f32.mrf.mxu0
    %v8001 = vadd.f32 %v7952, %v8000
    %v8002 = vpop.f32.mrf.mxu0
    %v8003 = vadd.f32 %v7954, %v8002
    %8004 = vmatmul.bf16.gmra.mxu0 %v929
    %v8005 = vpop.f32.mrf.mxu0
    %v8006 = vadd.f32 %v7957, %v8005
    %v8007 = vpop.f32.mrf.mxu0
    %v8008 = vadd.f32 %v7959, %v8007
    %8009 = vmatmul.bf16.gmra.mxu0 %v933
    %v8010 = vpop.f32.mrf.mxu0
    %v8011 = vadd.f32 %v7962, %v8010
    %v8012 = vpop.f32.mrf.mxu0
    %v8013 = vadd.f32 %v7964, %v8012
    %8014 = vmatmul.bf16.gmra.mxu0 %v937
    %v8015 = vpop.f32.mrf.mxu0
    %v8016 = vadd.f32 %v7967, %v8015
    %v8017 = vpop.f32.mrf.mxu0
    %v8018 = vadd.f32 %v7969, %v8017
    %8019 = vmatmul.bf16.gmra.mxu0 %v941
    %v8020 = vpop.f32.mrf.mxu0
    %v8021 = vadd.f32 %v7972, %v8020
    %v8022 = vpop.f32.mrf.mxu0
    %v8023 = vadd.f32 %v7974, %v8022
    %8024 = vmatmul.bf16.gmra.mxu0 %v945
    %v8025 = vpop.f32.mrf.mxu0
    %v8026 = vadd.f32 %v7977, %v8025
    %v8027 = vpop.f32.mrf.mxu0
    %v8028 = vadd.f32 %v7979, %v8027
    %8029 = vmatmul.bf16.gmra.mxu0 %v949
    %v8030 = vpop.f32.mrf.mxu0
    %v8031 = vadd.f32 %v7982, %v8030
    %v8032 = vpop.f32.mrf.mxu0
    %v8033 = vadd.f32 %v7984, %v8032
    %8034 = vmatmul.bf16.gmra.mxu0 %v953
    %v8035 = vpop.f32.mrf.mxu0
    %v8036 = vadd.f32 %v7987, %v8035
    %v8037 = vpop.f32.mrf.mxu0
    %v8038 = vadd.f32 %v7989, %v8037
    %8039 = vdwg.mxu0
    %8040 = vmatpush.bf16.msra.mxu0 %v4874
    %8041 = vmatpush.bf16.msra.mxu0 %v4866
    %8042 = vmatpush.bf16.msra.mxu0 %v4858
    %8043 = vmatpush.bf16.msra.mxu0 %v4850
    %8044 = vmatpush.bf16.msra.mxu0 %v4842
    %8045 = vmatpush.bf16.msra.mxu0 %v4834
    %8046 = vmatpush.bf16.msra.mxu0 %v4826
    %8047 = vmatpush.bf16.msra.mxu0 %v4818
    %8048 = vmatmul.bf16.gmra.mxu0 %v926
    %v8049 = vpop.f32.mrf.mxu0
    %v8050 = vadd.f32 %v8001, %v8049
    %v8051 = vpop.f32.mrf.mxu0
    %v8052 = vadd.f32 %v8003, %v8051
    %8053 = vmatmul.bf16.gmra.mxu0 %v930
    %v8054 = vpop.f32.mrf.mxu0
    %v8055 = vadd.f32 %v8006, %v8054
    %v8056 = vpop.f32.mrf.mxu0
    %v8057 = vadd.f32 %v8008, %v8056
    %8058 = vmatmul.bf16.gmra.mxu0 %v934
    %v8059 = vpop.f32.mrf.mxu0
    %v8060 = vadd.f32 %v8011, %v8059
    %v8061 = vpop.f32.mrf.mxu0
    %v8062 = vadd.f32 %v8013, %v8061
    %8063 = vmatmul.bf16.gmra.mxu0 %v938
    %v8064 = vpop.f32.mrf.mxu0
    %v8065 = vadd.f32 %v8016, %v8064
    %v8066 = vpop.f32.mrf.mxu0
    %v8067 = vadd.f32 %v8018, %v8066
    %8068 = vmatmul.bf16.gmra.mxu0 %v942
    %v8069 = vpop.f32.mrf.mxu0
    %v8070 = vadd.f32 %v8021, %v8069
    %v8071 = vpop.f32.mrf.mxu0
    %v8072 = vadd.f32 %v8023, %v8071
    %8073 = vmatmul.bf16.gmra.mxu0 %v946
    %v8074 = vpop.f32.mrf.mxu0
    %v8075 = vadd.f32 %v8026, %v8074
    %v8076 = vpop.f32.mrf.mxu0
    %v8077 = vadd.f32 %v8028, %v8076
    %8078 = vmatmul.bf16.gmra.mxu0 %v950
    %v8079 = vpop.f32.mrf.mxu0
    %v8080 = vadd.f32 %v8031, %v8079
    %v8081 = vpop.f32.mrf.mxu0
    %v8082 = vadd.f32 %v8033, %v8081
    %8083 = vmatmul.bf16.gmra.mxu0 %v954
    %v8084 = vpop.f32.mrf.mxu0
    %v8085 = vadd.f32 %v8036, %v8084
    %v8086 = vpop.f32.mrf.mxu0
    %v8087 = vadd.f32 %v8038, %v8086
    %8088 = vdwg.mxu0
    %8089 = vmatpush.bf16.msra.mxu0 %v4938
    %8090 = vmatpush.bf16.msra.mxu0 %v4930
    %8091 = vmatpush.bf16.msra.mxu0 %v4922
    %8092 = vmatpush.bf16.msra.mxu0 %v4914
    %8093 = vmatpush.bf16.msra.mxu0 %v4906
    %8094 = vmatpush.bf16.msra.mxu0 %v4898
    %8095 = vmatpush.bf16.msra.mxu0 %v4890
    %8096 = vmatpush.bf16.msra.mxu0 %v4882
    %8097 = vmatmul.bf16.gmra.mxu0 %v927
    %v8098 = vpop.f32.mrf.mxu0
    %v8099 = vadd.f32 %v8050, %v8098
    %v8100 = vpop.f32.mrf.mxu0
    %v8101 = vadd.f32 %v8052, %v8100
    %8102 = vmatmul.bf16.gmra.mxu0 %v931
    %v8103 = vpop.f32.mrf.mxu0
    %v8104 = vadd.f32 %v8055, %v8103
    %v8105 = vpop.f32.mrf.mxu0
    %v8106 = vadd.f32 %v8057, %v8105
    %8107 = vmatmul.bf16.gmra.mxu0 %v935
    %v8108 = vpop.f32.mrf.mxu0
    %v8109 = vadd.f32 %v8060, %v8108
    %v8110 = vpop.f32.mrf.mxu0
    %v8111 = vadd.f32 %v8062, %v8110
    %8112 = vmatmul.bf16.gmra.mxu0 %v939
    %v8113 = vpop.f32.mrf.mxu0
    %v8114 = vadd.f32 %v8065, %v8113
    %v8115 = vpop.f32.mrf.mxu0
    %v8116 = vadd.f32 %v8067, %v8115
    %8117 = vmatmul.bf16.gmra.mxu0 %v943
    %v8118 = vpop.f32.mrf.mxu0
    %v8119 = vadd.f32 %v8070, %v8118
    %v8120 = vpop.f32.mrf.mxu0
    %v8121 = vadd.f32 %v8072, %v8120
    %8122 = vmatmul.bf16.gmra.mxu0 %v947
    %v8123 = vpop.f32.mrf.mxu0
    %v8124 = vadd.f32 %v8075, %v8123
    %v8125 = vpop.f32.mrf.mxu0
    %v8126 = vadd.f32 %v8077, %v8125
    %8127 = vmatmul.bf16.gmra.mxu0 %v951
    %v8128 = vpop.f32.mrf.mxu0
    %v8129 = vadd.f32 %v8080, %v8128
    %v8130 = vpop.f32.mrf.mxu0
    %v8131 = vadd.f32 %v8082, %v8130
    %8132 = vmatmul.bf16.gmra.mxu0 %v955
    %v8133 = vpop.f32.mrf.mxu0
    %v8134 = vadd.f32 %v8085, %v8133
    %v8135 = vpop.f32.mrf.mxu0
    %v8136 = vadd.f32 %v8087, %v8135
    %8137 = vdwg.mxu0
    %8138 = vmatpush.bf16.msra.mxu0 %v5002
    %8139 = vmatpush.bf16.msra.mxu0 %v4994
    %8140 = vmatpush.bf16.msra.mxu0 %v4986
    %8141 = vmatpush.bf16.msra.mxu0 %v4978
    %8142 = vmatpush.bf16.msra.mxu0 %v4970
    %8143 = vmatpush.bf16.msra.mxu0 %v4962
    %8144 = vmatpush.bf16.msra.mxu0 %v4954
    %8145 = vmatpush.bf16.msra.mxu0 %v4946
    %8146 = vmatmul.bf16.gmra.mxu0 %v928
    %v8147 = vpop.f32.mrf.mxu0
    %v8148 = vadd.f32 %v8099, %v8147
    %v8149 = vpop.f32.mrf.mxu0
    %v8150 = vadd.f32 %v8101, %v8149
    %8151 = vmatmul.bf16.gmra.mxu0 %v932
    %v8152 = vpop.f32.mrf.mxu0
    %v8153 = vadd.f32 %v8104, %v8152
    %v8154 = vpop.f32.mrf.mxu0
    %v8155 = vadd.f32 %v8106, %v8154
    %8156 = vmatmul.bf16.gmra.mxu0 %v936
    %v8157 = vpop.f32.mrf.mxu0
    %v8158 = vadd.f32 %v8109, %v8157
    %v8159 = vpop.f32.mrf.mxu0
    %v8160 = vadd.f32 %v8111, %v8159
    %8161 = vmatmul.bf16.gmra.mxu0 %v940
    %v8162 = vpop.f32.mrf.mxu0
    %v8163 = vadd.f32 %v8114, %v8162
    %v8164 = vpop.f32.mrf.mxu0
    %v8165 = vadd.f32 %v8116, %v8164
    %8166 = vmatmul.bf16.gmra.mxu0 %v944
    %v8167 = vpop.f32.mrf.mxu0
    %v8168 = vadd.f32 %v8119, %v8167
    %v8169 = vpop.f32.mrf.mxu0
    %v8170 = vadd.f32 %v8121, %v8169
    %8171 = vmatmul.bf16.gmra.mxu0 %v948
    %v8172 = vpop.f32.mrf.mxu0
    %v8173 = vadd.f32 %v8124, %v8172
    %v8174 = vpop.f32.mrf.mxu0
    %v8175 = vadd.f32 %v8126, %v8174
    %8176 = vmatmul.bf16.gmra.mxu0 %v952
    %v8177 = vpop.f32.mrf.mxu0
    %v8178 = vadd.f32 %v8129, %v8177
    %v8179 = vpop.f32.mrf.mxu0
    %v8180 = vadd.f32 %v8131, %v8179
    %8181 = vmatmul.bf16.gmra.mxu0 %v956
    %v8182 = vpop.f32.mrf.mxu0
    %v8183 = vadd.f32 %v8134, %v8182
    %v8184 = vpop.f32.mrf.mxu0
    %v8185 = vadd.f32 %v8136, %v8184
    %8186 = vdwg.mxu0
    %8187 = vmatpush.bf16.msra.mxu0 %v5066
    %8188 = vmatpush.bf16.msra.mxu0 %v5058
    %8189 = vmatpush.bf16.msra.mxu0 %v5050
    %8190 = vmatpush.bf16.msra.mxu0 %v5042
    %8191 = vmatpush.bf16.msra.mxu0 %v5034
    %8192 = vmatpush.bf16.msra.mxu0 %v5026
    %8193 = vmatpush.bf16.msra.mxu0 %v5018
    %8194 = vmatpush.bf16.msra.mxu0 %v5010
    %8195 = vmatmul.bf16.gmra.mxu0 %v1341
    %v8196 = vpop.f32.mrf.mxu0
    %v8197 = vadd.f32 %v8148, %v8196
    %v8198 = vpop.f32.mrf.mxu0
    %v8199 = vadd.f32 %v8150, %v8198
    %8200 = vmatmul.bf16.gmra.mxu0 %v1345
    %v8201 = vpop.f32.mrf.mxu0
    %v8202 = vadd.f32 %v8153, %v8201
    %v8203 = vpop.f32.mrf.mxu0
    %v8204 = vadd.f32 %v8155, %v8203
    %8205 = vmatmul.bf16.gmra.mxu0 %v1349
    %v8206 = vpop.f32.mrf.mxu0
    %v8207 = vadd.f32 %v8158, %v8206
    %v8208 = vpop.f32.mrf.mxu0
    %v8209 = vadd.f32 %v8160, %v8208
    %8210 = vmatmul.bf16.gmra.mxu0 %v1353
    %v8211 = vpop.f32.mrf.mxu0
    %v8212 = vadd.f32 %v8163, %v8211
    %v8213 = vpop.f32.mrf.mxu0
    %v8214 = vadd.f32 %v8165, %v8213
    %8215 = vmatmul.bf16.gmra.mxu0 %v1357
    %v8216 = vpop.f32.mrf.mxu0
    %v8217 = vadd.f32 %v8168, %v8216
    %v8218 = vpop.f32.mrf.mxu0
    %v8219 = vadd.f32 %v8170, %v8218
    %8220 = vmatmul.bf16.gmra.mxu0 %v1361
    %v8221 = vpop.f32.mrf.mxu0
    %v8222 = vadd.f32 %v8173, %v8221
    %v8223 = vpop.f32.mrf.mxu0
    %v8224 = vadd.f32 %v8175, %v8223
    %8225 = vmatmul.bf16.gmra.mxu0 %v1365
    %v8226 = vpop.f32.mrf.mxu0
    %v8227 = vadd.f32 %v8178, %v8226
    %v8228 = vpop.f32.mrf.mxu0
    %v8229 = vadd.f32 %v8180, %v8228
    %8230 = vmatmul.bf16.gmra.mxu0 %v1369
    %v8231 = vpop.f32.mrf.mxu0
    %v8232 = vadd.f32 %v8183, %v8231
    %v8233 = vpop.f32.mrf.mxu0
    %v8234 = vadd.f32 %v8185, %v8233
    %8235 = vdwg.mxu0
    %8236 = vmatpush.bf16.msra.mxu0 %v5130
    %8237 = vmatpush.bf16.msra.mxu0 %v5122
    %8238 = vmatpush.bf16.msra.mxu0 %v5114
    %8239 = vmatpush.bf16.msra.mxu0 %v5106
    %8240 = vmatpush.bf16.msra.mxu0 %v5098
    %8241 = vmatpush.bf16.msra.mxu0 %v5090
    %8242 = vmatpush.bf16.msra.mxu0 %v5082
    %8243 = vmatpush.bf16.msra.mxu0 %v5074
    %8244 = vmatmul.bf16.gmra.mxu0 %v1342
    %v8245 = vpop.f32.mrf.mxu0
    %v8246 = vadd.f32 %v8197, %v8245
    %v8247 = vpop.f32.mrf.mxu0
    %v8248 = vadd.f32 %v8199, %v8247
    %8249 = vmatmul.bf16.gmra.mxu0 %v1346
    %v8250 = vpop.f32.mrf.mxu0
    %v8251 = vadd.f32 %v8202, %v8250
    %v8252 = vpop.f32.mrf.mxu0
    %v8253 = vadd.f32 %v8204, %v8252
    %8254 = vmatmul.bf16.gmra.mxu0 %v1350
    %v8255 = vpop.f32.mrf.mxu0
    %v8256 = vadd.f32 %v8207, %v8255
    %v8257 = vpop.f32.mrf.mxu0
    %v8258 = vadd.f32 %v8209, %v8257
    %8259 = vmatmul.bf16.gmra.mxu0 %v1354
    %v8260 = vpop.f32.mrf.mxu0
    %v8261 = vadd.f32 %v8212, %v8260
    %v8262 = vpop.f32.mrf.mxu0
    %v8263 = vadd.f32 %v8214, %v8262
    %8264 = vmatmul.bf16.gmra.mxu0 %v1358
    %v8265 = vpop.f32.mrf.mxu0
    %v8266 = vadd.f32 %v8217, %v8265
    %v8267 = vpop.f32.mrf.mxu0
    %v8268 = vadd.f32 %v8219, %v8267
    %8269 = vmatmul.bf16.gmra.mxu0 %v1362
    %v8270 = vpop.f32.mrf.mxu0
    %v8271 = vadd.f32 %v8222, %v8270
    %v8272 = vpop.f32.mrf.mxu0
    %v8273 = vadd.f32 %v8224, %v8272
    %8274 = vmatmul.bf16.gmra.mxu0 %v1366
    %v8275 = vpop.f32.mrf.mxu0
    %v8276 = vadd.f32 %v8227, %v8275
    %v8277 = vpop.f32.mrf.mxu0
    %v8278 = vadd.f32 %v8229, %v8277
    %8279 = vmatmul.bf16.gmra.mxu0 %v1370
    %v8280 = vpop.f32.mrf.mxu0
    %v8281 = vadd.f32 %v8232, %v8280
    %v8282 = vpop.f32.mrf.mxu0
    %v8283 = vadd.f32 %v8234, %v8282
    %8284 = vdwg.mxu0
    %8285 = vmatpush.bf16.msra.mxu0 %v5194
    %8286 = vmatpush.bf16.msra.mxu0 %v5186
    %8287 = vmatpush.bf16.msra.mxu0 %v5178
    %8288 = vmatpush.bf16.msra.mxu0 %v5170
    %8289 = vmatpush.bf16.msra.mxu0 %v5162
    %8290 = vmatpush.bf16.msra.mxu0 %v5154
    %8291 = vmatpush.bf16.msra.mxu0 %v5146
    %8292 = vmatpush.bf16.msra.mxu0 %v5138
    %8293 = vmatmul.bf16.gmra.mxu0 %v1343
    %v8294 = vpop.f32.mrf.mxu0
    %v8295 = vadd.f32 %v8246, %v8294
    %v8296 = vpop.f32.mrf.mxu0
    %v8297 = vadd.f32 %v8248, %v8296
    %8298 = vmatmul.bf16.gmra.mxu0 %v1347
    %v8299 = vpop.f32.mrf.mxu0
    %v8300 = vadd.f32 %v8251, %v8299
    %v8301 = vpop.f32.mrf.mxu0
    %v8302 = vadd.f32 %v8253, %v8301
    %8303 = vmatmul.bf16.gmra.mxu0 %v1351
    %v8304 = vpop.f32.mrf.mxu0
    %v8305 = vadd.f32 %v8256, %v8304
    %v8306 = vpop.f32.mrf.mxu0
    %v8307 = vadd.f32 %v8258, %v8306
    %8308 = vmatmul.bf16.gmra.mxu0 %v1355
    %v8309 = vpop.f32.mrf.mxu0
    %v8310 = vadd.f32 %v8261, %v8309
    %v8311 = vpop.f32.mrf.mxu0
    %v8312 = vadd.f32 %v8263, %v8311
    %8313 = vmatmul.bf16.gmra.mxu0 %v1359
    %v8314 = vpop.f32.mrf.mxu0
    %v8315 = vadd.f32 %v8266, %v8314
    %v8316 = vpop.f32.mrf.mxu0
    %v8317 = vadd.f32 %v8268, %v8316
    %8318 = vmatmul.bf16.gmra.mxu0 %v1363
    %v8319 = vpop.f32.mrf.mxu0
    %v8320 = vadd.f32 %v8271, %v8319
    %v8321 = vpop.f32.mrf.mxu0
    %v8322 = vadd.f32 %v8273, %v8321
    %8323 = vmatmul.bf16.gmra.mxu0 %v1367
    %v8324 = vpop.f32.mrf.mxu0
    %v8325 = vadd.f32 %v8276, %v8324
    %v8326 = vpop.f32.mrf.mxu0
    %v8327 = vadd.f32 %v8278, %v8326
    %8328 = vmatmul.bf16.gmra.mxu0 %v1371
    %v8329 = vpop.f32.mrf.mxu0
    %v8330 = vadd.f32 %v8281, %v8329
    %v8331 = vpop.f32.mrf.mxu0
    %v8332 = vadd.f32 %v8283, %v8331
    %8333 = vdwg.mxu0
    %8334 = vmatpush.bf16.msra.mxu0 %v5258
    %8335 = vmatpush.bf16.msra.mxu0 %v5250
    %8336 = vmatpush.bf16.msra.mxu0 %v5242
    %8337 = vmatpush.bf16.msra.mxu0 %v5234
    %8338 = vmatpush.bf16.msra.mxu0 %v5226
    %8339 = vmatpush.bf16.msra.mxu0 %v5218
    %8340 = vmatpush.bf16.msra.mxu0 %v5210
    %8341 = vmatpush.bf16.msra.mxu0 %v5202
    %8342 = vmatmul.bf16.gmra.mxu0 %v1344
    %v8343 = vpop.f32.mrf.mxu0
    %v8344 = vadd.f32 %v8295, %v8343
    %v8345 = vpop.f32.mrf.mxu0
    %v8346 = vadd.f32 %v8297, %v8345
    %8347 = vmatmul.bf16.gmra.mxu0 %v1348
    %v8348 = vpop.f32.mrf.mxu0
    %v8349 = vadd.f32 %v8300, %v8348
    %v8350 = vpop.f32.mrf.mxu0
    %v8351 = vadd.f32 %v8302, %v8350
    %8352 = vmatmul.bf16.gmra.mxu0 %v1352
    %v8353 = vpop.f32.mrf.mxu0
    %v8354 = vadd.f32 %v8305, %v8353
    %v8355 = vpop.f32.mrf.mxu0
    %v8356 = vadd.f32 %v8307, %v8355
    %8357 = vmatmul.bf16.gmra.mxu0 %v1356
    %v8358 = vpop.f32.mrf.mxu0
    %v8359 = vadd.f32 %v8310, %v8358
    %v8360 = vpop.f32.mrf.mxu0
    %v8361 = vadd.f32 %v8312, %v8360
    %8362 = vmatmul.bf16.gmra.mxu0 %v1360
    %v8363 = vpop.f32.mrf.mxu0
    %v8364 = vadd.f32 %v8315, %v8363
    %v8365 = vpop.f32.mrf.mxu0
    %v8366 = vadd.f32 %v8317, %v8365
    %8367 = vmatmul.bf16.gmra.mxu0 %v1364
    %v8368 = vpop.f32.mrf.mxu0
    %v8369 = vadd.f32 %v8320, %v8368
    %v8370 = vpop.f32.mrf.mxu0
    %v8371 = vadd.f32 %v8322, %v8370
    %8372 = vmatmul.bf16.gmra.mxu0 %v1368
    %v8373 = vpop.f32.mrf.mxu0
    %v8374 = vadd.f32 %v8325, %v8373
    %v8375 = vpop.f32.mrf.mxu0
    %v8376 = vadd.f32 %v8327, %v8375
    %8377 = vmatmul.bf16.gmra.mxu0 %v1372
    %v8378 = vpop.f32.mrf.mxu0
    %v8379 = vadd.f32 %v8330, %v8378
    %v8380 = vpop.f32.mrf.mxu0
    %v8381 = vadd.f32 %v8332, %v8380
    %8382 = vdwg.mxu0
    %8383 = vmatpush.bf16.msra.mxu0 %v4555
    %8384 = vmatpush.bf16.msra.mxu0 %v4547
    %8385 = vmatpush.bf16.msra.mxu0 %v4539
    %8386 = vmatpush.bf16.msra.mxu0 %v4531
    %8387 = vmatpush.bf16.msra.mxu0 %v4523
    %8388 = vmatpush.bf16.msra.mxu0 %v4515
    %8389 = vmatpush.bf16.msra.mxu0 %v4507
    %8390 = vmatpush.bf16.msra.mxu0 %v4499
    %8391 = vmatmul.bf16.gmra.mxu0 %v1213
    %v8392 = vpop.f32.mrf.mxu0
    %v8393 = vadd.f32 %v2179, %v8392
    %v8394 = vpop.f32.mrf.mxu0
    %v8395 = vadd.f32 %v2179, %v8394
    %8396 = vmatmul.bf16.gmra.mxu0 %v1217
    %v8397 = vpop.f32.mrf.mxu0
    %v8398 = vadd.f32 %v2179, %v8397
    %v8399 = vpop.f32.mrf.mxu0
    %v8400 = vadd.f32 %v2179, %v8399
    %8401 = vmatmul.bf16.gmra.mxu0 %v1221
    %v8402 = vpop.f32.mrf.mxu0
    %v8403 = vadd.f32 %v2179, %v8402
    %v8404 = vpop.f32.mrf.mxu0
    %v8405 = vadd.f32 %v2179, %v8404
    %8406 = vmatmul.bf16.gmra.mxu0 %v1225
    %v8407 = vpop.f32.mrf.mxu0
    %v8408 = vadd.f32 %v2179, %v8407
    %v8409 = vpop.f32.mrf.mxu0
    %v8410 = vadd.f32 %v2179, %v8409
    %8411 = vmatmul.bf16.gmra.mxu0 %v1229
    %v8412 = vpop.f32.mrf.mxu0
    %v8413 = vadd.f32 %v2179, %v8412
    %v8414 = vpop.f32.mrf.mxu0
    %v8415 = vadd.f32 %v2179, %v8414
    %8416 = vmatmul.bf16.gmra.mxu0 %v1233
    %v8417 = vpop.f32.mrf.mxu0
    %v8418 = vadd.f32 %v2179, %v8417
    %v8419 = vpop.f32.mrf.mxu0
    %v8420 = vadd.f32 %v2179, %v8419
    %8421 = vmatmul.bf16.gmra.mxu0 %v1237
    %v8422 = vpop.f32.mrf.mxu0
    %v8423 = vadd.f32 %v2179, %v8422
    %v8424 = vpop.f32.mrf.mxu0
    %v8425 = vadd.f32 %v2179, %v8424
    %8426 = vmatmul.bf16.gmra.mxu0 %v1241
    %v8427 = vpop.f32.mrf.mxu0
    %v8428 = vadd.f32 %v2179, %v8427
    %v8429 = vpop.f32.mrf.mxu0
    %v8430 = vadd.f32 %v2179, %v8429
    %8431 = vdwg.mxu0
    %8432 = vmatpush.bf16.msra.mxu0 %v4619
    %8433 = vmatpush.bf16.msra.mxu0 %v4611
    %8434 = vmatpush.bf16.msra.mxu0 %v4603
    %8435 = vmatpush.bf16.msra.mxu0 %v4595
    %8436 = vmatpush.bf16.msra.mxu0 %v4587
    %8437 = vmatpush.bf16.msra.mxu0 %v4579
    %8438 = vmatpush.bf16.msra.mxu0 %v4571
    %8439 = vmatpush.bf16.msra.mxu0 %v4563
    %8440 = vmatmul.bf16.gmra.mxu0 %v1214
    %v8441 = vpop.f32.mrf.mxu0
    %v8442 = vadd.f32 %v8393, %v8441
    %v8443 = vpop.f32.mrf.mxu0
    %v8444 = vadd.f32 %v8395, %v8443
    %8445 = vmatmul.bf16.gmra.mxu0 %v1218
    %v8446 = vpop.f32.mrf.mxu0
    %v8447 = vadd.f32 %v8398, %v8446
    %v8448 = vpop.f32.mrf.mxu0
    %v8449 = vadd.f32 %v8400, %v8448
    %8450 = vmatmul.bf16.gmra.mxu0 %v1222
    %v8451 = vpop.f32.mrf.mxu0
    %v8452 = vadd.f32 %v8403, %v8451
    %v8453 = vpop.f32.mrf.mxu0
    %v8454 = vadd.f32 %v8405, %v8453
    %8455 = vmatmul.bf16.gmra.mxu0 %v1226
    %v8456 = vpop.f32.mrf.mxu0
    %v8457 = vadd.f32 %v8408, %v8456
    %v8458 = vpop.f32.mrf.mxu0
    %v8459 = vadd.f32 %v8410, %v8458
    %8460 = vmatmul.bf16.gmra.mxu0 %v1230
    %v8461 = vpop.f32.mrf.mxu0
    %v8462 = vadd.f32 %v8413, %v8461
    %v8463 = vpop.f32.mrf.mxu0
    %v8464 = vadd.f32 %v8415, %v8463
    %8465 = vmatmul.bf16.gmra.mxu0 %v1234
    %v8466 = vpop.f32.mrf.mxu0
    %v8467 = vadd.f32 %v8418, %v8466
    %v8468 = vpop.f32.mrf.mxu0
    %v8469 = vadd.f32 %v8420, %v8468
    %8470 = vmatmul.bf16.gmra.mxu0 %v1238
    %v8471 = vpop.f32.mrf.mxu0
    %v8472 = vadd.f32 %v8423, %v8471
    %v8473 = vpop.f32.mrf.mxu0
    %v8474 = vadd.f32 %v8425, %v8473
    %8475 = vmatmul.bf16.gmra.mxu0 %v1242
    %v8476 = vpop.f32.mrf.mxu0
    %v8477 = vadd.f32 %v8428, %v8476
    %v8478 = vpop.f32.mrf.mxu0
    %v8479 = vadd.f32 %v8430, %v8478
    %8480 = vdwg.mxu0
    %8481 = vmatpush.bf16.msra.mxu0 %v4683
    %8482 = vmatpush.bf16.msra.mxu0 %v4675
    %8483 = vmatpush.bf16.msra.mxu0 %v4667
    %8484 = vmatpush.bf16.msra.mxu0 %v4659
    %8485 = vmatpush.bf16.msra.mxu0 %v4651
    %8486 = vmatpush.bf16.msra.mxu0 %v4643
    %8487 = vmatpush.bf16.msra.mxu0 %v4635
    %8488 = vmatpush.bf16.msra.mxu0 %v4627
    %8489 = vmatmul.bf16.gmra.mxu0 %v1215
    %v8490 = vpop.f32.mrf.mxu0
    %v8491 = vadd.f32 %v8442, %v8490
    %v8492 = vpop.f32.mrf.mxu0
    %v8493 = vadd.f32 %v8444, %v8492
    %8494 = vmatmul.bf16.gmra.mxu0 %v1219
    %v8495 = vpop.f32.mrf.mxu0
    %v8496 = vadd.f32 %v8447, %v8495
    %v8497 = vpop.f32.mrf.mxu0
    %v8498 = vadd.f32 %v8449, %v8497
    %8499 = vmatmul.bf16.gmra.mxu0 %v1223
    %v8500 = vpop.f32.mrf.mxu0
    %v8501 = vadd.f32 %v8452, %v8500
    %v8502 = vpop.f32.mrf.mxu0
    %v8503 = vadd.f32 %v8454, %v8502
    %8504 = vmatmul.bf16.gmra.mxu0 %v1227
    %v8505 = vpop.f32.mrf.mxu0
    %v8506 = vadd.f32 %v8457, %v8505
    %v8507 = vpop.f32.mrf.mxu0
    %v8508 = vadd.f32 %v8459, %v8507
    %8509 = vmatmul.bf16.gmra.mxu0 %v1231
    %v8510 = vpop.f32.mrf.mxu0
    %v8511 = vadd.f32 %v8462, %v8510
    %v8512 = vpop.f32.mrf.mxu0
    %v8513 = vadd.f32 %v8464, %v8512
    %8514 = vmatmul.bf16.gmra.mxu0 %v1235
    %v8515 = vpop.f32.mrf.mxu0
    %v8516 = vadd.f32 %v8467, %v8515
    %v8517 = vpop.f32.mrf.mxu0
    %v8518 = vadd.f32 %v8469, %v8517
    %8519 = vmatmul.bf16.gmra.mxu0 %v1239
    %v8520 = vpop.f32.mrf.mxu0
    %v8521 = vadd.f32 %v8472, %v8520
    %v8522 = vpop.f32.mrf.mxu0
    %v8523 = vadd.f32 %v8474, %v8522
    %8524 = vmatmul.bf16.gmra.mxu0 %v1243
    %v8525 = vpop.f32.mrf.mxu0
    %v8526 = vadd.f32 %v8477, %v8525
    %v8527 = vpop.f32.mrf.mxu0
    %v8528 = vadd.f32 %v8479, %v8527
    %8529 = vdwg.mxu0
    %8530 = vmatpush.bf16.msra.mxu0 %v4747
    %8531 = vmatpush.bf16.msra.mxu0 %v4739
    %8532 = vmatpush.bf16.msra.mxu0 %v4731
    %8533 = vmatpush.bf16.msra.mxu0 %v4723
    %8534 = vmatpush.bf16.msra.mxu0 %v4715
    %8535 = vmatpush.bf16.msra.mxu0 %v4707
    %8536 = vmatpush.bf16.msra.mxu0 %v4699
    %8537 = vmatpush.bf16.msra.mxu0 %v4691
    %8538 = vmatmul.bf16.gmra.mxu0 %v1216
    %v8539 = vpop.f32.mrf.mxu0
    %v8540 = vadd.f32 %v8491, %v8539
    %v8541 = vpop.f32.mrf.mxu0
    %v8542 = vadd.f32 %v8493, %v8541
    %8543 = vmatmul.bf16.gmra.mxu0 %v1220
    %v8544 = vpop.f32.mrf.mxu0
    %v8545 = vadd.f32 %v8496, %v8544
    %v8546 = vpop.f32.mrf.mxu0
    %v8547 = vadd.f32 %v8498, %v8546
    %8548 = vmatmul.bf16.gmra.mxu0 %v1224
    %v8549 = vpop.f32.mrf.mxu0
    %v8550 = vadd.f32 %v8501, %v8549
    %v8551 = vpop.f32.mrf.mxu0
    %v8552 = vadd.f32 %v8503, %v8551
    %8553 = vmatmul.bf16.gmra.mxu0 %v1228
    %v8554 = vpop.f32.mrf.mxu0
    %v8555 = vadd.f32 %v8506, %v8554
    %v8556 = vpop.f32.mrf.mxu0
    %v8557 = vadd.f32 %v8508, %v8556
    %8558 = vmatmul.bf16.gmra.mxu0 %v1232
    %v8559 = vpop.f32.mrf.mxu0
    %v8560 = vadd.f32 %v8511, %v8559
    %v8561 = vpop.f32.mrf.mxu0
    %v8562 = vadd.f32 %v8513, %v8561
    %8563 = vmatmul.bf16.gmra.mxu0 %v1236
    %v8564 = vpop.f32.mrf.mxu0
    %v8565 = vadd.f32 %v8516, %v8564
    %v8566 = vpop.f32.mrf.mxu0
    %v8567 = vadd.f32 %v8518, %v8566
    %8568 = vmatmul.bf16.gmra.mxu0 %v1240
    %v8569 = vpop.f32.mrf.mxu0
    %v8570 = vadd.f32 %v8521, %v8569
    %v8571 = vpop.f32.mrf.mxu0
    %v8572 = vadd.f32 %v8523, %v8571
    %8573 = vmatmul.bf16.gmra.mxu0 %v1244
    %v8574 = vpop.f32.mrf.mxu0
    %v8575 = vadd.f32 %v8526, %v8574
    %v8576 = vpop.f32.mrf.mxu0
    %v8577 = vadd.f32 %v8528, %v8576
    %8578 = vdwg.mxu0
    %8579 = vmatpush.bf16.msra.mxu0 %v4811
    %8580 = vmatpush.bf16.msra.mxu0 %v4803
    %8581 = vmatpush.bf16.msra.mxu0 %v4795
    %8582 = vmatpush.bf16.msra.mxu0 %v4787
    %8583 = vmatpush.bf16.msra.mxu0 %v4779
    %8584 = vmatpush.bf16.msra.mxu0 %v4771
    %8585 = vmatpush.bf16.msra.mxu0 %v4763
    %8586 = vmatpush.bf16.msra.mxu0 %v4755
    %8587 = vmatmul.bf16.gmra.mxu0 %v925
    %v8588 = vpop.f32.mrf.mxu0
    %v8589 = vadd.f32 %v8540, %v8588
    %v8590 = vpop.f32.mrf.mxu0
    %v8591 = vadd.f32 %v8542, %v8590
    %8592 = vmatmul.bf16.gmra.mxu0 %v929
    %v8593 = vpop.f32.mrf.mxu0
    %v8594 = vadd.f32 %v8545, %v8593
    %v8595 = vpop.f32.mrf.mxu0
    %v8596 = vadd.f32 %v8547, %v8595
    %8597 = vmatmul.bf16.gmra.mxu0 %v933
    %v8598 = vpop.f32.mrf.mxu0
    %v8599 = vadd.f32 %v8550, %v8598
    %v8600 = vpop.f32.mrf.mxu0
    %v8601 = vadd.f32 %v8552, %v8600
    %8602 = vmatmul.bf16.gmra.mxu0 %v937
    %v8603 = vpop.f32.mrf.mxu0
    %v8604 = vadd.f32 %v8555, %v8603
    %v8605 = vpop.f32.mrf.mxu0
    %v8606 = vadd.f32 %v8557, %v8605
    %8607 = vmatmul.bf16.gmra.mxu0 %v941
    %v8608 = vpop.f32.mrf.mxu0
    %v8609 = vadd.f32 %v8560, %v8608
    %v8610 = vpop.f32.mrf.mxu0
    %v8611 = vadd.f32 %v8562, %v8610
    %8612 = vmatmul.bf16.gmra.mxu0 %v945
    %v8613 = vpop.f32.mrf.mxu0
    %v8614 = vadd.f32 %v8565, %v8613
    %v8615 = vpop.f32.mrf.mxu0
    %v8616 = vadd.f32 %v8567, %v8615
    %8617 = vmatmul.bf16.gmra.mxu0 %v949
    %v8618 = vpop.f32.mrf.mxu0
    %v8619 = vadd.f32 %v8570, %v8618
    %v8620 = vpop.f32.mrf.mxu0
    %v8621 = vadd.f32 %v8572, %v8620
    %8622 = vmatmul.bf16.gmra.mxu0 %v953
    %v8623 = vpop.f32.mrf.mxu0
    %v8624 = vadd.f32 %v8575, %v8623
    %v8625 = vpop.f32.mrf.mxu0
    %v8626 = vadd.f32 %v8577, %v8625
    %8627 = vdwg.mxu0
    %8628 = vmatpush.bf16.msra.mxu0 %v4875
    %8629 = vmatpush.bf16.msra.mxu0 %v4867
    %8630 = vmatpush.bf16.msra.mxu0 %v4859
    %8631 = vmatpush.bf16.msra.mxu0 %v4851
    %8632 = vmatpush.bf16.msra.mxu0 %v4843
    %8633 = vmatpush.bf16.msra.mxu0 %v4835
    %8634 = vmatpush.bf16.msra.mxu0 %v4827
    %8635 = vmatpush.bf16.msra.mxu0 %v4819
    %8636 = vmatmul.bf16.gmra.mxu0 %v926
    %v8637 = vpop.f32.mrf.mxu0
    %v8638 = vadd.f32 %v8589, %v8637
    %v8639 = vpop.f32.mrf.mxu0
    %v8640 = vadd.f32 %v8591, %v8639
    %8641 = vmatmul.bf16.gmra.mxu0 %v930
    %v8642 = vpop.f32.mrf.mxu0
    %v8643 = vadd.f32 %v8594, %v8642
    %v8644 = vpop.f32.mrf.mxu0
    %v8645 = vadd.f32 %v8596, %v8644
    %8646 = vmatmul.bf16.gmra.mxu0 %v934
    %v8647 = vpop.f32.mrf.mxu0
    %v8648 = vadd.f32 %v8599, %v8647
    %v8649 = vpop.f32.mrf.mxu0
    %v8650 = vadd.f32 %v8601, %v8649
    %8651 = vmatmul.bf16.gmra.mxu0 %v938
    %v8652 = vpop.f32.mrf.mxu0
    %v8653 = vadd.f32 %v8604, %v8652
    %v8654 = vpop.f32.mrf.mxu0
    %v8655 = vadd.f32 %v8606, %v8654
    %8656 = vmatmul.bf16.gmra.mxu0 %v942
    %v8657 = vpop.f32.mrf.mxu0
    %v8658 = vadd.f32 %v8609, %v8657
    %v8659 = vpop.f32.mrf.mxu0
    %v8660 = vadd.f32 %v8611, %v8659
    %8661 = vmatmul.bf16.gmra.mxu0 %v946
    %v8662 = vpop.f32.mrf.mxu0
    %v8663 = vadd.f32 %v8614, %v8662
    %v8664 = vpop.f32.mrf.mxu0
    %v8665 = vadd.f32 %v8616, %v8664
    %8666 = vmatmul.bf16.gmra.mxu0 %v950
    %v8667 = vpop.f32.mrf.mxu0
    %v8668 = vadd.f32 %v8619, %v8667
    %v8669 = vpop.f32.mrf.mxu0
    %v8670 = vadd.f32 %v8621, %v8669
    %8671 = vmatmul.bf16.gmra.mxu0 %v954
    %v8672 = vpop.f32.mrf.mxu0
    %v8673 = vadd.f32 %v8624, %v8672
    %v8674 = vpop.f32.mrf.mxu0
    %v8675 = vadd.f32 %v8626, %v8674
    %8676 = vdwg.mxu0
    %8677 = vmatpush.bf16.msra.mxu0 %v4939
    %8678 = vmatpush.bf16.msra.mxu0 %v4931
    %8679 = vmatpush.bf16.msra.mxu0 %v4923
    %8680 = vmatpush.bf16.msra.mxu0 %v4915
    %8681 = vmatpush.bf16.msra.mxu0 %v4907
    %8682 = vmatpush.bf16.msra.mxu0 %v4899
    %8683 = vmatpush.bf16.msra.mxu0 %v4891
    %8684 = vmatpush.bf16.msra.mxu0 %v4883
    %8685 = vmatmul.bf16.gmra.mxu0 %v927
    %v8686 = vpop.f32.mrf.mxu0
    %v8687 = vadd.f32 %v8638, %v8686
    %v8688 = vpop.f32.mrf.mxu0
    %v8689 = vadd.f32 %v8640, %v8688
    %8690 = vmatmul.bf16.gmra.mxu0 %v931
    %v8691 = vpop.f32.mrf.mxu0
    %v8692 = vadd.f32 %v8643, %v8691
    %v8693 = vpop.f32.mrf.mxu0
    %v8694 = vadd.f32 %v8645, %v8693
    %8695 = vmatmul.bf16.gmra.mxu0 %v935
    %v8696 = vpop.f32.mrf.mxu0
    %v8697 = vadd.f32 %v8648, %v8696
    %v8698 = vpop.f32.mrf.mxu0
    %v8699 = vadd.f32 %v8650, %v8698
    %8700 = vmatmul.bf16.gmra.mxu0 %v939
    %v8701 = vpop.f32.mrf.mxu0
    %v8702 = vadd.f32 %v8653, %v8701
    %v8703 = vpop.f32.mrf.mxu0
    %v8704 = vadd.f32 %v8655, %v8703
    %8705 = vmatmul.bf16.gmra.mxu0 %v943
    %v8706 = vpop.f32.mrf.mxu0
    %v8707 = vadd.f32 %v8658, %v8706
    %v8708 = vpop.f32.mrf.mxu0
    %v8709 = vadd.f32 %v8660, %v8708
    %8710 = vmatmul.bf16.gmra.mxu0 %v947
    %v8711 = vpop.f32.mrf.mxu0
    %v8712 = vadd.f32 %v8663, %v8711
    %v8713 = vpop.f32.mrf.mxu0
    %v8714 = vadd.f32 %v8665, %v8713
    %8715 = vmatmul.bf16.gmra.mxu0 %v951
    %v8716 = vpop.f32.mrf.mxu0
    %v8717 = vadd.f32 %v8668, %v8716
    %v8718 = vpop.f32.mrf.mxu0
    %v8719 = vadd.f32 %v8670, %v8718
    %8720 = vmatmul.bf16.gmra.mxu0 %v955
    %v8721 = vpop.f32.mrf.mxu0
    %v8722 = vadd.f32 %v8673, %v8721
    %v8723 = vpop.f32.mrf.mxu0
    %v8724 = vadd.f32 %v8675, %v8723
    %8725 = vdwg.mxu0
    %8726 = vmatpush.bf16.msra.mxu0 %v5003
    %8727 = vmatpush.bf16.msra.mxu0 %v4995
    %8728 = vmatpush.bf16.msra.mxu0 %v4987
    %8729 = vmatpush.bf16.msra.mxu0 %v4979
    %8730 = vmatpush.bf16.msra.mxu0 %v4971
    %8731 = vmatpush.bf16.msra.mxu0 %v4963
    %8732 = vmatpush.bf16.msra.mxu0 %v4955
    %8733 = vmatpush.bf16.msra.mxu0 %v4947
    %8734 = vmatmul.bf16.gmra.mxu0 %v928
    %v8735 = vpop.f32.mrf.mxu0
    %v8736 = vadd.f32 %v8687, %v8735
    %v8737 = vpop.f32.mrf.mxu0
    %v8738 = vadd.f32 %v8689, %v8737
    %8739 = vmatmul.bf16.gmra.mxu0 %v932
    %v8740 = vpop.f32.mrf.mxu0
    %v8741 = vadd.f32 %v8692, %v8740
    %v8742 = vpop.f32.mrf.mxu0
    %v8743 = vadd.f32 %v8694, %v8742
    %8744 = vmatmul.bf16.gmra.mxu0 %v936
    %v8745 = vpop.f32.mrf.mxu0
    %v8746 = vadd.f32 %v8697, %v8745
    %v8747 = vpop.f32.mrf.mxu0
    %v8748 = vadd.f32 %v8699, %v8747
    %8749 = vmatmul.bf16.gmra.mxu0 %v940
    %v8750 = vpop.f32.mrf.mxu0
    %v8751 = vadd.f32 %v8702, %v8750
    %v8752 = vpop.f32.mrf.mxu0
    %v8753 = vadd.f32 %v8704, %v8752
    %8754 = vmatmul.bf16.gmra.mxu0 %v944
    %v8755 = vpop.f32.mrf.mxu0
    %v8756 = vadd.f32 %v8707, %v8755
    %v8757 = vpop.f32.mrf.mxu0
    %v8758 = vadd.f32 %v8709, %v8757
    %8759 = vmatmul.bf16.gmra.mxu0 %v948
    %v8760 = vpop.f32.mrf.mxu0
    %v8761 = vadd.f32 %v8712, %v8760
    %v8762 = vpop.f32.mrf.mxu0
    %v8763 = vadd.f32 %v8714, %v8762
    %8764 = vmatmul.bf16.gmra.mxu0 %v952
    %v8765 = vpop.f32.mrf.mxu0
    %v8766 = vadd.f32 %v8717, %v8765
    %v8767 = vpop.f32.mrf.mxu0
    %v8768 = vadd.f32 %v8719, %v8767
    %8769 = vmatmul.bf16.gmra.mxu0 %v956
    %v8770 = vpop.f32.mrf.mxu0
    %v8771 = vadd.f32 %v8722, %v8770
    %v8772 = vpop.f32.mrf.mxu0
    %v8773 = vadd.f32 %v8724, %v8772
    %8774 = vdwg.mxu0
    %8775 = vmatpush.bf16.msra.mxu0 %v5067
    %8776 = vmatpush.bf16.msra.mxu0 %v5059
    %8777 = vmatpush.bf16.msra.mxu0 %v5051
    %8778 = vmatpush.bf16.msra.mxu0 %v5043
    %8779 = vmatpush.bf16.msra.mxu0 %v5035
    %8780 = vmatpush.bf16.msra.mxu0 %v5027
    %8781 = vmatpush.bf16.msra.mxu0 %v5019
    %8782 = vmatpush.bf16.msra.mxu0 %v5011
    %8783 = vmatmul.bf16.gmra.mxu0 %v1341
    %v8784 = vpop.f32.mrf.mxu0
    %v8785 = vadd.f32 %v8736, %v8784
    %v8786 = vpop.f32.mrf.mxu0
    %v8787 = vadd.f32 %v8738, %v8786
    %8788 = vmatmul.bf16.gmra.mxu0 %v1345
    %v8789 = vpop.f32.mrf.mxu0
    %v8790 = vadd.f32 %v8741, %v8789
    %v8791 = vpop.f32.mrf.mxu0
    %v8792 = vadd.f32 %v8743, %v8791
    %8793 = vmatmul.bf16.gmra.mxu0 %v1349
    %v8794 = vpop.f32.mrf.mxu0
    %v8795 = vadd.f32 %v8746, %v8794
    %v8796 = vpop.f32.mrf.mxu0
    %v8797 = vadd.f32 %v8748, %v8796
    %8798 = vmatmul.bf16.gmra.mxu0 %v1353
    %v8799 = vpop.f32.mrf.mxu0
    %v8800 = vadd.f32 %v8751, %v8799
    %v8801 = vpop.f32.mrf.mxu0
    %v8802 = vadd.f32 %v8753, %v8801
    %8803 = vmatmul.bf16.gmra.mxu0 %v1357
    %v8804 = vpop.f32.mrf.mxu0
    %v8805 = vadd.f32 %v8756, %v8804
    %v8806 = vpop.f32.mrf.mxu0
    %v8807 = vadd.f32 %v8758, %v8806
    %8808 = vmatmul.bf16.gmra.mxu0 %v1361
    %v8809 = vpop.f32.mrf.mxu0
    %v8810 = vadd.f32 %v8761, %v8809
    %v8811 = vpop.f32.mrf.mxu0
    %v8812 = vadd.f32 %v8763, %v8811
    %8813 = vmatmul.bf16.gmra.mxu0 %v1365
    %v8814 = vpop.f32.mrf.mxu0
    %v8815 = vadd.f32 %v8766, %v8814
    %v8816 = vpop.f32.mrf.mxu0
    %v8817 = vadd.f32 %v8768, %v8816
    %8818 = vmatmul.bf16.gmra.mxu0 %v1369
    %v8819 = vpop.f32.mrf.mxu0
    %v8820 = vadd.f32 %v8771, %v8819
    %v8821 = vpop.f32.mrf.mxu0
    %v8822 = vadd.f32 %v8773, %v8821
    %8823 = vdwg.mxu0
    %8824 = vmatpush.bf16.msra.mxu0 %v5131
    %8825 = vmatpush.bf16.msra.mxu0 %v5123
    %8826 = vmatpush.bf16.msra.mxu0 %v5115
    %8827 = vmatpush.bf16.msra.mxu0 %v5107
    %8828 = vmatpush.bf16.msra.mxu0 %v5099
    %8829 = vmatpush.bf16.msra.mxu0 %v5091
    %8830 = vmatpush.bf16.msra.mxu0 %v5083
    %8831 = vmatpush.bf16.msra.mxu0 %v5075
    %8832 = vmatmul.bf16.gmra.mxu0 %v1342
    %v8833 = vpop.f32.mrf.mxu0
    %v8834 = vadd.f32 %v8785, %v8833
    %v8835 = vpop.f32.mrf.mxu0
    %v8836 = vadd.f32 %v8787, %v8835
    %8837 = vmatmul.bf16.gmra.mxu0 %v1346
    %v8838 = vpop.f32.mrf.mxu0
    %v8839 = vadd.f32 %v8790, %v8838
    %v8840 = vpop.f32.mrf.mxu0
    %v8841 = vadd.f32 %v8792, %v8840
    %8842 = vmatmul.bf16.gmra.mxu0 %v1350
    %v8843 = vpop.f32.mrf.mxu0
    %v8844 = vadd.f32 %v8795, %v8843
    %v8845 = vpop.f32.mrf.mxu0
    %v8846 = vadd.f32 %v8797, %v8845
    %8847 = vmatmul.bf16.gmra.mxu0 %v1354
    %v8848 = vpop.f32.mrf.mxu0
    %v8849 = vadd.f32 %v8800, %v8848
    %v8850 = vpop.f32.mrf.mxu0
    %v8851 = vadd.f32 %v8802, %v8850
    %8852 = vmatmul.bf16.gmra.mxu0 %v1358
    %v8853 = vpop.f32.mrf.mxu0
    %v8854 = vadd.f32 %v8805, %v8853
    %v8855 = vpop.f32.mrf.mxu0
    %v8856 = vadd.f32 %v8807, %v8855
    %8857 = vmatmul.bf16.gmra.mxu0 %v1362
    %v8858 = vpop.f32.mrf.mxu0
    %v8859 = vadd.f32 %v8810, %v8858
    %v8860 = vpop.f32.mrf.mxu0
    %v8861 = vadd.f32 %v8812, %v8860
    %8862 = vmatmul.bf16.gmra.mxu0 %v1366
    %v8863 = vpop.f32.mrf.mxu0
    %v8864 = vadd.f32 %v8815, %v8863
    %v8865 = vpop.f32.mrf.mxu0
    %v8866 = vadd.f32 %v8817, %v8865
    %8867 = vmatmul.bf16.gmra.mxu0 %v1370
    %v8868 = vpop.f32.mrf.mxu0
    %v8869 = vadd.f32 %v8820, %v8868
    %v8870 = vpop.f32.mrf.mxu0
    %v8871 = vadd.f32 %v8822, %v8870
    %8872 = vdwg.mxu0
    %8873 = vmatpush.bf16.msra.mxu0 %v5195
    %8874 = vmatpush.bf16.msra.mxu0 %v5187
    %8875 = vmatpush.bf16.msra.mxu0 %v5179
    %8876 = vmatpush.bf16.msra.mxu0 %v5171
    %8877 = vmatpush.bf16.msra.mxu0 %v5163
    %8878 = vmatpush.bf16.msra.mxu0 %v5155
    %8879 = vmatpush.bf16.msra.mxu0 %v5147
    %8880 = vmatpush.bf16.msra.mxu0 %v5139
    %8881 = vmatmul.bf16.gmra.mxu0 %v1343
    %v8882 = vpop.f32.mrf.mxu0
    %v8883 = vadd.f32 %v8834, %v8882
    %v8884 = vpop.f32.mrf.mxu0
    %v8885 = vadd.f32 %v8836, %v8884
    %8886 = vmatmul.bf16.gmra.mxu0 %v1347
    %v8887 = vpop.f32.mrf.mxu0
    %v8888 = vadd.f32 %v8839, %v8887
    %v8889 = vpop.f32.mrf.mxu0
    %v8890 = vadd.f32 %v8841, %v8889
    %8891 = vmatmul.bf16.gmra.mxu0 %v1351
    %v8892 = vpop.f32.mrf.mxu0
    %v8893 = vadd.f32 %v8844, %v8892
    %v8894 = vpop.f32.mrf.mxu0
    %v8895 = vadd.f32 %v8846, %v8894
    %8896 = vmatmul.bf16.gmra.mxu0 %v1355
    %v8897 = vpop.f32.mrf.mxu0
    %v8898 = vadd.f32 %v8849, %v8897
    %v8899 = vpop.f32.mrf.mxu0
    %v8900 = vadd.f32 %v8851, %v8899
    %8901 = vmatmul.bf16.gmra.mxu0 %v1359
    %v8902 = vpop.f32.mrf.mxu0
    %v8903 = vadd.f32 %v8854, %v8902
    %v8904 = vpop.f32.mrf.mxu0
    %v8905 = vadd.f32 %v8856, %v8904
    %8906 = vmatmul.bf16.gmra.mxu0 %v1363
    %v8907 = vpop.f32.mrf.mxu0
    %v8908 = vadd.f32 %v8859, %v8907
    %v8909 = vpop.f32.mrf.mxu0
    %v8910 = vadd.f32 %v8861, %v8909
    %8911 = vmatmul.bf16.gmra.mxu0 %v1367
    %v8912 = vpop.f32.mrf.mxu0
    %v8913 = vadd.f32 %v8864, %v8912
    %v8914 = vpop.f32.mrf.mxu0
    %v8915 = vadd.f32 %v8866, %v8914
    %8916 = vmatmul.bf16.gmra.mxu0 %v1371
    %v8917 = vpop.f32.mrf.mxu0
    %v8918 = vadd.f32 %v8869, %v8917
    %v8919 = vpop.f32.mrf.mxu0
    %v8920 = vadd.f32 %v8871, %v8919
    %8921 = vdwg.mxu0
    %8922 = vmatpush.bf16.msra.mxu0 %v5259
    %8923 = vmatpush.bf16.msra.mxu0 %v5251
    %8924 = vmatpush.bf16.msra.mxu0 %v5243
    %8925 = vmatpush.bf16.msra.mxu0 %v5235
    %8926 = vmatpush.bf16.msra.mxu0 %v5227
    %8927 = vmatpush.bf16.msra.mxu0 %v5219
    %8928 = vmatpush.bf16.msra.mxu0 %v5211
    %8929 = vmatpush.bf16.msra.mxu0 %v5203
    %8930 = vmatmul.bf16.gmra.mxu0 %v1344
    %v8931 = vpop.f32.mrf.mxu0
    %v8932 = vadd.f32 %v8883, %v8931
    %v8933 = vpop.f32.mrf.mxu0
    %v8934 = vadd.f32 %v8885, %v8933
    %8935 = vmatmul.bf16.gmra.mxu0 %v1348
    %v8936 = vpop.f32.mrf.mxu0
    %v8937 = vadd.f32 %v8888, %v8936
    %v8938 = vpop.f32.mrf.mxu0
    %v8939 = vadd.f32 %v8890, %v8938
    %8940 = vmatmul.bf16.gmra.mxu0 %v1352
    %v8941 = vpop.f32.mrf.mxu0
    %v8942 = vadd.f32 %v8893, %v8941
    %v8943 = vpop.f32.mrf.mxu0
    %v8944 = vadd.f32 %v8895, %v8943
    %8945 = vmatmul.bf16.gmra.mxu0 %v1356
    %v8946 = vpop.f32.mrf.mxu0
    %v8947 = vadd.f32 %v8898, %v8946
    %v8948 = vpop.f32.mrf.mxu0
    %v8949 = vadd.f32 %v8900, %v8948
    %8950 = vmatmul.bf16.gmra.mxu0 %v1360
    %v8951 = vpop.f32.mrf.mxu0
    %v8952 = vadd.f32 %v8903, %v8951
    %v8953 = vpop.f32.mrf.mxu0
    %v8954 = vadd.f32 %v8905, %v8953
    %8955 = vmatmul.bf16.gmra.mxu0 %v1364
    %v8956 = vpop.f32.mrf.mxu0
    %v8957 = vadd.f32 %v8908, %v8956
    %v8958 = vpop.f32.mrf.mxu0
    %v8959 = vadd.f32 %v8910, %v8958
    %8960 = vmatmul.bf16.gmra.mxu0 %v1368
    %v8961 = vpop.f32.mrf.mxu0
    %v8962 = vadd.f32 %v8913, %v8961
    %v8963 = vpop.f32.mrf.mxu0
    %v8964 = vadd.f32 %v8915, %v8963
    %8965 = vmatmul.bf16.gmra.mxu0 %v1372
    %v8966 = vpop.f32.mrf.mxu0
    %v8967 = vadd.f32 %v8918, %v8966
    %v8968 = vpop.f32.mrf.mxu0
    %v8969 = vadd.f32 %v8920, %v8968
    %8970 = vdwg.mxu0
    %8971 = vmatpush.bf16.msra.mxu0 %v4556
    %8972 = vmatpush.bf16.msra.mxu0 %v4548
    %8973 = vmatpush.bf16.msra.mxu0 %v4540
    %8974 = vmatpush.bf16.msra.mxu0 %v4532
    %8975 = vmatpush.bf16.msra.mxu0 %v4524
    %8976 = vmatpush.bf16.msra.mxu0 %v4516
    %8977 = vmatpush.bf16.msra.mxu0 %v4508
    %8978 = vmatpush.bf16.msra.mxu0 %v4500
    %8979 = vmatmul.bf16.gmra.mxu0 %v1213
    %v8980 = vpop.f32.mrf.mxu0
    %v8981 = vadd.f32 %v2180, %v8980
    %v8982 = vpop.f32.mrf.mxu0
    %v8983 = vadd.f32 %v2180, %v8982
    %8984 = vmatmul.bf16.gmra.mxu0 %v1217
    %v8985 = vpop.f32.mrf.mxu0
    %v8986 = vadd.f32 %v2180, %v8985
    %v8987 = vpop.f32.mrf.mxu0
    %v8988 = vadd.f32 %v2180, %v8987
    %8989 = vmatmul.bf16.gmra.mxu0 %v1221
    %v8990 = vpop.f32.mrf.mxu0
    %v8991 = vadd.f32 %v2180, %v8990
    %v8992 = vpop.f32.mrf.mxu0
    %v8993 = vadd.f32 %v2180, %v8992
    %8994 = vmatmul.bf16.gmra.mxu0 %v1225
    %v8995 = vpop.f32.mrf.mxu0
    %v8996 = vadd.f32 %v2180, %v8995
    %v8997 = vpop.f32.mrf.mxu0
    %v8998 = vadd.f32 %v2180, %v8997
    %8999 = vmatmul.bf16.gmra.mxu0 %v1229
    %v9000 = vpop.f32.mrf.mxu0
    %v9001 = vadd.f32 %v2180, %v9000
    %v9002 = vpop.f32.mrf.mxu0
    %v9003 = vadd.f32 %v2180, %v9002
    %9004 = vmatmul.bf16.gmra.mxu0 %v1233
    %v9005 = vpop.f32.mrf.mxu0
    %v9006 = vadd.f32 %v2180, %v9005
    %v9007 = vpop.f32.mrf.mxu0
    %v9008 = vadd.f32 %v2180, %v9007
    %9009 = vmatmul.bf16.gmra.mxu0 %v1237
    %v9010 = vpop.f32.mrf.mxu0
    %v9011 = vadd.f32 %v2180, %v9010
    %v9012 = vpop.f32.mrf.mxu0
    %v9013 = vadd.f32 %v2180, %v9012
    %9014 = vmatmul.bf16.gmra.mxu0 %v1241
    %v9015 = vpop.f32.mrf.mxu0
    %v9016 = vadd.f32 %v2180, %v9015
    %v9017 = vpop.f32.mrf.mxu0
    %v9018 = vadd.f32 %v2180, %v9017
    %9019 = vdwg.mxu0
    %9020 = vmatpush.bf16.msra.mxu0 %v4620
    %9021 = vmatpush.bf16.msra.mxu0 %v4612
    %9022 = vmatpush.bf16.msra.mxu0 %v4604
    %9023 = vmatpush.bf16.msra.mxu0 %v4596
    %9024 = vmatpush.bf16.msra.mxu0 %v4588
    %9025 = vmatpush.bf16.msra.mxu0 %v4580
    %9026 = vmatpush.bf16.msra.mxu0 %v4572
    %9027 = vmatpush.bf16.msra.mxu0 %v4564
    %9028 = vmatmul.bf16.gmra.mxu0 %v1214
    %v9029 = vpop.f32.mrf.mxu0
    %v9030 = vadd.f32 %v8981, %v9029
    %v9031 = vpop.f32.mrf.mxu0
    %v9032 = vadd.f32 %v8983, %v9031
    %9033 = vmatmul.bf16.gmra.mxu0 %v1218
    %v9034 = vpop.f32.mrf.mxu0
    %v9035 = vadd.f32 %v8986, %v9034
    %v9036 = vpop.f32.mrf.mxu0
    %v9037 = vadd.f32 %v8988, %v9036
    %9038 = vmatmul.bf16.gmra.mxu0 %v1222
    %v9039 = vpop.f32.mrf.mxu0
    %v9040 = vadd.f32 %v8991, %v9039
    %v9041 = vpop.f32.mrf.mxu0
    %v9042 = vadd.f32 %v8993, %v9041
    %9043 = vmatmul.bf16.gmra.mxu0 %v1226
    %v9044 = vpop.f32.mrf.mxu0
    %v9045 = vadd.f32 %v8996, %v9044
    %v9046 = vpop.f32.mrf.mxu0
    %v9047 = vadd.f32 %v8998, %v9046
    %9048 = vmatmul.bf16.gmra.mxu0 %v1230
    %v9049 = vpop.f32.mrf.mxu0
    %v9050 = vadd.f32 %v9001, %v9049
    %v9051 = vpop.f32.mrf.mxu0
    %v9052 = vadd.f32 %v9003, %v9051
    %9053 = vmatmul.bf16.gmra.mxu0 %v1234
    %v9054 = vpop.f32.mrf.mxu0
    %v9055 = vadd.f32 %v9006, %v9054
    %v9056 = vpop.f32.mrf.mxu0
    %v9057 = vadd.f32 %v9008, %v9056
    %9058 = vmatmul.bf16.gmra.mxu0 %v1238
    %v9059 = vpop.f32.mrf.mxu0
    %v9060 = vadd.f32 %v9011, %v9059
    %v9061 = vpop.f32.mrf.mxu0
    %v9062 = vadd.f32 %v9013, %v9061
    %9063 = vmatmul.bf16.gmra.mxu0 %v1242
    %v9064 = vpop.f32.mrf.mxu0
    %v9065 = vadd.f32 %v9016, %v9064
    %v9066 = vpop.f32.mrf.mxu0
    %v9067 = vadd.f32 %v9018, %v9066
    %9068 = vdwg.mxu0
    %9069 = vmatpush.bf16.msra.mxu0 %v4684
    %9070 = vmatpush.bf16.msra.mxu0 %v4676
    %9071 = vmatpush.bf16.msra.mxu0 %v4668
    %9072 = vmatpush.bf16.msra.mxu0 %v4660
    %9073 = vmatpush.bf16.msra.mxu0 %v4652
    %9074 = vmatpush.bf16.msra.mxu0 %v4644
    %9075 = vmatpush.bf16.msra.mxu0 %v4636
    %9076 = vmatpush.bf16.msra.mxu0 %v4628
    %9077 = vmatmul.bf16.gmra.mxu0 %v1215
    %v9078 = vpop.f32.mrf.mxu0
    %v9079 = vadd.f32 %v9030, %v9078
    %v9080 = vpop.f32.mrf.mxu0
    %v9081 = vadd.f32 %v9032, %v9080
    %9082 = vmatmul.bf16.gmra.mxu0 %v1219
    %v9083 = vpop.f32.mrf.mxu0
    %v9084 = vadd.f32 %v9035, %v9083
    %v9085 = vpop.f32.mrf.mxu0
    %v9086 = vadd.f32 %v9037, %v9085
    %9087 = vmatmul.bf16.gmra.mxu0 %v1223
    %v9088 = vpop.f32.mrf.mxu0
    %v9089 = vadd.f32 %v9040, %v9088
    %v9090 = vpop.f32.mrf.mxu0
    %v9091 = vadd.f32 %v9042, %v9090
    %9092 = vmatmul.bf16.gmra.mxu0 %v1227
    %v9093 = vpop.f32.mrf.mxu0
    %v9094 = vadd.f32 %v9045, %v9093
    %v9095 = vpop.f32.mrf.mxu0
    %v9096 = vadd.f32 %v9047, %v9095
    %9097 = vmatmul.bf16.gmra.mxu0 %v1231
    %v9098 = vpop.f32.mrf.mxu0
    %v9099 = vadd.f32 %v9050, %v9098
    %v9100 = vpop.f32.mrf.mxu0
    %v9101 = vadd.f32 %v9052, %v9100
    %9102 = vmatmul.bf16.gmra.mxu0 %v1235
    %v9103 = vpop.f32.mrf.mxu0
    %v9104 = vadd.f32 %v9055, %v9103
    %v9105 = vpop.f32.mrf.mxu0
    %v9106 = vadd.f32 %v9057, %v9105
    %9107 = vmatmul.bf16.gmra.mxu0 %v1239
    %v9108 = vpop.f32.mrf.mxu0
    %v9109 = vadd.f32 %v9060, %v9108
    %v9110 = vpop.f32.mrf.mxu0
    %v9111 = vadd.f32 %v9062, %v9110
    %9112 = vmatmul.bf16.gmra.mxu0 %v1243
    %v9113 = vpop.f32.mrf.mxu0
    %v9114 = vadd.f32 %v9065, %v9113
    %v9115 = vpop.f32.mrf.mxu0
    %v9116 = vadd.f32 %v9067, %v9115
    %9117 = vdwg.mxu0
    %9118 = vmatpush.bf16.msra.mxu0 %v4748
    %9119 = vmatpush.bf16.msra.mxu0 %v4740
    %9120 = vmatpush.bf16.msra.mxu0 %v4732
    %9121 = vmatpush.bf16.msra.mxu0 %v4724
    %9122 = vmatpush.bf16.msra.mxu0 %v4716
    %9123 = vmatpush.bf16.msra.mxu0 %v4708
    %9124 = vmatpush.bf16.msra.mxu0 %v4700
    %9125 = vmatpush.bf16.msra.mxu0 %v4692
    %9126 = vmatmul.bf16.gmra.mxu0 %v1216
    %v9127 = vpop.f32.mrf.mxu0
    %v9128 = vadd.f32 %v9079, %v9127
    %v9129 = vpop.f32.mrf.mxu0
    %v9130 = vadd.f32 %v9081, %v9129
    %9131 = vmatmul.bf16.gmra.mxu0 %v1220
    %v9132 = vpop.f32.mrf.mxu0
    %v9133 = vadd.f32 %v9084, %v9132
    %v9134 = vpop.f32.mrf.mxu0
    %v9135 = vadd.f32 %v9086, %v9134
    %9136 = vmatmul.bf16.gmra.mxu0 %v1224
    %v9137 = vpop.f32.mrf.mxu0
    %v9138 = vadd.f32 %v9089, %v9137
    %v9139 = vpop.f32.mrf.mxu0
    %v9140 = vadd.f32 %v9091, %v9139
    %9141 = vmatmul.bf16.gmra.mxu0 %v1228
    %v9142 = vpop.f32.mrf.mxu0
    %v9143 = vadd.f32 %v9094, %v9142
    %v9144 = vpop.f32.mrf.mxu0
    %v9145 = vadd.f32 %v9096, %v9144
    %9146 = vmatmul.bf16.gmra.mxu0 %v1232
    %v9147 = vpop.f32.mrf.mxu0
    %v9148 = vadd.f32 %v9099, %v9147
    %v9149 = vpop.f32.mrf.mxu0
    %v9150 = vadd.f32 %v9101, %v9149
    %9151 = vmatmul.bf16.gmra.mxu0 %v1236
    %v9152 = vpop.f32.mrf.mxu0
    %v9153 = vadd.f32 %v9104, %v9152
    %v9154 = vpop.f32.mrf.mxu0
    %v9155 = vadd.f32 %v9106, %v9154
    %9156 = vmatmul.bf16.gmra.mxu0 %v1240
    %v9157 = vpop.f32.mrf.mxu0
    %v9158 = vadd.f32 %v9109, %v9157
    %v9159 = vpop.f32.mrf.mxu0
    %v9160 = vadd.f32 %v9111, %v9159
    %9161 = vmatmul.bf16.gmra.mxu0 %v1244
    %v9162 = vpop.f32.mrf.mxu0
    %v9163 = vadd.f32 %v9114, %v9162
    %v9164 = vpop.f32.mrf.mxu0
    %v9165 = vadd.f32 %v9116, %v9164
    %9166 = vdwg.mxu0
    %9167 = vmatpush.bf16.msra.mxu0 %v4812
    %9168 = vmatpush.bf16.msra.mxu0 %v4804
    %9169 = vmatpush.bf16.msra.mxu0 %v4796
    %9170 = vmatpush.bf16.msra.mxu0 %v4788
    %9171 = vmatpush.bf16.msra.mxu0 %v4780
    %9172 = vmatpush.bf16.msra.mxu0 %v4772
    %9173 = vmatpush.bf16.msra.mxu0 %v4764
    %9174 = vmatpush.bf16.msra.mxu0 %v4756
    %9175 = vmatmul.bf16.gmra.mxu0 %v925
    %v9176 = vpop.f32.mrf.mxu0
    %v9177 = vadd.f32 %v9128, %v9176
    %v9178 = vpop.f32.mrf.mxu0
    %v9179 = vadd.f32 %v9130, %v9178
    %9180 = vmatmul.bf16.gmra.mxu0 %v929
    %v9181 = vpop.f32.mrf.mxu0
    %v9182 = vadd.f32 %v9133, %v9181
    %v9183 = vpop.f32.mrf.mxu0
    %v9184 = vadd.f32 %v9135, %v9183
    %9185 = vmatmul.bf16.gmra.mxu0 %v933
    %v9186 = vpop.f32.mrf.mxu0
    %v9187 = vadd.f32 %v9138, %v9186
    %v9188 = vpop.f32.mrf.mxu0
    %v9189 = vadd.f32 %v9140, %v9188
    %9190 = vmatmul.bf16.gmra.mxu0 %v937
    %v9191 = vpop.f32.mrf.mxu0
    %v9192 = vadd.f32 %v9143, %v9191
    %v9193 = vpop.f32.mrf.mxu0
    %v9194 = vadd.f32 %v9145, %v9193
    %9195 = vmatmul.bf16.gmra.mxu0 %v941
    %v9196 = vpop.f32.mrf.mxu0
    %v9197 = vadd.f32 %v9148, %v9196
    %v9198 = vpop.f32.mrf.mxu0
    %v9199 = vadd.f32 %v9150, %v9198
    %9200 = vmatmul.bf16.gmra.mxu0 %v945
    %v9201 = vpop.f32.mrf.mxu0
    %v9202 = vadd.f32 %v9153, %v9201
    %v9203 = vpop.f32.mrf.mxu0
    %v9204 = vadd.f32 %v9155, %v9203
    %9205 = vmatmul.bf16.gmra.mxu0 %v949
    %v9206 = vpop.f32.mrf.mxu0
    %v9207 = vadd.f32 %v9158, %v9206
    %v9208 = vpop.f32.mrf.mxu0
    %v9209 = vadd.f32 %v9160, %v9208
    %9210 = vmatmul.bf16.gmra.mxu0 %v953
    %v9211 = vpop.f32.mrf.mxu0
    %v9212 = vadd.f32 %v9163, %v9211
    %v9213 = vpop.f32.mrf.mxu0
    %v9214 = vadd.f32 %v9165, %v9213
    %9215 = vdwg.mxu0
    %9216 = vmatpush.bf16.msra.mxu0 %v4876
    %9217 = vmatpush.bf16.msra.mxu0 %v4868
    %9218 = vmatpush.bf16.msra.mxu0 %v4860
    %9219 = vmatpush.bf16.msra.mxu0 %v4852
    %9220 = vmatpush.bf16.msra.mxu0 %v4844
    %9221 = vmatpush.bf16.msra.mxu0 %v4836
    %9222 = vmatpush.bf16.msra.mxu0 %v4828
    %9223 = vmatpush.bf16.msra.mxu0 %v4820
    %9224 = vmatmul.bf16.gmra.mxu0 %v926
    %v9225 = vpop.f32.mrf.mxu0
    %v9226 = vadd.f32 %v9177, %v9225
    %v9227 = vpop.f32.mrf.mxu0
    %v9228 = vadd.f32 %v9179, %v9227
    %9229 = vmatmul.bf16.gmra.mxu0 %v930
    %v9230 = vpop.f32.mrf.mxu0
    %v9231 = vadd.f32 %v9182, %v9230
    %v9232 = vpop.f32.mrf.mxu0
    %v9233 = vadd.f32 %v9184, %v9232
    %9234 = vmatmul.bf16.gmra.mxu0 %v934
    %v9235 = vpop.f32.mrf.mxu0
    %v9236 = vadd.f32 %v9187, %v9235
    %v9237 = vpop.f32.mrf.mxu0
    %v9238 = vadd.f32 %v9189, %v9237
    %9239 = vmatmul.bf16.gmra.mxu0 %v938
    %v9240 = vpop.f32.mrf.mxu0
    %v9241 = vadd.f32 %v9192, %v9240
    %v9242 = vpop.f32.mrf.mxu0
    %v9243 = vadd.f32 %v9194, %v9242
    %9244 = vmatmul.bf16.gmra.mxu0 %v942
    %v9245 = vpop.f32.mrf.mxu0
    %v9246 = vadd.f32 %v9197, %v9245
    %v9247 = vpop.f32.mrf.mxu0
    %v9248 = vadd.f32 %v9199, %v9247
    %9249 = vmatmul.bf16.gmra.mxu0 %v946
    %v9250 = vpop.f32.mrf.mxu0
    %v9251 = vadd.f32 %v9202, %v9250
    %v9252 = vpop.f32.mrf.mxu0
    %v9253 = vadd.f32 %v9204, %v9252
    %9254 = vmatmul.bf16.gmra.mxu0 %v950
    %v9255 = vpop.f32.mrf.mxu0
    %v9256 = vadd.f32 %v9207, %v9255
    %v9257 = vpop.f32.mrf.mxu0
    %v9258 = vadd.f32 %v9209, %v9257
    %9259 = vmatmul.bf16.gmra.mxu0 %v954
    %v9260 = vpop.f32.mrf.mxu0
    %v9261 = vadd.f32 %v9212, %v9260
    %v9262 = vpop.f32.mrf.mxu0
    %v9263 = vadd.f32 %v9214, %v9262
    %9264 = vdwg.mxu0
    %9265 = vmatpush.bf16.msra.mxu0 %v4940
    %9266 = vmatpush.bf16.msra.mxu0 %v4932
    %9267 = vmatpush.bf16.msra.mxu0 %v4924
    %9268 = vmatpush.bf16.msra.mxu0 %v4916
    %9269 = vmatpush.bf16.msra.mxu0 %v4908
    %9270 = vmatpush.bf16.msra.mxu0 %v4900
    %9271 = vmatpush.bf16.msra.mxu0 %v4892
    %9272 = vmatpush.bf16.msra.mxu0 %v4884
    %9273 = vmatmul.bf16.gmra.mxu0 %v927
    %v9274 = vpop.f32.mrf.mxu0
    %v9275 = vadd.f32 %v9226, %v9274
    %v9276 = vpop.f32.mrf.mxu0
    %v9277 = vadd.f32 %v9228, %v9276
    %9278 = vmatmul.bf16.gmra.mxu0 %v931
    %v9279 = vpop.f32.mrf.mxu0
    %v9280 = vadd.f32 %v9231, %v9279
    %v9281 = vpop.f32.mrf.mxu0
    %v9282 = vadd.f32 %v9233, %v9281
    %9283 = vmatmul.bf16.gmra.mxu0 %v935
    %v9284 = vpop.f32.mrf.mxu0
    %v9285 = vadd.f32 %v9236, %v9284
    %v9286 = vpop.f32.mrf.mxu0
    %v9287 = vadd.f32 %v9238, %v9286
    %9288 = vmatmul.bf16.gmra.mxu0 %v939
    %v9289 = vpop.f32.mrf.mxu0
    %v9290 = vadd.f32 %v9241, %v9289
    %v9291 = vpop.f32.mrf.mxu0
    %v9292 = vadd.f32 %v9243, %v9291
    %9293 = vmatmul.bf16.gmra.mxu0 %v943
    %v9294 = vpop.f32.mrf.mxu0
    %v9295 = vadd.f32 %v9246, %v9294
    %v9296 = vpop.f32.mrf.mxu0
    %v9297 = vadd.f32 %v9248, %v9296
    %9298 = vmatmul.bf16.gmra.mxu0 %v947
    %v9299 = vpop.f32.mrf.mxu0
    %v9300 = vadd.f32 %v9251, %v9299
    %v9301 = vpop.f32.mrf.mxu0
    %v9302 = vadd.f32 %v9253, %v9301
    %9303 = vmatmul.bf16.gmra.mxu0 %v951
    %v9304 = vpop.f32.mrf.mxu0
    %v9305 = vadd.f32 %v9256, %v9304
    %v9306 = vpop.f32.mrf.mxu0
    %v9307 = vadd.f32 %v9258, %v9306
    %9308 = vmatmul.bf16.gmra.mxu0 %v955
    %v9309 = vpop.f32.mrf.mxu0
    %v9310 = vadd.f32 %v9261, %v9309
    %v9311 = vpop.f32.mrf.mxu0
    %v9312 = vadd.f32 %v9263, %v9311
    %9313 = vdwg.mxu0
    %9314 = vmatpush.bf16.msra.mxu0 %v5004
    %9315 = vmatpush.bf16.msra.mxu0 %v4996
    %9316 = vmatpush.bf16.msra.mxu0 %v4988
    %9317 = vmatpush.bf16.msra.mxu0 %v4980
    %9318 = vmatpush.bf16.msra.mxu0 %v4972
    %9319 = vmatpush.bf16.msra.mxu0 %v4964
    %9320 = vmatpush.bf16.msra.mxu0 %v4956
    %9321 = vmatpush.bf16.msra.mxu0 %v4948
    %9322 = vmatmul.bf16.gmra.mxu0 %v928
    %v9323 = vpop.f32.mrf.mxu0
    %v9324 = vadd.f32 %v9275, %v9323
    %v9325 = vpop.f32.mrf.mxu0
    %v9326 = vadd.f32 %v9277, %v9325
    %9327 = vmatmul.bf16.gmra.mxu0 %v932
    %v9328 = vpop.f32.mrf.mxu0
    %v9329 = vadd.f32 %v9280, %v9328
    %v9330 = vpop.f32.mrf.mxu0
    %v9331 = vadd.f32 %v9282, %v9330
    %9332 = vmatmul.bf16.gmra.mxu0 %v936
    %v9333 = vpop.f32.mrf.mxu0
    %v9334 = vadd.f32 %v9285, %v9333
    %v9335 = vpop.f32.mrf.mxu0
    %v9336 = vadd.f32 %v9287, %v9335
    %9337 = vmatmul.bf16.gmra.mxu0 %v940
    %v9338 = vpop.f32.mrf.mxu0
    %v9339 = vadd.f32 %v9290, %v9338
    %v9340 = vpop.f32.mrf.mxu0
    %v9341 = vadd.f32 %v9292, %v9340
    %9342 = vmatmul.bf16.gmra.mxu0 %v944
    %v9343 = vpop.f32.mrf.mxu0
    %v9344 = vadd.f32 %v9295, %v9343
    %v9345 = vpop.f32.mrf.mxu0
    %v9346 = vadd.f32 %v9297, %v9345
    %9347 = vmatmul.bf16.gmra.mxu0 %v948
    %v9348 = vpop.f32.mrf.mxu0
    %v9349 = vadd.f32 %v9300, %v9348
    %v9350 = vpop.f32.mrf.mxu0
    %v9351 = vadd.f32 %v9302, %v9350
    %9352 = vmatmul.bf16.gmra.mxu0 %v952
    %v9353 = vpop.f32.mrf.mxu0
    %v9354 = vadd.f32 %v9305, %v9353
    %v9355 = vpop.f32.mrf.mxu0
    %v9356 = vadd.f32 %v9307, %v9355
    %9357 = vmatmul.bf16.gmra.mxu0 %v956
    %v9358 = vpop.f32.mrf.mxu0
    %v9359 = vadd.f32 %v9310, %v9358
    %v9360 = vpop.f32.mrf.mxu0
    %v9361 = vadd.f32 %v9312, %v9360
    %9362 = vdwg.mxu0
    %9363 = vmatpush.bf16.msra.mxu0 %v5068
    %9364 = vmatpush.bf16.msra.mxu0 %v5060
    %9365 = vmatpush.bf16.msra.mxu0 %v5052
    %9366 = vmatpush.bf16.msra.mxu0 %v5044
    %9367 = vmatpush.bf16.msra.mxu0 %v5036
    %9368 = vmatpush.bf16.msra.mxu0 %v5028
    %9369 = vmatpush.bf16.msra.mxu0 %v5020
    %9370 = vmatpush.bf16.msra.mxu0 %v5012
    %9371 = vmatmul.bf16.gmra.mxu0 %v1341
    %v9372 = vpop.f32.mrf.mxu0
    %v9373 = vadd.f32 %v9324, %v9372
    %v9374 = vpop.f32.mrf.mxu0
    %v9375 = vadd.f32 %v9326, %v9374
    %9376 = vmatmul.bf16.gmra.mxu0 %v1345
    %v9377 = vpop.f32.mrf.mxu0
    %v9378 = vadd.f32 %v9329, %v9377
    %v9379 = vpop.f32.mrf.mxu0
    %v9380 = vadd.f32 %v9331, %v9379
    %9381 = vmatmul.bf16.gmra.mxu0 %v1349
    %v9382 = vpop.f32.mrf.mxu0
    %v9383 = vadd.f32 %v9334, %v9382
    %v9384 = vpop.f32.mrf.mxu0
    %v9385 = vadd.f32 %v9336, %v9384
    %9386 = vmatmul.bf16.gmra.mxu0 %v1353
    %v9387 = vpop.f32.mrf.mxu0
    %v9388 = vadd.f32 %v9339, %v9387
    %v9389 = vpop.f32.mrf.mxu0
    %v9390 = vadd.f32 %v9341, %v9389
    %9391 = vmatmul.bf16.gmra.mxu0 %v1357
    %v9392 = vpop.f32.mrf.mxu0
    %v9393 = vadd.f32 %v9344, %v9392
    %v9394 = vpop.f32.mrf.mxu0
    %v9395 = vadd.f32 %v9346, %v9394
    %9396 = vmatmul.bf16.gmra.mxu0 %v1361
    %v9397 = vpop.f32.mrf.mxu0
    %v9398 = vadd.f32 %v9349, %v9397
    %v9399 = vpop.f32.mrf.mxu0
    %v9400 = vadd.f32 %v9351, %v9399
    %9401 = vmatmul.bf16.gmra.mxu0 %v1365
    %v9402 = vpop.f32.mrf.mxu0
    %v9403 = vadd.f32 %v9354, %v9402
    %v9404 = vpop.f32.mrf.mxu0
    %v9405 = vadd.f32 %v9356, %v9404
    %9406 = vmatmul.bf16.gmra.mxu0 %v1369
    %v9407 = vpop.f32.mrf.mxu0
    %v9408 = vadd.f32 %v9359, %v9407
    %v9409 = vpop.f32.mrf.mxu0
    %v9410 = vadd.f32 %v9361, %v9409
    %9411 = vdwg.mxu0
    %9412 = vmatpush.bf16.msra.mxu0 %v5132
    %9413 = vmatpush.bf16.msra.mxu0 %v5124
    %9414 = vmatpush.bf16.msra.mxu0 %v5116
    %9415 = vmatpush.bf16.msra.mxu0 %v5108
    %9416 = vmatpush.bf16.msra.mxu0 %v5100
    %9417 = vmatpush.bf16.msra.mxu0 %v5092
    %9418 = vmatpush.bf16.msra.mxu0 %v5084
    %9419 = vmatpush.bf16.msra.mxu0 %v5076
    %9420 = vmatmul.bf16.gmra.mxu0 %v1342
    %v9421 = vpop.f32.mrf.mxu0
    %v9422 = vadd.f32 %v9373, %v9421
    %v9423 = vpop.f32.mrf.mxu0
    %v9424 = vadd.f32 %v9375, %v9423
    %9425 = vmatmul.bf16.gmra.mxu0 %v1346
    %v9426 = vpop.f32.mrf.mxu0
    %v9427 = vadd.f32 %v9378, %v9426
    %v9428 = vpop.f32.mrf.mxu0
    %v9429 = vadd.f32 %v9380, %v9428
    %9430 = vmatmul.bf16.gmra.mxu0 %v1350
    %v9431 = vpop.f32.mrf.mxu0
    %v9432 = vadd.f32 %v9383, %v9431
    %v9433 = vpop.f32.mrf.mxu0
    %v9434 = vadd.f32 %v9385, %v9433
    %9435 = vmatmul.bf16.gmra.mxu0 %v1354
    %v9436 = vpop.f32.mrf.mxu0
    %v9437 = vadd.f32 %v9388, %v9436
    %v9438 = vpop.f32.mrf.mxu0
    %v9439 = vadd.f32 %v9390, %v9438
    %9440 = vmatmul.bf16.gmra.mxu0 %v1358
    %v9441 = vpop.f32.mrf.mxu0
    %v9442 = vadd.f32 %v9393, %v9441
    %v9443 = vpop.f32.mrf.mxu0
    %v9444 = vadd.f32 %v9395, %v9443
    %9445 = vmatmul.bf16.gmra.mxu0 %v1362
    %v9446 = vpop.f32.mrf.mxu0
    %v9447 = vadd.f32 %v9398, %v9446
    %v9448 = vpop.f32.mrf.mxu0
    %v9449 = vadd.f32 %v9400, %v9448
    %9450 = vmatmul.bf16.gmra.mxu0 %v1366
    %v9451 = vpop.f32.mrf.mxu0
    %v9452 = vadd.f32 %v9403, %v9451
    %v9453 = vpop.f32.mrf.mxu0
    %v9454 = vadd.f32 %v9405, %v9453
    %9455 = vmatmul.bf16.gmra.mxu0 %v1370
    %v9456 = vpop.f32.mrf.mxu0
    %v9457 = vadd.f32 %v9408, %v9456
    %v9458 = vpop.f32.mrf.mxu0
    %v9459 = vadd.f32 %v9410, %v9458
    %9460 = vdwg.mxu0
    %9461 = vmatpush.bf16.msra.mxu0 %v5196
    %9462 = vmatpush.bf16.msra.mxu0 %v5188
    %9463 = vmatpush.bf16.msra.mxu0 %v5180
    %9464 = vmatpush.bf16.msra.mxu0 %v5172
    %9465 = vmatpush.bf16.msra.mxu0 %v5164
    %9466 = vmatpush.bf16.msra.mxu0 %v5156
    %9467 = vmatpush.bf16.msra.mxu0 %v5148
    %9468 = vmatpush.bf16.msra.mxu0 %v5140
    %9469 = vmatmul.bf16.gmra.mxu0 %v1343
    %v9470 = vpop.f32.mrf.mxu0
    %v9471 = vadd.f32 %v9422, %v9470
    %v9472 = vpop.f32.mrf.mxu0
    %v9473 = vadd.f32 %v9424, %v9472
    %9474 = vmatmul.bf16.gmra.mxu0 %v1347
    %v9475 = vpop.f32.mrf.mxu0
    %v9476 = vadd.f32 %v9427, %v9475
    %v9477 = vpop.f32.mrf.mxu0
    %v9478 = vadd.f32 %v9429, %v9477
    %9479 = vmatmul.bf16.gmra.mxu0 %v1351
    %v9480 = vpop.f32.mrf.mxu0
    %v9481 = vadd.f32 %v9432, %v9480
    %v9482 = vpop.f32.mrf.mxu0
    %v9483 = vadd.f32 %v9434, %v9482
    %9484 = vmatmul.bf16.gmra.mxu0 %v1355
    %v9485 = vpop.f32.mrf.mxu0
    %v9486 = vadd.f32 %v9437, %v9485
    %v9487 = vpop.f32.mrf.mxu0
    %v9488 = vadd.f32 %v9439, %v9487
    %9489 = vmatmul.bf16.gmra.mxu0 %v1359
    %v9490 = vpop.f32.mrf.mxu0
    %v9491 = vadd.f32 %v9442, %v9490
    %v9492 = vpop.f32.mrf.mxu0
    %v9493 = vadd.f32 %v9444, %v9492
    %9494 = vmatmul.bf16.gmra.mxu0 %v1363
    %v9495 = vpop.f32.mrf.mxu0
    %v9496 = vadd.f32 %v9447, %v9495
    %v9497 = vpop.f32.mrf.mxu0
    %v9498 = vadd.f32 %v9449, %v9497
    %9499 = vmatmul.bf16.gmra.mxu0 %v1367
    %v9500 = vpop.f32.mrf.mxu0
    %v9501 = vadd.f32 %v9452, %v9500
    %v9502 = vpop.f32.mrf.mxu0
    %v9503 = vadd.f32 %v9454, %v9502
    %9504 = vmatmul.bf16.gmra.mxu0 %v1371
    %v9505 = vpop.f32.mrf.mxu0
    %v9506 = vadd.f32 %v9457, %v9505
    %v9507 = vpop.f32.mrf.mxu0
    %v9508 = vadd.f32 %v9459, %v9507
    %9509 = vdwg.mxu0
    %9510 = vmatpush.bf16.msra.mxu0 %v5260
    %9511 = vmatpush.bf16.msra.mxu0 %v5252
    %9512 = vmatpush.bf16.msra.mxu0 %v5244
    %9513 = vmatpush.bf16.msra.mxu0 %v5236
    %9514 = vmatpush.bf16.msra.mxu0 %v5228
    %9515 = vmatpush.bf16.msra.mxu0 %v5220
    %9516 = vmatpush.bf16.msra.mxu0 %v5212
    %9517 = vmatpush.bf16.msra.mxu0 %v5204
    %9518 = vmatmul.bf16.gmra.mxu0 %v1344
    %v9519 = vpop.f32.mrf.mxu0
    %v9520 = vadd.f32 %v9471, %v9519
    %v9521 = vpop.f32.mrf.mxu0
    %v9522 = vadd.f32 %v9473, %v9521
    %9523 = vmatmul.bf16.gmra.mxu0 %v1348
    %v9524 = vpop.f32.mrf.mxu0
    %v9525 = vadd.f32 %v9476, %v9524
    %v9526 = vpop.f32.mrf.mxu0
    %v9527 = vadd.f32 %v9478, %v9526
    %9528 = vmatmul.bf16.gmra.mxu0 %v1352
    %v9529 = vpop.f32.mrf.mxu0
    %v9530 = vadd.f32 %v9481, %v9529
    %v9531 = vpop.f32.mrf.mxu0
    %v9532 = vadd.f32 %v9483, %v9531
    %9533 = vmatmul.bf16.gmra.mxu0 %v1356
    %v9534 = vpop.f32.mrf.mxu0
    %v9535 = vadd.f32 %v9486, %v9534
    %v9536 = vpop.f32.mrf.mxu0
    %v9537 = vadd.f32 %v9488, %v9536
    %9538 = vmatmul.bf16.gmra.mxu0 %v1360
    %v9539 = vpop.f32.mrf.mxu0
    %v9540 = vadd.f32 %v9491, %v9539
    %v9541 = vpop.f32.mrf.mxu0
    %v9542 = vadd.f32 %v9493, %v9541
    %9543 = vmatmul.bf16.gmra.mxu0 %v1364
    %v9544 = vpop.f32.mrf.mxu0
    %v9545 = vadd.f32 %v9496, %v9544
    %v9546 = vpop.f32.mrf.mxu0
    %v9547 = vadd.f32 %v9498, %v9546
    %9548 = vmatmul.bf16.gmra.mxu0 %v1368
    %v9549 = vpop.f32.mrf.mxu0
    %v9550 = vadd.f32 %v9501, %v9549
    %v9551 = vpop.f32.mrf.mxu0
    %v9552 = vadd.f32 %v9503, %v9551
    %9553 = vmatmul.bf16.gmra.mxu0 %v1372
    %v9554 = vpop.f32.mrf.mxu0
    %v9555 = vadd.f32 %v9506, %v9554
    %v9556 = vpop.f32.mrf.mxu0
    %v9557 = vadd.f32 %v9508, %v9556
    %9558 = vdwg.mxu0
    %9559 = vmatpush.bf16.msra.mxu0 %v4557
    %9560 = vmatpush.bf16.msra.mxu0 %v4549
    %9561 = vmatpush.bf16.msra.mxu0 %v4541
    %9562 = vmatpush.bf16.msra.mxu0 %v4533
    %9563 = vmatpush.bf16.msra.mxu0 %v4525
    %9564 = vmatpush.bf16.msra.mxu0 %v4517
    %9565 = vmatpush.bf16.msra.mxu0 %v4509
    %9566 = vmatpush.bf16.msra.mxu0 %v4501
    %9567 = vmatmul.bf16.gmra.mxu0 %v1213
    %v9568 = vpop.f32.mrf.mxu0
    %v9569 = vadd.f32 %v2181, %v9568
    %v9570 = vpop.f32.mrf.mxu0
    %v9571 = vadd.f32 %v2181, %v9570
    %9572 = vmatmul.bf16.gmra.mxu0 %v1217
    %v9573 = vpop.f32.mrf.mxu0
    %v9574 = vadd.f32 %v2181, %v9573
    %v9575 = vpop.f32.mrf.mxu0
    %v9576 = vadd.f32 %v2181, %v9575
    %9577 = vmatmul.bf16.gmra.mxu0 %v1221
    %v9578 = vpop.f32.mrf.mxu0
    %v9579 = vadd.f32 %v2181, %v9578
    %v9580 = vpop.f32.mrf.mxu0
    %v9581 = vadd.f32 %v2181, %v9580
    %9582 = vmatmul.bf16.gmra.mxu0 %v1225
    %v9583 = vpop.f32.mrf.mxu0
    %v9584 = vadd.f32 %v2181, %v9583
    %v9585 = vpop.f32.mrf.mxu0
    %v9586 = vadd.f32 %v2181, %v9585
    %9587 = vmatmul.bf16.gmra.mxu0 %v1229
    %v9588 = vpop.f32.mrf.mxu0
    %v9589 = vadd.f32 %v2181, %v9588
    %v9590 = vpop.f32.mrf.mxu0
    %v9591 = vadd.f32 %v2181, %v9590
    %9592 = vmatmul.bf16.gmra.mxu0 %v1233
    %v9593 = vpop.f32.mrf.mxu0
    %v9594 = vadd.f32 %v2181, %v9593
    %v9595 = vpop.f32.mrf.mxu0
    %v9596 = vadd.f32 %v2181, %v9595
    %9597 = vmatmul.bf16.gmra.mxu0 %v1237
    %v9598 = vpop.f32.mrf.mxu0
    %v9599 = vadd.f32 %v2181, %v9598
    %v9600 = vpop.f32.mrf.mxu0
    %v9601 = vadd.f32 %v2181, %v9600
    %9602 = vmatmul.bf16.gmra.mxu0 %v1241
    %v9603 = vpop.f32.mrf.mxu0
    %v9604 = vadd.f32 %v2181, %v9603
    %v9605 = vpop.f32.mrf.mxu0
    %v9606 = vadd.f32 %v2181, %v9605
    %9607 = vdwg.mxu0
    %9608 = vmatpush.bf16.msra.mxu0 %v4621
    %9609 = vmatpush.bf16.msra.mxu0 %v4613
    %9610 = vmatpush.bf16.msra.mxu0 %v4605
    %9611 = vmatpush.bf16.msra.mxu0 %v4597
    %9612 = vmatpush.bf16.msra.mxu0 %v4589
    %9613 = vmatpush.bf16.msra.mxu0 %v4581
    %9614 = vmatpush.bf16.msra.mxu0 %v4573
    %9615 = vmatpush.bf16.msra.mxu0 %v4565
    %9616 = vmatmul.bf16.gmra.mxu0 %v1214
    %v9617 = vpop.f32.mrf.mxu0
    %v9618 = vadd.f32 %v9569, %v9617
    %v9619 = vpop.f32.mrf.mxu0
    %v9620 = vadd.f32 %v9571, %v9619
    %9621 = vmatmul.bf16.gmra.mxu0 %v1218
    %v9622 = vpop.f32.mrf.mxu0
    %v9623 = vadd.f32 %v9574, %v9622
    %v9624 = vpop.f32.mrf.mxu0
    %v9625 = vadd.f32 %v9576, %v9624
    %9626 = vmatmul.bf16.gmra.mxu0 %v1222
    %v9627 = vpop.f32.mrf.mxu0
    %v9628 = vadd.f32 %v9579, %v9627
    %v9629 = vpop.f32.mrf.mxu0
    %v9630 = vadd.f32 %v9581, %v9629
    %9631 = vmatmul.bf16.gmra.mxu0 %v1226
    %v9632 = vpop.f32.mrf.mxu0
    %v9633 = vadd.f32 %v9584, %v9632
    %v9634 = vpop.f32.mrf.mxu0
    %v9635 = vadd.f32 %v9586, %v9634
    %9636 = vmatmul.bf16.gmra.mxu0 %v1230
    %v9637 = vpop.f32.mrf.mxu0
    %v9638 = vadd.f32 %v9589, %v9637
    %v9639 = vpop.f32.mrf.mxu0
    %v9640 = vadd.f32 %v9591, %v9639
    %9641 = vmatmul.bf16.gmra.mxu0 %v1234
    %v9642 = vpop.f32.mrf.mxu0
    %v9643 = vadd.f32 %v9594, %v9642
    %v9644 = vpop.f32.mrf.mxu0
    %v9645 = vadd.f32 %v9596, %v9644
    %9646 = vmatmul.bf16.gmra.mxu0 %v1238
    %v9647 = vpop.f32.mrf.mxu0
    %v9648 = vadd.f32 %v9599, %v9647
    %v9649 = vpop.f32.mrf.mxu0
    %v9650 = vadd.f32 %v9601, %v9649
    %9651 = vmatmul.bf16.gmra.mxu0 %v1242
    %v9652 = vpop.f32.mrf.mxu0
    %v9653 = vadd.f32 %v9604, %v9652
    %v9654 = vpop.f32.mrf.mxu0
    %v9655 = vadd.f32 %v9606, %v9654
    %9656 = vdwg.mxu0
    %9657 = vmatpush.bf16.msra.mxu0 %v4685
    %9658 = vmatpush.bf16.msra.mxu0 %v4677
    %9659 = vmatpush.bf16.msra.mxu0 %v4669
    %9660 = vmatpush.bf16.msra.mxu0 %v4661
    %9661 = vmatpush.bf16.msra.mxu0 %v4653
    %9662 = vmatpush.bf16.msra.mxu0 %v4645
    %9663 = vmatpush.bf16.msra.mxu0 %v4637
    %9664 = vmatpush.bf16.msra.mxu0 %v4629
    %9665 = vmatmul.bf16.gmra.mxu0 %v1215
    %v9666 = vpop.f32.mrf.mxu0
    %v9667 = vadd.f32 %v9618, %v9666
    %v9668 = vpop.f32.mrf.mxu0
    %v9669 = vadd.f32 %v9620, %v9668
    %9670 = vmatmul.bf16.gmra.mxu0 %v1219
    %v9671 = vpop.f32.mrf.mxu0
    %v9672 = vadd.f32 %v9623, %v9671
    %v9673 = vpop.f32.mrf.mxu0
    %v9674 = vadd.f32 %v9625, %v9673
    %9675 = vmatmul.bf16.gmra.mxu0 %v1223
    %v9676 = vpop.f32.mrf.mxu0
    %v9677 = vadd.f32 %v9628, %v9676
    %v9678 = vpop.f32.mrf.mxu0
    %v9679 = vadd.f32 %v9630, %v9678
    %9680 = vmatmul.bf16.gmra.mxu0 %v1227
    %v9681 = vpop.f32.mrf.mxu0
    %v9682 = vadd.f32 %v9633, %v9681
    %v9683 = vpop.f32.mrf.mxu0
    %v9684 = vadd.f32 %v9635, %v9683
    %9685 = vmatmul.bf16.gmra.mxu0 %v1231
    %v9686 = vpop.f32.mrf.mxu0
    %v9687 = vadd.f32 %v9638, %v9686
    %v9688 = vpop.f32.mrf.mxu0
    %v9689 = vadd.f32 %v9640, %v9688
    %9690 = vmatmul.bf16.gmra.mxu0 %v1235
    %v9691 = vpop.f32.mrf.mxu0
    %v9692 = vadd.f32 %v9643, %v9691
    %v9693 = vpop.f32.mrf.mxu0
    %v9694 = vadd.f32 %v9645, %v9693
    %9695 = vmatmul.bf16.gmra.mxu0 %v1239
    %v9696 = vpop.f32.mrf.mxu0
    %v9697 = vadd.f32 %v9648, %v9696
    %v9698 = vpop.f32.mrf.mxu0
    %v9699 = vadd.f32 %v9650, %v9698
    %9700 = vmatmul.bf16.gmra.mxu0 %v1243
    %v9701 = vpop.f32.mrf.mxu0
    %v9702 = vadd.f32 %v9653, %v9701
    %v9703 = vpop.f32.mrf.mxu0
    %v9704 = vadd.f32 %v9655, %v9703
    %9705 = vdwg.mxu0
    %9706 = vmatpush.bf16.msra.mxu0 %v4749
    %9707 = vmatpush.bf16.msra.mxu0 %v4741
    %9708 = vmatpush.bf16.msra.mxu0 %v4733
    %9709 = vmatpush.bf16.msra.mxu0 %v4725
    %9710 = vmatpush.bf16.msra.mxu0 %v4717
    %9711 = vmatpush.bf16.msra.mxu0 %v4709
    %9712 = vmatpush.bf16.msra.mxu0 %v4701
    %9713 = vmatpush.bf16.msra.mxu0 %v4693
    %9714 = vmatmul.bf16.gmra.mxu0 %v1216
    %v9715 = vpop.f32.mrf.mxu0
    %v9716 = vadd.f32 %v9667, %v9715
    %v9717 = vpop.f32.mrf.mxu0
    %v9718 = vadd.f32 %v9669, %v9717
    %9719 = vmatmul.bf16.gmra.mxu0 %v1220
    %v9720 = vpop.f32.mrf.mxu0
    %v9721 = vadd.f32 %v9672, %v9720
    %v9722 = vpop.f32.mrf.mxu0
    %v9723 = vadd.f32 %v9674, %v9722
    %9724 = vmatmul.bf16.gmra.mxu0 %v1224
    %v9725 = vpop.f32.mrf.mxu0
    %v9726 = vadd.f32 %v9677, %v9725
    %v9727 = vpop.f32.mrf.mxu0
    %v9728 = vadd.f32 %v9679, %v9727
    %9729 = vmatmul.bf16.gmra.mxu0 %v1228
    %v9730 = vpop.f32.mrf.mxu0
    %v9731 = vadd.f32 %v9682, %v9730
    %v9732 = vpop.f32.mrf.mxu0
    %v9733 = vadd.f32 %v9684, %v9732
    %9734 = vmatmul.bf16.gmra.mxu0 %v1232
    %v9735 = vpop.f32.mrf.mxu0
    %v9736 = vadd.f32 %v9687, %v9735
    %v9737 = vpop.f32.mrf.mxu0
    %v9738 = vadd.f32 %v9689, %v9737
    %9739 = vmatmul.bf16.gmra.mxu0 %v1236
    %v9740 = vpop.f32.mrf.mxu0
    %v9741 = vadd.f32 %v9692, %v9740
    %v9742 = vpop.f32.mrf.mxu0
    %v9743 = vadd.f32 %v9694, %v9742
    %9744 = vmatmul.bf16.gmra.mxu0 %v1240
    %v9745 = vpop.f32.mrf.mxu0
    %v9746 = vadd.f32 %v9697, %v9745
    %v9747 = vpop.f32.mrf.mxu0
    %v9748 = vadd.f32 %v9699, %v9747
    %9749 = vmatmul.bf16.gmra.mxu0 %v1244
    %v9750 = vpop.f32.mrf.mxu0
    %v9751 = vadd.f32 %v9702, %v9750
    %v9752 = vpop.f32.mrf.mxu0
    %v9753 = vadd.f32 %v9704, %v9752
    %9754 = vdwg.mxu0
    %9755 = vmatpush.bf16.msra.mxu0 %v4813
    %9756 = vmatpush.bf16.msra.mxu0 %v4805
    %9757 = vmatpush.bf16.msra.mxu0 %v4797
    %9758 = vmatpush.bf16.msra.mxu0 %v4789
    %9759 = vmatpush.bf16.msra.mxu0 %v4781
    %9760 = vmatpush.bf16.msra.mxu0 %v4773
    %9761 = vmatpush.bf16.msra.mxu0 %v4765
    %9762 = vmatpush.bf16.msra.mxu0 %v4757
    %9763 = vmatmul.bf16.gmra.mxu0 %v925
    %v9764 = vpop.f32.mrf.mxu0
    %v9765 = vadd.f32 %v9716, %v9764
    %v9766 = vpop.f32.mrf.mxu0
    %v9767 = vadd.f32 %v9718, %v9766
    %9768 = vmatmul.bf16.gmra.mxu0 %v929
    %v9769 = vpop.f32.mrf.mxu0
    %v9770 = vadd.f32 %v9721, %v9769
    %v9771 = vpop.f32.mrf.mxu0
    %v9772 = vadd.f32 %v9723, %v9771
    %9773 = vmatmul.bf16.gmra.mxu0 %v933
    %v9774 = vpop.f32.mrf.mxu0
    %v9775 = vadd.f32 %v9726, %v9774
    %v9776 = vpop.f32.mrf.mxu0
    %v9777 = vadd.f32 %v9728, %v9776
    %9778 = vmatmul.bf16.gmra.mxu0 %v937
    %v9779 = vpop.f32.mrf.mxu0
    %v9780 = vadd.f32 %v9731, %v9779
    %v9781 = vpop.f32.mrf.mxu0
    %v9782 = vadd.f32 %v9733, %v9781
    %9783 = vmatmul.bf16.gmra.mxu0 %v941
    %v9784 = vpop.f32.mrf.mxu0
    %v9785 = vadd.f32 %v9736, %v9784
    %v9786 = vpop.f32.mrf.mxu0
    %v9787 = vadd.f32 %v9738, %v9786
    %9788 = vmatmul.bf16.gmra.mxu0 %v945
    %v9789 = vpop.f32.mrf.mxu0
    %v9790 = vadd.f32 %v9741, %v9789
    %v9791 = vpop.f32.mrf.mxu0
    %v9792 = vadd.f32 %v9743, %v9791
    %9793 = vmatmul.bf16.gmra.mxu0 %v949
    %v9794 = vpop.f32.mrf.mxu0
    %v9795 = vadd.f32 %v9746, %v9794
    %v9796 = vpop.f32.mrf.mxu0
    %v9797 = vadd.f32 %v9748, %v9796
    %9798 = vmatmul.bf16.gmra.mxu0 %v953
    %v9799 = vpop.f32.mrf.mxu0
    %v9800 = vadd.f32 %v9751, %v9799
    %v9801 = vpop.f32.mrf.mxu0
    %v9802 = vadd.f32 %v9753, %v9801
    %9803 = vdwg.mxu0
    %9804 = vmatpush.bf16.msra.mxu0 %v4877
    %9805 = vmatpush.bf16.msra.mxu0 %v4869
    %9806 = vmatpush.bf16.msra.mxu0 %v4861
    %9807 = vmatpush.bf16.msra.mxu0 %v4853
    %9808 = vmatpush.bf16.msra.mxu0 %v4845
    %9809 = vmatpush.bf16.msra.mxu0 %v4837
    %9810 = vmatpush.bf16.msra.mxu0 %v4829
    %9811 = vmatpush.bf16.msra.mxu0 %v4821
    %9812 = vmatmul.bf16.gmra.mxu0 %v926
    %v9813 = vpop.f32.mrf.mxu0
    %v9814 = vadd.f32 %v9765, %v9813
    %v9815 = vpop.f32.mrf.mxu0
    %v9816 = vadd.f32 %v9767, %v9815
    %9817 = vmatmul.bf16.gmra.mxu0 %v930
    %v9818 = vpop.f32.mrf.mxu0
    %v9819 = vadd.f32 %v9770, %v9818
    %v9820 = vpop.f32.mrf.mxu0
    %v9821 = vadd.f32 %v9772, %v9820
    %9822 = vmatmul.bf16.gmra.mxu0 %v934
    %v9823 = vpop.f32.mrf.mxu0
    %v9824 = vadd.f32 %v9775, %v9823
    %v9825 = vpop.f32.mrf.mxu0
    %v9826 = vadd.f32 %v9777, %v9825
    %9827 = vmatmul.bf16.gmra.mxu0 %v938
    %v9828 = vpop.f32.mrf.mxu0
    %v9829 = vadd.f32 %v9780, %v9828
    %v9830 = vpop.f32.mrf.mxu0
    %v9831 = vadd.f32 %v9782, %v9830
    %9832 = vmatmul.bf16.gmra.mxu0 %v942
    %v9833 = vpop.f32.mrf.mxu0
    %v9834 = vadd.f32 %v9785, %v9833
    %v9835 = vpop.f32.mrf.mxu0
    %v9836 = vadd.f32 %v9787, %v9835
    %9837 = vmatmul.bf16.gmra.mxu0 %v946
    %v9838 = vpop.f32.mrf.mxu0
    %v9839 = vadd.f32 %v9790, %v9838
    %v9840 = vpop.f32.mrf.mxu0
    %v9841 = vadd.f32 %v9792, %v9840
    %9842 = vmatmul.bf16.gmra.mxu0 %v950
    %v9843 = vpop.f32.mrf.mxu0
    %v9844 = vadd.f32 %v9795, %v9843
    %v9845 = vpop.f32.mrf.mxu0
    %v9846 = vadd.f32 %v9797, %v9845
    %9847 = vmatmul.bf16.gmra.mxu0 %v954
    %v9848 = vpop.f32.mrf.mxu0
    %v9849 = vadd.f32 %v9800, %v9848
    %v9850 = vpop.f32.mrf.mxu0
    %v9851 = vadd.f32 %v9802, %v9850
    %9852 = vdwg.mxu0
    %9853 = vmatpush.bf16.msra.mxu0 %v4941
    %9854 = vmatpush.bf16.msra.mxu0 %v4933
    %9855 = vmatpush.bf16.msra.mxu0 %v4925
    %9856 = vmatpush.bf16.msra.mxu0 %v4917
    %9857 = vmatpush.bf16.msra.mxu0 %v4909
    %9858 = vmatpush.bf16.msra.mxu0 %v4901
    %9859 = vmatpush.bf16.msra.mxu0 %v4893
    %9860 = vmatpush.bf16.msra.mxu0 %v4885
    %9861 = vmatmul.bf16.gmra.mxu0 %v927
    %v9862 = vpop.f32.mrf.mxu0
    %v9863 = vadd.f32 %v9814, %v9862
    %v9864 = vpop.f32.mrf.mxu0
    %v9865 = vadd.f32 %v9816, %v9864
    %9866 = vmatmul.bf16.gmra.mxu0 %v931
    %v9867 = vpop.f32.mrf.mxu0
    %v9868 = vadd.f32 %v9819, %v9867
    %v9869 = vpop.f32.mrf.mxu0
    %v9870 = vadd.f32 %v9821, %v9869
    %9871 = vmatmul.bf16.gmra.mxu0 %v935
    %v9872 = vpop.f32.mrf.mxu0
    %v9873 = vadd.f32 %v9824, %v9872
    %v9874 = vpop.f32.mrf.mxu0
    %v9875 = vadd.f32 %v9826, %v9874
    %9876 = vmatmul.bf16.gmra.mxu0 %v939
    %v9877 = vpop.f32.mrf.mxu0
    %v9878 = vadd.f32 %v9829, %v9877
    %v9879 = vpop.f32.mrf.mxu0
    %v9880 = vadd.f32 %v9831, %v9879
    %9881 = vmatmul.bf16.gmra.mxu0 %v943
    %v9882 = vpop.f32.mrf.mxu0
    %v9883 = vadd.f32 %v9834, %v9882
    %v9884 = vpop.f32.mrf.mxu0
    %v9885 = vadd.f32 %v9836, %v9884
    %9886 = vmatmul.bf16.gmra.mxu0 %v947
    %v9887 = vpop.f32.mrf.mxu0
    %v9888 = vadd.f32 %v9839, %v9887
    %v9889 = vpop.f32.mrf.mxu0
    %v9890 = vadd.f32 %v9841, %v9889
    %9891 = vmatmul.bf16.gmra.mxu0 %v951
    %v9892 = vpop.f32.mrf.mxu0
    %v9893 = vadd.f32 %v9844, %v9892
    %v9894 = vpop.f32.mrf.mxu0
    %v9895 = vadd.f32 %v9846, %v9894
    %9896 = vmatmul.bf16.gmra.mxu0 %v955
    %v9897 = vpop.f32.mrf.mxu0
    %v9898 = vadd.f32 %v9849, %v9897
    %v9899 = vpop.f32.mrf.mxu0
    %v9900 = vadd.f32 %v9851, %v9899
    %9901 = vdwg.mxu0
    %9902 = vmatpush.bf16.msra.mxu0 %v5005
    %9903 = vmatpush.bf16.msra.mxu0 %v4997
    %9904 = vmatpush.bf16.msra.mxu0 %v4989
    %9905 = vmatpush.bf16.msra.mxu0 %v4981
    %9906 = vmatpush.bf16.msra.mxu0 %v4973
    %9907 = vmatpush.bf16.msra.mxu0 %v4965
    %9908 = vmatpush.bf16.msra.mxu0 %v4957
    %9909 = vmatpush.bf16.msra.mxu0 %v4949
    %9910 = vmatmul.bf16.gmra.mxu0 %v928
    %v9911 = vpop.f32.mrf.mxu0
    %v9912 = vadd.f32 %v9863, %v9911
    %v9913 = vpop.f32.mrf.mxu0
    %v9914 = vadd.f32 %v9865, %v9913
    %9915 = vmatmul.bf16.gmra.mxu0 %v932
    %v9916 = vpop.f32.mrf.mxu0
    %v9917 = vadd.f32 %v9868, %v9916
    %v9918 = vpop.f32.mrf.mxu0
    %v9919 = vadd.f32 %v9870, %v9918
    %9920 = vmatmul.bf16.gmra.mxu0 %v936
    %v9921 = vpop.f32.mrf.mxu0
    %v9922 = vadd.f32 %v9873, %v9921
    %v9923 = vpop.f32.mrf.mxu0
    %v9924 = vadd.f32 %v9875, %v9923
    %9925 = vmatmul.bf16.gmra.mxu0 %v940
    %v9926 = vpop.f32.mrf.mxu0
    %v9927 = vadd.f32 %v9878, %v9926
    %v9928 = vpop.f32.mrf.mxu0
    %v9929 = vadd.f32 %v9880, %v9928
    %9930 = vmatmul.bf16.gmra.mxu0 %v944
    %v9931 = vpop.f32.mrf.mxu0
    %v9932 = vadd.f32 %v9883, %v9931
    %v9933 = vpop.f32.mrf.mxu0
    %v9934 = vadd.f32 %v9885, %v9933
    %9935 = vmatmul.bf16.gmra.mxu0 %v948
    %v9936 = vpop.f32.mrf.mxu0
    %v9937 = vadd.f32 %v9888, %v9936
    %v9938 = vpop.f32.mrf.mxu0
    %v9939 = vadd.f32 %v9890, %v9938
    %9940 = vmatmul.bf16.gmra.mxu0 %v952
    %v9941 = vpop.f32.mrf.mxu0
    %v9942 = vadd.f32 %v9893, %v9941
    %v9943 = vpop.f32.mrf.mxu0
    %v9944 = vadd.f32 %v9895, %v9943
    %9945 = vmatmul.bf16.gmra.mxu0 %v956
    %v9946 = vpop.f32.mrf.mxu0
    %v9947 = vadd.f32 %v9898, %v9946
    %v9948 = vpop.f32.mrf.mxu0
    %v9949 = vadd.f32 %v9900, %v9948
    %9950 = vdwg.mxu0
    %9951 = vmatpush.bf16.msra.mxu0 %v5069
    %9952 = vmatpush.bf16.msra.mxu0 %v5061
    %9953 = vmatpush.bf16.msra.mxu0 %v5053
    %9954 = vmatpush.bf16.msra.mxu0 %v5045
    %9955 = vmatpush.bf16.msra.mxu0 %v5037
    %9956 = vmatpush.bf16.msra.mxu0 %v5029
    %9957 = vmatpush.bf16.msra.mxu0 %v5021
    %9958 = vmatpush.bf16.msra.mxu0 %v5013
    %9959 = vmatmul.bf16.gmra.mxu0 %v1341
    %v9960 = vpop.f32.mrf.mxu0
    %v9961 = vadd.f32 %v9912, %v9960
    %v9962 = vpop.f32.mrf.mxu0
    %v9963 = vadd.f32 %v9914, %v9962
    %9964 = vmatmul.bf16.gmra.mxu0 %v1345
    %v9965 = vpop.f32.mrf.mxu0
    %v9966 = vadd.f32 %v9917, %v9965
    %v9967 = vpop.f32.mrf.mxu0
    %v9968 = vadd.f32 %v9919, %v9967
    %9969 = vmatmul.bf16.gmra.mxu0 %v1349
    %v9970 = vpop.f32.mrf.mxu0
    %v9971 = vadd.f32 %v9922, %v9970
    %v9972 = vpop.f32.mrf.mxu0
    %v9973 = vadd.f32 %v9924, %v9972
    %9974 = vmatmul.bf16.gmra.mxu0 %v1353
    %v9975 = vpop.f32.mrf.mxu0
    %v9976 = vadd.f32 %v9927, %v9975
    %v9977 = vpop.f32.mrf.mxu0
    %v9978 = vadd.f32 %v9929, %v9977
    %9979 = vmatmul.bf16.gmra.mxu0 %v1357
    %v9980 = vpop.f32.mrf.mxu0
    %v9981 = vadd.f32 %v9932, %v9980
    %v9982 = vpop.f32.mrf.mxu0
    %v9983 = vadd.f32 %v9934, %v9982
    %9984 = vmatmul.bf16.gmra.mxu0 %v1361
    %v9985 = vpop.f32.mrf.mxu0
    %v9986 = vadd.f32 %v9937, %v9985
    %v9987 = vpop.f32.mrf.mxu0
    %v9988 = vadd.f32 %v9939, %v9987
    %9989 = vmatmul.bf16.gmra.mxu0 %v1365
    %v9990 = vpop.f32.mrf.mxu0
    %v9991 = vadd.f32 %v9942, %v9990
    %v9992 = vpop.f32.mrf.mxu0
    %v9993 = vadd.f32 %v9944, %v9992
    %9994 = vmatmul.bf16.gmra.mxu0 %v1369
    %v9995 = vpop.f32.mrf.mxu0
    %v9996 = vadd.f32 %v9947, %v9995
    %v9997 = vpop.f32.mrf.mxu0
    %v9998 = vadd.f32 %v9949, %v9997
    %9999 = vdwg.mxu0
    %10000 = vmatpush.bf16.msra.mxu0 %v5133
    %10001 = vmatpush.bf16.msra.mxu0 %v5125
    %10002 = vmatpush.bf16.msra.mxu0 %v5117
    %10003 = vmatpush.bf16.msra.mxu0 %v5109
    %10004 = vmatpush.bf16.msra.mxu0 %v5101
    %10005 = vmatpush.bf16.msra.mxu0 %v5093
    %10006 = vmatpush.bf16.msra.mxu0 %v5085
    %10007 = vmatpush.bf16.msra.mxu0 %v5077
    %10008 = vmatmul.bf16.gmra.mxu0 %v1342
    %v10009 = vpop.f32.mrf.mxu0
    %v10010 = vadd.f32 %v9961, %v10009
    %v10011 = vpop.f32.mrf.mxu0
    %v10012 = vadd.f32 %v9963, %v10011
    %10013 = vmatmul.bf16.gmra.mxu0 %v1346
    %v10014 = vpop.f32.mrf.mxu0
    %v10015 = vadd.f32 %v9966, %v10014
    %v10016 = vpop.f32.mrf.mxu0
    %v10017 = vadd.f32 %v9968, %v10016
    %10018 = vmatmul.bf16.gmra.mxu0 %v1350
    %v10019 = vpop.f32.mrf.mxu0
    %v10020 = vadd.f32 %v9971, %v10019
    %v10021 = vpop.f32.mrf.mxu0
    %v10022 = vadd.f32 %v9973, %v10021
    %10023 = vmatmul.bf16.gmra.mxu0 %v1354
    %v10024 = vpop.f32.mrf.mxu0
    %v10025 = vadd.f32 %v9976, %v10024
    %v10026 = vpop.f32.mrf.mxu0
    %v10027 = vadd.f32 %v9978, %v10026
    %10028 = vmatmul.bf16.gmra.mxu0 %v1358
    %v10029 = vpop.f32.mrf.mxu0
    %v10030 = vadd.f32 %v9981, %v10029
    %v10031 = vpop.f32.mrf.mxu0
    %v10032 = vadd.f32 %v9983, %v10031
    %10033 = vmatmul.bf16.gmra.mxu0 %v1362
    %v10034 = vpop.f32.mrf.mxu0
    %v10035 = vadd.f32 %v9986, %v10034
    %v10036 = vpop.f32.mrf.mxu0
    %v10037 = vadd.f32 %v9988, %v10036
    %10038 = vmatmul.bf16.gmra.mxu0 %v1366
    %v10039 = vpop.f32.mrf.mxu0
    %v10040 = vadd.f32 %v9991, %v10039
    %v10041 = vpop.f32.mrf.mxu0
    %v10042 = vadd.f32 %v9993, %v10041
    %10043 = vmatmul.bf16.gmra.mxu0 %v1370
    %v10044 = vpop.f32.mrf.mxu0
    %v10045 = vadd.f32 %v9996, %v10044
    %v10046 = vpop.f32.mrf.mxu0
    %v10047 = vadd.f32 %v9998, %v10046
    %10048 = vdwg.mxu0
    %10049 = vmatpush.bf16.msra.mxu0 %v5197
    %10050 = vmatpush.bf16.msra.mxu0 %v5189
    %10051 = vmatpush.bf16.msra.mxu0 %v5181
    %10052 = vmatpush.bf16.msra.mxu0 %v5173
    %10053 = vmatpush.bf16.msra.mxu0 %v5165
    %10054 = vmatpush.bf16.msra.mxu0 %v5157
    %10055 = vmatpush.bf16.msra.mxu0 %v5149
    %10056 = vmatpush.bf16.msra.mxu0 %v5141
    %10057 = vmatmul.bf16.gmra.mxu0 %v1343
    %v10058 = vpop.f32.mrf.mxu0
    %v10059 = vadd.f32 %v10010, %v10058
    %v10060 = vpop.f32.mrf.mxu0
    %v10061 = vadd.f32 %v10012, %v10060
    %10062 = vmatmul.bf16.gmra.mxu0 %v1347
    %v10063 = vpop.f32.mrf.mxu0
    %v10064 = vadd.f32 %v10015, %v10063
    %v10065 = vpop.f32.mrf.mxu0
    %v10066 = vadd.f32 %v10017, %v10065
    %10067 = vmatmul.bf16.gmra.mxu0 %v1351
    %v10068 = vpop.f32.mrf.mxu0
    %v10069 = vadd.f32 %v10020, %v10068
    %v10070 = vpop.f32.mrf.mxu0
    %v10071 = vadd.f32 %v10022, %v10070
    %10072 = vmatmul.bf16.gmra.mxu0 %v1355
    %v10073 = vpop.f32.mrf.mxu0
    %v10074 = vadd.f32 %v10025, %v10073
    %v10075 = vpop.f32.mrf.mxu0
    %v10076 = vadd.f32 %v10027, %v10075
    %10077 = vmatmul.bf16.gmra.mxu0 %v1359
    %v10078 = vpop.f32.mrf.mxu0
    %v10079 = vadd.f32 %v10030, %v10078
    %v10080 = vpop.f32.mrf.mxu0
    %v10081 = vadd.f32 %v10032, %v10080
    %10082 = vmatmul.bf16.gmra.mxu0 %v1363
    %v10083 = vpop.f32.mrf.mxu0
    %v10084 = vadd.f32 %v10035, %v10083
    %v10085 = vpop.f32.mrf.mxu0
    %v10086 = vadd.f32 %v10037, %v10085
    %10087 = vmatmul.bf16.gmra.mxu0 %v1367
    %v10088 = vpop.f32.mrf.mxu0
    %v10089 = vadd.f32 %v10040, %v10088
    %v10090 = vpop.f32.mrf.mxu0
    %v10091 = vadd.f32 %v10042, %v10090
    %10092 = vmatmul.bf16.gmra.mxu0 %v1371
    %v10093 = vpop.f32.mrf.mxu0
    %v10094 = vadd.f32 %v10045, %v10093
    %v10095 = vpop.f32.mrf.mxu0
    %v10096 = vadd.f32 %v10047, %v10095
    %10097 = vdwg.mxu0
    %10098 = vmatpush.bf16.msra.mxu0 %v5261
    %10099 = vmatpush.bf16.msra.mxu0 %v5253
    %10100 = vmatpush.bf16.msra.mxu0 %v5245
    %10101 = vmatpush.bf16.msra.mxu0 %v5237
    %10102 = vmatpush.bf16.msra.mxu0 %v5229
    %10103 = vmatpush.bf16.msra.mxu0 %v5221
    %10104 = vmatpush.bf16.msra.mxu0 %v5213
    %10105 = vmatpush.bf16.msra.mxu0 %v5205
    %10106 = vmatmul.bf16.gmra.mxu0 %v1344
    %v10107 = vpop.f32.mrf.mxu0
    %v10108 = vadd.f32 %v10059, %v10107
    %v10109 = vpop.f32.mrf.mxu0
    %v10110 = vadd.f32 %v10061, %v10109
    %10111 = vmatmul.bf16.gmra.mxu0 %v1348
    %v10112 = vpop.f32.mrf.mxu0
    %v10113 = vadd.f32 %v10064, %v10112
    %v10114 = vpop.f32.mrf.mxu0
    %v10115 = vadd.f32 %v10066, %v10114
    %10116 = vmatmul.bf16.gmra.mxu0 %v1352
    %v10117 = vpop.f32.mrf.mxu0
    %v10118 = vadd.f32 %v10069, %v10117
    %v10119 = vpop.f32.mrf.mxu0
    %v10120 = vadd.f32 %v10071, %v10119
    %10121 = vmatmul.bf16.gmra.mxu0 %v1356
    %v10122 = vpop.f32.mrf.mxu0
    %v10123 = vadd.f32 %v10074, %v10122
    %v10124 = vpop.f32.mrf.mxu0
    %v10125 = vadd.f32 %v10076, %v10124
    %10126 = vmatmul.bf16.gmra.mxu0 %v1360
    %v10127 = vpop.f32.mrf.mxu0
    %v10128 = vadd.f32 %v10079, %v10127
    %v10129 = vpop.f32.mrf.mxu0
    %v10130 = vadd.f32 %v10081, %v10129
    %10131 = vmatmul.bf16.gmra.mxu0 %v1364
    %v10132 = vpop.f32.mrf.mxu0
    %v10133 = vadd.f32 %v10084, %v10132
    %v10134 = vpop.f32.mrf.mxu0
    %v10135 = vadd.f32 %v10086, %v10134
    %10136 = vmatmul.bf16.gmra.mxu0 %v1368
    %v10137 = vpop.f32.mrf.mxu0
    %v10138 = vadd.f32 %v10089, %v10137
    %v10139 = vpop.f32.mrf.mxu0
    %v10140 = vadd.f32 %v10091, %v10139
    %10141 = vmatmul.bf16.gmra.mxu0 %v1372
    %v10142 = vpop.f32.mrf.mxu0
    %v10143 = vadd.f32 %v10094, %v10142
    %v10144 = vpop.f32.mrf.mxu0
    %v10145 = vadd.f32 %v10096, %v10144
    %10146 = vdwg.mxu0
    %10147 = vmatpush.bf16.msra.mxu0 %v4558
    %10148 = vmatpush.bf16.msra.mxu0 %v4550
    %10149 = vmatpush.bf16.msra.mxu0 %v4542
    %10150 = vmatpush.bf16.msra.mxu0 %v4534
    %10151 = vmatpush.bf16.msra.mxu0 %v4526
    %10152 = vmatpush.bf16.msra.mxu0 %v4518
    %10153 = vmatpush.bf16.msra.mxu0 %v4510
    %10154 = vmatpush.bf16.msra.mxu0 %v4502
    %10155 = vmatmul.bf16.gmra.mxu0 %v1213
    %v10156 = vpop.f32.mrf.mxu0
    %v10157 = vadd.f32 %v2182, %v10156
    %v10158 = vpop.f32.mrf.mxu0
    %v10159 = vadd.f32 %v2182, %v10158
    %10160 = vmatmul.bf16.gmra.mxu0 %v1217
    %v10161 = vpop.f32.mrf.mxu0
    %v10162 = vadd.f32 %v2182, %v10161
    %v10163 = vpop.f32.mrf.mxu0
    %v10164 = vadd.f32 %v2182, %v10163
    %10165 = vmatmul.bf16.gmra.mxu0 %v1221
    %v10166 = vpop.f32.mrf.mxu0
    %v10167 = vadd.f32 %v2182, %v10166
    %v10168 = vpop.f32.mrf.mxu0
    %v10169 = vadd.f32 %v2182, %v10168
    %10170 = vmatmul.bf16.gmra.mxu0 %v1225
    %v10171 = vpop.f32.mrf.mxu0
    %v10172 = vadd.f32 %v2182, %v10171
    %v10173 = vpop.f32.mrf.mxu0
    %v10174 = vadd.f32 %v2182, %v10173
    %10175 = vmatmul.bf16.gmra.mxu0 %v1229
    %v10176 = vpop.f32.mrf.mxu0
    %v10177 = vadd.f32 %v2182, %v10176
    %v10178 = vpop.f32.mrf.mxu0
    %v10179 = vadd.f32 %v2182, %v10178
    %10180 = vmatmul.bf16.gmra.mxu0 %v1233
    %v10181 = vpop.f32.mrf.mxu0
    %v10182 = vadd.f32 %v2182, %v10181
    %v10183 = vpop.f32.mrf.mxu0
    %v10184 = vadd.f32 %v2182, %v10183
    %10185 = vmatmul.bf16.gmra.mxu0 %v1237
    %v10186 = vpop.f32.mrf.mxu0
    %v10187 = vadd.f32 %v2182, %v10186
    %v10188 = vpop.f32.mrf.mxu0
    %v10189 = vadd.f32 %v2182, %v10188
    %10190 = vmatmul.bf16.gmra.mxu0 %v1241
    %v10191 = vpop.f32.mrf.mxu0
    %v10192 = vadd.f32 %v2182, %v10191
    %v10193 = vpop.f32.mrf.mxu0
    %v10194 = vadd.f32 %v2182, %v10193
    %10195 = vdwg.mxu0
    %10196 = vmatpush.bf16.msra.mxu0 %v4622
    %10197 = vmatpush.bf16.msra.mxu0 %v4614
    %10198 = vmatpush.bf16.msra.mxu0 %v4606
    %10199 = vmatpush.bf16.msra.mxu0 %v4598
    %10200 = vmatpush.bf16.msra.mxu0 %v4590
    %10201 = vmatpush.bf16.msra.mxu0 %v4582
    %10202 = vmatpush.bf16.msra.mxu0 %v4574
    %10203 = vmatpush.bf16.msra.mxu0 %v4566
    %10204 = vmatmul.bf16.gmra.mxu0 %v1214
    %v10205 = vpop.f32.mrf.mxu0
    %v10206 = vadd.f32 %v10157, %v10205
    %v10207 = vpop.f32.mrf.mxu0
    %v10208 = vadd.f32 %v10159, %v10207
    %10209 = vmatmul.bf16.gmra.mxu0 %v1218
    %v10210 = vpop.f32.mrf.mxu0
    %v10211 = vadd.f32 %v10162, %v10210
    %v10212 = vpop.f32.mrf.mxu0
    %v10213 = vadd.f32 %v10164, %v10212
    %10214 = vmatmul.bf16.gmra.mxu0 %v1222
    %v10215 = vpop.f32.mrf.mxu0
    %v10216 = vadd.f32 %v10167, %v10215
    %v10217 = vpop.f32.mrf.mxu0
    %v10218 = vadd.f32 %v10169, %v10217
    %10219 = vmatmul.bf16.gmra.mxu0 %v1226
    %v10220 = vpop.f32.mrf.mxu0
    %v10221 = vadd.f32 %v10172, %v10220
    %v10222 = vpop.f32.mrf.mxu0
    %v10223 = vadd.f32 %v10174, %v10222
    %10224 = vmatmul.bf16.gmra.mxu0 %v1230
    %v10225 = vpop.f32.mrf.mxu0
    %v10226 = vadd.f32 %v10177, %v10225
    %v10227 = vpop.f32.mrf.mxu0
    %v10228 = vadd.f32 %v10179, %v10227
    %10229 = vmatmul.bf16.gmra.mxu0 %v1234
    %v10230 = vpop.f32.mrf.mxu0
    %v10231 = vadd.f32 %v10182, %v10230
    %v10232 = vpop.f32.mrf.mxu0
    %v10233 = vadd.f32 %v10184, %v10232
    %10234 = vmatmul.bf16.gmra.mxu0 %v1238
    %v10235 = vpop.f32.mrf.mxu0
    %v10236 = vadd.f32 %v10187, %v10235
    %v10237 = vpop.f32.mrf.mxu0
    %v10238 = vadd.f32 %v10189, %v10237
    %10239 = vmatmul.bf16.gmra.mxu0 %v1242
    %v10240 = vpop.f32.mrf.mxu0
    %v10241 = vadd.f32 %v10192, %v10240
    %v10242 = vpop.f32.mrf.mxu0
    %v10243 = vadd.f32 %v10194, %v10242
    %10244 = vdwg.mxu0
    %10245 = vmatpush.bf16.msra.mxu0 %v4686
    %10246 = vmatpush.bf16.msra.mxu0 %v4678
    %10247 = vmatpush.bf16.msra.mxu0 %v4670
    %10248 = vmatpush.bf16.msra.mxu0 %v4662
    %10249 = vmatpush.bf16.msra.mxu0 %v4654
    %10250 = vmatpush.bf16.msra.mxu0 %v4646
    %10251 = vmatpush.bf16.msra.mxu0 %v4638
    %10252 = vmatpush.bf16.msra.mxu0 %v4630
    %10253 = vmatmul.bf16.gmra.mxu0 %v1215
    %v10254 = vpop.f32.mrf.mxu0
    %v10255 = vadd.f32 %v10206, %v10254
    %v10256 = vpop.f32.mrf.mxu0
    %v10257 = vadd.f32 %v10208, %v10256
    %10258 = vmatmul.bf16.gmra.mxu0 %v1219
    %v10259 = vpop.f32.mrf.mxu0
    %v10260 = vadd.f32 %v10211, %v10259
    %v10261 = vpop.f32.mrf.mxu0
    %v10262 = vadd.f32 %v10213, %v10261
    %10263 = vmatmul.bf16.gmra.mxu0 %v1223
    %v10264 = vpop.f32.mrf.mxu0
    %v10265 = vadd.f32 %v10216, %v10264
    %v10266 = vpop.f32.mrf.mxu0
    %v10267 = vadd.f32 %v10218, %v10266
    %10268 = vmatmul.bf16.gmra.mxu0 %v1227
    %v10269 = vpop.f32.mrf.mxu0
    %v10270 = vadd.f32 %v10221, %v10269
    %v10271 = vpop.f32.mrf.mxu0
    %v10272 = vadd.f32 %v10223, %v10271
    %10273 = vmatmul.bf16.gmra.mxu0 %v1231
    %v10274 = vpop.f32.mrf.mxu0
    %v10275 = vadd.f32 %v10226, %v10274
    %v10276 = vpop.f32.mrf.mxu0
    %v10277 = vadd.f32 %v10228, %v10276
    %10278 = vmatmul.bf16.gmra.mxu0 %v1235
    %v10279 = vpop.f32.mrf.mxu0
    %v10280 = vadd.f32 %v10231, %v10279
    %v10281 = vpop.f32.mrf.mxu0
    %v10282 = vadd.f32 %v10233, %v10281
    %10283 = vmatmul.bf16.gmra.mxu0 %v1239
    %v10284 = vpop.f32.mrf.mxu0
    %v10285 = vadd.f32 %v10236, %v10284
    %v10286 = vpop.f32.mrf.mxu0
    %v10287 = vadd.f32 %v10238, %v10286
    %10288 = vmatmul.bf16.gmra.mxu0 %v1243
    %v10289 = vpop.f32.mrf.mxu0
    %v10290 = vadd.f32 %v10241, %v10289
    %v10291 = vpop.f32.mrf.mxu0
    %v10292 = vadd.f32 %v10243, %v10291
    %10293 = vdwg.mxu0
    %10294 = vmatpush.bf16.msra.mxu0 %v4750
    %10295 = vmatpush.bf16.msra.mxu0 %v4742
    %10296 = vmatpush.bf16.msra.mxu0 %v4734
    %10297 = vmatpush.bf16.msra.mxu0 %v4726
    %10298 = vmatpush.bf16.msra.mxu0 %v4718
    %10299 = vmatpush.bf16.msra.mxu0 %v4710
    %10300 = vmatpush.bf16.msra.mxu0 %v4702
    %10301 = vmatpush.bf16.msra.mxu0 %v4694
    %10302 = vmatmul.bf16.gmra.mxu0 %v1216
    %v10303 = vpop.f32.mrf.mxu0
    %v10304 = vadd.f32 %v10255, %v10303
    %v10305 = vpop.f32.mrf.mxu0
    %v10306 = vadd.f32 %v10257, %v10305
    %10307 = vmatmul.bf16.gmra.mxu0 %v1220
    %v10308 = vpop.f32.mrf.mxu0
    %v10309 = vadd.f32 %v10260, %v10308
    %v10310 = vpop.f32.mrf.mxu0
    %v10311 = vadd.f32 %v10262, %v10310
    %10312 = vmatmul.bf16.gmra.mxu0 %v1224
    %v10313 = vpop.f32.mrf.mxu0
    %v10314 = vadd.f32 %v10265, %v10313
    %v10315 = vpop.f32.mrf.mxu0
    %v10316 = vadd.f32 %v10267, %v10315
    %10317 = vmatmul.bf16.gmra.mxu0 %v1228
    %v10318 = vpop.f32.mrf.mxu0
    %v10319 = vadd.f32 %v10270, %v10318
    %v10320 = vpop.f32.mrf.mxu0
    %v10321 = vadd.f32 %v10272, %v10320
    %10322 = vmatmul.bf16.gmra.mxu0 %v1232
    %v10323 = vpop.f32.mrf.mxu0
    %v10324 = vadd.f32 %v10275, %v10323
    %v10325 = vpop.f32.mrf.mxu0
    %v10326 = vadd.f32 %v10277, %v10325
    %10327 = vmatmul.bf16.gmra.mxu0 %v1236
    %v10328 = vpop.f32.mrf.mxu0
    %v10329 = vadd.f32 %v10280, %v10328
    %v10330 = vpop.f32.mrf.mxu0
    %v10331 = vadd.f32 %v10282, %v10330
    %10332 = vmatmul.bf16.gmra.mxu0 %v1240
    %v10333 = vpop.f32.mrf.mxu0
    %v10334 = vadd.f32 %v10285, %v10333
    %v10335 = vpop.f32.mrf.mxu0
    %v10336 = vadd.f32 %v10287, %v10335
    %10337 = vmatmul.bf16.gmra.mxu0 %v1244
    %v10338 = vpop.f32.mrf.mxu0
    %v10339 = vadd.f32 %v10290, %v10338
    %v10340 = vpop.f32.mrf.mxu0
    %v10341 = vadd.f32 %v10292, %v10340
    %10342 = vdwg.mxu0
    %10343 = vmatpush.bf16.msra.mxu0 %v4814
    %10344 = vmatpush.bf16.msra.mxu0 %v4806
    %10345 = vmatpush.bf16.msra.mxu0 %v4798
    %10346 = vmatpush.bf16.msra.mxu0 %v4790
    %10347 = vmatpush.bf16.msra.mxu0 %v4782
    %10348 = vmatpush.bf16.msra.mxu0 %v4774
    %10349 = vmatpush.bf16.msra.mxu0 %v4766
    %10350 = vmatpush.bf16.msra.mxu0 %v4758
    %10351 = vmatmul.bf16.gmra.mxu0 %v925
    %v10352 = vpop.f32.mrf.mxu0
    %v10353 = vadd.f32 %v10304, %v10352
    %v10354 = vpop.f32.mrf.mxu0
    %v10355 = vadd.f32 %v10306, %v10354
    %10356 = vmatmul.bf16.gmra.mxu0 %v929
    %v10357 = vpop.f32.mrf.mxu0
    %v10358 = vadd.f32 %v10309, %v10357
    %v10359 = vpop.f32.mrf.mxu0
    %v10360 = vadd.f32 %v10311, %v10359
    %10361 = vmatmul.bf16.gmra.mxu0 %v933
    %v10362 = vpop.f32.mrf.mxu0
    %v10363 = vadd.f32 %v10314, %v10362
    %v10364 = vpop.f32.mrf.mxu0
    %v10365 = vadd.f32 %v10316, %v10364
    %10366 = vmatmul.bf16.gmra.mxu0 %v937
    %v10367 = vpop.f32.mrf.mxu0
    %v10368 = vadd.f32 %v10319, %v10367
    %v10369 = vpop.f32.mrf.mxu0
    %v10370 = vadd.f32 %v10321, %v10369
    %10371 = vmatmul.bf16.gmra.mxu0 %v941
    %v10372 = vpop.f32.mrf.mxu0
    %v10373 = vadd.f32 %v10324, %v10372
    %v10374 = vpop.f32.mrf.mxu0
    %v10375 = vadd.f32 %v10326, %v10374
    %10376 = vmatmul.bf16.gmra.mxu0 %v945
    %v10377 = vpop.f32.mrf.mxu0
    %v10378 = vadd.f32 %v10329, %v10377
    %v10379 = vpop.f32.mrf.mxu0
    %v10380 = vadd.f32 %v10331, %v10379
    %10381 = vmatmul.bf16.gmra.mxu0 %v949
    %v10382 = vpop.f32.mrf.mxu0
    %v10383 = vadd.f32 %v10334, %v10382
    %v10384 = vpop.f32.mrf.mxu0
    %v10385 = vadd.f32 %v10336, %v10384
    %10386 = vmatmul.bf16.gmra.mxu0 %v953
    %v10387 = vpop.f32.mrf.mxu0
    %v10388 = vadd.f32 %v10339, %v10387
    %v10389 = vpop.f32.mrf.mxu0
    %v10390 = vadd.f32 %v10341, %v10389
    %10391 = vdwg.mxu0
    %10392 = vmatpush.bf16.msra.mxu0 %v4878
    %10393 = vmatpush.bf16.msra.mxu0 %v4870
    %10394 = vmatpush.bf16.msra.mxu0 %v4862
    %10395 = vmatpush.bf16.msra.mxu0 %v4854
    %10396 = vmatpush.bf16.msra.mxu0 %v4846
    %10397 = vmatpush.bf16.msra.mxu0 %v4838
    %10398 = vmatpush.bf16.msra.mxu0 %v4830
    %10399 = vmatpush.bf16.msra.mxu0 %v4822
    %10400 = vmatmul.bf16.gmra.mxu0 %v926
    %v10401 = vpop.f32.mrf.mxu0
    %v10402 = vadd.f32 %v10353, %v10401
    %v10403 = vpop.f32.mrf.mxu0
    %v10404 = vadd.f32 %v10355, %v10403
    %10405 = vmatmul.bf16.gmra.mxu0 %v930
    %v10406 = vpop.f32.mrf.mxu0
    %v10407 = vadd.f32 %v10358, %v10406
    %v10408 = vpop.f32.mrf.mxu0
    %v10409 = vadd.f32 %v10360, %v10408
    %10410 = vmatmul.bf16.gmra.mxu0 %v934
    %v10411 = vpop.f32.mrf.mxu0
    %v10412 = vadd.f32 %v10363, %v10411
    %v10413 = vpop.f32.mrf.mxu0
    %v10414 = vadd.f32 %v10365, %v10413
    %10415 = vmatmul.bf16.gmra.mxu0 %v938
    %v10416 = vpop.f32.mrf.mxu0
    %v10417 = vadd.f32 %v10368, %v10416
    %v10418 = vpop.f32.mrf.mxu0
    %v10419 = vadd.f32 %v10370, %v10418
    %10420 = vmatmul.bf16.gmra.mxu0 %v942
    %v10421 = vpop.f32.mrf.mxu0
    %v10422 = vadd.f32 %v10373, %v10421
    %v10423 = vpop.f32.mrf.mxu0
    %v10424 = vadd.f32 %v10375, %v10423
    %10425 = vmatmul.bf16.gmra.mxu0 %v946
    %v10426 = vpop.f32.mrf.mxu0
    %v10427 = vadd.f32 %v10378, %v10426
    %v10428 = vpop.f32.mrf.mxu0
    %v10429 = vadd.f32 %v10380, %v10428
    %10430 = vmatmul.bf16.gmra.mxu0 %v950
    %v10431 = vpop.f32.mrf.mxu0
    %v10432 = vadd.f32 %v10383, %v10431
    %v10433 = vpop.f32.mrf.mxu0
    %v10434 = vadd.f32 %v10385, %v10433
    %10435 = vmatmul.bf16.gmra.mxu0 %v954
    %v10436 = vpop.f32.mrf.mxu0
    %v10437 = vadd.f32 %v10388, %v10436
    %v10438 = vpop.f32.mrf.mxu0
    %v10439 = vadd.f32 %v10390, %v10438
    %10440 = vdwg.mxu0
    %10441 = vmatpush.bf16.msra.mxu0 %v4942
    %10442 = vmatpush.bf16.msra.mxu0 %v4934
    %10443 = vmatpush.bf16.msra.mxu0 %v4926
    %10444 = vmatpush.bf16.msra.mxu0 %v4918
    %10445 = vmatpush.bf16.msra.mxu0 %v4910
    %10446 = vmatpush.bf16.msra.mxu0 %v4902
    %10447 = vmatpush.bf16.msra.mxu0 %v4894
    %10448 = vmatpush.bf16.msra.mxu0 %v4886
    %10449 = vmatmul.bf16.gmra.mxu0 %v927
    %v10450 = vpop.f32.mrf.mxu0
    %v10451 = vadd.f32 %v10402, %v10450
    %v10452 = vpop.f32.mrf.mxu0
    %v10453 = vadd.f32 %v10404, %v10452
    %10454 = vmatmul.bf16.gmra.mxu0 %v931
    %v10455 = vpop.f32.mrf.mxu0
    %v10456 = vadd.f32 %v10407, %v10455
    %v10457 = vpop.f32.mrf.mxu0
    %v10458 = vadd.f32 %v10409, %v10457
    %10459 = vmatmul.bf16.gmra.mxu0 %v935
    %v10460 = vpop.f32.mrf.mxu0
    %v10461 = vadd.f32 %v10412, %v10460
    %v10462 = vpop.f32.mrf.mxu0
    %v10463 = vadd.f32 %v10414, %v10462
    %10464 = vmatmul.bf16.gmra.mxu0 %v939
    %v10465 = vpop.f32.mrf.mxu0
    %v10466 = vadd.f32 %v10417, %v10465
    %v10467 = vpop.f32.mrf.mxu0
    %v10468 = vadd.f32 %v10419, %v10467
    %10469 = vmatmul.bf16.gmra.mxu0 %v943
    %v10470 = vpop.f32.mrf.mxu0
    %v10471 = vadd.f32 %v10422, %v10470
    %v10472 = vpop.f32.mrf.mxu0
    %v10473 = vadd.f32 %v10424, %v10472
    %10474 = vmatmul.bf16.gmra.mxu0 %v947
    %v10475 = vpop.f32.mrf.mxu0
    %v10476 = vadd.f32 %v10427, %v10475
    %v10477 = vpop.f32.mrf.mxu0
    %v10478 = vadd.f32 %v10429, %v10477
    %10479 = vmatmul.bf16.gmra.mxu0 %v951
    %v10480 = vpop.f32.mrf.mxu0
    %v10481 = vadd.f32 %v10432, %v10480
    %v10482 = vpop.f32.mrf.mxu0
    %v10483 = vadd.f32 %v10434, %v10482
    %10484 = vmatmul.bf16.gmra.mxu0 %v955
    %v10485 = vpop.f32.mrf.mxu0
    %v10486 = vadd.f32 %v10437, %v10485
    %v10487 = vpop.f32.mrf.mxu0
    %v10488 = vadd.f32 %v10439, %v10487
    %10489 = vdwg.mxu0
    %10490 = vmatpush.bf16.msra.mxu0 %v5006
    %10491 = vmatpush.bf16.msra.mxu0 %v4998
    %10492 = vmatpush.bf16.msra.mxu0 %v4990
    %10493 = vmatpush.bf16.msra.mxu0 %v4982
    %10494 = vmatpush.bf16.msra.mxu0 %v4974
    %10495 = vmatpush.bf16.msra.mxu0 %v4966
    %10496 = vmatpush.bf16.msra.mxu0 %v4958
    %10497 = vmatpush.bf16.msra.mxu0 %v4950
    %10498 = vmatmul.bf16.gmra.mxu0 %v928
    %v10499 = vpop.f32.mrf.mxu0
    %v10500 = vadd.f32 %v10451, %v10499
    %v10501 = vpop.f32.mrf.mxu0
    %v10502 = vadd.f32 %v10453, %v10501
    %10503 = vmatmul.bf16.gmra.mxu0 %v932
    %v10504 = vpop.f32.mrf.mxu0
    %v10505 = vadd.f32 %v10456, %v10504
    %v10506 = vpop.f32.mrf.mxu0
    %v10507 = vadd.f32 %v10458, %v10506
    %10508 = vmatmul.bf16.gmra.mxu0 %v936
    %v10509 = vpop.f32.mrf.mxu0
    %v10510 = vadd.f32 %v10461, %v10509
    %v10511 = vpop.f32.mrf.mxu0
    %v10512 = vadd.f32 %v10463, %v10511
    %10513 = vmatmul.bf16.gmra.mxu0 %v940
    %v10514 = vpop.f32.mrf.mxu0
    %v10515 = vadd.f32 %v10466, %v10514
    %v10516 = vpop.f32.mrf.mxu0
    %v10517 = vadd.f32 %v10468, %v10516
    %10518 = vmatmul.bf16.gmra.mxu0 %v944
    %v10519 = vpop.f32.mrf.mxu0
    %v10520 = vadd.f32 %v10471, %v10519
    %v10521 = vpop.f32.mrf.mxu0
    %v10522 = vadd.f32 %v10473, %v10521
    %10523 = vmatmul.bf16.gmra.mxu0 %v948
    %v10524 = vpop.f32.mrf.mxu0
    %v10525 = vadd.f32 %v10476, %v10524
    %v10526 = vpop.f32.mrf.mxu0
    %v10527 = vadd.f32 %v10478, %v10526
    %10528 = vmatmul.bf16.gmra.mxu0 %v952
    %v10529 = vpop.f32.mrf.mxu0
    %v10530 = vadd.f32 %v10481, %v10529
    %v10531 = vpop.f32.mrf.mxu0
    %v10532 = vadd.f32 %v10483, %v10531
    %10533 = vmatmul.bf16.gmra.mxu0 %v956
    %v10534 = vpop.f32.mrf.mxu0
    %v10535 = vadd.f32 %v10486, %v10534
    %v10536 = vpop.f32.mrf.mxu0
    %v10537 = vadd.f32 %v10488, %v10536
    %10538 = vdwg.mxu0
    %10539 = vmatpush.bf16.msra.mxu0 %v5070
    %10540 = vmatpush.bf16.msra.mxu0 %v5062
    %10541 = vmatpush.bf16.msra.mxu0 %v5054
    %10542 = vmatpush.bf16.msra.mxu0 %v5046
    %10543 = vmatpush.bf16.msra.mxu0 %v5038
    %10544 = vmatpush.bf16.msra.mxu0 %v5030
    %10545 = vmatpush.bf16.msra.mxu0 %v5022
    %10546 = vmatpush.bf16.msra.mxu0 %v5014
    %10547 = vmatmul.bf16.gmra.mxu0 %v1341
    %v10548 = vpop.f32.mrf.mxu0
    %v10549 = vadd.f32 %v10500, %v10548
    %v10550 = vpop.f32.mrf.mxu0
    %v10551 = vadd.f32 %v10502, %v10550
    %10552 = vmatmul.bf16.gmra.mxu0 %v1345
    %v10553 = vpop.f32.mrf.mxu0
    %v10554 = vadd.f32 %v10505, %v10553
    %v10555 = vpop.f32.mrf.mxu0
    %v10556 = vadd.f32 %v10507, %v10555
    %10557 = vmatmul.bf16.gmra.mxu0 %v1349
    %v10558 = vpop.f32.mrf.mxu0
    %v10559 = vadd.f32 %v10510, %v10558
    %v10560 = vpop.f32.mrf.mxu0
    %v10561 = vadd.f32 %v10512, %v10560
    %10562 = vmatmul.bf16.gmra.mxu0 %v1353
    %v10563 = vpop.f32.mrf.mxu0
    %v10564 = vadd.f32 %v10515, %v10563
    %v10565 = vpop.f32.mrf.mxu0
    %v10566 = vadd.f32 %v10517, %v10565
    %10567 = vmatmul.bf16.gmra.mxu0 %v1357
    %v10568 = vpop.f32.mrf.mxu0
    %v10569 = vadd.f32 %v10520, %v10568
    %v10570 = vpop.f32.mrf.mxu0
    %v10571 = vadd.f32 %v10522, %v10570
    %10572 = vmatmul.bf16.gmra.mxu0 %v1361
    %v10573 = vpop.f32.mrf.mxu0
    %v10574 = vadd.f32 %v10525, %v10573
    %v10575 = vpop.f32.mrf.mxu0
    %v10576 = vadd.f32 %v10527, %v10575
    %10577 = vmatmul.bf16.gmra.mxu0 %v1365
    %v10578 = vpop.f32.mrf.mxu0
    %v10579 = vadd.f32 %v10530, %v10578
    %v10580 = vpop.f32.mrf.mxu0
    %v10581 = vadd.f32 %v10532, %v10580
    %10582 = vmatmul.bf16.gmra.mxu0 %v1369
    %v10583 = vpop.f32.mrf.mxu0
    %v10584 = vadd.f32 %v10535, %v10583
    %v10585 = vpop.f32.mrf.mxu0
    %v10586 = vadd.f32 %v10537, %v10585
    %10587 = vdwg.mxu0
    %10588 = vmatpush.bf16.msra.mxu0 %v5134
    %10589 = vmatpush.bf16.msra.mxu0 %v5126
    %10590 = vmatpush.bf16.msra.mxu0 %v5118
    %10591 = vmatpush.bf16.msra.mxu0 %v5110
    %10592 = vmatpush.bf16.msra.mxu0 %v5102
    %10593 = vmatpush.bf16.msra.mxu0 %v5094
    %10594 = vmatpush.bf16.msra.mxu0 %v5086
    %10595 = vmatpush.bf16.msra.mxu0 %v5078
    %10596 = vmatmul.bf16.gmra.mxu0 %v1342
    %v10597 = vpop.f32.mrf.mxu0
    %v10598 = vadd.f32 %v10549, %v10597
    %v10599 = vpop.f32.mrf.mxu0
    %v10600 = vadd.f32 %v10551, %v10599
    %10601 = vmatmul.bf16.gmra.mxu0 %v1346
    %v10602 = vpop.f32.mrf.mxu0
    %v10603 = vadd.f32 %v10554, %v10602
    %v10604 = vpop.f32.mrf.mxu0
    %v10605 = vadd.f32 %v10556, %v10604
    %10606 = vmatmul.bf16.gmra.mxu0 %v1350
    %v10607 = vpop.f32.mrf.mxu0
    %v10608 = vadd.f32 %v10559, %v10607
    %v10609 = vpop.f32.mrf.mxu0
    %v10610 = vadd.f32 %v10561, %v10609
    %10611 = vmatmul.bf16.gmra.mxu0 %v1354
    %v10612 = vpop.f32.mrf.mxu0
    %v10613 = vadd.f32 %v10564, %v10612
    %v10614 = vpop.f32.mrf.mxu0
    %v10615 = vadd.f32 %v10566, %v10614
    %10616 = vmatmul.bf16.gmra.mxu0 %v1358
    %v10617 = vpop.f32.mrf.mxu0
    %v10618 = vadd.f32 %v10569, %v10617
    %v10619 = vpop.f32.mrf.mxu0
    %v10620 = vadd.f32 %v10571, %v10619
    %10621 = vmatmul.bf16.gmra.mxu0 %v1362
    %v10622 = vpop.f32.mrf.mxu0
    %v10623 = vadd.f32 %v10574, %v10622
    %v10624 = vpop.f32.mrf.mxu0
    %v10625 = vadd.f32 %v10576, %v10624
    %10626 = vmatmul.bf16.gmra.mxu0 %v1366
    %v10627 = vpop.f32.mrf.mxu0
    %v10628 = vadd.f32 %v10579, %v10627
    %v10629 = vpop.f32.mrf.mxu0
    %v10630 = vadd.f32 %v10581, %v10629
    %10631 = vmatmul.bf16.gmra.mxu0 %v1370
    %v10632 = vpop.f32.mrf.mxu0
    %v10633 = vadd.f32 %v10584, %v10632
    %v10634 = vpop.f32.mrf.mxu0
    %v10635 = vadd.f32 %v10586, %v10634
    %10636 = vdwg.mxu0
    %10637 = vmatpush.bf16.msra.mxu0 %v5198
    %10638 = vmatpush.bf16.msra.mxu0 %v5190
    %10639 = vmatpush.bf16.msra.mxu0 %v5182
    %10640 = vmatpush.bf16.msra.mxu0 %v5174
    %10641 = vmatpush.bf16.msra.mxu0 %v5166
    %10642 = vmatpush.bf16.msra.mxu0 %v5158
    %10643 = vmatpush.bf16.msra.mxu0 %v5150
    %10644 = vmatpush.bf16.msra.mxu0 %v5142
    %10645 = vmatmul.bf16.gmra.mxu0 %v1343
    %v10646 = vpop.f32.mrf.mxu0
    %v10647 = vadd.f32 %v10598, %v10646
    %v10648 = vpop.f32.mrf.mxu0
    %v10649 = vadd.f32 %v10600, %v10648
    %10650 = vmatmul.bf16.gmra.mxu0 %v1347
    %v10651 = vpop.f32.mrf.mxu0
    %v10652 = vadd.f32 %v10603, %v10651
    %v10653 = vpop.f32.mrf.mxu0
    %v10654 = vadd.f32 %v10605, %v10653
    %10655 = vmatmul.bf16.gmra.mxu0 %v1351
    %v10656 = vpop.f32.mrf.mxu0
    %v10657 = vadd.f32 %v10608, %v10656
    %v10658 = vpop.f32.mrf.mxu0
    %v10659 = vadd.f32 %v10610, %v10658
    %10660 = vmatmul.bf16.gmra.mxu0 %v1355
    %v10661 = vpop.f32.mrf.mxu0
    %v10662 = vadd.f32 %v10613, %v10661
    %v10663 = vpop.f32.mrf.mxu0
    %v10664 = vadd.f32 %v10615, %v10663
    %10665 = vmatmul.bf16.gmra.mxu0 %v1359
    %v10666 = vpop.f32.mrf.mxu0
    %v10667 = vadd.f32 %v10618, %v10666
    %v10668 = vpop.f32.mrf.mxu0
    %v10669 = vadd.f32 %v10620, %v10668
    %10670 = vmatmul.bf16.gmra.mxu0 %v1363
    %v10671 = vpop.f32.mrf.mxu0
    %v10672 = vadd.f32 %v10623, %v10671
    %v10673 = vpop.f32.mrf.mxu0
    %v10674 = vadd.f32 %v10625, %v10673
    %10675 = vmatmul.bf16.gmra.mxu0 %v1367
    %v10676 = vpop.f32.mrf.mxu0
    %v10677 = vadd.f32 %v10628, %v10676
    %v10678 = vpop.f32.mrf.mxu0
    %v10679 = vadd.f32 %v10630, %v10678
    %10680 = vmatmul.bf16.gmra.mxu0 %v1371
    %v10681 = vpop.f32.mrf.mxu0
    %v10682 = vadd.f32 %v10633, %v10681
    %v10683 = vpop.f32.mrf.mxu0
    %v10684 = vadd.f32 %v10635, %v10683
    %10685 = vdwg.mxu0
    %10686 = vmatpush.bf16.msra.mxu0 %v5262
    %10687 = vmatpush.bf16.msra.mxu0 %v5254
    %10688 = vmatpush.bf16.msra.mxu0 %v5246
    %10689 = vmatpush.bf16.msra.mxu0 %v5238
    %10690 = vmatpush.bf16.msra.mxu0 %v5230
    %10691 = vmatpush.bf16.msra.mxu0 %v5222
    %10692 = vmatpush.bf16.msra.mxu0 %v5214
    %10693 = vmatpush.bf16.msra.mxu0 %v5206
    %10694 = vmatmul.bf16.gmra.mxu0 %v1344
    %v10695 = vpop.f32.mrf.mxu0
    %v10696 = vadd.f32 %v10647, %v10695
    %v10697 = vpop.f32.mrf.mxu0
    %v10698 = vadd.f32 %v10649, %v10697
    %10699 = vmatmul.bf16.gmra.mxu0 %v1348
    %v10700 = vpop.f32.mrf.mxu0
    %v10701 = vadd.f32 %v10652, %v10700
    %v10702 = vpop.f32.mrf.mxu0
    %v10703 = vadd.f32 %v10654, %v10702
    %10704 = vmatmul.bf16.gmra.mxu0 %v1352
    %v10705 = vpop.f32.mrf.mxu0
    %v10706 = vadd.f32 %v10657, %v10705
    %v10707 = vpop.f32.mrf.mxu0
    %v10708 = vadd.f32 %v10659, %v10707
    %10709 = vmatmul.bf16.gmra.mxu0 %v1356
    %v10710 = vpop.f32.mrf.mxu0
    %v10711 = vadd.f32 %v10662, %v10710
    %v10712 = vpop.f32.mrf.mxu0
    %v10713 = vadd.f32 %v10664, %v10712
    %10714 = vmatmul.bf16.gmra.mxu0 %v1360
    %v10715 = vpop.f32.mrf.mxu0
    %v10716 = vadd.f32 %v10667, %v10715
    %v10717 = vpop.f32.mrf.mxu0
    %v10718 = vadd.f32 %v10669, %v10717
    %10719 = vmatmul.bf16.gmra.mxu0 %v1364
    %v10720 = vpop.f32.mrf.mxu0
    %v10721 = vadd.f32 %v10672, %v10720
    %v10722 = vpop.f32.mrf.mxu0
    %v10723 = vadd.f32 %v10674, %v10722
    %10724 = vmatmul.bf16.gmra.mxu0 %v1368
    %v10725 = vpop.f32.mrf.mxu0
    %v10726 = vadd.f32 %v10677, %v10725
    %v10727 = vpop.f32.mrf.mxu0
    %v10728 = vadd.f32 %v10679, %v10727
    %10729 = vmatmul.bf16.gmra.mxu0 %v1372
    %v10730 = vpop.f32.mrf.mxu0
    %v10731 = vadd.f32 %v10682, %v10730
    %v10732 = vpop.f32.mrf.mxu0
    %v10733 = vadd.f32 %v10684, %v10732
    %10734 = vdwg.mxu0
    %v10735 = vmax.f32 %v6580, 0.0
    %v10736 = vmax.f32 %v7168, 0.0
    %v10737 = vmax.f32 %v7756, 0.0
    %v10738 = vmax.f32 %v8344, 0.0
    %v10739 = vmax.f32 %v8932, 0.0
    %v10740 = vmax.f32 %v9520, 0.0
    %v10741 = vmax.f32 %v10108, 0.0
    %v10742 = vmax.f32 %v10696, 0.0
    %v10743 = vmax.f32 %v6582, 0.0
    %v10744 = vmax.f32 %v7170, 0.0
    %v10745 = vmax.f32 %v7758, 0.0
    %v10746 = vmax.f32 %v8346, 0.0
    %v10747 = vmax.f32 %v8934, 0.0
    %v10748 = vmax.f32 %v9522, 0.0
    %v10749 = vmax.f32 %v10110, 0.0
    %v10750 = vmax.f32 %v10698, 0.0
    %v10751 = vmax.f32 %v6585, 0.0
    %v10752 = vmax.f32 %v7173, 0.0
    %v10753 = vmax.f32 %v7761, 0.0
    %v10754 = vmax.f32 %v8349, 0.0
    %v10755 = vmax.f32 %v8937, 0.0
    %v10756 = vmax.f32 %v9525, 0.0
    %v10757 = vmax.f32 %v10113, 0.0
    %v10758 = vmax.f32 %v10701, 0.0
    %v10759 = vmax.f32 %v6587, 0.0
    %v10760 = vmax.f32 %v7175, 0.0
    %v10761 = vmax.f32 %v7763, 0.0
    %v10762 = vmax.f32 %v8351, 0.0
    %v10763 = vmax.f32 %v8939, 0.0
    %v10764 = vmax.f32 %v9527, 0.0
    %v10765 = vmax.f32 %v10115, 0.0
    %v10766 = vmax.f32 %v10703, 0.0
    %v10767 = vmax.f32 %v6590, 0.0
    %v10768 = vmax.f32 %v7178, 0.0
    %v10769 = vmax.f32 %v7766, 0.0
    %v10770 = vmax.f32 %v8354, 0.0
    %v10771 = vmax.f32 %v8942, 0.0
    %v10772 = vmax.f32 %v9530, 0.0
    %v10773 = vmax.f32 %v10118, 0.0
    %v10774 = vmax.f32 %v10706, 0.0
    %v10775 = vmax.f32 %v6592, 0.0
    %v10776 = vmax.f32 %v7180, 0.0
    %v10777 = vmax.f32 %v7768, 0.0
    %v10778 = vmax.f32 %v8356, 0.0
    %v10779 = vmax.f32 %v8944, 0.0
    %v10780 = vmax.f32 %v9532, 0.0
    %v10781 = vmax.f32 %v10120, 0.0
    %v10782 = vmax.f32 %v10708, 0.0
    %v10783 = vmax.f32 %v6595, 0.0
    %v10784 = vmax.f32 %v7183, 0.0
    %v10785 = vmax.f32 %v7771, 0.0
    %v10786 = vmax.f32 %v8359, 0.0
    %v10787 = vmax.f32 %v8947, 0.0
    %v10788 = vmax.f32 %v9535, 0.0
    %v10789 = vmax.f32 %v10123, 0.0
    %v10790 = vmax.f32 %v10711, 0.0
    %v10791 = vmax.f32 %v6597, 0.0
    %v10792 = vmax.f32 %v7185, 0.0
    %v10793 = vmax.f32 %v7773, 0.0
    %v10794 = vmax.f32 %v8361, 0.0
    %v10795 = vmax.f32 %v8949, 0.0
    %v10796 = vmax.f32 %v9537, 0.0
    %v10797 = vmax.f32 %v10125, 0.0
    %v10798 = vmax.f32 %v10713, 0.0
    %v10799 = vmax.f32 %v6600, 0.0
    %v10800 = vmax.f32 %v7188, 0.0
    %v10801 = vmax.f32 %v7776, 0.0
    %v10802 = vmax.f32 %v8364, 0.0
    %v10803 = vmax.f32 %v8952, 0.0
    %v10804 = vmax.f32 %v9540, 0.0
    %v10805 = vmax.f32 %v10128, 0.0
    %v10806 = vmax.f32 %v10716, 0.0
    %v10807 = vmax.f32 %v6602, 0.0
    %v10808 = vmax.f32 %v7190, 0.0
    %v10809 = vmax.f32 %v7778, 0.0
    %v10810 = vmax.f32 %v8366, 0.0
    %v10811 = vmax.f32 %v8954, 0.0
    %v10812 = vmax.f32 %v9542, 0.0
    %v10813 = vmax.f32 %v10130, 0.0
    %v10814 = vmax.f32 %v10718, 0.0
    %v10815 = vmax.f32 %v6605, 0.0
    %v10816 = vmax.f32 %v7193, 0.0
    %v10817 = vmax.f32 %v7781, 0.0
    %v10818 = vmax.f32 %v8369, 0.0
    %v10819 = vmax.f32 %v8957, 0.0
    %v10820 = vmax.f32 %v9545, 0.0
    %v10821 = vmax.f32 %v10133, 0.0
    %v10822 = vmax.f32 %v10721, 0.0
    %v10823 = vmax.f32 %v6607, 0.0
    %v10824 = vmax.f32 %v7195, 0.0
    %v10825 = vmax.f32 %v7783, 0.0
    %v10826 = vmax.f32 %v8371, 0.0
    %v10827 = vmax.f32 %v8959, 0.0
    %v10828 = vmax.f32 %v9547, 0.0
    %v10829 = vmax.f32 %v10135, 0.0
    %v10830 = vmax.f32 %v10723, 0.0
    %v10831 = vmax.f32 %v6610, 0.0
    %v10832 = vmax.f32 %v7198, 0.0
    %v10833 = vmax.f32 %v7786, 0.0
    %v10834 = vmax.f32 %v8374, 0.0
    %v10835 = vmax.f32 %v8962, 0.0
    %v10836 = vmax.f32 %v9550, 0.0
    %v10837 = vmax.f32 %v10138, 0.0
    %v10838 = vmax.f32 %v10726, 0.0
    %v10839 = vmax.f32 %v6612, 0.0
    %v10840 = vmax.f32 %v7200, 0.0
    %v10841 = vmax.f32 %v7788, 0.0
    %v10842 = vmax.f32 %v8376, 0.0
    %v10843 = vmax.f32 %v8964, 0.0
    %v10844 = vmax.f32 %v9552, 0.0
    %v10845 = vmax.f32 %v10140, 0.0
    %v10846 = vmax.f32 %v10728, 0.0
    %v10847 = vmax.f32 %v6615, 0.0
    %v10848 = vmax.f32 %v7203, 0.0
    %v10849 = vmax.f32 %v7791, 0.0
    %v10850 = vmax.f32 %v8379, 0.0
    %v10851 = vmax.f32 %v8967, 0.0
    %v10852 = vmax.f32 %v9555, 0.0
    %v10853 = vmax.f32 %v10143, 0.0
    %v10854 = vmax.f32 %v10731, 0.0
    %v10855 = vmax.f32 %v6617, 0.0
    %v10856 = vmax.f32 %v7205, 0.0
    %v10857 = vmax.f32 %v7793, 0.0
    %v10858 = vmax.f32 %v8381, 0.0
    %v10859 = vmax.f32 %v8969, 0.0
    %v10860 = vmax.f32 %v9557, 0.0
    %v10861 = vmax.f32 %v10145, 0.0
    %v10862 = vmax.f32 %v10733, 0.0
    %v10863 = vld [vmem:[#allocation12] sm:$0xff]
    %v10865 = vperm.slane %v10863, 0
    %v10866 = vperm.slane %v10863, 1
    %v10867 = vperm.slane %v10863, 2
    %v10868 = vperm.slane %v10863, 3
    %v10869 = vperm.slane %v10863, 4
    %v10870 = vperm.slane %v10863, 5
    %v10871 = vperm.slane %v10863, 6
    %v10872 = vperm.slane %v10863, 7
    %v10881 = vmul.f32 %v10735, %v10865
    %v10882 = vmul.f32 %v10736, %v10866
    %v10883 = vmul.f32 %v10737, %v10867
    %v10884 = vmul.f32 %v10738, %v10868
    %v10885 = vmul.f32 %v10739, %v10869
    %v10886 = vmul.f32 %v10740, %v10870
    %v10887 = vmul.f32 %v10741, %v10871
    %v10888 = vmul.f32 %v10742, %v10872
    %v10889 = vmul.f32 %v10743, %v10865
    %v10890 = vmul.f32 %v10744, %v10866
    %v10891 = vmul.f32 %v10745, %v10867
    %v10892 = vmul.f32 %v10746, %v10868
    %v10893 = vmul.f32 %v10747, %v10869
    %v10894 = vmul.f32 %v10748, %v10870
    %v10895 = vmul.f32 %v10749, %v10871
    %v10896 = vmul.f32 %v10750, %v10872
    %v10897 = vmul.f32 %v10751, %v10865
    %v10898 = vmul.f32 %v10752, %v10866
    %v10899 = vmul.f32 %v10753, %v10867
    %v10900 = vmul.f32 %v10754, %v10868
    %v10901 = vmul.f32 %v10755, %v10869
    %v10902 = vmul.f32 %v10756, %v10870
    %v10903 = vmul.f32 %v10757, %v10871
    %v10904 = vmul.f32 %v10758, %v10872
    %v10905 = vmul.f32 %v10759, %v10865
    %v10906 = vmul.f32 %v10760, %v10866
    %v10907 = vmul.f32 %v10761, %v10867
    %v10908 = vmul.f32 %v10762, %v10868
    %v10909 = vmul.f32 %v10763, %v10869
    %v10910 = vmul.f32 %v10764, %v10870
    %v10911 = vmul.f32 %v10765, %v10871
    %v10912 = vmul.f32 %v10766, %v10872
    %v10913 = vmul.f32 %v10767, %v10865
    %v10914 = vmul.f32 %v10768, %v10866
    %v10915 = vmul.f32 %v10769, %v10867
    %v10916 = vmul.f32 %v10770, %v10868
    %v10917 = vmul.f32 %v10771, %v10869
    %v10918 = vmul.f32 %v10772, %v10870
    %v10919 = vmul.f32 %v10773, %v10871
    %v10920 = vmul.f32 %v10774, %v10872
    %v10921 = vmul.f32 %v10775, %v10865
    %v10922 = vmul.f32 %v10776, %v10866
    %v10923 = vmul.f32 %v10777, %v10867
    %v10924 = vmul.f32 %v10778, %v10868
    %v10925 = vmul.f32 %v10779, %v10869
    %v10926 = vmul.f32 %v10780, %v10870
    %v10927 = vmul.f32 %v10781, %v10871
    %v10928 = vmul.f32 %v10782, %v10872
    %v10929 = vmul.f32 %v10783, %v10865
    %v10930 = vmul.f32 %v10784, %v10866
    %v10931 = vmul.f32 %v10785, %v10867
    %v10932 = vmul.f32 %v10786, %v10868
    %v10933 = vmul.f32 %v10787, %v10869
    %v10934 = vmul.f32 %v10788, %v10870
    %v10935 = vmul.f32 %v10789, %v10871
    %v10936 = vmul.f32 %v10790, %v10872
    %v10937 = vmul.f32 %v10791, %v10865
    %v10938 = vmul.f32 %v10792, %v10866
    %v10939 = vmul.f32 %v10793, %v10867
    %v10940 = vmul.f32 %v10794, %v10868
    %v10941 = vmul.f32 %v10795, %v10869
    %v10942 = vmul.f32 %v10796, %v10870
    %v10943 = vmul.f32 %v10797, %v10871
    %v10944 = vmul.f32 %v10798, %v10872
    %v10945 = vmul.f32 %v10799, %v10865
    %v10946 = vmul.f32 %v10800, %v10866
    %v10947 = vmul.f32 %v10801, %v10867
    %v10948 = vmul.f32 %v10802, %v10868
    %v10949 = vmul.f32 %v10803, %v10869
    %v10950 = vmul.f32 %v10804, %v10870
    %v10951 = vmul.f32 %v10805, %v10871
    %v10952 = vmul.f32 %v10806, %v10872
    %v10953 = vmul.f32 %v10807, %v10865
    %v10954 = vmul.f32 %v10808, %v10866
    %v10955 = vmul.f32 %v10809, %v10867
    %v10956 = vmul.f32 %v10810, %v10868
    %v10957 = vmul.f32 %v10811, %v10869
    %v10958 = vmul.f32 %v10812, %v10870
    %v10959 = vmul.f32 %v10813, %v10871
    %v10960 = vmul.f32 %v10814, %v10872
    %v10961 = vmul.f32 %v10815, %v10865
    %v10962 = vmul.f32 %v10816, %v10866
    %v10963 = vmul.f32 %v10817, %v10867
    %v10964 = vmul.f32 %v10818, %v10868
    %v10965 = vmul.f32 %v10819, %v10869
    %v10966 = vmul.f32 %v10820, %v10870
    %v10967 = vmul.f32 %v10821, %v10871
    %v10968 = vmul.f32 %v10822, %v10872
    %v10969 = vmul.f32 %v10823, %v10865
    %v10970 = vmul.f32 %v10824, %v10866
    %v10971 = vmul.f32 %v10825, %v10867
    %v10972 = vmul.f32 %v10826, %v10868
    %v10973 = vmul.f32 %v10827, %v10869
    %v10974 = vmul.f32 %v10828, %v10870
    %v10975 = vmul.f32 %v10829, %v10871
    %v10976 = vmul.f32 %v10830, %v10872
    %v10977 = vmul.f32 %v10831, %v10865
    %v10978 = vmul.f32 %v10832, %v10866
    %v10979 = vmul.f32 %v10833, %v10867
    %v10980 = vmul.f32 %v10834, %v10868
    %v10981 = vmul.f32 %v10835, %v10869
    %v10982 = vmul.f32 %v10836, %v10870
    %v10983 = vmul.f32 %v10837, %v10871
    %v10984 = vmul.f32 %v10838, %v10872
    %v10985 = vmul.f32 %v10839, %v10865
    %v10986 = vmul.f32 %v10840, %v10866
    %v10987 = vmul.f32 %v10841, %v10867
    %v10988 = vmul.f32 %v10842, %v10868
    %v10989 = vmul.f32 %v10843, %v10869
    %v10990 = vmul.f32 %v10844, %v10870
    %v10991 = vmul.f32 %v10845, %v10871
    %v10992 = vmul.f32 %v10846, %v10872
    %v10993 = vmul.f32 %v10847, %v10865
    %v10994 = vmul.f32 %v10848, %v10866
    %v10995 = vmul.f32 %v10849, %v10867
    %v10996 = vmul.f32 %v10850, %v10868
    %v10997 = vmul.f32 %v10851, %v10869
    %v10998 = vmul.f32 %v10852, %v10870
    %v10999 = vmul.f32 %v10853, %v10871
    %v11000 = vmul.f32 %v10854, %v10872
    %v11001 = vmul.f32 %v10855, %v10865
    %v11002 = vmul.f32 %v10856, %v10866
    %v11003 = vmul.f32 %v10857, %v10867
    %v11004 = vmul.f32 %v10858, %v10868
    %v11005 = vmul.f32 %v10859, %v10869
    %v11006 = vmul.f32 %v10860, %v10870
    %v11007 = vmul.f32 %v10861, %v10871
    %v11008 = vmul.f32 %v10862, %v10872
    %v11009 = vadd.f32 %v10881, %v10882
    %v11010 = vadd.f32 %v11009, %v10883
    %v11011 = vadd.f32 %v11010, %v10884
    %v11012 = vadd.f32 %v11011, %v10885
    %v11013 = vadd.f32 %v11012, %v10886
    %v11014 = vadd.f32 %v11013, %v10887
    %v11015 = vadd.f32 %v11014, %v10888
    %11016 = vadd.xlane.f32.xlu0 %v11015
    %v11017 = vpop.xlane.xlu0 %11016
    %v11018 = vadd.f32 %v10889, %v10890
    %v11019 = vadd.f32 %v11018, %v10891
    %v11020 = vadd.f32 %v11019, %v10892
    %v11021 = vadd.f32 %v11020, %v10893
    %v11022 = vadd.f32 %v11021, %v10894
    %v11023 = vadd.f32 %v11022, %v10895
    %v11024 = vadd.f32 %v11023, %v10896
    %11025 = vadd.xlane.f32.xlu0 %v11024
    %v11026 = vpop.xlane.xlu0 %11025
    %v11027 = vadd.f32 %v10897, %v10898
    %v11028 = vadd.f32 %v11027, %v10899
    %v11029 = vadd.f32 %v11028, %v10900
    %v11030 = vadd.f32 %v11029, %v10901
    %v11031 = vadd.f32 %v11030, %v10902
    %v11032 = vadd.f32 %v11031, %v10903
    %v11033 = vadd.f32 %v11032, %v10904
    %11034 = vadd.xlane.f32.xlu0 %v11033
    %v11035 = vpop.xlane.xlu0 %11034
    %v11036 = vadd.f32 %v10905, %v10906
    %v11037 = vadd.f32 %v11036, %v10907
    %v11038 = vadd.f32 %v11037, %v10908
    %v11039 = vadd.f32 %v11038, %v10909
    %v11040 = vadd.f32 %v11039, %v10910
    %v11041 = vadd.f32 %v11040, %v10911
    %v11042 = vadd.f32 %v11041, %v10912
    %11043 = vadd.xlane.f32.xlu0 %v11042
    %v11044 = vpop.xlane.xlu0 %11043
    %v11045 = vadd.f32 %v10913, %v10914
    %v11046 = vadd.f32 %v11045, %v10915
    %v11047 = vadd.f32 %v11046, %v10916
    %v11048 = vadd.f32 %v11047, %v10917
    %v11049 = vadd.f32 %v11048, %v10918
    %v11050 = vadd.f32 %v11049, %v10919
    %v11051 = vadd.f32 %v11050, %v10920
    %11052 = vadd.xlane.f32.xlu0 %v11051
    %v11053 = vpop.xlane.xlu0 %11052
    %v11054 = vadd.f32 %v10921, %v10922
    %v11055 = vadd.f32 %v11054, %v10923
    %v11056 = vadd.f32 %v11055, %v10924
    %v11057 = vadd.f32 %v11056, %v10925
    %v11058 = vadd.f32 %v11057, %v10926
    %v11059 = vadd.f32 %v11058, %v10927
    %v11060 = vadd.f32 %v11059, %v10928
    %11061 = vadd.xlane.f32.xlu0 %v11060
    %v11062 = vpop.xlane.xlu0 %11061
    %v11063 = vadd.f32 %v10929, %v10930
    %v11064 = vadd.f32 %v11063, %v10931
    %v11065 = vadd.f32 %v11064, %v10932
    %v11066 = vadd.f32 %v11065, %v10933
    %v11067 = vadd.f32 %v11066, %v10934
    %v11068 = vadd.f32 %v11067, %v10935
    %v11069 = vadd.f32 %v11068, %v10936
    %11070 = vadd.xlane.f32.xlu0 %v11069
    %v11071 = vpop.xlane.xlu0 %11070
    %v11072 = vadd.f32 %v10937, %v10938
    %v11073 = vadd.f32 %v11072, %v10939
    %v11074 = vadd.f32 %v11073, %v10940
    %v11075 = vadd.f32 %v11074, %v10941
    %v11076 = vadd.f32 %v11075, %v10942
    %v11077 = vadd.f32 %v11076, %v10943
    %v11078 = vadd.f32 %v11077, %v10944
    %11079 = vadd.xlane.f32.xlu0 %v11078
    %v11080 = vpop.xlane.xlu0 %11079
    %v11081 = vadd.f32 %v10945, %v10946
    %v11082 = vadd.f32 %v11081, %v10947
    %v11083 = vadd.f32 %v11082, %v10948
    %v11084 = vadd.f32 %v11083, %v10949
    %v11085 = vadd.f32 %v11084, %v10950
    %v11086 = vadd.f32 %v11085, %v10951
    %v11087 = vadd.f32 %v11086, %v10952
    %11088 = vadd.xlane.f32.xlu0 %v11087
    %v11089 = vpop.xlane.xlu0 %11088
    %v11090 = vadd.f32 %v10953, %v10954
    %v11091 = vadd.f32 %v11090, %v10955
    %v11092 = vadd.f32 %v11091, %v10956
    %v11093 = vadd.f32 %v11092, %v10957
    %v11094 = vadd.f32 %v11093, %v10958
    %v11095 = vadd.f32 %v11094, %v10959
    %v11096 = vadd.f32 %v11095, %v10960
    %11097 = vadd.xlane.f32.xlu0 %v11096
    %v11098 = vpop.xlane.xlu0 %11097
    %v11099 = vadd.f32 %v10961, %v10962
    %v11100 = vadd.f32 %v11099, %v10963
    %v11101 = vadd.f32 %v11100, %v10964
    %v11102 = vadd.f32 %v11101, %v10965
    %v11103 = vadd.f32 %v11102, %v10966
    %v11104 = vadd.f32 %v11103, %v10967
    %v11105 = vadd.f32 %v11104, %v10968
    %11106 = vadd.xlane.f32.xlu0 %v11105
    %v11107 = vpop.xlane.xlu0 %11106
    %v11108 = vadd.f32 %v10969, %v10970
    %v11109 = vadd.f32 %v11108, %v10971
    %v11110 = vadd.f32 %v11109, %v10972
    %v11111 = vadd.f32 %v11110, %v10973
    %v11112 = vadd.f32 %v11111, %v10974
    %v11113 = vadd.f32 %v11112, %v10975
    %v11114 = vadd.f32 %v11113, %v10976
    %11115 = vadd.xlane.f32.xlu0 %v11114
    %v11116 = vpop.xlane.xlu0 %11115
    %v11117 = vadd.f32 %v10977, %v10978
    %v11118 = vadd.f32 %v11117, %v10979
    %v11119 = vadd.f32 %v11118, %v10980
    %v11120 = vadd.f32 %v11119, %v10981
    %v11121 = vadd.f32 %v11120, %v10982
    %v11122 = vadd.f32 %v11121, %v10983
    %v11123 = vadd.f32 %v11122, %v10984
    %11124 = vadd.xlane.f32.xlu0 %v11123
    %v11125 = vpop.xlane.xlu0 %11124
    %v11126 = vadd.f32 %v10985, %v10986
    %v11127 = vadd.f32 %v11126, %v10987
    %v11128 = vadd.f32 %v11127, %v10988
    %v11129 = vadd.f32 %v11128, %v10989
    %v11130 = vadd.f32 %v11129, %v10990
    %v11131 = vadd.f32 %v11130, %v10991
    %v11132 = vadd.f32 %v11131, %v10992
    %11133 = vadd.xlane.f32.xlu0 %v11132
    %v11134 = vpop.xlane.xlu0 %11133
    %v11135 = vadd.f32 %v10993, %v10994
    %v11136 = vadd.f32 %v11135, %v10995
    %v11137 = vadd.f32 %v11136, %v10996
    %v11138 = vadd.f32 %v11137, %v10997
    %v11139 = vadd.f32 %v11138, %v10998
    %v11140 = vadd.f32 %v11139, %v10999
    %v11141 = vadd.f32 %v11140, %v11000
    %11142 = vadd.xlane.f32.xlu0 %v11141
    %v11143 = vpop.xlane.xlu0 %11142
    %v11144 = vadd.f32 %v11001, %v11002
    %v11145 = vadd.f32 %v11144, %v11003
    %v11146 = vadd.f32 %v11145, %v11004
    %v11147 = vadd.f32 %v11146, %v11005
    %v11148 = vadd.f32 %v11147, %v11006
    %v11149 = vadd.f32 %v11148, %v11007
    %v11150 = vadd.f32 %v11149, %v11008
    %11151 = vadd.xlane.f32.xlu0 %v11150
    %v11152 = vpop.xlane.xlu0 %11151
    %v11169 = vlaneseq
    %v11170 = vand.u32 %v11169, 127
    %v11171 = vperm.slane %v11017, %v11170
    %v11172 = vadd.s32 %v11170, 4294967288
    %v11173 = vperm.slane %v11026, %v11172
    %vm11174 = vcmask 130112
    %v11175 = vsel %vm11174, %v11173, %v11171
    %v11176 = vperm.slane %v11035, %v11170
    %v11177 = vperm.slane %v11044, %v11172
    %v11178 = vsel %vm11174, %v11177, %v11176
    %v11179 = vperm.slane %v11053, %v11170
    %v11180 = vperm.slane %v11062, %v11172
    %v11181 = vsel %vm11174, %v11180, %v11179
    %v11182 = vperm.slane %v11071, %v11170
    %v11183 = vperm.slane %v11080, %v11172
    %v11184 = vsel %vm11174, %v11183, %v11182
    %v11185 = vperm.slane %v11089, %v11170
    %v11186 = vperm.slane %v11098, %v11172
    %v11187 = vsel %vm11174, %v11186, %v11185
    %v11188 = vperm.slane %v11107, %v11170
    %v11189 = vperm.slane %v11116, %v11172
    %v11190 = vsel %vm11174, %v11189, %v11188
    %v11191 = vperm.slane %v11125, %v11170
    %v11192 = vperm.slane %v11134, %v11172
    %v11193 = vsel %vm11174, %v11192, %v11191
    %v11194 = vperm.slane %v11143, %v11170
    %v11195 = vperm.slane %v11152, %v11172
    %v11196 = vsel %vm11174, %v11195, %v11194
    %vm11197 = vcmask 1041409
    %v11198 = vsel %vm11197, %v11178, %v11175
    %vm11199 = vcmask 1042434
    %v11200 = vsel %vm11199, %v11181, %v11198
    %vm11201 = vcmask 1043459
    %v11202 = vsel %vm11201, %v11184, %v11200
    %vm11203 = vcmask 1044484
    %v11204 = vsel %vm11203, %v11187, %v11202
    %vm11205 = vcmask 1045509
    %v11206 = vsel %vm11205, %v11190, %v11204
    %vm11207 = vcmask 1046534
    %v11208 = vsel %vm11207, %v11193, %v11206
    %vm11209 = vcmask 1047559
    %v11210 = vsel %vm11209, %v11196, %v11208
    %vm11212 = vcmask 130048
    %v11213 = vsel %vm11212, %v11210, 0.0
    %11214 = vadd.xlane.f32.xlu0 %v11213
    %v11215 = vpop.xlane.xlu0 %11214
    %v11216 = vld [vmem:[#allocation2] sm:$0x1]
    %11218 = vset.pattern.permute.xlu0 0
    %11219 = vperm.xlu0 %11218, %v11216
    %v11220 = vpop.permute.xlu0 %11219
    %v11222 = vperm.slane %v11220, 0
    %v11223 = vadd.f32 %v11215, %v11222
    %v11225 = vperm.slane %v11223, %v11170
    %vm11227 = vcmask 57344
    %11228 = vst.msk [vmem:[#allocation14] sm:$0x1] %vm11227, %v11225
    // Predicated region
    $region54: #{tpu_custom_call.1} parent=1 // pred_check
      _
    $region55: #{tpu_custom_call.1} parent=1 // pred_check_branch
      %11230 = sbr.rel (0) target = $region57
    $region56: #{tpu_custom_call.1} parent=1 // pred_region
      %11232 = vsyncadd [#allocation5], 0
      %s11234 = sshll.u32 [#allocation14], 4
      %s11235 = int_to_ptr.vmem [resolvable:$true] %s11234
      %s11236 = sshll.u32 %s7, 4
      %s11237 = int_to_ptr.hbm [resolvable:$true] %s11236
      %11239 = dma.vmem_to_hbm [thread:$0]  %s11235, 16, %s11237, [#allocation5]
    $region57: #{tpu_custom_call.1} parent=1 // pred_fallthru
      _
    // Predicated region
    $region58: #{tpu_custom_call.1} parent=1 // pred_check
      _
    $region59: #{tpu_custom_call.1} parent=1 // pred_check_branch
      %11241 = sbr.rel (0) target = $region61
    $region60: #{tpu_custom_call.1} parent=1 // pred_region
      %11243 = dma.done [#allocation5], 16
    $region61: #{tpu_custom_call.1} parent=1 // pred_fallthru
      _
    %11244 = vsyncpa [#allocation4], 1
    %11245 = vsyncpa [#allocation7], 1
    %11246 = vsyncpa [#allocation10], 1
    %11247 = vsyncpa [#allocation13], 1
    %11248 = vsyncpa [#allocation5], 1

</llo_original>
